<compile_context>
chip_gen: v7x
topology: tpu7x:2x2x1
jax: 0.10.0
libtpu: 0.0.40
codegen_flags: <defaults>
</compile_context>

<pallas_src>
import functools

import jax
import jax.numpy as jnp
import numpy as np
from jax.experimental import pallas as pl
from jax.experimental.pallas import tpu as pltpu


# ----------------------------------------------------------------------------
# kernel helpers
# ----------------------------------------------------------------------------
def _lrelu(v):
    # F.leaky_relu / nn.LeakyReLU default negative_slope = 0.01
    return jnp.maximum(v, 0.01 * v)


def _dot(h, w_ref):
    """bf16 x bf16 matmul with f32 accumulation."""
    return jnp.dot(h.astype(jnp.bfloat16), w_ref[...],
                   preferred_element_type=jnp.float32)


def _conv(h, w_ref, b_ref):
    """1x1 Conv1d (+bias) + leaky relu on an (N, Cin) tile."""
    return _lrelu(_dot(h, w_ref) + b_ref[...])


# ----------------------------------------------------------------------------
# fused per-batch-element kernel: main trunk + borderConv + last_emb head
# ----------------------------------------------------------------------------
def fused_kernel(*refs):
    (pm_ref, pb_ref, sp_ref,
     # main trunk (block-diagonal fused layers 1-3, fused conv4|conv7)
     w1, b1, w2, b2, w3, b3, w47, b47,
     w5, b5, w6, b6, w8, b8, w9, b9,
     wga, wgb, bg,
     # borderConv (block-diagonal fused layers 1-3)
     bw1, bb1, bw2, bb2, bw3, bb3, bw4, bb4, bw5, bb5, bw6, bb6,
     # last_emb head (Linear1 split into the 5 feature chunks)
     h1a, h1b, h1c, h1d, h1e, hb1, hw2, hb2,
     out_ref) = refs

    # ---------------- main trunk ----------------
    h = pm_ref[0]                          # (N, 2+ic)  layout [x(2) | emb(ic)]
    h = _conv(h, w1, b1)                   # (N, 128)  conv1|e_conv1 (+bn folded)
    h = _conv(h, w2, b2)                   # (N, 256)  conv2|e_conv2 (+bn)
    pf2 = _conv(h, w3, b3)                 # (N, 512)  == torch.cat((x, emb), 1)

    h47 = _conv(pf2, w47, b47)             # (N, 512): [:,:256]=conv4, [:,256:]=conv7
    x1 = _conv(h47[:, :256], w5, b5)       # (N, 512)  conv5 (+bn)
    x1 = _conv(x1, w6, b6)                 # (N, 64)   conv6
    x2 = _conv(h47[:, 256:], w8, b8)       # (N, 512)  conv8 (+bn)
    x2 = _conv(x2, w9, b9)                 # (N, 64)   conv9

    ap_x1 = jnp.mean(x1, axis=0, keepdims=True)          # (1, 64)  AvgPool1d
    mp_x2 = jnp.max(x2, axis=0, keepdims=True)            # (1, 64)  MaxPool1d

    # conv_weight(cat([x1, x2])) without the concat: split the weight.
    wf = _dot(x1, wga) + _dot(x2, wgb) + bg[...]           # (N, 1)
    wf = wf - jnp.max(wf, axis=0, keepdims=True)
    ew = jnp.exp(wf)
    weight = ew * pl.reciprocal(jnp.sum(ew, axis=0, keepdims=True), approx=True)
    weight_x3 = jnp.sum(weight * pf2, axis=0, keepdims=True)   # (1, 512)

    # ---------------- borderConv (PointFeatFuse3P) ----------------
    bh = pb_ref[0]                         # (Nb, 8)  layout [x(2) | emb(3) | t(3)]
    bh = _conv(bh, bw1, bb1)               # (Nb, 192)  conv1|e_conv1|t_conv1
    bh = _conv(bh, bw2, bb2)               # (Nb, 384)
    bh = _conv(bh, bw3, bb3)               # (Nb, 512)  == torch.cat((x, emb, t), 1)
    bh = _conv(bh, bw4, bb4)               # (Nb, 256)
    bh = _conv(bh, bw5, bb5)               # (Nb, 512)
    bh = _conv(bh, bw6, bb6)               # (Nb, 256)
    border_feat = jnp.max(bh, axis=0, keepdims=True)        # (1, 256) MaxPool1d

    # ---------------- last_emb head ----------------
    sp = sp_ref[0]                         # (1, 64)
    hfeat = (_dot(ap_x1, h1a) + _dot(mp_x2, h1b) + _dot(weight_x3, h1c)
             + _dot(border_feat, h1d) + _dot(sp, h1e) + hb1[...])   # (1, 256)
    hfeat = _lrelu(hfeat)
    out_ref[0] = _dot(hfeat, hw2) + hb2[...]                 # (1, out_dim)


# ----------------------------------------------------------------------------
# pallas_call wrapper
# ----------------------------------------------------------------------------
def posenet_forward(inp, borders, spatial_embs, params):
    """inp: (B, ic+2, N) NCW; borders: (B, 8, Nb) NCW; spatial_embs: (B, 64)."""
    B = inp.shape[0]
    out_dim = params[-1].shape[-1]

    # pack + NCW -> (B, N, C) layout glue (tiny XLA ops outside the kernel)
    packed_main = jnp.transpose(
        jnp.concatenate([inp[:, -2:, :], inp[:, :-2, :]], axis=1), (0, 2, 1))
    packed_border = jnp.transpose(
        jnp.concatenate([borders[:, 3:5, :], borders[:, :3, :], borders[:, 5:, :]],
                        axis=1), (0, 2, 1))
    sp = spatial_embs[:, None, :]                              # (B, 1, 64)

    point_inputs = [packed_main, packed_border, sp]
    in_specs = [pl.BlockSpec((1,) + a.shape[1:], lambda b: (b, 0, 0))
                for a in point_inputs]
    # weights/biases: constant index map (no re-fetch across grid steps)
    in_specs += [pl.BlockSpec(w.shape, lambda b: (0, 0)) for w in params]

    out = pl.pallas_call(
        fused_kernel,
        out_shape=jax.ShapeDtypeStruct((B, 1, out_dim), jnp.float32),
        grid=(B,),
        in_specs=in_specs,
        out_specs=pl.BlockSpec((1, 1, out_dim), lambda b: (b, 0, 0)),
        compiler_params=pltpu.CompilerParams(
            dimension_semantics=("parallel",)),
    )(*point_inputs, *params)
    return out[:, 0, :]


# ----------------------------------------------------------------------------
# deterministic parameter construction (BN folded, block-diag fused, bf16)
# ----------------------------------------------------------------------------
def _conv_params(key, cin, cout):
    k1, k2 = jax.random.split(key)
    bound = 1.0 / np.sqrt(cin)
    w = jax.random.uniform(k1, (cin, cout), jnp.float32, -bound, bound)
    b = jax.random.uniform(k2, (1, cout), jnp.float32, -bound, bound)
    return w, b


def _bn_params(key, c):
    k1, k2, k3, k4 = jax.random.split(key, 4)
    gamma = jax.random.uniform(k1, (c,), jnp.float32, 0.5, 1.5)
    beta = jax.random.uniform(k2, (c,), jnp.float32, -0.1, 0.1)
    mean = jax.random.uniform(k3, (c,), jnp.float32, -0.1, 0.1)
    var = jax.random.uniform(k4, (c,), jnp.float32, 0.5, 1.5)
    return gamma, beta, mean, var


def _fold_bn(conv, bn, eps=1e-5):
    w, b = conv
    gamma, beta, mean, var = bn
    scale = gamma / jnp.sqrt(var + eps)
    return w * scale[None, :], (b - mean[None, :]) * scale[None, :] + beta[None, :]


def _blockdiag(blocks, cin_total, cout_total):
    """blocks: list of (row_off, col_off, weight). Zero elsewhere."""
    W = jnp.zeros((cin_total, cout_total), jnp.float32)
    for r0, c0, w in blocks:
        W = W.at[r0:r0 + w.shape[0], c0:c0 + w.shape[1]].set(w)
    return W


def build_params(key, ic=7, border_ic=3, bc=256, output_dim=64):
    keys = iter(jax.random.split(key, 80))
    nk = lambda: next(keys)
    wb = lambda w: w.astype(jnp.bfloat16)      # weights -> bf16
    cat1 = lambda a, b: jnp.concatenate([a, b], axis=1)

    # ---- main trunk convs (BN folded where the module has one) ----
    c1 = _fold_bn(_conv_params(nk(), 2, 64), _bn_params(nk(), 64))
    c2 = _fold_bn(_conv_params(nk(), 64, 128), _bn_params(nk(), 128))
    c3 = _fold_bn(_conv_params(nk(), 128, 256), _bn_params(nk(), 256))
    e1 = _fold_bn(_conv_params(nk(), ic, 64), _bn_params(nk(), 64))
    e2 = _fold_bn(_conv_params(nk(), 64, 128), _bn_params(nk(), 128))
    e3 = _fold_bn(_conv_params(nk(), 128, 256), _bn_params(nk(), 256))
    c4 = _fold_bn(_conv_params(nk(), 512, 256), _bn_params(nk(), 256))
    c5 = _fold_bn(_conv_params(nk(), 256, 512), _bn_params(nk(), 512))
    c6 = _conv_params(nk(), 512, 64)
    c7 = _fold_bn(_conv_params(nk(), 512, 256), _bn_params(nk(), 256))
    c8 = _fold_bn(_conv_params(nk(), 256, 512), _bn_params(nk(), 512))
    c9 = _conv_params(nk(), 512, 64)
    cw = _conv_params(nk(), 128, 1)

    # block-diagonal fusion of the x / emb towers, channel order [x | emb]
    W1 = _blockdiag([(0, 0, c1[0]), (2, 64, e1[0])], 2 + ic, 128)
    B1 = cat1(c1[1], e1[1])
    W2 = _blockdiag([(0, 0, c2[0]), (64, 128, e2[0])], 128, 256)
    B2 = cat1(c2[1], e2[1])
    W3 = _blockdiag([(0, 0, c3[0]), (128, 256, e3[0])], 256, 512)
    B3 = cat1(c3[1], e3[1])
    # conv4 | conv7 fused (both read pf2)
    W47 = cat1(c4[0], c7[0])
    B47 = cat1(c4[1], c7[1])

    # ---- borderConv (PointFeatFuse3P, no BN), channel order [x | emb | t] ----
    p1 = _conv_params(nk(), 2, 64)
    p2 = _conv_params(nk(), 64, 128)
    p3 = _conv_params(nk(), 128, 128)
    pe1 = _conv_params(nk(), border_ic, 64)
    pe2 = _conv_params(nk(), 64, 128)
    pe3 = _conv_params(nk(), 128, 256)
    pt1 = _conv_params(nk(), 3, 64)
    pt2 = _conv_params(nk(), 64, 128)
    pt3 = _conv_params(nk(), 128, 128)
    p4 = _conv_params(nk(), 512, 256)
    p5 = _conv_params(nk(), 256, 512)
    p6 = _conv_params(nk(), 512, bc)

    BW1 = _blockdiag([(0, 0, p1[0]), (2, 64, pe1[0]), (2 + border_ic, 128, pt1[0])],
                     2 + border_ic + 3, 192)
    BB1 = jnp.concatenate([p1[1], pe1[1], pt1[1]], axis=1)
    BW2 = _blockdiag([(0, 0, p2[0]), (64, 128, pe2[0]), (128, 256, pt2[0])], 192, 384)
    BB2 = jnp.concatenate([p2[1], pe2[1], pt2[1]], axis=1)
    BW3 = _blockdiag([(0, 0, p3[0]), (128, 128, pe3[0]), (256, 384, pt3[0])], 384, 512)
    BB3 = jnp.concatenate([p3[1], pe3[1], pt3[1]], axis=1)

    # ---- last_emb: Linear(704+bc, 256) split into the 5 feature chunks ----
    wl1, bl1 = _conv_params(nk(), 704 + bc, 256)
    wl2, bl2 = _conv_params(nk(), 256, output_dim)

    params = [
        # main trunk
        wb(W1), B1, wb(W2), B2, wb(W3), B3, wb(W47), B47,
        wb(c5[0]), c5[1], wb(c6[0]), c6[1], wb(c8[0]), c8[1], wb(c9[0]), c9[1],
        wb(cw[0][:64]), wb(cw[0][64:]), cw[1],
        # borderConv
        wb(BW1), BB1, wb(BW2), BB2, wb(BW3), BB3,
        wb(p4[0]), p4[1], wb(p5[0]), p5[1], wb(p6[0]), p6[1],
        # head: chunks for [ap_x1 | mp_x2 | weight_x3 | border_feat | spatial]
        wb(wl1[0:64]), wb(wl1[64:128]), wb(wl1[128:640]),
        wb(wl1[640:640 + bc]), wb(wl1[640 + bc:]),
        bl1, wb(wl2), bl2,
    ]
    return params


if __name__ == "__main__":
    B = 2
    ic = 7
    border_ic = 3
    num_points = 64
    border_points = 64
    output_dim = 64

    key = jax.random.PRNGKey(0)
    k_inp, k_bor, k_spa, k_par = jax.random.split(key, 4)

    inp = jax.random.normal(k_inp, (B, ic + 2, num_points), jnp.float32)
    borders = jax.random.normal(k_bor, (B, border_ic + 5, border_points), jnp.float32)
    spatial_embs = jax.random.normal(k_spa, (B, 64), jnp.float32)

    params = build_params(k_par, ic=ic, border_ic=border_ic, bc=256,
                          output_dim=output_dim)

    out = jax.jit(functools.partial(posenet_forward, params=params))(
        inp, borders, spatial_embs)
    out = jax.block_until_ready(out)

    assert out.shape == (B, output_dim), out.shape
    assert bool(jnp.all(jnp.isfinite(out)))
    print("KERNEL_OK")
</pallas_src>

<mosaic_0001>
module attributes {stable_mosaic.version = 11 : i64} {
  func.func @fused_kernel(%arg0: i32, %arg1: memref<1x64x9xf32, #tpu.memory_space<vmem>>, %arg2: memref<1x64x8xf32, #tpu.memory_space<vmem>>, %arg3: memref<1x1x64xf32, #tpu.memory_space<vmem>>, %arg4: memref<9x128xbf16, #tpu.memory_space<vmem>>, %arg5: memref<1x128xf32, #tpu.memory_space<vmem>>, %arg6: memref<128x256xbf16, #tpu.memory_space<vmem>>, %arg7: memref<1x256xf32, #tpu.memory_space<vmem>>, %arg8: memref<256x512xbf16, #tpu.memory_space<vmem>>, %arg9: memref<1x512xf32, #tpu.memory_space<vmem>>, %arg10: memref<512x512xbf16, #tpu.memory_space<vmem>>, %arg11: memref<1x512xf32, #tpu.memory_space<vmem>>, %arg12: memref<256x512xbf16, #tpu.memory_space<vmem>>, %arg13: memref<1x512xf32, #tpu.memory_space<vmem>>, %arg14: memref<512x64xbf16, #tpu.memory_space<vmem>>, %arg15: memref<1x64xf32, #tpu.memory_space<vmem>>, %arg16: memref<256x512xbf16, #tpu.memory_space<vmem>>, %arg17: memref<1x512xf32, #tpu.memory_space<vmem>>, %arg18: memref<512x64xbf16, #tpu.memory_space<vmem>>, %arg19: memref<1x64xf32, #tpu.memory_space<vmem>>, %arg20: memref<64x1xbf16, #tpu.memory_space<vmem>>, %arg21: memref<64x1xbf16, #tpu.memory_space<vmem>>, %arg22: memref<1x1xf32, #tpu.memory_space<vmem>>, %arg23: memref<8x192xbf16, #tpu.memory_space<vmem>>, %arg24: memref<1x192xf32, #tpu.memory_space<vmem>>, %arg25: memref<192x384xbf16, #tpu.memory_space<vmem>>, %arg26: memref<1x384xf32, #tpu.memory_space<vmem>>, %arg27: memref<384x512xbf16, #tpu.memory_space<vmem>>, %arg28: memref<1x512xf32, #tpu.memory_space<vmem>>, %arg29: memref<512x256xbf16, #tpu.memory_space<vmem>>, %arg30: memref<1x256xf32, #tpu.memory_space<vmem>>, %arg31: memref<256x512xbf16, #tpu.memory_space<vmem>>, %arg32: memref<1x512xf32, #tpu.memory_space<vmem>>, %arg33: memref<512x256xbf16, #tpu.memory_space<vmem>>, %arg34: memref<1x256xf32, #tpu.memory_space<vmem>>, %arg35: memref<64x256xbf16, #tpu.memory_space<vmem>>, %arg36: memref<64x256xbf16, #tpu.memory_space<vmem>>, %arg37: memref<512x256xbf16, #tpu.memory_space<vmem>>, %arg38: memref<256x256xbf16, #tpu.memory_space<vmem>>, %arg39: memref<64x256xbf16, #tpu.memory_space<vmem>>, %arg40: memref<1x256xf32, #tpu.memory_space<vmem>>, %arg41: memref<256x64xbf16, #tpu.memory_space<vmem>>, %arg42: memref<1x64xf32, #tpu.memory_space<vmem>>, %arg43: memref<1x1x64xf32, #tpu.memory_space<vmem>>) attributes {dimension_semantics = [#tpu.dimension_semantics<parallel>], iteration_bounds = array<i64: 2>, scalar_prefetch = 0 : i64, scratch_operands = 0 : i64, tpu.core_type = #tpu.core_type<tc>, window_params = [{transform_indices = @transform_0, window_bounds = array<i64: 1, 64, 9>}, {transform_indices = @transform_1, window_bounds = array<i64: 1, 64, 8>}, {transform_indices = @transform_2, window_bounds = array<i64: 1, 1, 64>}, {pipeline_mode = #tpu.pipeline_mode<synchronous>, transform_indices = @transform_3, window_bounds = array<i64: 9, 128>}, {pipeline_mode = #tpu.pipeline_mode<synchronous>, transform_indices = @transform_4, window_bounds = array<i64: 1, 128>}, {pipeline_mode = #tpu.pipeline_mode<synchronous>, transform_indices = @transform_5, window_bounds = array<i64: 128, 256>}, {pipeline_mode = #tpu.pipeline_mode<synchronous>, transform_indices = @transform_6, window_bounds = array<i64: 1, 256>}, {pipeline_mode = #tpu.pipeline_mode<synchronous>, transform_indices = @transform_7, window_bounds = array<i64: 256, 512>}, {pipeline_mode = #tpu.pipeline_mode<synchronous>, transform_indices = @transform_8, window_bounds = array<i64: 1, 512>}, {pipeline_mode = #tpu.pipeline_mode<synchronous>, transform_indices = @transform_9, window_bounds = array<i64: 512, 512>}, {pipeline_mode = #tpu.pipeline_mode<synchronous>, transform_indices = @transform_10, window_bounds = array<i64: 1, 512>}, {pipeline_mode = #tpu.pipeline_mode<synchronous>, transform_indices = @transform_11, window_bounds = array<i64: 256, 512>}, {pipeline_mode = #tpu.pipeline_mode<synchronous>, transform_indices = @transform_12, window_bounds = array<i64: 1, 512>}, {pipeline_mode = #tpu.pipeline_mode<synchronous>, transform_indices = @transform_13, window_bounds = array<i64: 512, 64>}, {pipeline_mode = #tpu.pipeline_mode<synchronous>, transform_indices = @transform_14, window_bounds = array<i64: 1, 64>}, {pipeline_mode = #tpu.pipeline_mode<synchronous>, transform_indices = @transform_15, window_bounds = array<i64: 256, 512>}, {pipeline_mode = #tpu.pipeline_mode<synchronous>, transform_indices = @transform_16, window_bounds = array<i64: 1, 512>}, {pipeline_mode = #tpu.pipeline_mode<synchronous>, transform_indices = @transform_17, window_bounds = array<i64: 512, 64>}, {pipeline_mode = #tpu.pipeline_mode<synchronous>, transform_indices = @transform_18, window_bounds = array<i64: 1, 64>}, {pipeline_mode = #tpu.pipeline_mode<synchronous>, transform_indices = @transform_19, window_bounds = array<i64: 64, 1>}, {pipeline_mode = #tpu.pipeline_mode<synchronous>, transform_indices = @transform_20, window_bounds = array<i64: 64, 1>}, {pipeline_mode = #tpu.pipeline_mode<synchronous>, transform_indices = @transform_21, window_bounds = array<i64: 1, 1>}, {pipeline_mode = #tpu.pipeline_mode<synchronous>, transform_indices = @transform_22, window_bounds = array<i64: 8, 192>}, {pipeline_mode = #tpu.pipeline_mode<synchronous>, transform_indices = @transform_23, window_bounds = array<i64: 1, 192>}, {pipeline_mode = #tpu.pipeline_mode<synchronous>, transform_indices = @transform_24, window_bounds = array<i64: 192, 384>}, {pipeline_mode = #tpu.pipeline_mode<synchronous>, transform_indices = @transform_25, window_bounds = array<i64: 1, 384>}, {pipeline_mode = #tpu.pipeline_mode<synchronous>, transform_indices = @transform_26, window_bounds = array<i64: 384, 512>}, {pipeline_mode = #tpu.pipeline_mode<synchronous>, transform_indices = @transform_27, window_bounds = array<i64: 1, 512>}, {pipeline_mode = #tpu.pipeline_mode<synchronous>, transform_indices = @transform_28, window_bounds = array<i64: 512, 256>}, {pipeline_mode = #tpu.pipeline_mode<synchronous>, transform_indices = @transform_29, window_bounds = array<i64: 1, 256>}, {pipeline_mode = #tpu.pipeline_mode<synchronous>, transform_indices = @transform_30, window_bounds = array<i64: 256, 512>}, {pipeline_mode = #tpu.pipeline_mode<synchronous>, transform_indices = @transform_31, window_bounds = array<i64: 1, 512>}, {pipeline_mode = #tpu.pipeline_mode<synchronous>, transform_indices = @transform_32, window_bounds = array<i64: 512, 256>}, {pipeline_mode = #tpu.pipeline_mode<synchronous>, transform_indices = @transform_33, window_bounds = array<i64: 1, 256>}, {pipeline_mode = #tpu.pipeline_mode<synchronous>, transform_indices = @transform_34, window_bounds = array<i64: 64, 256>}, {pipeline_mode = #tpu.pipeline_mode<synchronous>, transform_indices = @transform_35, window_bounds = array<i64: 64, 256>}, {pipeline_mode = #tpu.pipeline_mode<synchronous>, transform_indices = @transform_36, window_bounds = array<i64: 512, 256>}, {pipeline_mode = #tpu.pipeline_mode<synchronous>, transform_indices = @transform_37, window_bounds = array<i64: 256, 256>}, {pipeline_mode = #tpu.pipeline_mode<synchronous>, transform_indices = @transform_38, window_bounds = array<i64: 64, 256>}, {pipeline_mode = #tpu.pipeline_mode<synchronous>, transform_indices = @transform_39, window_bounds = array<i64: 1, 256>}, {pipeline_mode = #tpu.pipeline_mode<synchronous>, transform_indices = @transform_40, window_bounds = array<i64: 256, 64>}, {pipeline_mode = #tpu.pipeline_mode<synchronous>, transform_indices = @transform_41, window_bounds = array<i64: 1, 64>}, {transform_indices = @transform_42, window_bounds = array<i64: 1, 1, 64>}]} {
    %c0 = arith.constant 0 : index
    %c0_0 = arith.constant 0 : index
    %c0_1 = arith.constant 0 : index
    %0 = vector.load %arg1[%c0, %c0_0, %c0_1] : memref<1x64x9xf32, #tpu.memory_space<vmem>>, vector<1x64x9xf32>
    %1 = vector.shape_cast %0 : vector<1x64x9xf32> to vector<64x9xf32>
    %2 = arith.truncf %1 : vector<64x9xf32> to vector<64x9xbf16>
    %c0_2 = arith.constant 0 : index
    %c0_3 = arith.constant 0 : index
    %3 = vector.load %arg4[%c0_2, %c0_3] : memref<9x128xbf16, #tpu.memory_space<vmem>>, vector<9x128xbf16>
    %cst = arith.constant dense<0.000000e+00> : vector<64x128xf32>
    %4 = tpu.matmul %2, %3, %cst {dimension_numbers = #tpu.dot_dimension_numbers<[1], [0], [0], [1], [0, 0, 1, 1], [], []>} : vector<64x9xbf16>, vector<9x128xbf16>, vector<64x128xf32> -> vector<64x128xf32>
    %c0_4 = arith.constant 0 : index
    %c0_5 = arith.constant 0 : index
    %5 = vector.load %arg5[%c0_4, %c0_5] : memref<1x128xf32, #tpu.memory_space<vmem>>, vector<1x128xf32>
    %6 = vector.broadcast %5 : vector<1x128xf32> to vector<64x128xf32>
    %7 = arith.addf %4, %6 : vector<64x128xf32>
    %cst_6 = arith.constant 0.00999999977 : f32
    %8 = vector.broadcast %cst_6 : f32 to vector<64x128xf32>
    %9 = arith.mulf %8, %7 : vector<64x128xf32>
    %10 = arith.maximumf %7, %9 : vector<64x128xf32>
    %11 = arith.truncf %10 : vector<64x128xf32> to vector<64x128xbf16>
    %c0_7 = arith.constant 0 : index
    %c0_8 = arith.constant 0 : index
    %12 = vector.load %arg6[%c0_7, %c0_8] : memref<128x256xbf16, #tpu.memory_space<vmem>>, vector<128x256xbf16>
    %cst_9 = arith.constant dense<0.000000e+00> : vector<64x256xf32>
    %13 = tpu.matmul %11, %12, %cst_9 {dimension_numbers = #tpu.dot_dimension_numbers<[1], [0], [0], [1], [0, 0, 1, 1], [], []>} : vector<64x128xbf16>, vector<128x256xbf16>, vector<64x256xf32> -> vector<64x256xf32>
    %c0_10 = arith.constant 0 : index
    %c0_11 = arith.constant 0 : index
    %14 = vector.load %arg7[%c0_10, %c0_11] : memref<1x256xf32, #tpu.memory_space<vmem>>, vector<1x256xf32>
    %15 = vector.broadcast %14 : vector<1x256xf32> to vector<64x256xf32>
    %16 = arith.addf %13, %15 : vector<64x256xf32>
    %cst_12 = arith.constant 0.00999999977 : f32
    %17 = vector.broadcast %cst_12 : f32 to vector<64x256xf32>
    %18 = arith.mulf %17, %16 : vector<64x256xf32>
    %19 = arith.maximumf %16, %18 : vector<64x256xf32>
    %20 = arith.truncf %19 : vector<64x256xf32> to vector<64x256xbf16>
    %c0_13 = arith.constant 0 : index
    %c0_14 = arith.constant 0 : index
    %21 = vector.load %arg8[%c0_13, %c0_14] : memref<256x512xbf16, #tpu.memory_space<vmem>>, vector<256x512xbf16>
    %cst_15 = arith.constant dense<0.000000e+00> : vector<64x512xf32>
    %22 = tpu.matmul %20, %21, %cst_15 {dimension_numbers = #tpu.dot_dimension_numbers<[1], [0], [0], [1], [0, 0, 1, 1], [], []>} : vector<64x256xbf16>, vector<256x512xbf16>, vector<64x512xf32> -> vector<64x512xf32>
    %c0_16 = arith.constant 0 : index
    %c0_17 = arith.constant 0 : index
    %23 = vector.load %arg9[%c0_16, %c0_17] : memref<1x512xf32, #tpu.memory_space<vmem>>, vector<1x512xf32>
    %24 = vector.broadcast %23 : vector<1x512xf32> to vector<64x512xf32>
    %25 = arith.addf %22, %24 : vector<64x512xf32>
    %cst_18 = arith.constant 0.00999999977 : f32
    %26 = vector.broadcast %cst_18 : f32 to vector<64x512xf32>
    %27 = arith.mulf %26, %25 : vector<64x512xf32>
    %28 = arith.maximumf %25, %27 : vector<64x512xf32>
    %29 = arith.truncf %28 : vector<64x512xf32> to vector<64x512xbf16>
    %c0_19 = arith.constant 0 : index
    %c0_20 = arith.constant 0 : index
    %30 = vector.load %arg10[%c0_19, %c0_20] : memref<512x512xbf16, #tpu.memory_space<vmem>>, vector<512x512xbf16>
    %cst_21 = arith.constant dense<0.000000e+00> : vector<64x512xf32>
    %31 = tpu.matmul %29, %30, %cst_21 {dimension_numbers = #tpu.dot_dimension_numbers<[1], [0], [0], [1], [0, 0, 1, 1], [], []>} : vector<64x512xbf16>, vector<512x512xbf16>, vector<64x512xf32> -> vector<64x512xf32>
    %c0_22 = arith.constant 0 : index
    %c0_23 = arith.constant 0 : index
    %32 = vector.load %arg11[%c0_22, %c0_23] : memref<1x512xf32, #tpu.memory_space<vmem>>, vector<1x512xf32>
    %33 = vector.broadcast %32 : vector<1x512xf32> to vector<64x512xf32>
    %34 = arith.addf %31, %33 : vector<64x512xf32>
    %cst_24 = arith.constant 0.00999999977 : f32
    %35 = vector.broadcast %cst_24 : f32 to vector<64x512xf32>
    %36 = arith.mulf %35, %34 : vector<64x512xf32>
    %37 = arith.maximumf %34, %36 : vector<64x512xf32>
    %38 = vector.extract_strided_slice %37 {offsets = [0, 0], sizes = [64, 256], strides = [1, 1]} : vector<64x512xf32> to vector<64x256xf32>
    %39 = arith.truncf %38 : vector<64x256xf32> to vector<64x256xbf16>
    %c0_25 = arith.constant 0 : index
    %c0_26 = arith.constant 0 : index
    %40 = vector.load %arg12[%c0_25, %c0_26] : memref<256x512xbf16, #tpu.memory_space<vmem>>, vector<256x512xbf16>
    %cst_27 = arith.constant dense<0.000000e+00> : vector<64x512xf32>
    %41 = tpu.matmul %39, %40, %cst_27 {dimension_numbers = #tpu.dot_dimension_numbers<[1], [0], [0], [1], [0, 0, 1, 1], [], []>} : vector<64x256xbf16>, vector<256x512xbf16>, vector<64x512xf32> -> vector<64x512xf32>
    %c0_28 = arith.constant 0 : index
    %c0_29 = arith.constant 0 : index
    %42 = vector.load %arg13[%c0_28, %c0_29] : memref<1x512xf32, #tpu.memory_space<vmem>>, vector<1x512xf32>
    %43 = vector.broadcast %42 : vector<1x512xf32> to vector<64x512xf32>
    %44 = arith.addf %41, %43 : vector<64x512xf32>
    %cst_30 = arith.constant 0.00999999977 : f32
    %45 = vector.broadcast %cst_30 : f32 to vector<64x512xf32>
    %46 = arith.mulf %45, %44 : vector<64x512xf32>
    %47 = arith.maximumf %44, %46 : vector<64x512xf32>
    %48 = arith.truncf %47 : vector<64x512xf32> to vector<64x512xbf16>
    %c0_31 = arith.constant 0 : index
    %c0_32 = arith.constant 0 : index
    %49 = vector.load %arg14[%c0_31, %c0_32] : memref<512x64xbf16, #tpu.memory_space<vmem>>, vector<512x64xbf16>
    %cst_33 = arith.constant dense<0.000000e+00> : vector<64x64xf32>
    %50 = tpu.matmul %48, %49, %cst_33 {dimension_numbers = #tpu.dot_dimension_numbers<[1], [0], [0], [1], [0, 0, 1, 1], [], []>} : vector<64x512xbf16>, vector<512x64xbf16>, vector<64x64xf32> -> vector<64x64xf32>
    %c0_34 = arith.constant 0 : index
    %c0_35 = arith.constant 0 : index
    %51 = vector.load %arg15[%c0_34, %c0_35] : memref<1x64xf32, #tpu.memory_space<vmem>>, vector<1x64xf32>
    %52 = vector.broadcast %51 : vector<1x64xf32> to vector<64x64xf32>
    %53 = arith.addf %50, %52 : vector<64x64xf32>
    %cst_36 = arith.constant 0.00999999977 : f32
    %54 = vector.broadcast %cst_36 : f32 to vector<64x64xf32>
    %55 = arith.mulf %54, %53 : vector<64x64xf32>
    %56 = arith.maximumf %53, %55 : vector<64x64xf32>
    %57 = vector.extract_strided_slice %37 {offsets = [0, 256], sizes = [64, 256], strides = [1, 1]} : vector<64x512xf32> to vector<64x256xf32>
    %58 = arith.truncf %57 : vector<64x256xf32> to vector<64x256xbf16>
    %c0_37 = arith.constant 0 : index
    %c0_38 = arith.constant 0 : index
    %59 = vector.load %arg16[%c0_37, %c0_38] : memref<256x512xbf16, #tpu.memory_space<vmem>>, vector<256x512xbf16>
    %cst_39 = arith.constant dense<0.000000e+00> : vector<64x512xf32>
    %60 = tpu.matmul %58, %59, %cst_39 {dimension_numbers = #tpu.dot_dimension_numbers<[1], [0], [0], [1], [0, 0, 1, 1], [], []>} : vector<64x256xbf16>, vector<256x512xbf16>, vector<64x512xf32> -> vector<64x512xf32>
    %c0_40 = arith.constant 0 : index
    %c0_41 = arith.constant 0 : index
    %61 = vector.load %arg17[%c0_40, %c0_41] : memref<1x512xf32, #tpu.memory_space<vmem>>, vector<1x512xf32>
    %62 = vector.broadcast %61 : vector<1x512xf32> to vector<64x512xf32>
    %63 = arith.addf %60, %62 : vector<64x512xf32>
    %cst_42 = arith.constant 0.00999999977 : f32
    %64 = vector.broadcast %cst_42 : f32 to vector<64x512xf32>
    %65 = arith.mulf %64, %63 : vector<64x512xf32>
    %66 = arith.maximumf %63, %65 : vector<64x512xf32>
    %67 = arith.truncf %66 : vector<64x512xf32> to vector<64x512xbf16>
    %c0_43 = arith.constant 0 : index
    %c0_44 = arith.constant 0 : index
    %68 = vector.load %arg18[%c0_43, %c0_44] : memref<512x64xbf16, #tpu.memory_space<vmem>>, vector<512x64xbf16>
    %cst_45 = arith.constant dense<0.000000e+00> : vector<64x64xf32>
    %69 = tpu.matmul %67, %68, %cst_45 {dimension_numbers = #tpu.dot_dimension_numbers<[1], [0], [0], [1], [0, 0, 1, 1], [], []>} : vector<64x512xbf16>, vector<512x64xbf16>, vector<64x64xf32> -> vector<64x64xf32>
    %c0_46 = arith.constant 0 : index
    %c0_47 = arith.constant 0 : index
    %70 = vector.load %arg19[%c0_46, %c0_47] : memref<1x64xf32, #tpu.memory_space<vmem>>, vector<1x64xf32>
    %71 = vector.broadcast %70 : vector<1x64xf32> to vector<64x64xf32>
    %72 = arith.addf %69, %71 : vector<64x64xf32>
    %cst_48 = arith.constant 0.00999999977 : f32
    %73 = vector.broadcast %cst_48 : f32 to vector<64x64xf32>
    %74 = arith.mulf %73, %72 : vector<64x64xf32>
    %75 = arith.maximumf %72, %74 : vector<64x64xf32>
    %cst_49 = arith.constant dense<0.000000e+00> : vector<64xf32>
    %76 = vector.multi_reduction <add>, %56, %cst_49 [0] : vector<64x64xf32> to vector<64xf32>
    %77 = vector.shape_cast %76 : vector<64xf32> to vector<1x64xf32>
    %cst_50 = arith.constant 6.400000e+01 : f32
    %78 = vector.broadcast %cst_50 : f32 to vector<1x64xf32>
    %79 = arith.divf %77, %78 : vector<1x64xf32>
    %cst_51 = arith.constant dense<0xFF800000> : vector<64xf32>
    %80 = vector.multi_reduction <maximumf>, %75, %cst_51 [0] : vector<64x64xf32> to vector<64xf32>
    %81 = vector.shape_cast %80 : vector<64xf32> to vector<1x64xf32>
    %82 = arith.truncf %56 : vector<64x64xf32> to vector<64x64xbf16>
    %c0_52 = arith.constant 0 : index
    %c0_53 = arith.constant 0 : index
    %83 = vector.load %arg20[%c0_52, %c0_53] : memref<64x1xbf16, #tpu.memory_space<vmem>>, vector<64x1xbf16>
    %cst_54 = arith.constant dense<0.000000e+00> : vector<64x1xf32>
    %84 = tpu.matmul %82, %83, %cst_54 {dimension_numbers = #tpu.dot_dimension_numbers<[1], [0], [0], [1], [0, 0, 1, 1], [], []>} : vector<64x64xbf16>, vector<64x1xbf16>, vector<64x1xf32> -> vector<64x1xf32>
    %85 = arith.truncf %75 : vector<64x64xf32> to vector<64x64xbf16>
    %c0_55 = arith.constant 0 : index
    %c0_56 = arith.constant 0 : index
    %86 = vector.load %arg21[%c0_55, %c0_56] : memref<64x1xbf16, #tpu.memory_space<vmem>>, vector<64x1xbf16>
    %cst_57 = arith.constant dense<0.000000e+00> : vector<64x1xf32>
    %87 = tpu.matmul %85, %86, %cst_57 {dimension_numbers = #tpu.dot_dimension_numbers<[1], [0], [0], [1], [0, 0, 1, 1], [], []>} : vector<64x64xbf16>, vector<64x1xbf16>, vector<64x1xf32> -> vector<64x1xf32>
    %88 = arith.addf %84, %87 : vector<64x1xf32>
    %c0_58 = arith.constant 0 : index
    %c0_59 = arith.constant 0 : index
    %89 = vector.load %arg22[%c0_58, %c0_59] : memref<1x1xf32, #tpu.memory_space<vmem>>, vector<1x1xf32>
    %90 = vector.broadcast %89 : vector<1x1xf32> to vector<64x1xf32>
    %91 = arith.addf %88, %90 : vector<64x1xf32>
    %cst_60 = arith.constant dense<0xFF800000> : vector<1xf32>
    %92 = vector.multi_reduction <maximumf>, %91, %cst_60 [0] : vector<64x1xf32> to vector<1xf32>
    %93 = vector.shape_cast %92 : vector<1xf32> to vector<1x1xf32>
    %94 = vector.broadcast %93 : vector<1x1xf32> to vector<64x1xf32>
    %95 = arith.subf %91, %94 : vector<64x1xf32>
    %96 = math.exp %95 : vector<64x1xf32>
    %cst_61 = arith.constant dense<0.000000e+00> : vector<1xf32>
    %97 = vector.multi_reduction <add>, %96, %cst_61 [0] : vector<64x1xf32> to vector<1xf32>
    %98 = vector.shape_cast %97 : vector<1xf32> to vector<1x1xf32>
    %99 = tpu.reciprocal %98 {approx = true} : vector<1x1xf32> -> vector<1x1xf32>
    %100 = vector.broadcast %99 : vector<1x1xf32> to vector<64x1xf32>
    %101 = arith.mulf %96, %100 : vector<64x1xf32>
    %102 = vector.broadcast %101 : vector<64x1xf32> to vector<64x512xf32>
    %103 = arith.mulf %102, %28 : vector<64x512xf32>
    %cst_62 = arith.constant dense<0.000000e+00> : vector<512xf32>
    %104 = vector.multi_reduction <add>, %103, %cst_62 [0] : vector<64x512xf32> to vector<512xf32>
    %105 = vector.shape_cast %104 : vector<512xf32> to vector<1x512xf32>
    %c0_63 = arith.constant 0 : index
    %c0_64 = arith.constant 0 : index
    %c0_65 = arith.constant 0 : index
    %106 = vector.load %arg2[%c0_63, %c0_64, %c0_65] : memref<1x64x8xf32, #tpu.memory_space<vmem>>, vector<1x64x8xf32>
    %107 = vector.shape_cast %106 : vector<1x64x8xf32> to vector<64x8xf32>
    %108 = arith.truncf %107 : vector<64x8xf32> to vector<64x8xbf16>
    %c0_66 = arith.constant 0 : index
    %c0_67 = arith.constant 0 : index
    %109 = vector.load %arg23[%c0_66, %c0_67] : memref<8x192xbf16, #tpu.memory_space<vmem>>, vector<8x192xbf16>
    %cst_68 = arith.constant dense<0.000000e+00> : vector<64x192xf32>
    %110 = tpu.matmul %108, %109, %cst_68 {dimension_numbers = #tpu.dot_dimension_numbers<[1], [0], [0], [1], [0, 0, 1, 1], [], []>} : vector<64x8xbf16>, vector<8x192xbf16>, vector<64x192xf32> -> vector<64x192xf32>
    %c0_69 = arith.constant 0 : index
    %c0_70 = arith.constant 0 : index
    %111 = vector.load %arg24[%c0_69, %c0_70] : memref<1x192xf32, #tpu.memory_space<vmem>>, vector<1x192xf32>
    %112 = vector.broadcast %111 : vector<1x192xf32> to vector<64x192xf32>
    %113 = arith.addf %110, %112 : vector<64x192xf32>
    %cst_71 = arith.constant 0.00999999977 : f32
    %114 = vector.broadcast %cst_71 : f32 to vector<64x192xf32>
    %115 = arith.mulf %114, %113 : vector<64x192xf32>
    %116 = arith.maximumf %113, %115 : vector<64x192xf32>
    %117 = arith.truncf %116 : vector<64x192xf32> to vector<64x192xbf16>
    %c0_72 = arith.constant 0 : index
    %c0_73 = arith.constant 0 : index
    %118 = vector.load %arg25[%c0_72, %c0_73] : memref<192x384xbf16, #tpu.memory_space<vmem>>, vector<192x384xbf16>
    %cst_74 = arith.constant dense<0.000000e+00> : vector<64x384xf32>
    %119 = tpu.matmul %117, %118, %cst_74 {dimension_numbers = #tpu.dot_dimension_numbers<[1], [0], [0], [1], [0, 0, 1, 1], [], []>} : vector<64x192xbf16>, vector<192x384xbf16>, vector<64x384xf32> -> vector<64x384xf32>
    %c0_75 = arith.constant 0 : index
    %c0_76 = arith.constant 0 : index
    %120 = vector.load %arg26[%c0_75, %c0_76] : memref<1x384xf32, #tpu.memory_space<vmem>>, vector<1x384xf32>
    %121 = vector.broadcast %120 : vector<1x384xf32> to vector<64x384xf32>
    %122 = arith.addf %119, %121 : vector<64x384xf32>
    %cst_77 = arith.constant 0.00999999977 : f32
    %123 = vector.broadcast %cst_77 : f32 to vector<64x384xf32>
    %124 = arith.mulf %123, %122 : vector<64x384xf32>
    %125 = arith.maximumf %122, %124 : vector<64x384xf32>
    %126 = arith.truncf %125 : vector<64x384xf32> to vector<64x384xbf16>
    %c0_78 = arith.constant 0 : index
    %c0_79 = arith.constant 0 : index
    %127 = vector.load %arg27[%c0_78, %c0_79] : memref<384x512xbf16, #tpu.memory_space<vmem>>, vector<384x512xbf16>
    %cst_80 = arith.constant dense<0.000000e+00> : vector<64x512xf32>
    %128 = tpu.matmul %126, %127, %cst_80 {dimension_numbers = #tpu.dot_dimension_numbers<[1], [0], [0], [1], [0, 0, 1, 1], [], []>} : vector<64x384xbf16>, vector<384x512xbf16>, vector<64x512xf32> -> vector<64x512xf32>
    %c0_81 = arith.constant 0 : index
    %c0_82 = arith.constant 0 : index
    %129 = vector.load %arg28[%c0_81, %c0_82] : memref<1x512xf32, #tpu.memory_space<vmem>>, vector<1x512xf32>
    %130 = vector.broadcast %129 : vector<1x512xf32> to vector<64x512xf32>
    %131 = arith.addf %128, %130 : vector<64x512xf32>
    %cst_83 = arith.constant 0.00999999977 : f32
    %132 = vector.broadcast %cst_83 : f32 to vector<64x512xf32>
    %133 = arith.mulf %132, %131 : vector<64x512xf32>
    %134 = arith.maximumf %131, %133 : vector<64x512xf32>
    %135 = arith.truncf %134 : vector<64x512xf32> to vector<64x512xbf16>
    %c0_84 = arith.constant 0 : index
    %c0_85 = arith.constant 0 : index
    %136 = vector.load %arg29[%c0_84, %c0_85] : memref<512x256xbf16, #tpu.memory_space<vmem>>, vector<512x256xbf16>
    %cst_86 = arith.constant dense<0.000000e+00> : vector<64x256xf32>
    %137 = tpu.matmul %135, %136, %cst_86 {dimension_numbers = #tpu.dot_dimension_numbers<[1], [0], [0], [1], [0, 0, 1, 1], [], []>} : vector<64x512xbf16>, vector<512x256xbf16>, vector<64x256xf32> -> vector<64x256xf32>
    %c0_87 = arith.constant 0 : index
    %c0_88 = arith.constant 0 : index
    %138 = vector.load %arg30[%c0_87, %c0_88] : memref<1x256xf32, #tpu.memory_space<vmem>>, vector<1x256xf32>
    %139 = vector.broadcast %138 : vector<1x256xf32> to vector<64x256xf32>
    %140 = arith.addf %137, %139 : vector<64x256xf32>
    %cst_89 = arith.constant 0.00999999977 : f32
    %141 = vector.broadcast %cst_89 : f32 to vector<64x256xf32>
    %142 = arith.mulf %141, %140 : vector<64x256xf32>
    %143 = arith.maximumf %140, %142 : vector<64x256xf32>
    %144 = arith.truncf %143 : vector<64x256xf32> to vector<64x256xbf16>
    %c0_90 = arith.constant 0 : index
    %c0_91 = arith.constant 0 : index
    %145 = vector.load %arg31[%c0_90, %c0_91] : memref<256x512xbf16, #tpu.memory_space<vmem>>, vector<256x512xbf16>
    %cst_92 = arith.constant dense<0.000000e+00> : vector<64x512xf32>
    %146 = tpu.matmul %144, %145, %cst_92 {dimension_numbers = #tpu.dot_dimension_numbers<[1], [0], [0], [1], [0, 0, 1, 1], [], []>} : vector<64x256xbf16>, vector<256x512xbf16>, vector<64x512xf32> -> vector<64x512xf32>
    %c0_93 = arith.constant 0 : index
    %c0_94 = arith.constant 0 : index
    %147 = vector.load %arg32[%c0_93, %c0_94] : memref<1x512xf32, #tpu.memory_space<vmem>>, vector<1x512xf32>
    %148 = vector.broadcast %147 : vector<1x512xf32> to vector<64x512xf32>
    %149 = arith.addf %146, %148 : vector<64x512xf32>
    %cst_95 = arith.constant 0.00999999977 : f32
    %150 = vector.broadcast %cst_95 : f32 to vector<64x512xf32>
    %151 = arith.mulf %150, %149 : vector<64x512xf32>
    %152 = arith.maximumf %149, %151 : vector<64x512xf32>
    %153 = arith.truncf %152 : vector<64x512xf32> to vector<64x512xbf16>
    %c0_96 = arith.constant 0 : index
    %c0_97 = arith.constant 0 : index
    %154 = vector.load %arg33[%c0_96, %c0_97] : memref<512x256xbf16, #tpu.memory_space<vmem>>, vector<512x256xbf16>
    %cst_98 = arith.constant dense<0.000000e+00> : vector<64x256xf32>
    %155 = tpu.matmul %153, %154, %cst_98 {dimension_numbers = #tpu.dot_dimension_numbers<[1], [0], [0], [1], [0, 0, 1, 1], [], []>} : vector<64x512xbf16>, vector<512x256xbf16>, vector<64x256xf32> -> vector<64x256xf32>
    %c0_99 = arith.constant 0 : index
    %c0_100 = arith.constant 0 : index
    %156 = vector.load %arg34[%c0_99, %c0_100] : memref<1x256xf32, #tpu.memory_space<vmem>>, vector<1x256xf32>
    %157 = vector.broadcast %156 : vector<1x256xf32> to vector<64x256xf32>
    %158 = arith.addf %155, %157 : vector<64x256xf32>
    %cst_101 = arith.constant 0.00999999977 : f32
    %159 = vector.broadcast %cst_101 : f32 to vector<64x256xf32>
    %160 = arith.mulf %159, %158 : vector<64x256xf32>
    %161 = arith.maximumf %158, %160 : vector<64x256xf32>
    %cst_102 = arith.constant dense<0xFF800000> : vector<256xf32>
    %162 = vector.multi_reduction <maximumf>, %161, %cst_102 [0] : vector<64x256xf32> to vector<256xf32>
    %163 = vector.shape_cast %162 : vector<256xf32> to vector<1x256xf32>
    %c0_103 = arith.constant 0 : index
    %c0_104 = arith.constant 0 : index
    %c0_105 = arith.constant 0 : index
    %164 = vector.load %arg3[%c0_103, %c0_104, %c0_105] : memref<1x1x64xf32, #tpu.memory_space<vmem>>, vector<1x1x64xf32>
    %165 = vector.shape_cast %164 : vector<1x1x64xf32> to vector<1x64xf32>
    %166 = arith.truncf %79 : vector<1x64xf32> to vector<1x64xbf16>
    %c0_106 = arith.constant 0 : index
    %c0_107 = arith.constant 0 : index
    %167 = vector.load %arg35[%c0_106, %c0_107] : memref<64x256xbf16, #tpu.memory_space<vmem>>, vector<64x256xbf16>
    %cst_108 = arith.constant dense<0.000000e+00> : vector<1x256xf32>
    %168 = tpu.matmul %166, %167, %cst_108 {dimension_numbers = #tpu.dot_dimension_numbers<[1], [0], [0], [1], [0, 0, 1, 1], [], []>} : vector<1x64xbf16>, vector<64x256xbf16>, vector<1x256xf32> -> vector<1x256xf32>
    %169 = arith.truncf %81 : vector<1x64xf32> to vector<1x64xbf16>
    %c0_109 = arith.constant 0 : index
    %c0_110 = arith.constant 0 : index
    %170 = vector.load %arg36[%c0_109, %c0_110] : memref<64x256xbf16, #tpu.memory_space<vmem>>, vector<64x256xbf16>
    %cst_111 = arith.constant dense<0.000000e+00> : vector<1x256xf32>
    %171 = tpu.matmul %169, %170, %cst_111 {dimension_numbers = #tpu.dot_dimension_numbers<[1], [0], [0], [1], [0, 0, 1, 1], [], []>} : vector<1x64xbf16>, vector<64x256xbf16>, vector<1x256xf32> -> vector<1x256xf32>
    %172 = arith.addf %168, %171 : vector<1x256xf32>
    %173 = arith.truncf %105 : vector<1x512xf32> to vector<1x512xbf16>
    %c0_112 = arith.constant 0 : index
    %c0_113 = arith.constant 0 : index
    %174 = vector.load %arg37[%c0_112, %c0_113] : memref<512x256xbf16, #tpu.memory_space<vmem>>, vector<512x256xbf16>
    %cst_114 = arith.constant dense<0.000000e+00> : vector<1x256xf32>
    %175 = tpu.matmul %173, %174, %cst_114 {dimension_numbers = #tpu.dot_dimension_numbers<[1], [0], [0], [1], [0, 0, 1, 1], [], []>} : vector<1x512xbf16>, vector<512x256xbf16>, vector<1x256xf32> -> vector<1x256xf32>
    %176 = arith.addf %172, %175 : vector<1x256xf32>
    %177 = arith.truncf %163 : vector<1x256xf32> to vector<1x256xbf16>
    %c0_115 = arith.constant 0 : index
    %c0_116 = arith.constant 0 : index
    %178 = vector.load %arg38[%c0_115, %c0_116] : memref<256x256xbf16, #tpu.memory_space<vmem>>, vector<256x256xbf16>
    %cst_117 = arith.constant dense<0.000000e+00> : vector<1x256xf32>
    %179 = tpu.matmul %177, %178, %cst_117 {dimension_numbers = #tpu.dot_dimension_numbers<[1], [0], [0], [1], [0, 0, 1, 1], [], []>} : vector<1x256xbf16>, vector<256x256xbf16>, vector<1x256xf32> -> vector<1x256xf32>
    %180 = arith.addf %176, %179 : vector<1x256xf32>
    %181 = arith.truncf %165 : vector<1x64xf32> to vector<1x64xbf16>
    %c0_118 = arith.constant 0 : index
    %c0_119 = arith.constant 0 : index
    %182 = vector.load %arg39[%c0_118, %c0_119] : memref<64x256xbf16, #tpu.memory_space<vmem>>, vector<64x256xbf16>
    %cst_120 = arith.constant dense<0.000000e+00> : vector<1x256xf32>
    %183 = tpu.matmul %181, %182, %cst_120 {dimension_numbers = #tpu.dot_dimension_numbers<[1], [0], [0], [1], [0, 0, 1, 1], [], []>} : vector<1x64xbf16>, vector<64x256xbf16>, vector<1x256xf32> -> vector<1x256xf32>
    %184 = arith.addf %180, %183 : vector<1x256xf32>
    %c0_121 = arith.constant 0 : index
    %c0_122 = arith.constant 0 : index
    %185 = vector.load %arg40[%c0_121, %c0_122] : memref<1x256xf32, #tpu.memory_space<vmem>>, vector<1x256xf32>
    %186 = arith.addf %184, %185 : vector<1x256xf32>
    %cst_123 = arith.constant 0.00999999977 : f32
    %187 = vector.broadcast %cst_123 : f32 to vector<1x256xf32>
    %188 = arith.mulf %187, %186 : vector<1x256xf32>
    %189 = arith.maximumf %186, %188 : vector<1x256xf32>
    %190 = arith.truncf %189 : vector<1x256xf32> to vector<1x256xbf16>
    %c0_124 = arith.constant 0 : index
    %c0_125 = arith.constant 0 : index
    %191 = vector.load %arg41[%c0_124, %c0_125] : memref<256x64xbf16, #tpu.memory_space<vmem>>, vector<256x64xbf16>
    %cst_126 = arith.constant dense<0.000000e+00> : vector<1x64xf32>
    %192 = tpu.matmul %190, %191, %cst_126 {dimension_numbers = #tpu.dot_dimension_numbers<[1], [0], [0], [1], [0, 0, 1, 1], [], []>} : vector<1x256xbf16>, vector<256x64xbf16>, vector<1x64xf32> -> vector<1x64xf32>
    %c0_127 = arith.constant 0 : index
    %c0_128 = arith.constant 0 : index
    %193 = vector.load %arg42[%c0_127, %c0_128] : memref<1x64xf32, #tpu.memory_space<vmem>>, vector<1x64xf32>
    %194 = arith.addf %192, %193 : vector<1x64xf32>
    %c0_129 = arith.constant 0 : index
    %c0_130 = arith.constant 0 : index
    %c0_131 = arith.constant 0 : index
    %195 = vector.load %arg43[%c0_129, %c0_130, %c0_131] : memref<1x1x64xf32, #tpu.memory_space<vmem>>, vector<1x1x64xf32>
    %196 = vector.shape_cast %195 : vector<1x1x64xf32> to vector<1x64xf32>
    %197 = vector.shape_cast %194 : vector<1x64xf32> to vector<1x1x64xf32>
    tpu.vector_store %arg43[%c0_129, %c0_130, %c0_131], %197 {strides = array<i32>} : memref<1x1x64xf32, #tpu.memory_space<vmem>>, vector<1x1x64xf32>,
    return
  }
  func.func @transform_0(%arg0: i32) -> (i32, i32, i32) {
    %c0_i32 = arith.constant 0 : i32
    %c0_i32_0 = arith.constant 0 : i32
    %c0_i32_1 = arith.constant 0 : i32
    return %arg0, %c0_i32, %c0_i32_0 : i32, i32, i32
  }
  func.func @transform_1(%arg0: i32) -> (i32, i32, i32) {
    %c0_i32 = arith.constant 0 : i32
    %c0_i32_0 = arith.constant 0 : i32
    %c0_i32_1 = arith.constant 0 : i32
    return %arg0, %c0_i32, %c0_i32_0 : i32, i32, i32
  }
  func.func @transform_2(%arg0: i32) -> (i32, i32, i32) {
    %c0_i32 = arith.constant 0 : i32
    %c0_i32_0 = arith.constant 0 : i32
    %c0_i32_1 = arith.constant 0 : i32
    return %arg0, %c0_i32, %c0_i32_0 : i32, i32, i32
  }
  func.func @transform_3(%arg0: i32) -> (i32, i32) {
    %c0_i32 = arith.constant 0 : i32
    %c0_i32_0 = arith.constant 0 : i32
    %c0_i32_1 = arith.constant 0 : i32
    return %c0_i32, %c0_i32_0 : i32, i32
  }
  func.func @transform_4(%arg0: i32) -> (i32, i32) {
    %c0_i32 = arith.constant 0 : i32
    %c0_i32_0 = arith.constant 0 : i32
    %c0_i32_1 = arith.constant 0 : i32
    return %c0_i32, %c0_i32_0 : i32, i32
  }
  func.func @transform_5(%arg0: i32) -> (i32, i32) {
    %c0_i32 = arith.constant 0 : i32
    %c0_i32_0 = arith.constant 0 : i32
    %c0_i32_1 = arith.constant 0 : i32
    return %c0_i32, %c0_i32_0 : i32, i32
  }
  func.func @transform_6(%arg0: i32) -> (i32, i32) {
    %c0_i32 = arith.constant 0 : i32
    %c0_i32_0 = arith.constant 0 : i32
    %c0_i32_1 = arith.constant 0 : i32
    return %c0_i32, %c0_i32_0 : i32, i32
  }
  func.func @transform_7(%arg0: i32) -> (i32, i32) {
    %c0_i32 = arith.constant 0 : i32
    %c0_i32_0 = arith.constant 0 : i32
    %c0_i32_1 = arith.constant 0 : i32
    return %c0_i32, %c0_i32_0 : i32, i32
  }
  func.func @transform_8(%arg0: i32) -> (i32, i32) {
    %c0_i32 = arith.constant 0 : i32
    %c0_i32_0 = arith.constant 0 : i32
    %c0_i32_1 = arith.constant 0 : i32
    return %c0_i32, %c0_i32_0 : i32, i32
  }
  func.func @transform_9(%arg0: i32) -> (i32, i32) {
    %c0_i32 = arith.constant 0 : i32
    %c0_i32_0 = arith.constant 0 : i32
    %c0_i32_1 = arith.constant 0 : i32
    return %c0_i32, %c0_i32_0 : i32, i32
  }
  func.func @transform_10(%arg0: i32) -> (i32, i32) {
    %c0_i32 = arith.constant 0 : i32
    %c0_i32_0 = arith.constant 0 : i32
    %c0_i32_1 = arith.constant 0 : i32
    return %c0_i32, %c0_i32_0 : i32, i32
  }
  func.func @transform_11(%arg0: i32) -> (i32, i32) {
    %c0_i32 = arith.constant 0 : i32
    %c0_i32_0 = arith.constant 0 : i32
    %c0_i32_1 = arith.constant 0 : i32
    return %c0_i32, %c0_i32_0 : i32, i32
  }
  func.func @transform_12(%arg0: i32) -> (i32, i32) {
    %c0_i32 = arith.constant 0 : i32
    %c0_i32_0 = arith.constant 0 : i32
    %c0_i32_1 = arith.constant 0 : i32
    return %c0_i32, %c0_i32_0 : i32, i32
  }
  func.func @transform_13(%arg0: i32) -> (i32, i32) {
    %c0_i32 = arith.constant 0 : i32
    %c0_i32_0 = arith.constant 0 : i32
    %c0_i32_1 = arith.constant 0 : i32
    return %c0_i32, %c0_i32_0 : i32, i32
  }
  func.func @transform_14(%arg0: i32) -> (i32, i32) {
    %c0_i32 = arith.constant 0 : i32
    %c0_i32_0 = arith.constant 0 : i32
    %c0_i32_1 = arith.constant 0 : i32
    return %c0_i32, %c0_i32_0 : i32, i32
  }
  func.func @transform_15(%arg0: i32) -> (i32, i32) {
    %c0_i32 = arith.constant 0 : i32
    %c0_i32_0 = arith.constant 0 : i32
    %c0_i32_1 = arith.constant 0 : i32
    return %c0_i32, %c0_i32_0 : i32, i32
  }
  func.func @transform_16(%arg0: i32) -> (i32, i32) {
    %c0_i32 = arith.constant 0 : i32
    %c0_i32_0 = arith.constant 0 : i32
    %c0_i32_1 = arith.constant 0 : i32
    return %c0_i32, %c0_i32_0 : i32, i32
  }
  func.func @transform_17(%arg0: i32) -> (i32, i32) {
    %c0_i32 = arith.constant 0 : i32
    %c0_i32_0 = arith.constant 0 : i32
    %c0_i32_1 = arith.constant 0 : i32
    return %c0_i32, %c0_i32_0 : i32, i32
  }
  func.func @transform_18(%arg0: i32) -> (i32, i32) {
    %c0_i32 = arith.constant 0 : i32
    %c0_i32_0 = arith.constant 0 : i32
    %c0_i32_1 = arith.constant 0 : i32
    return %c0_i32, %c0_i32_0 : i32, i32
  }
  func.func @transform_19(%arg0: i32) -> (i32, i32) {
    %c0_i32 = arith.constant 0 : i32
    %c0_i32_0 = arith.constant 0 : i32
    %c0_i32_1 = arith.constant 0 : i32
    return %c0_i32, %c0_i32_0 : i32, i32
  }
  func.func @transform_20(%arg0: i32) -> (i32, i32) {
    %c0_i32 = arith.constant 0 : i32
    %c0_i32_0 = arith.constant 0 : i32
    %c0_i32_1 = arith.constant 0 : i32
    return %c0_i32, %c0_i32_0 : i32, i32
  }
  func.func @transform_21(%arg0: i32) -> (i32, i32) {
    %c0_i32 = arith.constant 0 : i32
    %c0_i32_0 = arith.constant 0 : i32
    %c0_i32_1 = arith.constant 0 : i32
    return %c0_i32, %c0_i32_0 : i32, i32
  }
  func.func @transform_22(%arg0: i32) -> (i32, i32) {
    %c0_i32 = arith.constant 0 : i32
    %c0_i32_0 = arith.constant 0 : i32
    %c0_i32_1 = arith.constant 0 : i32
    return %c0_i32, %c0_i32_0 : i32, i32
  }
  func.func @transform_23(%arg0: i32) -> (i32, i32) {
    %c0_i32 = arith.constant 0 : i32
    %c0_i32_0 = arith.constant 0 : i32
    %c0_i32_1 = arith.constant 0 : i32
    return %c0_i32, %c0_i32_0 : i32, i32
  }
  func.func @transform_24(%arg0: i32) -> (i32, i32) {
    %c0_i32 = arith.constant 0 : i32
    %c0_i32_0 = arith.constant 0 : i32
    %c0_i32_1 = arith.constant 0 : i32
    return %c0_i32, %c0_i32_0 : i32, i32
  }
  func.func @transform_25(%arg0: i32) -> (i32, i32) {
    %c0_i32 = arith.constant 0 : i32
    %c0_i32_0 = arith.constant 0 : i32
    %c0_i32_1 = arith.constant 0 : i32
    return %c0_i32, %c0_i32_0 : i32, i32
  }
  func.func @transform_26(%arg0: i32) -> (i32, i32) {
    %c0_i32 = arith.constant 0 : i32
    %c0_i32_0 = arith.constant 0 : i32
    %c0_i32_1 = arith.constant 0 : i32
    return %c0_i32, %c0_i32_0 : i32, i32
  }
  func.func @transform_27(%arg0: i32) -> (i32, i32) {
    %c0_i32 = arith.constant 0 : i32
    %c0_i32_0 = arith.constant 0 : i32
    %c0_i32_1 = arith.constant 0 : i32
    return %c0_i32, %c0_i32_0 : i32, i32
  }
  func.func @transform_28(%arg0: i32) -> (i32, i32) {
    %c0_i32 = arith.constant 0 : i32
    %c0_i32_0 = arith.constant 0 : i32
    %c0_i32_1 = arith.constant 0 : i32
    return %c0_i32, %c0_i32_0 : i32, i32
  }
  func.func @transform_29(%arg0: i32) -> (i32, i32) {
    %c0_i32 = arith.constant 0 : i32
    %c0_i32_0 = arith.constant 0 : i32
    %c0_i32_1 = arith.constant 0 : i32
    return %c0_i32, %c0_i32_0 : i32, i32
  }
  func.func @transform_30(%arg0: i32) -> (i32, i32) {
    %c0_i32 = arith.constant 0 : i32
    %c0_i32_0 = arith.constant 0 : i32
    %c0_i32_1 = arith.constant 0 : i32
    return %c0_i32, %c0_i32_0 : i32, i32
  }
  func.func @transform_31(%arg0: i32) -> (i32, i32) {
    %c0_i32 = arith.constant 0 : i32
    %c0_i32_0 = arith.constant 0 : i32
    %c0_i32_1 = arith.constant 0 : i32
    return %c0_i32, %c0_i32_0 : i32, i32
  }
  func.func @transform_32(%arg0: i32) -> (i32, i32) {
    %c0_i32 = arith.constant 0 : i32
    %c0_i32_0 = arith.constant 0 : i32
    %c0_i32_1 = arith.constant 0 : i32
    return %c0_i32, %c0_i32_0 : i32, i32
  }
  func.func @transform_33(%arg0: i32) -> (i32, i32) {
    %c0_i32 = arith.constant 0 : i32
    %c0_i32_0 = arith.constant 0 : i32
    %c0_i32_1 = arith.constant 0 : i32
    return %c0_i32, %c0_i32_0 : i32, i32
  }
  func.func @transform_34(%arg0: i32) -> (i32, i32) {
    %c0_i32 = arith.constant 0 : i32
    %c0_i32_0 = arith.constant 0 : i32
    %c0_i32_1 = arith.constant 0 : i32
    return %c0_i32, %c0_i32_0 : i32, i32
  }
  func.func @transform_35(%arg0: i32) -> (i32, i32) {
    %c0_i32 = arith.constant 0 : i32
    %c0_i32_0 = arith.constant 0 : i32
    %c0_i32_1 = arith.constant 0 : i32
    return %c0_i32, %c0_i32_0 : i32, i32
  }
  func.func @transform_36(%arg0: i32) -> (i32, i32) {
    %c0_i32 = arith.constant 0 : i32
    %c0_i32_0 = arith.constant 0 : i32
    %c0_i32_1 = arith.constant 0 : i32
    return %c0_i32, %c0_i32_0 : i32, i32
  }
  func.func @transform_37(%arg0: i32) -> (i32, i32) {
    %c0_i32 = arith.constant 0 : i32
    %c0_i32_0 = arith.constant 0 : i32
    %c0_i32_1 = arith.constant 0 : i32
    return %c0_i32, %c0_i32_0 : i32, i32
  }
  func.func @transform_38(%arg0: i32) -> (i32, i32) {
    %c0_i32 = arith.constant 0 : i32
    %c0_i32_0 = arith.constant 0 : i32
    %c0_i32_1 = arith.constant 0 : i32
    return %c0_i32, %c0_i32_0 : i32, i32
  }
  func.func @transform_39(%arg0: i32) -> (i32, i32) {
    %c0_i32 = arith.constant 0 : i32
    %c0_i32_0 = arith.constant 0 : i32
    %c0_i32_1 = arith.constant 0 : i32
    return %c0_i32, %c0_i32_0 : i32, i32
  }
  func.func @transform_40(%arg0: i32) -> (i32, i32) {
    %c0_i32 = arith.constant 0 : i32
    %c0_i32_0 = arith.constant 0 : i32
    %c0_i32_1 = arith.constant 0 : i32
    return %c0_i32, %c0_i32_0 : i32, i32
  }
  func.func @transform_41(%arg0: i32) -> (i32, i32) {
    %c0_i32 = arith.constant 0 : i32
    %c0_i32_0 = arith.constant 0 : i32
    %c0_i32_1 = arith.constant 0 : i32
    return %c0_i32, %c0_i32_0 : i32, i32
  }
  func.func @transform_42(%arg0: i32) -> (i32, i32, i32) {
    %c0_i32 = arith.constant 0 : i32
    %c0_i32_0 = arith.constant 0 : i32
    %c0_i32_1 = arith.constant 0 : i32
    return %arg0, %c0_i32, %c0_i32_0 : i32, i32, i32
  }
}

</mosaic_0001>

<llo_original>
// kernel: posenet_forward.1
$region0: #{posenet_forward.1}
  #allocation0 [shape = 'u32[]', space=smem, size = 0x4, offset = 0x4, fixed_abs, tag = 'smem constant byte address 0x4 - core index']
  #allocation1 [shape = 'u32[144,128]{1,0:T(1,128)}', space=vmem, size = 0x12000, scoped, tag = 'internal scratch']
  #allocation2 [shape = 'f32[1,1]{1,0:T(1,128)S(1)}', space=vmem, size = 0x200, scoped, tag = 'scoped memory for posenet_forward.1']
  %s0 = inlined_call_operand.smem [shape: u32[43], index: -1, kind: input, shape index: {}]
  %s1 = sld [smem:[%s0]]
  %s2 = scalar_lea.smem %s0, 1
  %s3 = sld [smem:[%s2]]
  %s4 = scalar_lea.smem %s0, 2
  %s5 = sld [smem:[%s4]]
  %s6 = scalar_lea.smem %s0, 3
  %s7 = sld [smem:[%s6]]
  %s8 = scalar_lea.smem %s0, 4
  %s9 = sld [smem:[%s8]]
  %s10 = scalar_lea.smem %s0, 5
  %s11 = sld [smem:[%s10]]
  %s12 = scalar_lea.smem %s0, 6
  %s13 = sld [smem:[%s12]]
  %s14 = scalar_lea.smem %s0, 7
  %s15 = sld [smem:[%s14]]
  %s16 = scalar_lea.smem %s0, 8
  %s17 = sld [smem:[%s16]]
  %s18 = scalar_lea.smem %s0, 9
  %s19 = sld [smem:[%s18]]
  %s20 = scalar_lea.smem %s0, 10
  %s21 = sld [smem:[%s20]]
  %s22 = scalar_lea.smem %s0, 11
  %s23 = sld [smem:[%s22]]
  %s24 = scalar_lea.smem %s0, 12
  %s25 = sld [smem:[%s24]]
  %s26 = scalar_lea.smem %s0, 13
  %s27 = sld [smem:[%s26]]
  %s28 = scalar_lea.smem %s0, 14
  %s29 = sld [smem:[%s28]]
  %s30 = scalar_lea.smem %s0, 15
  %s31 = sld [smem:[%s30]]
  %s32 = scalar_lea.smem %s0, 16
  %s33 = sld [smem:[%s32]]
  %s34 = scalar_lea.smem %s0, 17
  %s35 = sld [smem:[%s34]]
  %s36 = scalar_lea.smem %s0, 18
  %s37 = sld [smem:[%s36]]
  %s38 = scalar_lea.smem %s0, 19
  %s39 = sld [smem:[%s38]]
  %s40 = scalar_lea.smem %s0, 20
  %s41 = sld [smem:[%s40]]
  %s42 = scalar_lea.smem %s0, 21
  %s43 = sld [smem:[%s42]]
  %s44 = scalar_lea.smem %s0, 22
  %s45 = sld [smem:[%s44]]
  %s46 = scalar_lea.smem %s0, 23
  %s47 = sld [smem:[%s46]]
  %s48 = scalar_lea.smem %s0, 24
  %s49 = sld [smem:[%s48]]
  %s50 = scalar_lea.smem %s0, 25
  %s51 = sld [smem:[%s50]]
  %s52 = scalar_lea.smem %s0, 26
  %s53 = sld [smem:[%s52]]
  %s54 = scalar_lea.smem %s0, 27
  %s55 = sld [smem:[%s54]]
  %s56 = scalar_lea.smem %s0, 28
  %s57 = sld [smem:[%s56]]
  %s58 = scalar_lea.smem %s0, 29
  %s59 = sld [smem:[%s58]]
  %s60 = scalar_lea.smem %s0, 30
  %s61 = sld [smem:[%s60]]
  %s62 = scalar_lea.smem %s0, 31
  %s63 = sld [smem:[%s62]]
  %s64 = scalar_lea.smem %s0, 32
  %s65 = sld [smem:[%s64]]
  %s66 = scalar_lea.smem %s0, 33
  %s67 = sld [smem:[%s66]]
  %s68 = scalar_lea.smem %s0, 34
  %s69 = sld [smem:[%s68]]
  %s70 = scalar_lea.smem %s0, 35
  %s71 = sld [smem:[%s70]]
  %s72 = scalar_lea.smem %s0, 36
  %s73 = sld [smem:[%s72]]
  %s74 = scalar_lea.smem %s0, 37
  %s75 = sld [smem:[%s74]]
  %s76 = scalar_lea.smem %s0, 38
  %s77 = sld [smem:[%s76]]
  %s78 = scalar_lea.smem %s0, 39
  %s79 = sld [smem:[%s78]]
  %s80 = scalar_lea.smem %s0, 40
  %s81 = sld [smem:[%s80]]
  %s82 = scalar_lea.smem %s0, 41
  %s83 = sld [smem:[%s82]]
  %s84 = scalar_lea.smem %s0, 42
  %s85 = sld [smem:[%s84]]
  %s86 = sld [smem:[#allocation0]]
  $region201: #{posenet_forward.1} parent=0
    _
  %s88 = ssub.s32 1, %s86
  %s89 = scalar_select 0, %s88, %s86
  %v90 = vstv %s43
  %91 = vst [vmem:[#allocation2] sm:$0x1] %v90
  $region1: #{posenet_forward.1} parent=0
    #allocation3 [shape = 'u8[1024]{0}', space=vmem, size = 0x400, scoped, tag = 'output window, operand 0']
    #allocation4 [shape = 's32[2]{0}', space=sflag, size = 0x8, scoped, tag = 'scoped memory for posenet_forward.1']
    %92 = vsyncpa [#allocation4], 0
    %s93 = scalar_lea.sflag [#allocation4], 1
    %94 = vsyncpa %s93, 0
    loop: start=0, step=1, limit=4
    $region2: #{posenet_forward.1} parent=1 // loop_pre_header
      _
    $region3: #{posenet_forward.1} parent=1 // loop_header
      %s96 = sphi 0, %s100
      %p97 = scmp.ge.s32.totalorder %s96, 4
      %s106 = sphi 0, %s108
      %s109 = sphi 0, %s106
      %s110 = sphi 0, %s109
      %s126 = sphi 0, %s110
      %s132 = sphi 0, %s134
      %s135 = sphi 0, %s132
      %s136 = sphi 0, %s135
      %s152 = sphi 0, %s136
      %s158 = sphi 0, %s160
      %s161 = sphi 0, %s158
      %s162 = sphi 0, %s161
      %s178 = sphi 0, %s162
      %s182 = sphi 0, %s182
      %s184 = sphi 0, %s182
      %s185 = sphi 0, %s184
      %s199 = sphi 0, %s185
      %s203 = sphi 0, %s203
      %s205 = sphi 0, %s203
      %s206 = sphi 0, %s205
      %s220 = sphi 0, %s206
      %s224 = sphi 0, %s224
      %s226 = sphi 0, %s224
      %s227 = sphi 0, %s226
      %s241 = sphi 0, %s227
      %s245 = sphi 0, %s245
      %s247 = sphi 0, %s245
      %s248 = sphi 0, %s247
      %s262 = sphi 0, %s248
      %s266 = sphi 0, %s266
      %s268 = sphi 0, %s266
      %s269 = sphi 0, %s268
      %s283 = sphi 0, %s269
      %s287 = sphi 0, %s287
      %s289 = sphi 0, %s287
      %s290 = sphi 0, %s289
      %s304 = sphi 0, %s290
      %s308 = sphi 0, %s308
      %s310 = sphi 0, %s308
      %s311 = sphi 0, %s310
      %s325 = sphi 0, %s311
      %s329 = sphi 0, %s329
      %s331 = sphi 0, %s329
      %s332 = sphi 0, %s331
      %s346 = sphi 0, %s332
      %s350 = sphi 0, %s350
      %s352 = sphi 0, %s350
      %s353 = sphi 0, %s352
      %s367 = sphi 0, %s353
      %s371 = sphi 0, %s371
      %s373 = sphi 0, %s371
      %s374 = sphi 0, %s373
      %s388 = sphi 0, %s374
      %s392 = sphi 0, %s392
      %s394 = sphi 0, %s392
      %s395 = sphi 0, %s394
      %s409 = sphi 0, %s395
      %s413 = sphi 0, %s413
      %s415 = sphi 0, %s413
      %s416 = sphi 0, %s415
      %s430 = sphi 0, %s416
      %s434 = sphi 0, %s434
      %s436 = sphi 0, %s434
      %s437 = sphi 0, %s436
      %s451 = sphi 0, %s437
      %s455 = sphi 0, %s455
      %s457 = sphi 0, %s455
      %s458 = sphi 0, %s457
      %s472 = sphi 0, %s458
      %s476 = sphi 0, %s476
      %s478 = sphi 0, %s476
      %s479 = sphi 0, %s478
      %s493 = sphi 0, %s479
      %s497 = sphi 0, %s497
      %s499 = sphi 0, %s497
      %s500 = sphi 0, %s499
      %s514 = sphi 0, %s500
      %s518 = sphi 0, %s518
      %s520 = sphi 0, %s518
      %s521 = sphi 0, %s520
      %s535 = sphi 0, %s521
      %s539 = sphi 0, %s539
      %s541 = sphi 0, %s539
      %s542 = sphi 0, %s541
      %s556 = sphi 0, %s542
      %s560 = sphi 0, %s560
      %s562 = sphi 0, %s560
      %s563 = sphi 0, %s562
      %s577 = sphi 0, %s563
      %s581 = sphi 0, %s581
      %s583 = sphi 0, %s581
      %s584 = sphi 0, %s583
      %s598 = sphi 0, %s584
      %s602 = sphi 0, %s602
      %s604 = sphi 0, %s602
      %s605 = sphi 0, %s604
      %s619 = sphi 0, %s605
      %s623 = sphi 0, %s623
      %s625 = sphi 0, %s623
      %s626 = sphi 0, %s625
      %s640 = sphi 0, %s626
      %s644 = sphi 0, %s644
      %s646 = sphi 0, %s644
      %s647 = sphi 0, %s646
      %s661 = sphi 0, %s647
      %s665 = sphi 0, %s665
      %s667 = sphi 0, %s665
      %s668 = sphi 0, %s667
      %s682 = sphi 0, %s668
      %s686 = sphi 0, %s686
      %s688 = sphi 0, %s686
      %s689 = sphi 0, %s688
      %s703 = sphi 0, %s689
      %s707 = sphi 0, %s707
      %s709 = sphi 0, %s707
      %s710 = sphi 0, %s709
      %s724 = sphi 0, %s710
      %s728 = sphi 0, %s728
      %s730 = sphi 0, %s728
      %s731 = sphi 0, %s730
      %s745 = sphi 0, %s731
      %s749 = sphi 0, %s749
      %s751 = sphi 0, %s749
      %s752 = sphi 0, %s751
      %s766 = sphi 0, %s752
      %s770 = sphi 0, %s770
      %s772 = sphi 0, %s770
      %s773 = sphi 0, %s772
      %s787 = sphi 0, %s773
      %s791 = sphi 0, %s791
      %s793 = sphi 0, %s791
      %s794 = sphi 0, %s793
      %s808 = sphi 0, %s794
      %s812 = sphi 0, %s812
      %s814 = sphi 0, %s812
      %s815 = sphi 0, %s814
      %s829 = sphi 0, %s815
      %s833 = sphi 0, %s833
      %s835 = sphi 0, %s833
      %s836 = sphi 0, %s835
      %s850 = sphi 0, %s836
      %s854 = sphi 0, %s854
      %s856 = sphi 0, %s854
      %s857 = sphi 0, %s856
      %s871 = sphi 0, %s857
      %s875 = sphi 0, %s875
      %s877 = sphi 0, %s875
      %s878 = sphi 0, %s877
      %s892 = sphi 0, %s878
      %s896 = sphi 0, %s896
      %s898 = sphi 0, %s896
      %s899 = sphi 0, %s898
      %s913 = sphi 0, %s899
      %s917 = sphi 0, %s917
      %s919 = sphi 0, %s917
      %s920 = sphi 0, %s919
      %s934 = sphi 0, %s920
      %s938 = sphi 0, %s938
      %s940 = sphi 0, %s938
      %s941 = sphi 0, %s940
      %s955 = sphi 0, %s941
      %s959 = sphi 0, %s959
      %s961 = sphi 0, %s959
      %s962 = sphi 0, %s961
      %s976 = sphi 0, %s962
      %s980 = sphi 0, %s980
      %s982 = sphi 0, %s980
      %s983 = sphi 0, %s982
      %s997 = sphi 0, %s983
      %s1003 = sphi 0, %s1005
      %s1006 = sphi 0, %s1003
      %s1007 = sphi 0, %s1006
      %s1023 = sphi 0, %s1007
    $region4: #{posenet_forward.1} parent=1 // loop_header_branch
      %99 = sbr.rel (%p97) target = $region8
    $region5: #{posenet_forward.1} parent=1 // loop_body
      %s101 = ssub.s32 %s96, 1
      %s102 = ssub.s32 %s96, 2
      %s103 = sadd.s32 %s96, 1
      %s104 = ssub.s32 %s96, %s103
      %p105 = scmp.eq.s32.totalorder %s104, 0
      %s107 = sadd.s32 %s106, 1
      %s108 = scalar_select %p105, %s106, %s107
      %p111 = pneg %p105
      %p112 = scmp.eq.s32.totalorder %s96, 1
      %p113 = por %p111, %p112
      %p114 = scmp.ne.s32.totalorder %s106, %s109
      %p115 = scmp.eq.s32.totalorder %s96, 0
      %p116 = por %p114, %p115
      %p117 = scmp.ne.s32.totalorder %s106, %s109
      %p118 = scmp.eq.s32.totalorder %s101, 1
      %p119 = por %p117, %p118
      %p120 = scmp.ne.s32.totalorder %s109, %s110
      %p121 = scmp.eq.s32.totalorder %s101, 0
      %p122 = por %p120, %p121
      %p123 = scmp.ne.s32.totalorder %s109, %s110
      %p124 = scmp.eq.s32.totalorder %s102, 1
      %p125 = por %p123, %p124
      %p127 = scmp.ne.s32.totalorder %s110, %s126
      %p128 = scmp.eq.s32.totalorder %s102, 0
      %p129 = por %p127, %p128
      %s130 = ssub.s32 %s96, %s103
      %p131 = scmp.eq.s32.totalorder %s130, 0
      %s133 = sadd.s32 %s132, 1
      %s134 = scalar_select %p131, %s132, %s133
      %p137 = pneg %p131
      %p138 = scmp.eq.s32.totalorder %s96, 1
      %p139 = por %p137, %p138
      %p140 = scmp.ne.s32.totalorder %s132, %s135
      %p141 = scmp.eq.s32.totalorder %s96, 0
      %p142 = por %p140, %p141
      %p143 = scmp.ne.s32.totalorder %s132, %s135
      %p144 = scmp.eq.s32.totalorder %s101, 1
      %p145 = por %p143, %p144
      %p146 = scmp.ne.s32.totalorder %s135, %s136
      %p147 = scmp.eq.s32.totalorder %s101, 0
      %p148 = por %p146, %p147
      %p149 = scmp.ne.s32.totalorder %s135, %s136
      %p150 = scmp.eq.s32.totalorder %s102, 1
      %p151 = por %p149, %p150
      %p153 = scmp.ne.s32.totalorder %s136, %s152
      %p154 = scmp.eq.s32.totalorder %s102, 0
      %p155 = por %p153, %p154
      %s156 = ssub.s32 %s96, %s103
      %p157 = scmp.eq.s32.totalorder %s156, 0
      %s159 = sadd.s32 %s158, 1
      %s160 = scalar_select %p157, %s158, %s159
      %p163 = pneg %p157
      %p164 = scmp.eq.s32.totalorder %s96, 1
      %p165 = por %p163, %p164
      %p166 = scmp.ne.s32.totalorder %s158, %s161
      %p167 = scmp.eq.s32.totalorder %s96, 0
      %p168 = por %p166, %p167
      %p169 = scmp.ne.s32.totalorder %s158, %s161
      %p170 = scmp.eq.s32.totalorder %s101, 1
      %p171 = por %p169, %p170
      %p172 = scmp.ne.s32.totalorder %s161, %s162
      %p173 = scmp.eq.s32.totalorder %s101, 0
      %p174 = por %p172, %p173
      %p175 = scmp.ne.s32.totalorder %s161, %s162
      %p176 = scmp.eq.s32.totalorder %s102, 1
      %p177 = por %p175, %p176
      %p179 = scmp.ne.s32.totalorder %s162, %s178
      %p180 = scmp.eq.s32.totalorder %s102, 0
      %p181 = por %p179, %p180
      %s183 = sadd.s32 %s182, 1
      %p186 = scmp.eq.s32.totalorder %s96, 1
      %p187 = scmp.ne.s32.totalorder %s182, %s184
      %p188 = scmp.eq.s32.totalorder %s96, 0
      %p189 = por %p187, %p188
      %p190 = scmp.ne.s32.totalorder %s182, %s184
      %p191 = scmp.eq.s32.totalorder %s101, 1
      %p192 = por %p190, %p191
      %p193 = scmp.ne.s32.totalorder %s184, %s185
      %p194 = scmp.eq.s32.totalorder %s101, 0
      %p195 = por %p193, %p194
      %p196 = scmp.ne.s32.totalorder %s184, %s185
      %p197 = scmp.eq.s32.totalorder %s102, 1
      %p198 = por %p196, %p197
      %p200 = scmp.ne.s32.totalorder %s185, %s199
      %p201 = scmp.eq.s32.totalorder %s102, 0
      %p202 = por %p200, %p201
      %s204 = sadd.s32 %s203, 1
      %p207 = scmp.eq.s32.totalorder %s96, 1
      %p208 = scmp.ne.s32.totalorder %s203, %s205
      %p209 = scmp.eq.s32.totalorder %s96, 0
      %p210 = por %p208, %p209
      %p211 = scmp.ne.s32.totalorder %s203, %s205
      %p212 = scmp.eq.s32.totalorder %s101, 1
      %p213 = por %p211, %p212
      %p214 = scmp.ne.s32.totalorder %s205, %s206
      %p215 = scmp.eq.s32.totalorder %s101, 0
      %p216 = por %p214, %p215
      %p217 = scmp.ne.s32.totalorder %s205, %s206
      %p218 = scmp.eq.s32.totalorder %s102, 1
      %p219 = por %p217, %p218
      %p221 = scmp.ne.s32.totalorder %s206, %s220
      %p222 = scmp.eq.s32.totalorder %s102, 0
      %p223 = por %p221, %p222
      %s225 = sadd.s32 %s224, 1
      %p228 = scmp.eq.s32.totalorder %s96, 1
      %p229 = scmp.ne.s32.totalorder %s224, %s226
      %p230 = scmp.eq.s32.totalorder %s96, 0
      %p231 = por %p229, %p230
      %p232 = scmp.ne.s32.totalorder %s224, %s226
      %p233 = scmp.eq.s32.totalorder %s101, 1
      %p234 = por %p232, %p233
      %p235 = scmp.ne.s32.totalorder %s226, %s227
      %p236 = scmp.eq.s32.totalorder %s101, 0
      %p237 = por %p235, %p236
      %p238 = scmp.ne.s32.totalorder %s226, %s227
      %p239 = scmp.eq.s32.totalorder %s102, 1
      %p240 = por %p238, %p239
      %p242 = scmp.ne.s32.totalorder %s227, %s241
      %p243 = scmp.eq.s32.totalorder %s102, 0
      %p244 = por %p242, %p243
      %s246 = sadd.s32 %s245, 1
      %p249 = scmp.eq.s32.totalorder %s96, 1
      %p250 = scmp.ne.s32.totalorder %s245, %s247
      %p251 = scmp.eq.s32.totalorder %s96, 0
      %p252 = por %p250, %p251
      %p253 = scmp.ne.s32.totalorder %s245, %s247
      %p254 = scmp.eq.s32.totalorder %s101, 1
      %p255 = por %p253, %p254
      %p256 = scmp.ne.s32.totalorder %s247, %s248
      %p257 = scmp.eq.s32.totalorder %s101, 0
      %p258 = por %p256, %p257
      %p259 = scmp.ne.s32.totalorder %s247, %s248
      %p260 = scmp.eq.s32.totalorder %s102, 1
      %p261 = por %p259, %p260
      %p263 = scmp.ne.s32.totalorder %s248, %s262
      %p264 = scmp.eq.s32.totalorder %s102, 0
      %p265 = por %p263, %p264
      %s267 = sadd.s32 %s266, 1
      %p270 = scmp.eq.s32.totalorder %s96, 1
      %p271 = scmp.ne.s32.totalorder %s266, %s268
      %p272 = scmp.eq.s32.totalorder %s96, 0
      %p273 = por %p271, %p272
      %p274 = scmp.ne.s32.totalorder %s266, %s268
      %p275 = scmp.eq.s32.totalorder %s101, 1
      %p276 = por %p274, %p275
      %p277 = scmp.ne.s32.totalorder %s268, %s269
      %p278 = scmp.eq.s32.totalorder %s101, 0
      %p279 = por %p277, %p278
      %p280 = scmp.ne.s32.totalorder %s268, %s269
      %p281 = scmp.eq.s32.totalorder %s102, 1
      %p282 = por %p280, %p281
      %p284 = scmp.ne.s32.totalorder %s269, %s283
      %p285 = scmp.eq.s32.totalorder %s102, 0
      %p286 = por %p284, %p285
      %s288 = sadd.s32 %s287, 1
      %p291 = scmp.eq.s32.totalorder %s96, 1
      %p292 = scmp.ne.s32.totalorder %s287, %s289
      %p293 = scmp.eq.s32.totalorder %s96, 0
      %p294 = por %p292, %p293
      %p295 = scmp.ne.s32.totalorder %s287, %s289
      %p296 = scmp.eq.s32.totalorder %s101, 1
      %p297 = por %p295, %p296
      %p298 = scmp.ne.s32.totalorder %s289, %s290
      %p299 = scmp.eq.s32.totalorder %s101, 0
      %p300 = por %p298, %p299
      %p301 = scmp.ne.s32.totalorder %s289, %s290
      %p302 = scmp.eq.s32.totalorder %s102, 1
      %p303 = por %p301, %p302
      %p305 = scmp.ne.s32.totalorder %s290, %s304
      %p306 = scmp.eq.s32.totalorder %s102, 0
      %p307 = por %p305, %p306
      %s309 = sadd.s32 %s308, 1
      %p312 = scmp.eq.s32.totalorder %s96, 1
      %p313 = scmp.ne.s32.totalorder %s308, %s310
      %p314 = scmp.eq.s32.totalorder %s96, 0
      %p315 = por %p313, %p314
      %p316 = scmp.ne.s32.totalorder %s308, %s310
      %p317 = scmp.eq.s32.totalorder %s101, 1
      %p318 = por %p316, %p317
      %p319 = scmp.ne.s32.totalorder %s310, %s311
      %p320 = scmp.eq.s32.totalorder %s101, 0
      %p321 = por %p319, %p320
      %p322 = scmp.ne.s32.totalorder %s310, %s311
      %p323 = scmp.eq.s32.totalorder %s102, 1
      %p324 = por %p322, %p323
      %p326 = scmp.ne.s32.totalorder %s311, %s325
      %p327 = scmp.eq.s32.totalorder %s102, 0
      %p328 = por %p326, %p327
      %s330 = sadd.s32 %s329, 1
      %p333 = scmp.eq.s32.totalorder %s96, 1
      %p334 = scmp.ne.s32.totalorder %s329, %s331
      %p335 = scmp.eq.s32.totalorder %s96, 0
      %p336 = por %p334, %p335
      %p337 = scmp.ne.s32.totalorder %s329, %s331
      %p338 = scmp.eq.s32.totalorder %s101, 1
      %p339 = por %p337, %p338
      %p340 = scmp.ne.s32.totalorder %s331, %s332
      %p341 = scmp.eq.s32.totalorder %s101, 0
      %p342 = por %p340, %p341
      %p343 = scmp.ne.s32.totalorder %s331, %s332
      %p344 = scmp.eq.s32.totalorder %s102, 1
      %p345 = por %p343, %p344
      %p347 = scmp.ne.s32.totalorder %s332, %s346
      %p348 = scmp.eq.s32.totalorder %s102, 0
      %p349 = por %p347, %p348
      %s351 = sadd.s32 %s350, 1
      %p354 = scmp.eq.s32.totalorder %s96, 1
      %p355 = scmp.ne.s32.totalorder %s350, %s352
      %p356 = scmp.eq.s32.totalorder %s96, 0
      %p357 = por %p355, %p356
      %p358 = scmp.ne.s32.totalorder %s350, %s352
      %p359 = scmp.eq.s32.totalorder %s101, 1
      %p360 = por %p358, %p359
      %p361 = scmp.ne.s32.totalorder %s352, %s353
      %p362 = scmp.eq.s32.totalorder %s101, 0
      %p363 = por %p361, %p362
      %p364 = scmp.ne.s32.totalorder %s352, %s353
      %p365 = scmp.eq.s32.totalorder %s102, 1
      %p366 = por %p364, %p365
      %p368 = scmp.ne.s32.totalorder %s353, %s367
      %p369 = scmp.eq.s32.totalorder %s102, 0
      %p370 = por %p368, %p369
      %s372 = sadd.s32 %s371, 1
      %p375 = scmp.eq.s32.totalorder %s96, 1
      %p376 = scmp.ne.s32.totalorder %s371, %s373
      %p377 = scmp.eq.s32.totalorder %s96, 0
      %p378 = por %p376, %p377
      %p379 = scmp.ne.s32.totalorder %s371, %s373
      %p380 = scmp.eq.s32.totalorder %s101, 1
      %p381 = por %p379, %p380
      %p382 = scmp.ne.s32.totalorder %s373, %s374
      %p383 = scmp.eq.s32.totalorder %s101, 0
      %p384 = por %p382, %p383
      %p385 = scmp.ne.s32.totalorder %s373, %s374
      %p386 = scmp.eq.s32.totalorder %s102, 1
      %p387 = por %p385, %p386
      %p389 = scmp.ne.s32.totalorder %s374, %s388
      %p390 = scmp.eq.s32.totalorder %s102, 0
      %p391 = por %p389, %p390
      %s393 = sadd.s32 %s392, 1
      %p396 = scmp.eq.s32.totalorder %s96, 1
      %p397 = scmp.ne.s32.totalorder %s392, %s394
      %p398 = scmp.eq.s32.totalorder %s96, 0
      %p399 = por %p397, %p398
      %p400 = scmp.ne.s32.totalorder %s392, %s394
      %p401 = scmp.eq.s32.totalorder %s101, 1
      %p402 = por %p400, %p401
      %p403 = scmp.ne.s32.totalorder %s394, %s395
      %p404 = scmp.eq.s32.totalorder %s101, 0
      %p405 = por %p403, %p404
      %p406 = scmp.ne.s32.totalorder %s394, %s395
      %p407 = scmp.eq.s32.totalorder %s102, 1
      %p408 = por %p406, %p407
      %p410 = scmp.ne.s32.totalorder %s395, %s409
      %p411 = scmp.eq.s32.totalorder %s102, 0
      %p412 = por %p410, %p411
      %s414 = sadd.s32 %s413, 1
      %p417 = scmp.eq.s32.totalorder %s96, 1
      %p418 = scmp.ne.s32.totalorder %s413, %s415
      %p419 = scmp.eq.s32.totalorder %s96, 0
      %p420 = por %p418, %p419
      %p421 = scmp.ne.s32.totalorder %s413, %s415
      %p422 = scmp.eq.s32.totalorder %s101, 1
      %p423 = por %p421, %p422
      %p424 = scmp.ne.s32.totalorder %s415, %s416
      %p425 = scmp.eq.s32.totalorder %s101, 0
      %p426 = por %p424, %p425
      %p427 = scmp.ne.s32.totalorder %s415, %s416
      %p428 = scmp.eq.s32.totalorder %s102, 1
      %p429 = por %p427, %p428
      %p431 = scmp.ne.s32.totalorder %s416, %s430
      %p432 = scmp.eq.s32.totalorder %s102, 0
      %p433 = por %p431, %p432
      %s435 = sadd.s32 %s434, 1
      %p438 = scmp.eq.s32.totalorder %s96, 1
      %p439 = scmp.ne.s32.totalorder %s434, %s436
      %p440 = scmp.eq.s32.totalorder %s96, 0
      %p441 = por %p439, %p440
      %p442 = scmp.ne.s32.totalorder %s434, %s436
      %p443 = scmp.eq.s32.totalorder %s101, 1
      %p444 = por %p442, %p443
      %p445 = scmp.ne.s32.totalorder %s436, %s437
      %p446 = scmp.eq.s32.totalorder %s101, 0
      %p447 = por %p445, %p446
      %p448 = scmp.ne.s32.totalorder %s436, %s437
      %p449 = scmp.eq.s32.totalorder %s102, 1
      %p450 = por %p448, %p449
      %p452 = scmp.ne.s32.totalorder %s437, %s451
      %p453 = scmp.eq.s32.totalorder %s102, 0
      %p454 = por %p452, %p453
      %s456 = sadd.s32 %s455, 1
      %p459 = scmp.eq.s32.totalorder %s96, 1
      %p460 = scmp.ne.s32.totalorder %s455, %s457
      %p461 = scmp.eq.s32.totalorder %s96, 0
      %p462 = por %p460, %p461
      %p463 = scmp.ne.s32.totalorder %s455, %s457
      %p464 = scmp.eq.s32.totalorder %s101, 1
      %p465 = por %p463, %p464
      %p466 = scmp.ne.s32.totalorder %s457, %s458
      %p467 = scmp.eq.s32.totalorder %s101, 0
      %p468 = por %p466, %p467
      %p469 = scmp.ne.s32.totalorder %s457, %s458
      %p470 = scmp.eq.s32.totalorder %s102, 1
      %p471 = por %p469, %p470
      %p473 = scmp.ne.s32.totalorder %s458, %s472
      %p474 = scmp.eq.s32.totalorder %s102, 0
      %p475 = por %p473, %p474
      %s477 = sadd.s32 %s476, 1
      %p480 = scmp.eq.s32.totalorder %s96, 1
      %p481 = scmp.ne.s32.totalorder %s476, %s478
      %p482 = scmp.eq.s32.totalorder %s96, 0
      %p483 = por %p481, %p482
      %p484 = scmp.ne.s32.totalorder %s476, %s478
      %p485 = scmp.eq.s32.totalorder %s101, 1
      %p486 = por %p484, %p485
      %p487 = scmp.ne.s32.totalorder %s478, %s479
      %p488 = scmp.eq.s32.totalorder %s101, 0
      %p489 = por %p487, %p488
      %p490 = scmp.ne.s32.totalorder %s478, %s479
      %p491 = scmp.eq.s32.totalorder %s102, 1
      %p492 = por %p490, %p491
      %p494 = scmp.ne.s32.totalorder %s479, %s493
      %p495 = scmp.eq.s32.totalorder %s102, 0
      %p496 = por %p494, %p495
      %s498 = sadd.s32 %s497, 1
      %p501 = scmp.eq.s32.totalorder %s96, 1
      %p502 = scmp.ne.s32.totalorder %s497, %s499
      %p503 = scmp.eq.s32.totalorder %s96, 0
      %p504 = por %p502, %p503
      %p505 = scmp.ne.s32.totalorder %s497, %s499
      %p506 = scmp.eq.s32.totalorder %s101, 1
      %p507 = por %p505, %p506
      %p508 = scmp.ne.s32.totalorder %s499, %s500
      %p509 = scmp.eq.s32.totalorder %s101, 0
      %p510 = por %p508, %p509
      %p511 = scmp.ne.s32.totalorder %s499, %s500
      %p512 = scmp.eq.s32.totalorder %s102, 1
      %p513 = por %p511, %p512
      %p515 = scmp.ne.s32.totalorder %s500, %s514
      %p516 = scmp.eq.s32.totalorder %s102, 0
      %p517 = por %p515, %p516
      %s519 = sadd.s32 %s518, 1
      %p522 = scmp.eq.s32.totalorder %s96, 1
      %p523 = scmp.ne.s32.totalorder %s518, %s520
      %p524 = scmp.eq.s32.totalorder %s96, 0
      %p525 = por %p523, %p524
      %p526 = scmp.ne.s32.totalorder %s518, %s520
      %p527 = scmp.eq.s32.totalorder %s101, 1
      %p528 = por %p526, %p527
      %p529 = scmp.ne.s32.totalorder %s520, %s521
      %p530 = scmp.eq.s32.totalorder %s101, 0
      %p531 = por %p529, %p530
      %p532 = scmp.ne.s32.totalorder %s520, %s521
      %p533 = scmp.eq.s32.totalorder %s102, 1
      %p534 = por %p532, %p533
      %p536 = scmp.ne.s32.totalorder %s521, %s535
      %p537 = scmp.eq.s32.totalorder %s102, 0
      %p538 = por %p536, %p537
      %s540 = sadd.s32 %s539, 1
      %p543 = scmp.eq.s32.totalorder %s96, 1
      %p544 = scmp.ne.s32.totalorder %s539, %s541
      %p545 = scmp.eq.s32.totalorder %s96, 0
      %p546 = por %p544, %p545
      %p547 = scmp.ne.s32.totalorder %s539, %s541
      %p548 = scmp.eq.s32.totalorder %s101, 1
      %p549 = por %p547, %p548
      %p550 = scmp.ne.s32.totalorder %s541, %s542
      %p551 = scmp.eq.s32.totalorder %s101, 0
      %p552 = por %p550, %p551
      %p553 = scmp.ne.s32.totalorder %s541, %s542
      %p554 = scmp.eq.s32.totalorder %s102, 1
      %p555 = por %p553, %p554
      %p557 = scmp.ne.s32.totalorder %s542, %s556
      %p558 = scmp.eq.s32.totalorder %s102, 0
      %p559 = por %p557, %p558
      %s561 = sadd.s32 %s560, 1
      %p564 = scmp.eq.s32.totalorder %s96, 1
      %p565 = scmp.ne.s32.totalorder %s560, %s562
      %p566 = scmp.eq.s32.totalorder %s96, 0
      %p567 = por %p565, %p566
      %p568 = scmp.ne.s32.totalorder %s560, %s562
      %p569 = scmp.eq.s32.totalorder %s101, 1
      %p570 = por %p568, %p569
      %p571 = scmp.ne.s32.totalorder %s562, %s563
      %p572 = scmp.eq.s32.totalorder %s101, 0
      %p573 = por %p571, %p572
      %p574 = scmp.ne.s32.totalorder %s562, %s563
      %p575 = scmp.eq.s32.totalorder %s102, 1
      %p576 = por %p574, %p575
      %p578 = scmp.ne.s32.totalorder %s563, %s577
      %p579 = scmp.eq.s32.totalorder %s102, 0
      %p580 = por %p578, %p579
      %s582 = sadd.s32 %s581, 1
      %p585 = scmp.eq.s32.totalorder %s96, 1
      %p586 = scmp.ne.s32.totalorder %s581, %s583
      %p587 = scmp.eq.s32.totalorder %s96, 0
      %p588 = por %p586, %p587
      %p589 = scmp.ne.s32.totalorder %s581, %s583
      %p590 = scmp.eq.s32.totalorder %s101, 1
      %p591 = por %p589, %p590
      %p592 = scmp.ne.s32.totalorder %s583, %s584
      %p593 = scmp.eq.s32.totalorder %s101, 0
      %p594 = por %p592, %p593
      %p595 = scmp.ne.s32.totalorder %s583, %s584
      %p596 = scmp.eq.s32.totalorder %s102, 1
      %p597 = por %p595, %p596
      %p599 = scmp.ne.s32.totalorder %s584, %s598
      %p600 = scmp.eq.s32.totalorder %s102, 0
      %p601 = por %p599, %p600
      %s603 = sadd.s32 %s602, 1
      %p606 = scmp.eq.s32.totalorder %s96, 1
      %p607 = scmp.ne.s32.totalorder %s602, %s604
      %p608 = scmp.eq.s32.totalorder %s96, 0
      %p609 = por %p607, %p608
      %p610 = scmp.ne.s32.totalorder %s602, %s604
      %p611 = scmp.eq.s32.totalorder %s101, 1
      %p612 = por %p610, %p611
      %p613 = scmp.ne.s32.totalorder %s604, %s605
      %p614 = scmp.eq.s32.totalorder %s101, 0
      %p615 = por %p613, %p614
      %p616 = scmp.ne.s32.totalorder %s604, %s605
      %p617 = scmp.eq.s32.totalorder %s102, 1
      %p618 = por %p616, %p617
      %p620 = scmp.ne.s32.totalorder %s605, %s619
      %p621 = scmp.eq.s32.totalorder %s102, 0
      %p622 = por %p620, %p621
      %s624 = sadd.s32 %s623, 1
      %p627 = scmp.eq.s32.totalorder %s96, 1
      %p628 = scmp.ne.s32.totalorder %s623, %s625
      %p629 = scmp.eq.s32.totalorder %s96, 0
      %p630 = por %p628, %p629
      %p631 = scmp.ne.s32.totalorder %s623, %s625
      %p632 = scmp.eq.s32.totalorder %s101, 1
      %p633 = por %p631, %p632
      %p634 = scmp.ne.s32.totalorder %s625, %s626
      %p635 = scmp.eq.s32.totalorder %s101, 0
      %p636 = por %p634, %p635
      %p637 = scmp.ne.s32.totalorder %s625, %s626
      %p638 = scmp.eq.s32.totalorder %s102, 1
      %p639 = por %p637, %p638
      %p641 = scmp.ne.s32.totalorder %s626, %s640
      %p642 = scmp.eq.s32.totalorder %s102, 0
      %p643 = por %p641, %p642
      %s645 = sadd.s32 %s644, 1
      %p648 = scmp.eq.s32.totalorder %s96, 1
      %p649 = scmp.ne.s32.totalorder %s644, %s646
      %p650 = scmp.eq.s32.totalorder %s96, 0
      %p651 = por %p649, %p650
      %p652 = scmp.ne.s32.totalorder %s644, %s646
      %p653 = scmp.eq.s32.totalorder %s101, 1
      %p654 = por %p652, %p653
      %p655 = scmp.ne.s32.totalorder %s646, %s647
      %p656 = scmp.eq.s32.totalorder %s101, 0
      %p657 = por %p655, %p656
      %p658 = scmp.ne.s32.totalorder %s646, %s647
      %p659 = scmp.eq.s32.totalorder %s102, 1
      %p660 = por %p658, %p659
      %p662 = scmp.ne.s32.totalorder %s647, %s661
      %p663 = scmp.eq.s32.totalorder %s102, 0
      %p664 = por %p662, %p663
      %s666 = sadd.s32 %s665, 1
      %p669 = scmp.eq.s32.totalorder %s96, 1
      %p670 = scmp.ne.s32.totalorder %s665, %s667
      %p671 = scmp.eq.s32.totalorder %s96, 0
      %p672 = por %p670, %p671
      %p673 = scmp.ne.s32.totalorder %s665, %s667
      %p674 = scmp.eq.s32.totalorder %s101, 1
      %p675 = por %p673, %p674
      %p676 = scmp.ne.s32.totalorder %s667, %s668
      %p677 = scmp.eq.s32.totalorder %s101, 0
      %p678 = por %p676, %p677
      %p679 = scmp.ne.s32.totalorder %s667, %s668
      %p680 = scmp.eq.s32.totalorder %s102, 1
      %p681 = por %p679, %p680
      %p683 = scmp.ne.s32.totalorder %s668, %s682
      %p684 = scmp.eq.s32.totalorder %s102, 0
      %p685 = por %p683, %p684
      %s687 = sadd.s32 %s686, 1
      %p690 = scmp.eq.s32.totalorder %s96, 1
      %p691 = scmp.ne.s32.totalorder %s686, %s688
      %p692 = scmp.eq.s32.totalorder %s96, 0
      %p693 = por %p691, %p692
      %p694 = scmp.ne.s32.totalorder %s686, %s688
      %p695 = scmp.eq.s32.totalorder %s101, 1
      %p696 = por %p694, %p695
      %p697 = scmp.ne.s32.totalorder %s688, %s689
      %p698 = scmp.eq.s32.totalorder %s101, 0
      %p699 = por %p697, %p698
      %p700 = scmp.ne.s32.totalorder %s688, %s689
      %p701 = scmp.eq.s32.totalorder %s102, 1
      %p702 = por %p700, %p701
      %p704 = scmp.ne.s32.totalorder %s689, %s703
      %p705 = scmp.eq.s32.totalorder %s102, 0
      %p706 = por %p704, %p705
      %s708 = sadd.s32 %s707, 1
      %p711 = scmp.eq.s32.totalorder %s96, 1
      %p712 = scmp.ne.s32.totalorder %s707, %s709
      %p713 = scmp.eq.s32.totalorder %s96, 0
      %p714 = por %p712, %p713
      %p715 = scmp.ne.s32.totalorder %s707, %s709
      %p716 = scmp.eq.s32.totalorder %s101, 1
      %p717 = por %p715, %p716
      %p718 = scmp.ne.s32.totalorder %s709, %s710
      %p719 = scmp.eq.s32.totalorder %s101, 0
      %p720 = por %p718, %p719
      %p721 = scmp.ne.s32.totalorder %s709, %s710
      %p722 = scmp.eq.s32.totalorder %s102, 1
      %p723 = por %p721, %p722
      %p725 = scmp.ne.s32.totalorder %s710, %s724
      %p726 = scmp.eq.s32.totalorder %s102, 0
      %p727 = por %p725, %p726
      %s729 = sadd.s32 %s728, 1
      %p732 = scmp.eq.s32.totalorder %s96, 1
      %p733 = scmp.ne.s32.totalorder %s728, %s730
      %p734 = scmp.eq.s32.totalorder %s96, 0
      %p735 = por %p733, %p734
      %p736 = scmp.ne.s32.totalorder %s728, %s730
      %p737 = scmp.eq.s32.totalorder %s101, 1
      %p738 = por %p736, %p737
      %p739 = scmp.ne.s32.totalorder %s730, %s731
      %p740 = scmp.eq.s32.totalorder %s101, 0
      %p741 = por %p739, %p740
      %p742 = scmp.ne.s32.totalorder %s730, %s731
      %p743 = scmp.eq.s32.totalorder %s102, 1
      %p744 = por %p742, %p743
      %p746 = scmp.ne.s32.totalorder %s731, %s745
      %p747 = scmp.eq.s32.totalorder %s102, 0
      %p748 = por %p746, %p747
      %s750 = sadd.s32 %s749, 1
      %p753 = scmp.eq.s32.totalorder %s96, 1
      %p754 = scmp.ne.s32.totalorder %s749, %s751
      %p755 = scmp.eq.s32.totalorder %s96, 0
      %p756 = por %p754, %p755
      %p757 = scmp.ne.s32.totalorder %s749, %s751
      %p758 = scmp.eq.s32.totalorder %s101, 1
      %p759 = por %p757, %p758
      %p760 = scmp.ne.s32.totalorder %s751, %s752
      %p761 = scmp.eq.s32.totalorder %s101, 0
      %p762 = por %p760, %p761
      %p763 = scmp.ne.s32.totalorder %s751, %s752
      %p764 = scmp.eq.s32.totalorder %s102, 1
      %p765 = por %p763, %p764
      %p767 = scmp.ne.s32.totalorder %s752, %s766
      %p768 = scmp.eq.s32.totalorder %s102, 0
      %p769 = por %p767, %p768
      %s771 = sadd.s32 %s770, 1
      %p774 = scmp.eq.s32.totalorder %s96, 1
      %p775 = scmp.ne.s32.totalorder %s770, %s772
      %p776 = scmp.eq.s32.totalorder %s96, 0
      %p777 = por %p775, %p776
      %p778 = scmp.ne.s32.totalorder %s770, %s772
      %p779 = scmp.eq.s32.totalorder %s101, 1
      %p780 = por %p778, %p779
      %p781 = scmp.ne.s32.totalorder %s772, %s773
      %p782 = scmp.eq.s32.totalorder %s101, 0
      %p783 = por %p781, %p782
      %p784 = scmp.ne.s32.totalorder %s772, %s773
      %p785 = scmp.eq.s32.totalorder %s102, 1
      %p786 = por %p784, %p785
      %p788 = scmp.ne.s32.totalorder %s773, %s787
      %p789 = scmp.eq.s32.totalorder %s102, 0
      %p790 = por %p788, %p789
      %s792 = sadd.s32 %s791, 1
      %p795 = scmp.eq.s32.totalorder %s96, 1
      %p796 = scmp.ne.s32.totalorder %s791, %s793
      %p797 = scmp.eq.s32.totalorder %s96, 0
      %p798 = por %p796, %p797
      %p799 = scmp.ne.s32.totalorder %s791, %s793
      %p800 = scmp.eq.s32.totalorder %s101, 1
      %p801 = por %p799, %p800
      %p802 = scmp.ne.s32.totalorder %s793, %s794
      %p803 = scmp.eq.s32.totalorder %s101, 0
      %p804 = por %p802, %p803
      %p805 = scmp.ne.s32.totalorder %s793, %s794
      %p806 = scmp.eq.s32.totalorder %s102, 1
      %p807 = por %p805, %p806
      %p809 = scmp.ne.s32.totalorder %s794, %s808
      %p810 = scmp.eq.s32.totalorder %s102, 0
      %p811 = por %p809, %p810
      %s813 = sadd.s32 %s812, 1
      %p816 = scmp.eq.s32.totalorder %s96, 1
      %p817 = scmp.ne.s32.totalorder %s812, %s814
      %p818 = scmp.eq.s32.totalorder %s96, 0
      %p819 = por %p817, %p818
      %p820 = scmp.ne.s32.totalorder %s812, %s814
      %p821 = scmp.eq.s32.totalorder %s101, 1
      %p822 = por %p820, %p821
      %p823 = scmp.ne.s32.totalorder %s814, %s815
      %p824 = scmp.eq.s32.totalorder %s101, 0
      %p825 = por %p823, %p824
      %p826 = scmp.ne.s32.totalorder %s814, %s815
      %p827 = scmp.eq.s32.totalorder %s102, 1
      %p828 = por %p826, %p827
      %p830 = scmp.ne.s32.totalorder %s815, %s829
      %p831 = scmp.eq.s32.totalorder %s102, 0
      %p832 = por %p830, %p831
      %s834 = sadd.s32 %s833, 1
      %p837 = scmp.eq.s32.totalorder %s96, 1
      %p838 = scmp.ne.s32.totalorder %s833, %s835
      %p839 = scmp.eq.s32.totalorder %s96, 0
      %p840 = por %p838, %p839
      %p841 = scmp.ne.s32.totalorder %s833, %s835
      %p842 = scmp.eq.s32.totalorder %s101, 1
      %p843 = por %p841, %p842
      %p844 = scmp.ne.s32.totalorder %s835, %s836
      %p845 = scmp.eq.s32.totalorder %s101, 0
      %p846 = por %p844, %p845
      %p847 = scmp.ne.s32.totalorder %s835, %s836
      %p848 = scmp.eq.s32.totalorder %s102, 1
      %p849 = por %p847, %p848
      %p851 = scmp.ne.s32.totalorder %s836, %s850
      %p852 = scmp.eq.s32.totalorder %s102, 0
      %p853 = por %p851, %p852
      %s855 = sadd.s32 %s854, 1
      %p858 = scmp.eq.s32.totalorder %s96, 1
      %p859 = scmp.ne.s32.totalorder %s854, %s856
      %p860 = scmp.eq.s32.totalorder %s96, 0
      %p861 = por %p859, %p860
      %p862 = scmp.ne.s32.totalorder %s854, %s856
      %p863 = scmp.eq.s32.totalorder %s101, 1
      %p864 = por %p862, %p863
      %p865 = scmp.ne.s32.totalorder %s856, %s857
      %p866 = scmp.eq.s32.totalorder %s101, 0
      %p867 = por %p865, %p866
      %p868 = scmp.ne.s32.totalorder %s856, %s857
      %p869 = scmp.eq.s32.totalorder %s102, 1
      %p870 = por %p868, %p869
      %p872 = scmp.ne.s32.totalorder %s857, %s871
      %p873 = scmp.eq.s32.totalorder %s102, 0
      %p874 = por %p872, %p873
      %s876 = sadd.s32 %s875, 1
      %p879 = scmp.eq.s32.totalorder %s96, 1
      %p880 = scmp.ne.s32.totalorder %s875, %s877
      %p881 = scmp.eq.s32.totalorder %s96, 0
      %p882 = por %p880, %p881
      %p883 = scmp.ne.s32.totalorder %s875, %s877
      %p884 = scmp.eq.s32.totalorder %s101, 1
      %p885 = por %p883, %p884
      %p886 = scmp.ne.s32.totalorder %s877, %s878
      %p887 = scmp.eq.s32.totalorder %s101, 0
      %p888 = por %p886, %p887
      %p889 = scmp.ne.s32.totalorder %s877, %s878
      %p890 = scmp.eq.s32.totalorder %s102, 1
      %p891 = por %p889, %p890
      %p893 = scmp.ne.s32.totalorder %s878, %s892
      %p894 = scmp.eq.s32.totalorder %s102, 0
      %p895 = por %p893, %p894
      %s897 = sadd.s32 %s896, 1
      %p900 = scmp.eq.s32.totalorder %s96, 1
      %p901 = scmp.ne.s32.totalorder %s896, %s898
      %p902 = scmp.eq.s32.totalorder %s96, 0
      %p903 = por %p901, %p902
      %p904 = scmp.ne.s32.totalorder %s896, %s898
      %p905 = scmp.eq.s32.totalorder %s101, 1
      %p906 = por %p904, %p905
      %p907 = scmp.ne.s32.totalorder %s898, %s899
      %p908 = scmp.eq.s32.totalorder %s101, 0
      %p909 = por %p907, %p908
      %p910 = scmp.ne.s32.totalorder %s898, %s899
      %p911 = scmp.eq.s32.totalorder %s102, 1
      %p912 = por %p910, %p911
      %p914 = scmp.ne.s32.totalorder %s899, %s913
      %p915 = scmp.eq.s32.totalorder %s102, 0
      %p916 = por %p914, %p915
      %s918 = sadd.s32 %s917, 1
      %p921 = scmp.eq.s32.totalorder %s96, 1
      %p922 = scmp.ne.s32.totalorder %s917, %s919
      %p923 = scmp.eq.s32.totalorder %s96, 0
      %p924 = por %p922, %p923
      %p925 = scmp.ne.s32.totalorder %s917, %s919
      %p926 = scmp.eq.s32.totalorder %s101, 1
      %p927 = por %p925, %p926
      %p928 = scmp.ne.s32.totalorder %s919, %s920
      %p929 = scmp.eq.s32.totalorder %s101, 0
      %p930 = por %p928, %p929
      %p931 = scmp.ne.s32.totalorder %s919, %s920
      %p932 = scmp.eq.s32.totalorder %s102, 1
      %p933 = por %p931, %p932
      %p935 = scmp.ne.s32.totalorder %s920, %s934
      %p936 = scmp.eq.s32.totalorder %s102, 0
      %p937 = por %p935, %p936
      %s939 = sadd.s32 %s938, 1
      %p942 = scmp.eq.s32.totalorder %s96, 1
      %p943 = scmp.ne.s32.totalorder %s938, %s940
      %p944 = scmp.eq.s32.totalorder %s96, 0
      %p945 = por %p943, %p944
      %p946 = scmp.ne.s32.totalorder %s938, %s940
      %p947 = scmp.eq.s32.totalorder %s101, 1
      %p948 = por %p946, %p947
      %p949 = scmp.ne.s32.totalorder %s940, %s941
      %p950 = scmp.eq.s32.totalorder %s101, 0
      %p951 = por %p949, %p950
      %p952 = scmp.ne.s32.totalorder %s940, %s941
      %p953 = scmp.eq.s32.totalorder %s102, 1
      %p954 = por %p952, %p953
      %p956 = scmp.ne.s32.totalorder %s941, %s955
      %p957 = scmp.eq.s32.totalorder %s102, 0
      %p958 = por %p956, %p957
      %s960 = sadd.s32 %s959, 1
      %p963 = scmp.eq.s32.totalorder %s96, 1
      %p964 = scmp.ne.s32.totalorder %s959, %s961
      %p965 = scmp.eq.s32.totalorder %s96, 0
      %p966 = por %p964, %p965
      %p967 = scmp.ne.s32.totalorder %s959, %s961
      %p968 = scmp.eq.s32.totalorder %s101, 1
      %p969 = por %p967, %p968
      %p970 = scmp.ne.s32.totalorder %s961, %s962
      %p971 = scmp.eq.s32.totalorder %s101, 0
      %p972 = por %p970, %p971
      %p973 = scmp.ne.s32.totalorder %s961, %s962
      %p974 = scmp.eq.s32.totalorder %s102, 1
      %p975 = por %p973, %p974
      %p977 = scmp.ne.s32.totalorder %s962, %s976
      %p978 = scmp.eq.s32.totalorder %s102, 0
      %p979 = por %p977, %p978
      %s981 = sadd.s32 %s980, 1
      %p984 = scmp.eq.s32.totalorder %s96, 1
      %p985 = scmp.ne.s32.totalorder %s980, %s982
      %p986 = scmp.eq.s32.totalorder %s96, 0
      %p987 = por %p985, %p986
      %p988 = scmp.ne.s32.totalorder %s980, %s982
      %p989 = scmp.eq.s32.totalorder %s101, 1
      %p990 = por %p988, %p989
      %p991 = scmp.ne.s32.totalorder %s982, %s983
      %p992 = scmp.eq.s32.totalorder %s101, 0
      %p993 = por %p991, %p992
      %p994 = scmp.ne.s32.totalorder %s982, %s983
      %p995 = scmp.eq.s32.totalorder %s102, 1
      %p996 = por %p994, %p995
      %p998 = scmp.ne.s32.totalorder %s983, %s997
      %p999 = scmp.eq.s32.totalorder %s102, 0
      %p1000 = por %p998, %p999
      %s1001 = ssub.s32 %s96, %s103
      %p1002 = scmp.eq.s32.totalorder %s1001, 0
      %s1004 = sadd.s32 %s1003, 1
      %s1005 = scalar_select %p1002, %s1003, %s1004
      %p1008 = pneg %p1002
      %p1009 = scmp.eq.s32.totalorder %s96, 1
      %p1010 = por %p1008, %p1009
      %p1011 = scmp.ne.s32.totalorder %s1003, %s1006
      %p1012 = scmp.eq.s32.totalorder %s96, 0
      %p1013 = por %p1011, %p1012
      %p1014 = scmp.ne.s32.totalorder %s1003, %s1006
      %p1015 = scmp.eq.s32.totalorder %s101, 1
      %p1016 = por %p1014, %p1015
      %p1017 = scmp.ne.s32.totalorder %s1006, %s1007
      %p1018 = scmp.eq.s32.totalorder %s101, 0
      %p1019 = por %p1017, %p1018
      %p1020 = scmp.ne.s32.totalorder %s1006, %s1007
      %p1021 = scmp.eq.s32.totalorder %s102, 1
      %p1022 = por %p1020, %p1021
      %p1024 = scmp.ne.s32.totalorder %s1007, %s1023
      %p1025 = scmp.eq.s32.totalorder %s102, 0
      %p1026 = por %p1024, %p1025
      %p1027 = scmp.le.s32.totalorder 1, %s96
      %p1028 = scmp.lt.s32.totalorder %s96, 3
      %p1029 = pnand %p1027, %p1028
      %p1030 = pneg %p1029
      // Predicated region
      $region9: #{posenet_forward.1} parent=5 // pred_check
        _
      $region10: #{posenet_forward.1} parent=5 // pred_check_branch
        %1032 = sbr.rel (%p1029) target = $region12
      $region11: #{posenet_forward.1} parent=5 // pred_region
        %s1033 = ssub.s32 %s96, 1
        // Predicated region
        $region13: #{posenet_forward.1} parent=11 // pred_check
          %p1034 = pneg %p195
        $region14: #{posenet_forward.1} parent=11 // pred_check_branch
          %1036 = sbr.rel (%p1034) target = $region16
        $region15: #{posenet_forward.1} parent=11 // pred_region
          _
        $region16: #{posenet_forward.1} parent=11 // pred_fallthru
          _
        // Predicated region
        $region17: #{posenet_forward.1} parent=11 // pred_check
          %p1037 = pneg %p216
        $region18: #{posenet_forward.1} parent=11 // pred_check_branch
          %1039 = sbr.rel (%p1037) target = $region20
        $region19: #{posenet_forward.1} parent=11 // pred_region
          _
        $region20: #{posenet_forward.1} parent=11 // pred_fallthru
          _
        // Predicated region
        $region21: #{posenet_forward.1} parent=11 // pred_check
          %p1040 = pneg %p237
        $region22: #{posenet_forward.1} parent=11 // pred_check_branch
          %1042 = sbr.rel (%p1040) target = $region24
        $region23: #{posenet_forward.1} parent=11 // pred_region
          _
        $region24: #{posenet_forward.1} parent=11 // pred_fallthru
          _
        // Predicated region
        $region25: #{posenet_forward.1} parent=11 // pred_check
          %p1043 = pneg %p258
        $region26: #{posenet_forward.1} parent=11 // pred_check_branch
          %1045 = sbr.rel (%p1043) target = $region28
        $region27: #{posenet_forward.1} parent=11 // pred_region
          _
        $region28: #{posenet_forward.1} parent=11 // pred_fallthru
          _
        // Predicated region
        $region29: #{posenet_forward.1} parent=11 // pred_check
          %p1046 = pneg %p279
        $region30: #{posenet_forward.1} parent=11 // pred_check_branch
          %1048 = sbr.rel (%p1046) target = $region32
        $region31: #{posenet_forward.1} parent=11 // pred_region
          _
        $region32: #{posenet_forward.1} parent=11 // pred_fallthru
          _
        // Predicated region
        $region33: #{posenet_forward.1} parent=11 // pred_check
          %p1049 = pneg %p300
        $region34: #{posenet_forward.1} parent=11 // pred_check_branch
          %1051 = sbr.rel (%p1049) target = $region36
        $region35: #{posenet_forward.1} parent=11 // pred_region
          _
        $region36: #{posenet_forward.1} parent=11 // pred_fallthru
          _
        // Predicated region
        $region37: #{posenet_forward.1} parent=11 // pred_check
          %p1052 = pneg %p321
        $region38: #{posenet_forward.1} parent=11 // pred_check_branch
          %1054 = sbr.rel (%p1052) target = $region40
        $region39: #{posenet_forward.1} parent=11 // pred_region
          _
        $region40: #{posenet_forward.1} parent=11 // pred_fallthru
          _
        // Predicated region
        $region41: #{posenet_forward.1} parent=11 // pred_check
          %p1055 = pneg %p342
        $region42: #{posenet_forward.1} parent=11 // pred_check_branch
          %1057 = sbr.rel (%p1055) target = $region44
        $region43: #{posenet_forward.1} parent=11 // pred_region
          _
        $region44: #{posenet_forward.1} parent=11 // pred_fallthru
          _
        // Predicated region
        $region45: #{posenet_forward.1} parent=11 // pred_check
          %p1058 = pneg %p363
        $region46: #{posenet_forward.1} parent=11 // pred_check_branch
          %1060 = sbr.rel (%p1058) target = $region48
        $region47: #{posenet_forward.1} parent=11 // pred_region
          _
        $region48: #{posenet_forward.1} parent=11 // pred_fallthru
          _
        // Predicated region
        $region49: #{posenet_forward.1} parent=11 // pred_check
          %p1061 = pneg %p384
        $region50: #{posenet_forward.1} parent=11 // pred_check_branch
          %1063 = sbr.rel (%p1061) target = $region52
        $region51: #{posenet_forward.1} parent=11 // pred_region
          _
        $region52: #{posenet_forward.1} parent=11 // pred_fallthru
          _
        // Predicated region
        $region53: #{posenet_forward.1} parent=11 // pred_check
          %p1064 = pneg %p405
        $region54: #{posenet_forward.1} parent=11 // pred_check_branch
          %1066 = sbr.rel (%p1064) target = $region56
        $region55: #{posenet_forward.1} parent=11 // pred_region
          _
        $region56: #{posenet_forward.1} parent=11 // pred_fallthru
          _
        // Predicated region
        $region57: #{posenet_forward.1} parent=11 // pred_check
          %p1067 = pneg %p426
        $region58: #{posenet_forward.1} parent=11 // pred_check_branch
          %1069 = sbr.rel (%p1067) target = $region60
        $region59: #{posenet_forward.1} parent=11 // pred_region
          _
        $region60: #{posenet_forward.1} parent=11 // pred_fallthru
          _
        // Predicated region
        $region61: #{posenet_forward.1} parent=11 // pred_check
          %p1070 = pneg %p447
        $region62: #{posenet_forward.1} parent=11 // pred_check_branch
          %1072 = sbr.rel (%p1070) target = $region64
        $region63: #{posenet_forward.1} parent=11 // pred_region
          _
        $region64: #{posenet_forward.1} parent=11 // pred_fallthru
          _
        // Predicated region
        $region65: #{posenet_forward.1} parent=11 // pred_check
          %p1073 = pneg %p468
        $region66: #{posenet_forward.1} parent=11 // pred_check_branch
          %1075 = sbr.rel (%p1073) target = $region68
        $region67: #{posenet_forward.1} parent=11 // pred_region
          _
        $region68: #{posenet_forward.1} parent=11 // pred_fallthru
          _
        // Predicated region
        $region69: #{posenet_forward.1} parent=11 // pred_check
          %p1076 = pneg %p489
        $region70: #{posenet_forward.1} parent=11 // pred_check_branch
          %1078 = sbr.rel (%p1076) target = $region72
        $region71: #{posenet_forward.1} parent=11 // pred_region
          _
        $region72: #{posenet_forward.1} parent=11 // pred_fallthru
          _
        // Predicated region
        $region73: #{posenet_forward.1} parent=11 // pred_check
          %p1079 = pneg %p510
        $region74: #{posenet_forward.1} parent=11 // pred_check_branch
          %1081 = sbr.rel (%p1079) target = $region76
        $region75: #{posenet_forward.1} parent=11 // pred_region
          _
        $region76: #{posenet_forward.1} parent=11 // pred_fallthru
          _
        // Predicated region
        $region77: #{posenet_forward.1} parent=11 // pred_check
          %p1082 = pneg %p531
        $region78: #{posenet_forward.1} parent=11 // pred_check_branch
          %1084 = sbr.rel (%p1082) target = $region80
        $region79: #{posenet_forward.1} parent=11 // pred_region
          _
        $region80: #{posenet_forward.1} parent=11 // pred_fallthru
          _
        // Predicated region
        $region81: #{posenet_forward.1} parent=11 // pred_check
          %p1085 = pneg %p552
        $region82: #{posenet_forward.1} parent=11 // pred_check_branch
          %1087 = sbr.rel (%p1085) target = $region84
        $region83: #{posenet_forward.1} parent=11 // pred_region
          _
        $region84: #{posenet_forward.1} parent=11 // pred_fallthru
          _
        // Predicated region
        $region85: #{posenet_forward.1} parent=11 // pred_check
          %p1088 = pneg %p573
        $region86: #{posenet_forward.1} parent=11 // pred_check_branch
          %1090 = sbr.rel (%p1088) target = $region88
        $region87: #{posenet_forward.1} parent=11 // pred_region
          _
        $region88: #{posenet_forward.1} parent=11 // pred_fallthru
          _
        // Predicated region
        $region89: #{posenet_forward.1} parent=11 // pred_check
          %p1091 = pneg %p594
        $region90: #{posenet_forward.1} parent=11 // pred_check_branch
          %1093 = sbr.rel (%p1091) target = $region92
        $region91: #{posenet_forward.1} parent=11 // pred_region
          _
        $region92: #{posenet_forward.1} parent=11 // pred_fallthru
          _
        // Predicated region
        $region93: #{posenet_forward.1} parent=11 // pred_check
          %p1094 = pneg %p615
        $region94: #{posenet_forward.1} parent=11 // pred_check_branch
          %1096 = sbr.rel (%p1094) target = $region96
        $region95: #{posenet_forward.1} parent=11 // pred_region
          _
        $region96: #{posenet_forward.1} parent=11 // pred_fallthru
          _
        // Predicated region
        $region97: #{posenet_forward.1} parent=11 // pred_check
          %p1097 = pneg %p636
        $region98: #{posenet_forward.1} parent=11 // pred_check_branch
          %1099 = sbr.rel (%p1097) target = $region100
        $region99: #{posenet_forward.1} parent=11 // pred_region
          _
        $region100: #{posenet_forward.1} parent=11 // pred_fallthru
          _
        // Predicated region
        $region101: #{posenet_forward.1} parent=11 // pred_check
          %p1100 = pneg %p657
        $region102: #{posenet_forward.1} parent=11 // pred_check_branch
          %1102 = sbr.rel (%p1100) target = $region104
        $region103: #{posenet_forward.1} parent=11 // pred_region
          _
        $region104: #{posenet_forward.1} parent=11 // pred_fallthru
          _
        // Predicated region
        $region105: #{posenet_forward.1} parent=11 // pred_check
          %p1103 = pneg %p678
        $region106: #{posenet_forward.1} parent=11 // pred_check_branch
          %1105 = sbr.rel (%p1103) target = $region108
        $region107: #{posenet_forward.1} parent=11 // pred_region
          _
        $region108: #{posenet_forward.1} parent=11 // pred_fallthru
          _
        // Predicated region
        $region109: #{posenet_forward.1} parent=11 // pred_check
          %p1106 = pneg %p699
        $region110: #{posenet_forward.1} parent=11 // pred_check_branch
          %1108 = sbr.rel (%p1106) target = $region112
        $region111: #{posenet_forward.1} parent=11 // pred_region
          _
        $region112: #{posenet_forward.1} parent=11 // pred_fallthru
          _
        // Predicated region
        $region113: #{posenet_forward.1} parent=11 // pred_check
          %p1109 = pneg %p720
        $region114: #{posenet_forward.1} parent=11 // pred_check_branch
          %1111 = sbr.rel (%p1109) target = $region116
        $region115: #{posenet_forward.1} parent=11 // pred_region
          _
        $region116: #{posenet_forward.1} parent=11 // pred_fallthru
          _
        // Predicated region
        $region117: #{posenet_forward.1} parent=11 // pred_check
          %p1112 = pneg %p741
        $region118: #{posenet_forward.1} parent=11 // pred_check_branch
          %1114 = sbr.rel (%p1112) target = $region120
        $region119: #{posenet_forward.1} parent=11 // pred_region
          _
        $region120: #{posenet_forward.1} parent=11 // pred_fallthru
          _
        // Predicated region
        $region121: #{posenet_forward.1} parent=11 // pred_check
          %p1115 = pneg %p762
        $region122: #{posenet_forward.1} parent=11 // pred_check_branch
          %1117 = sbr.rel (%p1115) target = $region124
        $region123: #{posenet_forward.1} parent=11 // pred_region
          _
        $region124: #{posenet_forward.1} parent=11 // pred_fallthru
          _
        // Predicated region
        $region125: #{posenet_forward.1} parent=11 // pred_check
          %p1118 = pneg %p783
        $region126: #{posenet_forward.1} parent=11 // pred_check_branch
          %1120 = sbr.rel (%p1118) target = $region128
        $region127: #{posenet_forward.1} parent=11 // pred_region
          _
        $region128: #{posenet_forward.1} parent=11 // pred_fallthru
          _
        // Predicated region
        $region129: #{posenet_forward.1} parent=11 // pred_check
          %p1121 = pneg %p804
        $region130: #{posenet_forward.1} parent=11 // pred_check_branch
          %1123 = sbr.rel (%p1121) target = $region132
        $region131: #{posenet_forward.1} parent=11 // pred_region
          _
        $region132: #{posenet_forward.1} parent=11 // pred_fallthru
          _
        // Predicated region
        $region133: #{posenet_forward.1} parent=11 // pred_check
          %p1124 = pneg %p825
        $region134: #{posenet_forward.1} parent=11 // pred_check_branch
          %1126 = sbr.rel (%p1124) target = $region136
        $region135: #{posenet_forward.1} parent=11 // pred_region
          _
        $region136: #{posenet_forward.1} parent=11 // pred_fallthru
          _
        // Predicated region
        $region137: #{posenet_forward.1} parent=11 // pred_check
          %p1127 = pneg %p846
        $region138: #{posenet_forward.1} parent=11 // pred_check_branch
          %1129 = sbr.rel (%p1127) target = $region140
        $region139: #{posenet_forward.1} parent=11 // pred_region
          _
        $region140: #{posenet_forward.1} parent=11 // pred_fallthru
          _
        // Predicated region
        $region141: #{posenet_forward.1} parent=11 // pred_check
          %p1130 = pneg %p867
        $region142: #{posenet_forward.1} parent=11 // pred_check_branch
          %1132 = sbr.rel (%p1130) target = $region144
        $region143: #{posenet_forward.1} parent=11 // pred_region
          _
        $region144: #{posenet_forward.1} parent=11 // pred_fallthru
          _
        // Predicated region
        $region145: #{posenet_forward.1} parent=11 // pred_check
          %p1133 = pneg %p888
        $region146: #{posenet_forward.1} parent=11 // pred_check_branch
          %1135 = sbr.rel (%p1133) target = $region148
        $region147: #{posenet_forward.1} parent=11 // pred_region
          _
        $region148: #{posenet_forward.1} parent=11 // pred_fallthru
          _
        // Predicated region
        $region149: #{posenet_forward.1} parent=11 // pred_check
          %p1136 = pneg %p909
        $region150: #{posenet_forward.1} parent=11 // pred_check_branch
          %1138 = sbr.rel (%p1136) target = $region152
        $region151: #{posenet_forward.1} parent=11 // pred_region
          _
        $region152: #{posenet_forward.1} parent=11 // pred_fallthru
          _
        // Predicated region
        $region153: #{posenet_forward.1} parent=11 // pred_check
          %p1139 = pneg %p930
        $region154: #{posenet_forward.1} parent=11 // pred_check_branch
          %1141 = sbr.rel (%p1139) target = $region156
        $region155: #{posenet_forward.1} parent=11 // pred_region
          _
        $region156: #{posenet_forward.1} parent=11 // pred_fallthru
          _
        // Predicated region
        $region157: #{posenet_forward.1} parent=11 // pred_check
          %p1142 = pneg %p951
        $region158: #{posenet_forward.1} parent=11 // pred_check_branch
          %1144 = sbr.rel (%p1142) target = $region160
        $region159: #{posenet_forward.1} parent=11 // pred_region
          _
        $region160: #{posenet_forward.1} parent=11 // pred_fallthru
          _
        // Predicated region
        $region161: #{posenet_forward.1} parent=11 // pred_check
          %p1145 = pneg %p972
        $region162: #{posenet_forward.1} parent=11 // pred_check_branch
          %1147 = sbr.rel (%p1145) target = $region164
        $region163: #{posenet_forward.1} parent=11 // pred_region
          _
        $region164: #{posenet_forward.1} parent=11 // pred_fallthru
          _
        // Predicated region
        $region165: #{posenet_forward.1} parent=11 // pred_check
          %p1148 = pneg %p993
        $region166: #{posenet_forward.1} parent=11 // pred_check_branch
          %1150 = sbr.rel (%p1148) target = $region168
        $region167: #{posenet_forward.1} parent=11 // pred_region
          _
        $region168: #{posenet_forward.1} parent=11 // pred_fallthru
          _
      $region12: #{posenet_forward.1} parent=5 // pred_fallthru
        _
      %p1151 = scmp.lt.s32.totalorder %s96, 2
      // Predicated region
      $region169: #{posenet_forward.1} parent=5 // pred_check
        %p1152 = pneg %p1151
      $region170: #{posenet_forward.1} parent=5 // pred_check_branch
        %1154 = sbr.rel (%p1152) target = $region172
      $region171: #{posenet_forward.1} parent=5 // pred_region
        // Predicated region
        $region173: #{posenet_forward.1} parent=171 // pred_check
          %p1155 = pneg %p116
        $region174: #{posenet_forward.1} parent=171 // pred_check_branch
          %1157 = sbr.rel (%p1155) target = $region176
        $region175: #{posenet_forward.1} parent=171 // pred_region
          %p1158 = scmp.lt.s32.totalorder %s96, 1
          %s1159 = scalar_select %p1158, %s96, 1
          %s1160 = smul.addr %s1159, 8
          %s1161 = smul.addr %s1160, 8
          %s1162 = scalar_lea.vmem %s1, %s1161
        $region176: #{posenet_forward.1} parent=171 // pred_fallthru
          _
        // Predicated region
        $region177: #{posenet_forward.1} parent=171 // pred_check
          %p1163 = pneg %p142
        $region178: #{posenet_forward.1} parent=171 // pred_check_branch
          %1165 = sbr.rel (%p1163) target = $region180
        $region179: #{posenet_forward.1} parent=171 // pred_region
          %p1166 = scmp.lt.s32.totalorder %s96, 1
          %s1167 = scalar_select %p1166, %s96, 1
          %s1168 = smul.addr %s1167, 8
          %s1169 = smul.addr %s1168, 8
          %s1170 = scalar_lea.vmem %s3, %s1169
        $region180: #{posenet_forward.1} parent=171 // pred_fallthru
          _
        // Predicated region
        $region181: #{posenet_forward.1} parent=171 // pred_check
          %p1171 = pneg %p168
        $region182: #{posenet_forward.1} parent=171 // pred_check_branch
          %1173 = sbr.rel (%p1171) target = $region184
        $region183: #{posenet_forward.1} parent=171 // pred_region
          %p1174 = scmp.lt.s32.totalorder %s96, 1
          %s1175 = scalar_select %p1174, %s96, 1
          %s1176 = scalar_lea.vmem %s5, %s1175
        $region184: #{posenet_forward.1} parent=171 // pred_fallthru
          _
      $region172: #{posenet_forward.1} parent=5 // pred_fallthru
        _
      %p1177 = scmp.le.s32.totalorder 1, %s96
      %p1178 = scmp.lt.s32.totalorder %s96, 3
      %p1179 = pnand %p1177, %p1178
      %p1180 = pneg %p1179
      // Predicated region
      $region185: #{posenet_forward.1} parent=5 // pred_check
        _
      $region186: #{posenet_forward.1} parent=5 // pred_check_branch
        %1182 = sbr.rel (%p1179) target = $region188
      $region187: #{posenet_forward.1} parent=5 // pred_region
        %s1183 = ssub.s32 %s96, 1
        %p1184 = scmp.lt.s32.totalorder %s101, 1
        %s1185 = scalar_select %p1184, %s101, 1
        %s1186 = smul.addr %s1185, 8
        %s1187 = smul.addr %s1186, 8
        %s1188 = scalar_lea.vmem %s1, %s1187
        %p1189 = pneg %p122
        %p1190 = pneg %p119
        %p1191 = scmp.lt.s32.totalorder %s101, 1
        %s1192 = scalar_select %p1191, %s101, 1
        %s1193 = smul.addr %s1192, 8
        %s1194 = smul.addr %s1193, 8
        %s1195 = scalar_lea.vmem %s3, %s1194
        %p1196 = pneg %p148
        %p1197 = pneg %p145
        %p1198 = scmp.lt.s32.totalorder %s101, 1
        %s1199 = scalar_select %p1198, %s101, 1
        %s1200 = scalar_lea.vmem %s5, %s1199
        %p1201 = pneg %p174
        %p1202 = pneg %p171
        %p1203 = pneg %p195
        %p1204 = pneg %p192
        %p1205 = pneg %p216
        %p1206 = pneg %p213
        %p1207 = pneg %p237
        %p1208 = pneg %p234
        %p1209 = pneg %p258
        %p1210 = pneg %p255
        %p1211 = pneg %p279
        %p1212 = pneg %p276
        %p1213 = pneg %p300
        %p1214 = pneg %p297
        %p1215 = pneg %p321
        %p1216 = pneg %p318
        %p1217 = pneg %p342
        %p1218 = pneg %p339
        %p1219 = pneg %p363
        %p1220 = pneg %p360
        %p1221 = pneg %p384
        %p1222 = pneg %p381
        %p1223 = pneg %p405
        %p1224 = pneg %p402
        %p1225 = pneg %p426
        %p1226 = pneg %p423
        %p1227 = pneg %p447
        %p1228 = pneg %p444
        %p1229 = pneg %p468
        %p1230 = pneg %p465
        %p1231 = pneg %p489
        %p1232 = pneg %p486
        %p1233 = pneg %p510
        %p1234 = pneg %p507
        %p1235 = pneg %p531
        %p1236 = pneg %p528
        %p1237 = pneg %p552
        %p1238 = pneg %p549
        %p1239 = pneg %p573
        %p1240 = pneg %p570
        %p1241 = pneg %p594
        %p1242 = pneg %p591
        %p1243 = pneg %p615
        %p1244 = pneg %p612
        %p1245 = pneg %p636
        %p1246 = pneg %p633
        %p1247 = pneg %p657
        %p1248 = pneg %p654
        %p1249 = pneg %p678
        %p1250 = pneg %p675
        %p1251 = pneg %p699
        %p1252 = pneg %p696
        %p1253 = pneg %p720
        %p1254 = pneg %p717
        %p1255 = pneg %p741
        %p1256 = pneg %p738
        %p1257 = pneg %p762
        %p1258 = pneg %p759
        %p1259 = pneg %p783
        %p1260 = pneg %p780
        %p1261 = pneg %p804
        %p1262 = pneg %p801
        %p1263 = pneg %p825
        %p1264 = pneg %p822
        %p1265 = pneg %p846
        %p1266 = pneg %p843
        %p1267 = pneg %p867
        %p1268 = pneg %p864
        %p1269 = pneg %p888
        %p1270 = pneg %p885
        %p1271 = pneg %p909
        %p1272 = pneg %p906
        %p1273 = pneg %p930
        %p1274 = pneg %p927
        %p1275 = pneg %p951
        %p1276 = pneg %p948
        %p1277 = pneg %p972
        %p1278 = pneg %p969
        %p1279 = pneg %p993
        %p1280 = pneg %p990
        %p1281 = pneg %p1019
        %p1282 = pneg %p1016
        %s1283 = sand.u32 %s1006, 1
        %s1284 = scalar_lea.sflag [#allocation4], %s1283
        %s1285 = sand.u32 %s1006, 1
        %s1286 = scalar_lea.vmem [#allocation3], %s1285
        %p1287 = scmp.lt.s32.totalorder %s101, 1
        %s1288 = scalar_select %p1287, %s101, 1
        %s1289 = smul.addr %s1288, 8
        %s1290 = smul.addr %s1289, 8
        %s1291 = scalar_lea.vmem %s1, %s1290
        %p1292 = scmp.lt.s32.totalorder %s101, 1
        %s1293 = scalar_select %p1292, %s101, 1
        %s1294 = smul.addr %s1293, 8
        %s1295 = smul.addr %s1294, 8
        %s1296 = scalar_lea.vmem %s3, %s1295
        %p1297 = scmp.lt.s32.totalorder %s101, 1
        %s1298 = scalar_select %p1297, %s101, 1
        %s1299 = scalar_lea.vmem %s5, %s1298
        %v1301 = vld [vmem:[%s1291] sm:$0xff]
        %v1302 = vld [vmem:[%s1291 + $0x8] sm:$0xff]
        %v1303 = vld [vmem:[%s1291 + $0x10] sm:$0xff]
        %v1304 = vld [vmem:[%s1291 + $0x18] sm:$0xff]
        %v1305 = vld [vmem:[%s1291 + $0x20] sm:$0xff]
        %v1306 = vld [vmem:[%s1291 + $0x28] sm:$0xff]
        %v1307 = vld [vmem:[%s1291 + $0x30] sm:$0xff]
        %v1308 = vld [vmem:[%s1291 + $0x38] sm:$0xff]
        %v1309 = vpack.c.bf16 %v1302, %v1301
        %v1310 = vpack.c.bf16 %v1304, %v1303
        %v1311 = vpack.c.bf16 %v1306, %v1305
        %v1312 = vpack.c.bf16 %v1308, %v1307
        %v1313 = vld [vmem:[%s7] sm:$0xf]
        %v1314 = vld [vmem:[%s7 + $0x4] sm:$0x1]
        %v1315 = vld [vmem:[%s9] sm:$0x1]
        %v1317 = vlaneseq
        %v1318 = vshrl.u32 %v1317, 7
        %v1319 = vsub.s32 0, %v1318
        %v1320 = vrot.slane %v1315, %v1319
        %v1324 = vunpack.c.l.b16 %v1313
        %v1325 = vunpack.c.l.b16 %v1314
        %v1326 = vpack.c.b16 %v1325, %v1324
        %vm1327 = vcmask 72704
        %v1329 = vsel %vm1327, %v1309, 0
        %v1332 = vsel %vm1327, %v1310, 0
        %v1335 = vsel %vm1327, %v1311, 0
        %v1338 = vsel %vm1327, %v1312, 0
        %vm1340 = vcmask 1043456
        %vm1341 = vcmask 1044480
        %v1342 = vsel %vm1340, 4294967295, 65535
        %v1343 = vsel %vm1341, %v1342, 0
        %v1345 = vand.u32 %v1326, %v1343
        %1347 = vmatprep.subr.bf16.mxu0 0
        %1348 = vmatpush1.bf16.msra.mxu0 %v1345
        %1349 = vmatprep.subr.bf16.mxu0 0
        %1350 = vmatpush1.bf16.msra.mxu0 0
        %1351 = vmatprep.subr.bf16.mxu0 0
        %1352 = vmatpush1.bf16.msra.mxu0 0
        %1353 = vmatprep.subr.bf16.mxu0 0
        %1354 = vmatpush1.bf16.msra.mxu0 0
        %1355 = vmatprep.subr.bf16.mxu0 0
        %1356 = vmatpush1.bf16.msra.mxu0 0
        %1357 = vmatprep.subr.bf16.mxu0 0
        %1358 = vmatpush1.bf16.msra.mxu0 0
        %1359 = vmatprep.subr.bf16.mxu0 0
        %1360 = vmatpush1.bf16.msra.mxu0 0
        %1361 = vmatprep.subr.bf16.mxu0 0
        %1362 = vmatpush1.bf16.msra.mxu0 0
        %1363 = vmatprep.subr.bf16.mxu0 0
        %1364 = vmatpush1.bf16.msra.mxu0 0
        %1365 = vmatprep.subr.bf16.mxu0 0
        %1366 = vmatpush1.bf16.msra.mxu0 0
        %1367 = vmatprep.subr.bf16.mxu0 0
        %1368 = vmatpush1.bf16.msra.mxu0 0
        %1369 = vmatprep.subr.bf16.mxu0 0
        %1370 = vmatpush1.bf16.msra.mxu0 0
        %1371 = vmatprep.subr.bf16.mxu0 0
        %1372 = vmatpush1.bf16.msra.mxu0 0
        %1373 = vmatprep.subr.bf16.mxu0 0
        %1374 = vmatpush1.bf16.msra.mxu0 0
        %1375 = vmatprep.subr.bf16.mxu0 0
        %1376 = vmatpush1.bf16.msra.mxu0 0
        %1377 = vmatprep.subr.bf16.mxu0 0
        %1378 = vmatpush1.bf16.msra.mxu0 0
        %1379 = vmatprep.mubr.bf16.mxu0 0
        %1380 = vmatmul.mubr.bf16.gmra.mrb[0].mxu0 %v1329
        %v1381 = vpop.f32.mrb[0].mxu0
        %v1382 = vadd.f32 %v1320, %v1381
        %v1383 = vpop.f32.mrb[0].mxu0
        %v1384 = vpop.f32.mrb[0].mxu0
        %v1385 = vadd.f32 %v1320, %v1384
        %v1386 = vpop.f32.mrb[0].mxu0
        %1387 = vmatprep.mubr.bf16.mxu0 0
        %1388 = vmatmul.mubr.bf16.gmra.mrb[0].mxu0 %v1332
        %v1389 = vpop.f32.mrb[0].mxu0
        %v1390 = vadd.f32 %v1320, %v1389
        %v1391 = vpop.f32.mrb[0].mxu0
        %v1392 = vpop.f32.mrb[0].mxu0
        %v1393 = vadd.f32 %v1320, %v1392
        %v1394 = vpop.f32.mrb[0].mxu0
        %1395 = vmatprep.mubr.bf16.mxu0 0
        %1396 = vmatmul.mubr.bf16.gmra.mrb[0].mxu0 %v1335
        %v1397 = vpop.f32.mrb[0].mxu0
        %v1398 = vadd.f32 %v1320, %v1397
        %v1399 = vpop.f32.mrb[0].mxu0
        %v1400 = vpop.f32.mrb[0].mxu0
        %v1401 = vadd.f32 %v1320, %v1400
        %v1402 = vpop.f32.mrb[0].mxu0
        %1403 = vmatprep.mubr.bf16.mxu0 0
        %1404 = vmatmul.mubr.bf16.gmra.mrb[0].mxu0 %v1338
        %v1405 = vpop.f32.mrb[0].mxu0
        %v1406 = vadd.f32 %v1320, %v1405
        %v1407 = vpop.f32.mrb[0].mxu0
        %v1408 = vpop.f32.mrb[0].mxu0
        %v1409 = vadd.f32 %v1320, %v1408
        %v1410 = vpop.f32.mrb[0].mxu0
        %1411 = vdwg.mxu0
        %v1412 = vmul.f32 %v1382, 0.01
        %v1413 = vmul.f32 %v1385, 0.01
        %v1414 = vmul.f32 %v1390, 0.01
        %v1415 = vmul.f32 %v1393, 0.01
        %v1416 = vmul.f32 %v1398, 0.01
        %v1417 = vmul.f32 %v1401, 0.01
        %v1418 = vmul.f32 %v1406, 0.01
        %v1419 = vmul.f32 %v1409, 0.01
        %v1420 = vmax.f32 %v1382, %v1412
        %v1421 = vmax.f32 %v1385, %v1413
        %v1422 = vmax.f32 %v1390, %v1414
        %v1423 = vmax.f32 %v1393, %v1415
        %v1424 = vmax.f32 %v1398, %v1416
        %v1425 = vmax.f32 %v1401, %v1417
        %v1426 = vmax.f32 %v1406, %v1418
        %v1427 = vmax.f32 %v1409, %v1419
        %v1428 = vpack.c.bf16 %v1421, %v1420
        %v1429 = vpack.c.bf16 %v1423, %v1422
        %v1430 = vpack.c.bf16 %v1425, %v1424
        %v1431 = vpack.c.bf16 %v1427, %v1426
        %v1432 = vld [vmem:[%s11] sm:$0xff]
        %v1433 = vld [vmem:[%s11 + $0x8] sm:$0xff]
        %v1434 = vld [vmem:[%s11 + $0x10] sm:$0xff]
        %v1435 = vld [vmem:[%s11 + $0x18] sm:$0xff]
        %v1436 = vld [vmem:[%s11 + $0x20] sm:$0xff]
        %v1437 = vld [vmem:[%s11 + $0x28] sm:$0xff]
        %v1438 = vld [vmem:[%s11 + $0x30] sm:$0xff]
        %v1439 = vld [vmem:[%s11 + $0x38] sm:$0xff]
        %v1440 = vld [vmem:[%s11 + $0x40] sm:$0xff]
        %v1441 = vld [vmem:[%s11 + $0x48] sm:$0xff]
        %v1442 = vld [vmem:[%s11 + $0x50] sm:$0xff]
        %v1443 = vld [vmem:[%s11 + $0x58] sm:$0xff]
        %v1444 = vld [vmem:[%s11 + $0x60] sm:$0xff]
        %v1445 = vld [vmem:[%s11 + $0x68] sm:$0xff]
        %v1446 = vld [vmem:[%s11 + $0x70] sm:$0xff]
        %v1447 = vld [vmem:[%s11 + $0x78] sm:$0xff]
        %v1448 = vld [vmem:[%s13] sm:$0x3]
        %v1450 = vlaneseq
        %v1451 = vshrl.u32 %v1450, 7
        %v1452 = vsub.s32 0, %v1451
        %v1453 = vrot.slane %v1448, %v1452
        %v1454 = vlaneseq
        %v1455 = vshrl.u32 %v1454, 7
        %v1456 = vsub.s32 1, %v1455
        %v1457 = vrot.slane %v1448, %v1456
        %v1476 = vunpack.c.l.b16 %v1432
        %v1477 = vunpack.c.h.b16 %v1432
        %v1478 = vunpack.c.l.b16 %v1433
        %v1479 = vunpack.c.h.b16 %v1433
        %v1480 = vunpack.c.l.b16 %v1434
        %v1481 = vunpack.c.h.b16 %v1434
        %v1482 = vunpack.c.l.b16 %v1435
        %v1483 = vunpack.c.h.b16 %v1435
        %v1484 = vunpack.c.l.b16 %v1436
        %v1485 = vunpack.c.h.b16 %v1436
        %v1486 = vunpack.c.l.b16 %v1437
        %v1487 = vunpack.c.h.b16 %v1437
        %v1488 = vunpack.c.l.b16 %v1438
        %v1489 = vunpack.c.h.b16 %v1438
        %v1490 = vunpack.c.l.b16 %v1439
        %v1491 = vunpack.c.h.b16 %v1439
        %v1492 = vunpack.c.l.b16 %v1440
        %v1493 = vunpack.c.h.b16 %v1440
        %v1494 = vunpack.c.l.b16 %v1441
        %v1495 = vunpack.c.h.b16 %v1441
        %v1496 = vunpack.c.l.b16 %v1442
        %v1497 = vunpack.c.h.b16 %v1442
        %v1498 = vunpack.c.l.b16 %v1443
        %v1499 = vunpack.c.h.b16 %v1443
        %v1500 = vunpack.c.l.b16 %v1444
        %v1501 = vunpack.c.h.b16 %v1444
        %v1502 = vunpack.c.l.b16 %v1445
        %v1503 = vunpack.c.h.b16 %v1445
        %v1504 = vunpack.c.l.b16 %v1446
        %v1505 = vunpack.c.h.b16 %v1446
        %v1506 = vunpack.c.l.b16 %v1447
        %v1507 = vunpack.c.h.b16 %v1447
        %v1508 = vpack.c.b16 %v1478, %v1476
        %v1509 = vpack.c.b16 %v1479, %v1477
        %v1510 = vpack.c.b16 %v1482, %v1480
        %v1511 = vpack.c.b16 %v1483, %v1481
        %v1512 = vpack.c.b16 %v1486, %v1484
        %v1513 = vpack.c.b16 %v1487, %v1485
        %v1514 = vpack.c.b16 %v1490, %v1488
        %v1515 = vpack.c.b16 %v1491, %v1489
        %v1516 = vpack.c.b16 %v1494, %v1492
        %v1517 = vpack.c.b16 %v1495, %v1493
        %v1518 = vpack.c.b16 %v1498, %v1496
        %v1519 = vpack.c.b16 %v1499, %v1497
        %v1520 = vpack.c.b16 %v1502, %v1500
        %v1521 = vpack.c.b16 %v1503, %v1501
        %v1522 = vpack.c.b16 %v1506, %v1504
        %v1523 = vpack.c.b16 %v1507, %v1505
        %1540 = vmatprep.subr.bf16.mxu0 %v1509
        %1541 = vmatpush1.bf16.msra.mxu0 %v1508
        %1542 = vmatprep.subr.bf16.mxu0 %v1511
        %1543 = vmatpush1.bf16.msra.mxu0 %v1510
        %1544 = vmatprep.subr.bf16.mxu0 %v1513
        %1545 = vmatpush1.bf16.msra.mxu0 %v1512
        %1546 = vmatprep.subr.bf16.mxu0 %v1515
        %1547 = vmatpush1.bf16.msra.mxu0 %v1514
        %1548 = vmatprep.subr.bf16.mxu0 %v1517
        %1549 = vmatpush1.bf16.msra.mxu0 %v1516
        %1550 = vmatprep.subr.bf16.mxu0 %v1519
        %1551 = vmatpush1.bf16.msra.mxu0 %v1518
        %1552 = vmatprep.subr.bf16.mxu0 %v1521
        %1553 = vmatpush1.bf16.msra.mxu0 %v1520
        %1554 = vmatprep.subr.bf16.mxu0 %v1523
        %1555 = vmatpush1.bf16.msra.mxu0 %v1522
        %1556 = vmatprep.subr.bf16.mxu0 0
        %1557 = vmatpush1.bf16.msra.mxu0 0
        %1558 = vmatprep.subr.bf16.mxu0 0
        %1559 = vmatpush1.bf16.msra.mxu0 0
        %1560 = vmatprep.subr.bf16.mxu0 0
        %1561 = vmatpush1.bf16.msra.mxu0 0
        %1562 = vmatprep.subr.bf16.mxu0 0
        %1563 = vmatpush1.bf16.msra.mxu0 0
        %1564 = vmatprep.subr.bf16.mxu0 0
        %1565 = vmatpush1.bf16.msra.mxu0 0
        %1566 = vmatprep.subr.bf16.mxu0 0
        %1567 = vmatpush1.bf16.msra.mxu0 0
        %1568 = vmatprep.subr.bf16.mxu0 0
        %1569 = vmatpush1.bf16.msra.mxu0 0
        %1570 = vmatprep.subr.bf16.mxu0 0
        %1571 = vmatpush1.bf16.msra.mxu0 0
        %1572 = vmatprep.mubr.bf16.mxu0 0
        %1573 = vmatmul.mubr.bf16.gmra.mrb[0].mxu0 %v1428
        %v1574 = vpop.f32.mrb[0].mxu0
        %v1575 = vadd.f32 %v1453, %v1574
        %v1576 = vpop.f32.mrb[0].mxu0
        %v1577 = vadd.f32 %v1457, %v1576
        %v1578 = vpop.f32.mrb[0].mxu0
        %v1579 = vadd.f32 %v1453, %v1578
        %v1580 = vpop.f32.mrb[0].mxu0
        %v1581 = vadd.f32 %v1457, %v1580
        %1582 = vmatprep.mubr.bf16.mxu0 0
        %1583 = vmatmul.mubr.bf16.gmra.mrb[0].mxu0 %v1429
        %v1584 = vpop.f32.mrb[0].mxu0
        %v1585 = vadd.f32 %v1453, %v1584
        %v1586 = vpop.f32.mrb[0].mxu0
        %v1587 = vadd.f32 %v1457, %v1586
        %v1588 = vpop.f32.mrb[0].mxu0
        %v1589 = vadd.f32 %v1453, %v1588
        %v1590 = vpop.f32.mrb[0].mxu0
        %v1591 = vadd.f32 %v1457, %v1590
        %1592 = vmatprep.mubr.bf16.mxu0 0
        %1593 = vmatmul.mubr.bf16.gmra.mrb[0].mxu0 %v1430
        %v1594 = vpop.f32.mrb[0].mxu0
        %v1595 = vadd.f32 %v1453, %v1594
        %v1596 = vpop.f32.mrb[0].mxu0
        %v1597 = vadd.f32 %v1457, %v1596
        %v1598 = vpop.f32.mrb[0].mxu0
        %v1599 = vadd.f32 %v1453, %v1598
        %v1600 = vpop.f32.mrb[0].mxu0
        %v1601 = vadd.f32 %v1457, %v1600
        %1602 = vmatprep.mubr.bf16.mxu0 0
        %1603 = vmatmul.mubr.bf16.gmra.mrb[0].mxu0 %v1431
        %v1604 = vpop.f32.mrb[0].mxu0
        %v1605 = vadd.f32 %v1453, %v1604
        %v1606 = vpop.f32.mrb[0].mxu0
        %v1607 = vadd.f32 %v1457, %v1606
        %v1608 = vpop.f32.mrb[0].mxu0
        %v1609 = vadd.f32 %v1453, %v1608
        %v1610 = vpop.f32.mrb[0].mxu0
        %v1611 = vadd.f32 %v1457, %v1610
        %1612 = vdwg.mxu0
        %v1613 = vmul.f32 %v1575, 0.01
        %v1614 = vmul.f32 %v1577, 0.01
        %v1615 = vmul.f32 %v1579, 0.01
        %v1616 = vmul.f32 %v1581, 0.01
        %v1617 = vmul.f32 %v1585, 0.01
        %v1618 = vmul.f32 %v1587, 0.01
        %v1619 = vmul.f32 %v1589, 0.01
        %v1620 = vmul.f32 %v1591, 0.01
        %v1621 = vmul.f32 %v1595, 0.01
        %v1622 = vmul.f32 %v1597, 0.01
        %v1623 = vmul.f32 %v1599, 0.01
        %v1624 = vmul.f32 %v1601, 0.01
        %v1625 = vmul.f32 %v1605, 0.01
        %v1626 = vmul.f32 %v1607, 0.01
        %v1627 = vmul.f32 %v1609, 0.01
        %v1628 = vmul.f32 %v1611, 0.01
        %v1629 = vmax.f32 %v1575, %v1613
        %v1630 = vmax.f32 %v1577, %v1614
        %v1631 = vmax.f32 %v1579, %v1615
        %v1632 = vmax.f32 %v1581, %v1616
        %v1633 = vmax.f32 %v1585, %v1617
        %v1634 = vmax.f32 %v1587, %v1618
        %v1635 = vmax.f32 %v1589, %v1619
        %v1636 = vmax.f32 %v1591, %v1620
        %v1637 = vmax.f32 %v1595, %v1621
        %v1638 = vmax.f32 %v1597, %v1622
        %v1639 = vmax.f32 %v1599, %v1623
        %v1640 = vmax.f32 %v1601, %v1624
        %v1641 = vmax.f32 %v1605, %v1625
        %v1642 = vmax.f32 %v1607, %v1626
        %v1643 = vmax.f32 %v1609, %v1627
        %v1644 = vmax.f32 %v1611, %v1628
        %v1645 = vpack.c.bf16 %v1631, %v1629
        %v1646 = vpack.c.bf16 %v1632, %v1630
        %v1647 = vpack.c.bf16 %v1635, %v1633
        %v1648 = vpack.c.bf16 %v1636, %v1634
        %v1649 = vpack.c.bf16 %v1639, %v1637
        %v1650 = vpack.c.bf16 %v1640, %v1638
        %v1651 = vpack.c.bf16 %v1643, %v1641
        %v1652 = vpack.c.bf16 %v1644, %v1642
        %v1653 = vld [vmem:[%s15] sm:$0xff]
        %v1654 = vld [vmem:[%s15 + $0x8] sm:$0xff]
        %v1655 = vld [vmem:[%s15 + $0x10] sm:$0xff]
        %v1656 = vld [vmem:[%s15 + $0x18] sm:$0xff]
        %v1657 = vld [vmem:[%s15 + $0x20] sm:$0xff]
        %v1658 = vld [vmem:[%s15 + $0x28] sm:$0xff]
        %v1659 = vld [vmem:[%s15 + $0x30] sm:$0xff]
        %v1660 = vld [vmem:[%s15 + $0x38] sm:$0xff]
        %v1661 = vld [vmem:[%s15 + $0x40] sm:$0xff]
        %v1662 = vld [vmem:[%s15 + $0x48] sm:$0xff]
        %v1663 = vld [vmem:[%s15 + $0x50] sm:$0xff]
        %v1664 = vld [vmem:[%s15 + $0x58] sm:$0xff]
        %v1665 = vld [vmem:[%s15 + $0x60] sm:$0xff]
        %v1666 = vld [vmem:[%s15 + $0x68] sm:$0xff]
        %v1667 = vld [vmem:[%s15 + $0x70] sm:$0xff]
        %v1668 = vld [vmem:[%s15 + $0x78] sm:$0xff]
        %v1669 = vld [vmem:[%s15 + $0x80] sm:$0xff]
        %v1670 = vld [vmem:[%s15 + $0x88] sm:$0xff]
        %v1671 = vld [vmem:[%s15 + $0x90] sm:$0xff]
        %v1672 = vld [vmem:[%s15 + $0x98] sm:$0xff]
        %v1673 = vld [vmem:[%s15 + $0xa0] sm:$0xff]
        %v1674 = vld [vmem:[%s15 + $0xa8] sm:$0xff]
        %v1675 = vld [vmem:[%s15 + $0xb0] sm:$0xff]
        %v1676 = vld [vmem:[%s15 + $0xb8] sm:$0xff]
        %v1677 = vld [vmem:[%s15 + $0xc0] sm:$0xff]
        %v1678 = vld [vmem:[%s15 + $0xc8] sm:$0xff]
        %v1679 = vld [vmem:[%s15 + $0xd0] sm:$0xff]
        %v1680 = vld [vmem:[%s15 + $0xd8] sm:$0xff]
        %v1681 = vld [vmem:[%s15 + $0xe0] sm:$0xff]
        %v1682 = vld [vmem:[%s15 + $0xe8] sm:$0xff]
        %v1683 = vld [vmem:[%s15 + $0xf0] sm:$0xff]
        %v1684 = vld [vmem:[%s15 + $0xf8] sm:$0xff]
        %v1685 = vld [vmem:[%s15 + $0x100] sm:$0xff]
        %v1686 = vld [vmem:[%s15 + $0x108] sm:$0xff]
        %v1687 = vld [vmem:[%s15 + $0x110] sm:$0xff]
        %v1688 = vld [vmem:[%s15 + $0x118] sm:$0xff]
        %v1689 = vld [vmem:[%s15 + $0x120] sm:$0xff]
        %v1690 = vld [vmem:[%s15 + $0x128] sm:$0xff]
        %v1691 = vld [vmem:[%s15 + $0x130] sm:$0xff]
        %v1692 = vld [vmem:[%s15 + $0x138] sm:$0xff]
        %v1693 = vld [vmem:[%s15 + $0x140] sm:$0xff]
        %v1694 = vld [vmem:[%s15 + $0x148] sm:$0xff]
        %v1695 = vld [vmem:[%s15 + $0x150] sm:$0xff]
        %v1696 = vld [vmem:[%s15 + $0x158] sm:$0xff]
        %v1697 = vld [vmem:[%s15 + $0x160] sm:$0xff]
        %v1698 = vld [vmem:[%s15 + $0x168] sm:$0xff]
        %v1699 = vld [vmem:[%s15 + $0x170] sm:$0xff]
        %v1700 = vld [vmem:[%s15 + $0x178] sm:$0xff]
        %v1701 = vld [vmem:[%s15 + $0x180] sm:$0xff]
        %v1702 = vld [vmem:[%s15 + $0x188] sm:$0xff]
        %v1703 = vld [vmem:[%s15 + $0x190] sm:$0xff]
        %v1704 = vld [vmem:[%s15 + $0x198] sm:$0xff]
        %v1705 = vld [vmem:[%s15 + $0x1a0] sm:$0xff]
        %v1706 = vld [vmem:[%s15 + $0x1a8] sm:$0xff]
        %v1707 = vld [vmem:[%s15 + $0x1b0] sm:$0xff]
        %v1708 = vld [vmem:[%s15 + $0x1b8] sm:$0xff]
        %v1709 = vld [vmem:[%s15 + $0x1c0] sm:$0xff]
        %v1710 = vld [vmem:[%s15 + $0x1c8] sm:$0xff]
        %v1711 = vld [vmem:[%s15 + $0x1d0] sm:$0xff]
        %v1712 = vld [vmem:[%s15 + $0x1d8] sm:$0xff]
        %v1713 = vld [vmem:[%s15 + $0x1e0] sm:$0xff]
        %v1714 = vld [vmem:[%s15 + $0x1e8] sm:$0xff]
        %v1715 = vld [vmem:[%s15 + $0x1f0] sm:$0xff]
        %v1716 = vld [vmem:[%s15 + $0x1f8] sm:$0xff]
        %v1717 = vld [vmem:[%s17] sm:$0xf]
        %v1719 = vlaneseq
        %v1720 = vshrl.u32 %v1719, 7
        %v1721 = vsub.s32 0, %v1720
        %v1722 = vrot.slane %v1717, %v1721
        %v1723 = vlaneseq
        %v1724 = vshrl.u32 %v1723, 7
        %v1725 = vsub.s32 1, %v1724
        %v1726 = vrot.slane %v1717, %v1725
        %v1727 = vlaneseq
        %v1728 = vshrl.u32 %v1727, 7
        %v1729 = vsub.s32 2, %v1728
        %v1730 = vrot.slane %v1717, %v1729
        %v1731 = vlaneseq
        %v1732 = vshrl.u32 %v1731, 7
        %v1733 = vsub.s32 3, %v1732
        %v1734 = vrot.slane %v1717, %v1733
        %v1803 = vunpack.c.l.b16 %v1653
        %v1804 = vunpack.c.h.b16 %v1653
        %v1805 = vunpack.c.l.b16 %v1654
        %v1806 = vunpack.c.h.b16 %v1654
        %v1807 = vunpack.c.l.b16 %v1655
        %v1808 = vunpack.c.h.b16 %v1655
        %v1809 = vunpack.c.l.b16 %v1656
        %v1810 = vunpack.c.h.b16 %v1656
        %v1811 = vunpack.c.l.b16 %v1657
        %v1812 = vunpack.c.h.b16 %v1657
        %v1813 = vunpack.c.l.b16 %v1658
        %v1814 = vunpack.c.h.b16 %v1658
        %v1815 = vunpack.c.l.b16 %v1659
        %v1816 = vunpack.c.h.b16 %v1659
        %v1817 = vunpack.c.l.b16 %v1660
        %v1818 = vunpack.c.h.b16 %v1660
        %v1819 = vunpack.c.l.b16 %v1661
        %v1820 = vunpack.c.h.b16 %v1661
        %v1821 = vunpack.c.l.b16 %v1662
        %v1822 = vunpack.c.h.b16 %v1662
        %v1823 = vunpack.c.l.b16 %v1663
        %v1824 = vunpack.c.h.b16 %v1663
        %v1825 = vunpack.c.l.b16 %v1664
        %v1826 = vunpack.c.h.b16 %v1664
        %v1827 = vunpack.c.l.b16 %v1665
        %v1828 = vunpack.c.h.b16 %v1665
        %v1829 = vunpack.c.l.b16 %v1666
        %v1830 = vunpack.c.h.b16 %v1666
        %v1831 = vunpack.c.l.b16 %v1667
        %v1832 = vunpack.c.h.b16 %v1667
        %v1833 = vunpack.c.l.b16 %v1668
        %v1834 = vunpack.c.h.b16 %v1668
        %v1835 = vunpack.c.l.b16 %v1669
        %v1836 = vunpack.c.h.b16 %v1669
        %v1837 = vunpack.c.l.b16 %v1670
        %v1838 = vunpack.c.h.b16 %v1670
        %v1839 = vunpack.c.l.b16 %v1671
        %v1840 = vunpack.c.h.b16 %v1671
        %v1841 = vunpack.c.l.b16 %v1672
        %v1842 = vunpack.c.h.b16 %v1672
        %v1843 = vunpack.c.l.b16 %v1673
        %v1844 = vunpack.c.h.b16 %v1673
        %v1845 = vunpack.c.l.b16 %v1674
        %v1846 = vunpack.c.h.b16 %v1674
        %v1847 = vunpack.c.l.b16 %v1675
        %v1848 = vunpack.c.h.b16 %v1675
        %v1849 = vunpack.c.l.b16 %v1676
        %v1850 = vunpack.c.h.b16 %v1676
        %v1851 = vunpack.c.l.b16 %v1677
        %v1852 = vunpack.c.h.b16 %v1677
        %v1853 = vunpack.c.l.b16 %v1678
        %v1854 = vunpack.c.h.b16 %v1678
        %v1855 = vunpack.c.l.b16 %v1679
        %v1856 = vunpack.c.h.b16 %v1679
        %v1857 = vunpack.c.l.b16 %v1680
        %v1858 = vunpack.c.h.b16 %v1680
        %v1859 = vunpack.c.l.b16 %v1681
        %v1860 = vunpack.c.h.b16 %v1681
        %v1861 = vunpack.c.l.b16 %v1682
        %v1862 = vunpack.c.h.b16 %v1682
        %v1863 = vunpack.c.l.b16 %v1683
        %v1864 = vunpack.c.h.b16 %v1683
        %v1865 = vunpack.c.l.b16 %v1684
        %v1866 = vunpack.c.h.b16 %v1684
        %v1867 = vunpack.c.l.b16 %v1685
        %v1868 = vunpack.c.h.b16 %v1685
        %v1869 = vunpack.c.l.b16 %v1686
        %v1870 = vunpack.c.h.b16 %v1686
        %v1871 = vunpack.c.l.b16 %v1687
        %v1872 = vunpack.c.h.b16 %v1687
        %v1873 = vunpack.c.l.b16 %v1688
        %v1874 = vunpack.c.h.b16 %v1688
        %v1875 = vunpack.c.l.b16 %v1689
        %v1876 = vunpack.c.h.b16 %v1689
        %v1877 = vunpack.c.l.b16 %v1690
        %v1878 = vunpack.c.h.b16 %v1690
        %v1879 = vunpack.c.l.b16 %v1691
        %v1880 = vunpack.c.h.b16 %v1691
        %v1881 = vunpack.c.l.b16 %v1692
        %v1882 = vunpack.c.h.b16 %v1692
        %v1883 = vunpack.c.l.b16 %v1693
        %v1884 = vunpack.c.h.b16 %v1693
        %v1885 = vunpack.c.l.b16 %v1694
        %v1886 = vunpack.c.h.b16 %v1694
        %v1887 = vunpack.c.l.b16 %v1695
        %v1888 = vunpack.c.h.b16 %v1695
        %v1889 = vunpack.c.l.b16 %v1696
        %v1890 = vunpack.c.h.b16 %v1696
        %v1891 = vunpack.c.l.b16 %v1697
        %v1892 = vunpack.c.h.b16 %v1697
        %v1893 = vunpack.c.l.b16 %v1698
        %v1894 = vunpack.c.h.b16 %v1698
        %v1895 = vunpack.c.l.b16 %v1699
        %v1896 = vunpack.c.h.b16 %v1699
        %v1897 = vunpack.c.l.b16 %v1700
        %v1898 = vunpack.c.h.b16 %v1700
        %v1899 = vunpack.c.l.b16 %v1701
        %v1900 = vunpack.c.h.b16 %v1701
        %v1901 = vunpack.c.l.b16 %v1702
        %v1902 = vunpack.c.h.b16 %v1702
        %v1903 = vunpack.c.l.b16 %v1703
        %v1904 = vunpack.c.h.b16 %v1703
        %v1905 = vunpack.c.l.b16 %v1704
        %v1906 = vunpack.c.h.b16 %v1704
        %v1907 = vunpack.c.l.b16 %v1705
        %v1908 = vunpack.c.h.b16 %v1705
        %v1909 = vunpack.c.l.b16 %v1706
        %v1910 = vunpack.c.h.b16 %v1706
        %v1911 = vunpack.c.l.b16 %v1707
        %v1912 = vunpack.c.h.b16 %v1707
        %v1913 = vunpack.c.l.b16 %v1708
        %v1914 = vunpack.c.h.b16 %v1708
        %v1915 = vunpack.c.l.b16 %v1709
        %v1916 = vunpack.c.h.b16 %v1709
        %v1917 = vunpack.c.l.b16 %v1710
        %v1918 = vunpack.c.h.b16 %v1710
        %v1919 = vunpack.c.l.b16 %v1711
        %v1920 = vunpack.c.h.b16 %v1711
        %v1921 = vunpack.c.l.b16 %v1712
        %v1922 = vunpack.c.h.b16 %v1712
        %v1923 = vunpack.c.l.b16 %v1713
        %v1924 = vunpack.c.h.b16 %v1713
        %v1925 = vunpack.c.l.b16 %v1714
        %v1926 = vunpack.c.h.b16 %v1714
        %v1927 = vunpack.c.l.b16 %v1715
        %v1928 = vunpack.c.h.b16 %v1715
        %v1929 = vunpack.c.l.b16 %v1716
        %v1930 = vunpack.c.h.b16 %v1716
        %v1931 = vpack.c.b16 %v1807, %v1803
        %v1932 = vpack.c.b16 %v1808, %v1804
        %v1933 = vpack.c.b16 %v1809, %v1805
        %v1934 = vpack.c.b16 %v1810, %v1806
        %v1935 = vpack.c.b16 %v1815, %v1811
        %v1936 = vpack.c.b16 %v1816, %v1812
        %v1937 = vpack.c.b16 %v1817, %v1813
        %v1938 = vpack.c.b16 %v1818, %v1814
        %v1939 = vpack.c.b16 %v1823, %v1819
        %v1940 = vpack.c.b16 %v1824, %v1820
        %v1941 = vpack.c.b16 %v1825, %v1821
        %v1942 = vpack.c.b16 %v1826, %v1822
        %v1943 = vpack.c.b16 %v1831, %v1827
        %v1944 = vpack.c.b16 %v1832, %v1828
        %v1945 = vpack.c.b16 %v1833, %v1829
        %v1946 = vpack.c.b16 %v1834, %v1830
        %v1947 = vpack.c.b16 %v1839, %v1835
        %v1948 = vpack.c.b16 %v1840, %v1836
        %v1949 = vpack.c.b16 %v1841, %v1837
        %v1950 = vpack.c.b16 %v1842, %v1838
        %v1951 = vpack.c.b16 %v1847, %v1843
        %v1952 = vpack.c.b16 %v1848, %v1844
        %v1953 = vpack.c.b16 %v1849, %v1845
        %v1954 = vpack.c.b16 %v1850, %v1846
        %v1955 = vpack.c.b16 %v1855, %v1851
        %v1956 = vpack.c.b16 %v1856, %v1852
        %v1957 = vpack.c.b16 %v1857, %v1853
        %v1958 = vpack.c.b16 %v1858, %v1854
        %v1959 = vpack.c.b16 %v1863, %v1859
        %v1960 = vpack.c.b16 %v1864, %v1860
        %v1961 = vpack.c.b16 %v1865, %v1861
        %v1962 = vpack.c.b16 %v1866, %v1862
        %v1963 = vpack.c.b16 %v1871, %v1867
        %v1964 = vpack.c.b16 %v1872, %v1868
        %v1965 = vpack.c.b16 %v1873, %v1869
        %v1966 = vpack.c.b16 %v1874, %v1870
        %v1967 = vpack.c.b16 %v1879, %v1875
        %v1968 = vpack.c.b16 %v1880, %v1876
        %v1969 = vpack.c.b16 %v1881, %v1877
        %v1970 = vpack.c.b16 %v1882, %v1878
        %v1971 = vpack.c.b16 %v1887, %v1883
        %v1972 = vpack.c.b16 %v1888, %v1884
        %v1973 = vpack.c.b16 %v1889, %v1885
        %v1974 = vpack.c.b16 %v1890, %v1886
        %v1975 = vpack.c.b16 %v1895, %v1891
        %v1976 = vpack.c.b16 %v1896, %v1892
        %v1977 = vpack.c.b16 %v1897, %v1893
        %v1978 = vpack.c.b16 %v1898, %v1894
        %v1979 = vpack.c.b16 %v1903, %v1899
        %v1980 = vpack.c.b16 %v1904, %v1900
        %v1981 = vpack.c.b16 %v1905, %v1901
        %v1982 = vpack.c.b16 %v1906, %v1902
        %v1983 = vpack.c.b16 %v1911, %v1907
        %v1984 = vpack.c.b16 %v1912, %v1908
        %v1985 = vpack.c.b16 %v1913, %v1909
        %v1986 = vpack.c.b16 %v1914, %v1910
        %v1987 = vpack.c.b16 %v1919, %v1915
        %v1988 = vpack.c.b16 %v1920, %v1916
        %v1989 = vpack.c.b16 %v1921, %v1917
        %v1990 = vpack.c.b16 %v1922, %v1918
        %v1991 = vpack.c.b16 %v1927, %v1923
        %v1992 = vpack.c.b16 %v1928, %v1924
        %v1993 = vpack.c.b16 %v1929, %v1925
        %v1994 = vpack.c.b16 %v1930, %v1926
        %2059 = vmatprep.subr.bf16.mxu0 %v1932
        %2060 = vmatpush1.bf16.msra.mxu0 %v1931
        %2061 = vmatprep.subr.bf16.mxu0 %v1936
        %2062 = vmatpush1.bf16.msra.mxu0 %v1935
        %2063 = vmatprep.subr.bf16.mxu0 %v1940
        %2064 = vmatpush1.bf16.msra.mxu0 %v1939
        %2065 = vmatprep.subr.bf16.mxu0 %v1944
        %2066 = vmatpush1.bf16.msra.mxu0 %v1943
        %2067 = vmatprep.subr.bf16.mxu0 %v1948
        %2068 = vmatpush1.bf16.msra.mxu0 %v1947
        %2069 = vmatprep.subr.bf16.mxu0 %v1952
        %2070 = vmatpush1.bf16.msra.mxu0 %v1951
        %2071 = vmatprep.subr.bf16.mxu0 %v1956
        %2072 = vmatpush1.bf16.msra.mxu0 %v1955
        %2073 = vmatprep.subr.bf16.mxu0 %v1960
        %2074 = vmatpush1.bf16.msra.mxu0 %v1959
        %2075 = vmatprep.subr.bf16.mxu0 %v1964
        %2076 = vmatpush1.bf16.msra.mxu0 %v1963
        %2077 = vmatprep.subr.bf16.mxu0 %v1968
        %2078 = vmatpush1.bf16.msra.mxu0 %v1967
        %2079 = vmatprep.subr.bf16.mxu0 %v1972
        %2080 = vmatpush1.bf16.msra.mxu0 %v1971
        %2081 = vmatprep.subr.bf16.mxu0 %v1976
        %2082 = vmatpush1.bf16.msra.mxu0 %v1975
        %2083 = vmatprep.subr.bf16.mxu0 %v1980
        %2084 = vmatpush1.bf16.msra.mxu0 %v1979
        %2085 = vmatprep.subr.bf16.mxu0 %v1984
        %2086 = vmatpush1.bf16.msra.mxu0 %v1983
        %2087 = vmatprep.subr.bf16.mxu0 %v1988
        %2088 = vmatpush1.bf16.msra.mxu0 %v1987
        %2089 = vmatprep.subr.bf16.mxu0 %v1992
        %2090 = vmatpush1.bf16.msra.mxu0 %v1991
        %2091 = vmatprep.mubr.bf16.mxu0 %v1646
        %2092 = vmatmul.mubr.bf16.gmra.mrb[0].mxu0 %v1645
        %v2093 = vpop.f32.mrb[0].mxu0
        %v2094 = vadd.f32 %v1722, %v2093
        %v2095 = vpop.f32.mrb[0].mxu0
        %v2096 = vadd.f32 %v1726, %v2095
        %v2097 = vpop.f32.mrb[0].mxu0
        %v2098 = vadd.f32 %v1722, %v2097
        %v2099 = vpop.f32.mrb[0].mxu0
        %v2100 = vadd.f32 %v1726, %v2099
        %2101 = vmatprep.mubr.bf16.mxu0 %v1648
        %2102 = vmatmul.mubr.bf16.gmra.mrb[0].mxu0 %v1647
        %v2103 = vpop.f32.mrb[0].mxu0
        %v2104 = vadd.f32 %v1722, %v2103
        %v2105 = vpop.f32.mrb[0].mxu0
        %v2106 = vadd.f32 %v1726, %v2105
        %v2107 = vpop.f32.mrb[0].mxu0
        %v2108 = vadd.f32 %v1722, %v2107
        %v2109 = vpop.f32.mrb[0].mxu0
        %v2110 = vadd.f32 %v1726, %v2109
        %2111 = vmatprep.mubr.bf16.mxu0 %v1650
        %2112 = vmatmul.mubr.bf16.gmra.mrb[0].mxu0 %v1649
        %v2113 = vpop.f32.mrb[0].mxu0
        %v2114 = vadd.f32 %v1722, %v2113
        %v2115 = vpop.f32.mrb[0].mxu0
        %v2116 = vadd.f32 %v1726, %v2115
        %v2117 = vpop.f32.mrb[0].mxu0
        %v2118 = vadd.f32 %v1722, %v2117
        %v2119 = vpop.f32.mrb[0].mxu0
        %v2120 = vadd.f32 %v1726, %v2119
        %2121 = vmatprep.mubr.bf16.mxu0 %v1652
        %2122 = vmatmul.mubr.bf16.gmra.mrb[0].mxu0 %v1651
        %v2123 = vpop.f32.mrb[0].mxu0
        %v2124 = vadd.f32 %v1722, %v2123
        %v2125 = vpop.f32.mrb[0].mxu0
        %v2126 = vadd.f32 %v1726, %v2125
        %v2127 = vpop.f32.mrb[0].mxu0
        %v2128 = vadd.f32 %v1722, %v2127
        %v2129 = vpop.f32.mrb[0].mxu0
        %v2130 = vadd.f32 %v1726, %v2129
        %2131 = vdwg.mxu0
        %2132 = vmatprep.subr.bf16.mxu0 %v1934
        %2133 = vmatpush1.bf16.msra.mxu0 %v1933
        %2134 = vmatprep.subr.bf16.mxu0 %v1938
        %2135 = vmatpush1.bf16.msra.mxu0 %v1937
        %2136 = vmatprep.subr.bf16.mxu0 %v1942
        %2137 = vmatpush1.bf16.msra.mxu0 %v1941
        %2138 = vmatprep.subr.bf16.mxu0 %v1946
        %2139 = vmatpush1.bf16.msra.mxu0 %v1945
        %2140 = vmatprep.subr.bf16.mxu0 %v1950
        %2141 = vmatpush1.bf16.msra.mxu0 %v1949
        %2142 = vmatprep.subr.bf16.mxu0 %v1954
        %2143 = vmatpush1.bf16.msra.mxu0 %v1953
        %2144 = vmatprep.subr.bf16.mxu0 %v1958
        %2145 = vmatpush1.bf16.msra.mxu0 %v1957
        %2146 = vmatprep.subr.bf16.mxu0 %v1962
        %2147 = vmatpush1.bf16.msra.mxu0 %v1961
        %2148 = vmatprep.subr.bf16.mxu0 %v1966
        %2149 = vmatpush1.bf16.msra.mxu0 %v1965
        %2150 = vmatprep.subr.bf16.mxu0 %v1970
        %2151 = vmatpush1.bf16.msra.mxu0 %v1969
        %2152 = vmatprep.subr.bf16.mxu0 %v1974
        %2153 = vmatpush1.bf16.msra.mxu0 %v1973
        %2154 = vmatprep.subr.bf16.mxu0 %v1978
        %2155 = vmatpush1.bf16.msra.mxu0 %v1977
        %2156 = vmatprep.subr.bf16.mxu0 %v1982
        %2157 = vmatpush1.bf16.msra.mxu0 %v1981
        %2158 = vmatprep.subr.bf16.mxu0 %v1986
        %2159 = vmatpush1.bf16.msra.mxu0 %v1985
        %2160 = vmatprep.subr.bf16.mxu0 %v1990
        %2161 = vmatpush1.bf16.msra.mxu0 %v1989
        %2162 = vmatprep.subr.bf16.mxu0 %v1994
        %2163 = vmatpush1.bf16.msra.mxu0 %v1993
        %2164 = vmatprep.mubr.bf16.mxu0 %v1646
        %2165 = vmatmul.mubr.bf16.gmra.mrb[0].mxu0 %v1645
        %v2166 = vpop.f32.mrb[0].mxu0
        %v2167 = vadd.f32 %v1730, %v2166
        %v2168 = vpop.f32.mrb[0].mxu0
        %v2169 = vadd.f32 %v1734, %v2168
        %v2170 = vpop.f32.mrb[0].mxu0
        %v2171 = vadd.f32 %v1730, %v2170
        %v2172 = vpop.f32.mrb[0].mxu0
        %v2173 = vadd.f32 %v1734, %v2172
        %2174 = vmatprep.mubr.bf16.mxu0 %v1648
        %2175 = vmatmul.mubr.bf16.gmra.mrb[0].mxu0 %v1647
        %v2176 = vpop.f32.mrb[0].mxu0
        %v2177 = vadd.f32 %v1730, %v2176
        %v2178 = vpop.f32.mrb[0].mxu0
        %v2179 = vadd.f32 %v1734, %v2178
        %v2180 = vpop.f32.mrb[0].mxu0
        %v2181 = vadd.f32 %v1730, %v2180
        %v2182 = vpop.f32.mrb[0].mxu0
        %v2183 = vadd.f32 %v1734, %v2182
        %2184 = vmatprep.mubr.bf16.mxu0 %v1650
        %2185 = vmatmul.mubr.bf16.gmra.mrb[0].mxu0 %v1649
        %v2186 = vpop.f32.mrb[0].mxu0
        %v2187 = vadd.f32 %v1730, %v2186
        %v2188 = vpop.f32.mrb[0].mxu0
        %v2189 = vadd.f32 %v1734, %v2188
        %v2190 = vpop.f32.mrb[0].mxu0
        %v2191 = vadd.f32 %v1730, %v2190
        %v2192 = vpop.f32.mrb[0].mxu0
        %v2193 = vadd.f32 %v1734, %v2192
        %2194 = vmatprep.mubr.bf16.mxu0 %v1652
        %2195 = vmatmul.mubr.bf16.gmra.mrb[0].mxu0 %v1651
        %v2196 = vpop.f32.mrb[0].mxu0
        %v2197 = vadd.f32 %v1730, %v2196
        %v2198 = vpop.f32.mrb[0].mxu0
        %v2199 = vadd.f32 %v1734, %v2198
        %v2200 = vpop.f32.mrb[0].mxu0
        %v2201 = vadd.f32 %v1730, %v2200
        %v2202 = vpop.f32.mrb[0].mxu0
        %v2203 = vadd.f32 %v1734, %v2202
        %2204 = vdwg.mxu0
        %v2205 = vmul.f32 %v2094, 0.01
        %v2206 = vmul.f32 %v2096, 0.01
        %v2207 = vmul.f32 %v2167, 0.01
        %v2208 = vmul.f32 %v2169, 0.01
        %v2209 = vmul.f32 %v2098, 0.01
        %v2210 = vmul.f32 %v2100, 0.01
        %v2211 = vmul.f32 %v2171, 0.01
        %v2212 = vmul.f32 %v2173, 0.01
        %v2213 = vmul.f32 %v2104, 0.01
        %v2214 = vmul.f32 %v2106, 0.01
        %v2215 = vmul.f32 %v2177, 0.01
        %v2216 = vmul.f32 %v2179, 0.01
        %v2217 = vmul.f32 %v2108, 0.01
        %v2218 = vmul.f32 %v2110, 0.01
        %v2219 = vmul.f32 %v2181, 0.01
        %v2220 = vmul.f32 %v2183, 0.01
        %v2221 = vmul.f32 %v2114, 0.01
        %v2222 = vmul.f32 %v2116, 0.01
        %v2223 = vmul.f32 %v2187, 0.01
        %v2224 = vmul.f32 %v2189, 0.01
        %v2225 = vmul.f32 %v2118, 0.01
        %v2226 = vmul.f32 %v2120, 0.01
        %v2227 = vmul.f32 %v2191, 0.01
        %v2228 = vmul.f32 %v2193, 0.01
        %v2229 = vmul.f32 %v2124, 0.01
        %v2230 = vmul.f32 %v2126, 0.01
        %v2231 = vmul.f32 %v2197, 0.01
        %v2232 = vmul.f32 %v2199, 0.01
        %v2233 = vmul.f32 %v2128, 0.01
        %v2234 = vmul.f32 %v2130, 0.01
        %v2235 = vmul.f32 %v2201, 0.01
        %v2236 = vmul.f32 %v2203, 0.01
        %v2237 = vmax.f32 %v2094, %v2205
        %v2238 = vmax.f32 %v2096, %v2206
        %v2239 = vmax.f32 %v2167, %v2207
        %v2240 = vmax.f32 %v2169, %v2208
        %v2241 = vmax.f32 %v2098, %v2209
        %v2242 = vmax.f32 %v2100, %v2210
        %v2243 = vmax.f32 %v2171, %v2211
        %v2244 = vmax.f32 %v2173, %v2212
        %v2245 = vmax.f32 %v2104, %v2213
        %v2246 = vmax.f32 %v2106, %v2214
        %v2247 = vmax.f32 %v2177, %v2215
        %v2248 = vmax.f32 %v2179, %v2216
        %v2249 = vmax.f32 %v2108, %v2217
        %v2250 = vmax.f32 %v2110, %v2218
        %v2251 = vmax.f32 %v2181, %v2219
        %v2252 = vmax.f32 %v2183, %v2220
        %v2253 = vmax.f32 %v2114, %v2221
        %v2254 = vmax.f32 %v2116, %v2222
        %v2255 = vmax.f32 %v2187, %v2223
        %v2256 = vmax.f32 %v2189, %v2224
        %v2257 = vmax.f32 %v2118, %v2225
        %v2258 = vmax.f32 %v2120, %v2226
        %v2259 = vmax.f32 %v2191, %v2227
        %v2260 = vmax.f32 %v2193, %v2228
        %v2261 = vmax.f32 %v2124, %v2229
        %v2262 = vmax.f32 %v2126, %v2230
        %v2263 = vmax.f32 %v2197, %v2231
        %v2264 = vmax.f32 %v2199, %v2232
        %v2265 = vmax.f32 %v2128, %v2233
        %v2266 = vmax.f32 %v2130, %v2234
        %v2267 = vmax.f32 %v2201, %v2235
        %v2268 = vmax.f32 %v2203, %v2236
        %v2269 = vpack.c.bf16 %v2241, %v2237
        %v2270 = vpack.c.bf16 %v2242, %v2238
        %v2271 = vpack.c.bf16 %v2243, %v2239
        %v2272 = vpack.c.bf16 %v2244, %v2240
        %v2273 = vpack.c.bf16 %v2249, %v2245
        %v2274 = vpack.c.bf16 %v2250, %v2246
        %v2275 = vpack.c.bf16 %v2251, %v2247
        %v2276 = vpack.c.bf16 %v2252, %v2248
        %v2277 = vpack.c.bf16 %v2257, %v2253
        %v2278 = vpack.c.bf16 %v2258, %v2254
        %v2279 = vpack.c.bf16 %v2259, %v2255
        %v2280 = vpack.c.bf16 %v2260, %v2256
        %v2281 = vpack.c.bf16 %v2265, %v2261
        %v2282 = vpack.c.bf16 %v2266, %v2262
        %v2283 = vpack.c.bf16 %v2267, %v2263
        %v2284 = vpack.c.bf16 %v2268, %v2264
        %v2285 = vld [vmem:[%s19] sm:$0xff]
        %v2286 = vld [vmem:[%s19 + $0x8] sm:$0xff]
        %v2287 = vld [vmem:[%s19 + $0x10] sm:$0xff]
        %v2288 = vld [vmem:[%s19 + $0x18] sm:$0xff]
        %v2289 = vld [vmem:[%s19 + $0x20] sm:$0xff]
        %v2290 = vld [vmem:[%s19 + $0x28] sm:$0xff]
        %v2291 = vld [vmem:[%s19 + $0x30] sm:$0xff]
        %v2292 = vld [vmem:[%s19 + $0x38] sm:$0xff]
        %v2293 = vld [vmem:[%s19 + $0x40] sm:$0xff]
        %v2294 = vld [vmem:[%s19 + $0x48] sm:$0xff]
        %v2295 = vld [vmem:[%s19 + $0x50] sm:$0xff]
        %v2296 = vld [vmem:[%s19 + $0x58] sm:$0xff]
        %v2297 = vld [vmem:[%s19 + $0x60] sm:$0xff]
        %v2298 = vld [vmem:[%s19 + $0x68] sm:$0xff]
        %v2299 = vld [vmem:[%s19 + $0x70] sm:$0xff]
        %v2300 = vld [vmem:[%s19 + $0x78] sm:$0xff]
        %v2301 = vld [vmem:[%s19 + $0x80] sm:$0xff]
        %v2302 = vld [vmem:[%s19 + $0x88] sm:$0xff]
        %v2303 = vld [vmem:[%s19 + $0x90] sm:$0xff]
        %v2304 = vld [vmem:[%s19 + $0x98] sm:$0xff]
        %v2305 = vld [vmem:[%s19 + $0xa0] sm:$0xff]
        %v2306 = vld [vmem:[%s19 + $0xa8] sm:$0xff]
        %v2307 = vld [vmem:[%s19 + $0xb0] sm:$0xff]
        %v2308 = vld [vmem:[%s19 + $0xb8] sm:$0xff]
        %v2309 = vld [vmem:[%s19 + $0xc0] sm:$0xff]
        %v2310 = vld [vmem:[%s19 + $0xc8] sm:$0xff]
        %v2311 = vld [vmem:[%s19 + $0xd0] sm:$0xff]
        %v2312 = vld [vmem:[%s19 + $0xd8] sm:$0xff]
        %v2313 = vld [vmem:[%s19 + $0xe0] sm:$0xff]
        %v2314 = vld [vmem:[%s19 + $0xe8] sm:$0xff]
        %v2315 = vld [vmem:[%s19 + $0xf0] sm:$0xff]
        %v2316 = vld [vmem:[%s19 + $0xf8] sm:$0xff]
        %v2317 = vld [vmem:[%s19 + $0x100] sm:$0xff]
        %v2318 = vld [vmem:[%s19 + $0x108] sm:$0xff]
        %v2319 = vld [vmem:[%s19 + $0x110] sm:$0xff]
        %v2320 = vld [vmem:[%s19 + $0x118] sm:$0xff]
        %v2321 = vld [vmem:[%s19 + $0x120] sm:$0xff]
        %v2322 = vld [vmem:[%s19 + $0x128] sm:$0xff]
        %v2323 = vld [vmem:[%s19 + $0x130] sm:$0xff]
        %v2324 = vld [vmem:[%s19 + $0x138] sm:$0xff]
        %v2325 = vld [vmem:[%s19 + $0x140] sm:$0xff]
        %v2326 = vld [vmem:[%s19 + $0x148] sm:$0xff]
        %v2327 = vld [vmem:[%s19 + $0x150] sm:$0xff]
        %v2328 = vld [vmem:[%s19 + $0x158] sm:$0xff]
        %v2329 = vld [vmem:[%s19 + $0x160] sm:$0xff]
        %v2330 = vld [vmem:[%s19 + $0x168] sm:$0xff]
        %v2331 = vld [vmem:[%s19 + $0x170] sm:$0xff]
        %v2332 = vld [vmem:[%s19 + $0x178] sm:$0xff]
        %v2333 = vld [vmem:[%s19 + $0x180] sm:$0xff]
        %v2334 = vld [vmem:[%s19 + $0x188] sm:$0xff]
        %v2335 = vld [vmem:[%s19 + $0x190] sm:$0xff]
        %v2336 = vld [vmem:[%s19 + $0x198] sm:$0xff]
        %v2337 = vld [vmem:[%s19 + $0x1a0] sm:$0xff]
        %v2338 = vld [vmem:[%s19 + $0x1a8] sm:$0xff]
        %v2339 = vld [vmem:[%s19 + $0x1b0] sm:$0xff]
        %v2340 = vld [vmem:[%s19 + $0x1b8] sm:$0xff]
        %v2341 = vld [vmem:[%s19 + $0x1c0] sm:$0xff]
        %v2342 = vld [vmem:[%s19 + $0x1c8] sm:$0xff]
        %v2343 = vld [vmem:[%s19 + $0x1d0] sm:$0xff]
        %v2344 = vld [vmem:[%s19 + $0x1d8] sm:$0xff]
        %v2345 = vld [vmem:[%s19 + $0x1e0] sm:$0xff]
        %v2346 = vld [vmem:[%s19 + $0x1e8] sm:$0xff]
        %v2347 = vld [vmem:[%s19 + $0x1f0] sm:$0xff]
        %v2348 = vld [vmem:[%s19 + $0x1f8] sm:$0xff]
        %v2349 = vld [vmem:[%s19 + $0x200] sm:$0xff]
        %v2350 = vld [vmem:[%s19 + $0x208] sm:$0xff]
        %v2351 = vld [vmem:[%s19 + $0x210] sm:$0xff]
        %v2352 = vld [vmem:[%s19 + $0x218] sm:$0xff]
        %v2353 = vld [vmem:[%s19 + $0x220] sm:$0xff]
        %v2354 = vld [vmem:[%s19 + $0x228] sm:$0xff]
        %v2355 = vld [vmem:[%s19 + $0x230] sm:$0xff]
        %v2356 = vld [vmem:[%s19 + $0x238] sm:$0xff]
        %v2357 = vld [vmem:[%s19 + $0x240] sm:$0xff]
        %v2358 = vld [vmem:[%s19 + $0x248] sm:$0xff]
        %v2359 = vld [vmem:[%s19 + $0x250] sm:$0xff]
        %v2360 = vld [vmem:[%s19 + $0x258] sm:$0xff]
        %v2361 = vld [vmem:[%s19 + $0x260] sm:$0xff]
        %v2362 = vld [vmem:[%s19 + $0x268] sm:$0xff]
        %v2363 = vld [vmem:[%s19 + $0x270] sm:$0xff]
        %v2364 = vld [vmem:[%s19 + $0x278] sm:$0xff]
        %v2365 = vld [vmem:[%s19 + $0x280] sm:$0xff]
        %v2366 = vld [vmem:[%s19 + $0x288] sm:$0xff]
        %v2367 = vld [vmem:[%s19 + $0x290] sm:$0xff]
        %v2368 = vld [vmem:[%s19 + $0x298] sm:$0xff]
        %v2369 = vld [vmem:[%s19 + $0x2a0] sm:$0xff]
        %v2370 = vld [vmem:[%s19 + $0x2a8] sm:$0xff]
        %v2371 = vld [vmem:[%s19 + $0x2b0] sm:$0xff]
        %v2372 = vld [vmem:[%s19 + $0x2b8] sm:$0xff]
        %v2373 = vld [vmem:[%s19 + $0x2c0] sm:$0xff]
        %v2374 = vld [vmem:[%s19 + $0x2c8] sm:$0xff]
        %v2375 = vld [vmem:[%s19 + $0x2d0] sm:$0xff]
        %v2376 = vld [vmem:[%s19 + $0x2d8] sm:$0xff]
        %v2377 = vld [vmem:[%s19 + $0x2e0] sm:$0xff]
        %v2378 = vld [vmem:[%s19 + $0x2e8] sm:$0xff]
        %v2379 = vld [vmem:[%s19 + $0x2f0] sm:$0xff]
        %v2380 = vld [vmem:[%s19 + $0x2f8] sm:$0xff]
        %v2381 = vld [vmem:[%s19 + $0x300] sm:$0xff]
        %v2382 = vld [vmem:[%s19 + $0x308] sm:$0xff]
        %v2383 = vld [vmem:[%s19 + $0x310] sm:$0xff]
        %v2384 = vld [vmem:[%s19 + $0x318] sm:$0xff]
        %v2385 = vld [vmem:[%s19 + $0x320] sm:$0xff]
        %v2386 = vld [vmem:[%s19 + $0x328] sm:$0xff]
        %v2387 = vld [vmem:[%s19 + $0x330] sm:$0xff]
        %v2388 = vld [vmem:[%s19 + $0x338] sm:$0xff]
        %v2389 = vld [vmem:[%s19 + $0x340] sm:$0xff]
        %v2390 = vld [vmem:[%s19 + $0x348] sm:$0xff]
        %v2391 = vld [vmem:[%s19 + $0x350] sm:$0xff]
        %v2392 = vld [vmem:[%s19 + $0x358] sm:$0xff]
        %v2393 = vld [vmem:[%s19 + $0x360] sm:$0xff]
        %v2394 = vld [vmem:[%s19 + $0x368] sm:$0xff]
        %v2395 = vld [vmem:[%s19 + $0x370] sm:$0xff]
        %v2396 = vld [vmem:[%s19 + $0x378] sm:$0xff]
        %v2397 = vld [vmem:[%s19 + $0x380] sm:$0xff]
        %v2398 = vld [vmem:[%s19 + $0x388] sm:$0xff]
        %v2399 = vld [vmem:[%s19 + $0x390] sm:$0xff]
        %v2400 = vld [vmem:[%s19 + $0x398] sm:$0xff]
        %v2401 = vld [vmem:[%s19 + $0x3a0] sm:$0xff]
        %v2402 = vld [vmem:[%s19 + $0x3a8] sm:$0xff]
        %v2403 = vld [vmem:[%s19 + $0x3b0] sm:$0xff]
        %v2404 = vld [vmem:[%s19 + $0x3b8] sm:$0xff]
        %v2405 = vld [vmem:[%s19 + $0x3c0] sm:$0xff]
        %v2406 = vld [vmem:[%s19 + $0x3c8] sm:$0xff]
        %v2407 = vld [vmem:[%s19 + $0x3d0] sm:$0xff]
        %v2408 = vld [vmem:[%s19 + $0x3d8] sm:$0xff]
        %v2409 = vld [vmem:[%s19 + $0x3e0] sm:$0xff]
        %v2410 = vld [vmem:[%s19 + $0x3e8] sm:$0xff]
        %v2411 = vld [vmem:[%s19 + $0x3f0] sm:$0xff]
        %v2412 = vld [vmem:[%s19 + $0x3f8] sm:$0xff]
        %v2413 = vld [vmem:[%s21] sm:$0xf]
        %v2415 = vlaneseq
        %v2416 = vshrl.u32 %v2415, 7
        %v2417 = vsub.s32 0, %v2416
        %v2418 = vrot.slane %v2413, %v2417
        %v2419 = vlaneseq
        %v2420 = vshrl.u32 %v2419, 7
        %v2421 = vsub.s32 1, %v2420
        %v2422 = vrot.slane %v2413, %v2421
        %v2423 = vlaneseq
        %v2424 = vshrl.u32 %v2423, 7
        %v2425 = vsub.s32 2, %v2424
        %v2426 = vrot.slane %v2413, %v2425
        %v2427 = vlaneseq
        %v2428 = vshrl.u32 %v2427, 7
        %v2429 = vsub.s32 3, %v2428
        %v2430 = vrot.slane %v2413, %v2429
        %v2563 = vunpack.c.l.b16 %v2285
        %v2564 = vunpack.c.h.b16 %v2285
        %v2565 = vunpack.c.l.b16 %v2286
        %v2566 = vunpack.c.h.b16 %v2286
        %v2567 = vunpack.c.l.b16 %v2287
        %v2568 = vunpack.c.h.b16 %v2287
        %v2569 = vunpack.c.l.b16 %v2288
        %v2570 = vunpack.c.h.b16 %v2288
        %v2571 = vunpack.c.l.b16 %v2289
        %v2572 = vunpack.c.h.b16 %v2289
        %v2573 = vunpack.c.l.b16 %v2290
        %v2574 = vunpack.c.h.b16 %v2290
        %v2575 = vunpack.c.l.b16 %v2291
        %v2576 = vunpack.c.h.b16 %v2291
        %v2577 = vunpack.c.l.b16 %v2292
        %v2578 = vunpack.c.h.b16 %v2292
        %v2579 = vunpack.c.l.b16 %v2293
        %v2580 = vunpack.c.h.b16 %v2293
        %v2581 = vunpack.c.l.b16 %v2294
        %v2582 = vunpack.c.h.b16 %v2294
        %v2583 = vunpack.c.l.b16 %v2295
        %v2584 = vunpack.c.h.b16 %v2295
        %v2585 = vunpack.c.l.b16 %v2296
        %v2586 = vunpack.c.h.b16 %v2296
        %v2587 = vunpack.c.l.b16 %v2297
        %v2588 = vunpack.c.h.b16 %v2297
        %v2589 = vunpack.c.l.b16 %v2298
        %v2590 = vunpack.c.h.b16 %v2298
        %v2591 = vunpack.c.l.b16 %v2299
        %v2592 = vunpack.c.h.b16 %v2299
        %v2593 = vunpack.c.l.b16 %v2300
        %v2594 = vunpack.c.h.b16 %v2300
        %v2595 = vunpack.c.l.b16 %v2301
        %v2596 = vunpack.c.h.b16 %v2301
        %v2597 = vunpack.c.l.b16 %v2302
        %v2598 = vunpack.c.h.b16 %v2302
        %v2599 = vunpack.c.l.b16 %v2303
        %v2600 = vunpack.c.h.b16 %v2303
        %v2601 = vunpack.c.l.b16 %v2304
        %v2602 = vunpack.c.h.b16 %v2304
        %v2603 = vunpack.c.l.b16 %v2305
        %v2604 = vunpack.c.h.b16 %v2305
        %v2605 = vunpack.c.l.b16 %v2306
        %v2606 = vunpack.c.h.b16 %v2306
        %v2607 = vunpack.c.l.b16 %v2307
        %v2608 = vunpack.c.h.b16 %v2307
        %v2609 = vunpack.c.l.b16 %v2308
        %v2610 = vunpack.c.h.b16 %v2308
        %v2611 = vunpack.c.l.b16 %v2309
        %v2612 = vunpack.c.h.b16 %v2309
        %v2613 = vunpack.c.l.b16 %v2310
        %v2614 = vunpack.c.h.b16 %v2310
        %v2615 = vunpack.c.l.b16 %v2311
        %v2616 = vunpack.c.h.b16 %v2311
        %v2617 = vunpack.c.l.b16 %v2312
        %v2618 = vunpack.c.h.b16 %v2312
        %v2619 = vunpack.c.l.b16 %v2313
        %v2620 = vunpack.c.h.b16 %v2313
        %v2621 = vunpack.c.l.b16 %v2314
        %v2622 = vunpack.c.h.b16 %v2314
        %v2623 = vunpack.c.l.b16 %v2315
        %v2624 = vunpack.c.h.b16 %v2315
        %v2625 = vunpack.c.l.b16 %v2316
        %v2626 = vunpack.c.h.b16 %v2316
        %v2627 = vunpack.c.l.b16 %v2317
        %v2628 = vunpack.c.h.b16 %v2317
        %v2629 = vunpack.c.l.b16 %v2318
        %v2630 = vunpack.c.h.b16 %v2318
        %v2631 = vunpack.c.l.b16 %v2319
        %v2632 = vunpack.c.h.b16 %v2319
        %v2633 = vunpack.c.l.b16 %v2320
        %v2634 = vunpack.c.h.b16 %v2320
        %v2635 = vunpack.c.l.b16 %v2321
        %v2636 = vunpack.c.h.b16 %v2321
        %v2637 = vunpack.c.l.b16 %v2322
        %v2638 = vunpack.c.h.b16 %v2322
        %v2639 = vunpack.c.l.b16 %v2323
        %v2640 = vunpack.c.h.b16 %v2323
        %v2641 = vunpack.c.l.b16 %v2324
        %v2642 = vunpack.c.h.b16 %v2324
        %v2643 = vunpack.c.l.b16 %v2325
        %v2644 = vunpack.c.h.b16 %v2325
        %v2645 = vunpack.c.l.b16 %v2326
        %v2646 = vunpack.c.h.b16 %v2326
        %v2647 = vunpack.c.l.b16 %v2327
        %v2648 = vunpack.c.h.b16 %v2327
        %v2649 = vunpack.c.l.b16 %v2328
        %v2650 = vunpack.c.h.b16 %v2328
        %v2651 = vunpack.c.l.b16 %v2329
        %v2652 = vunpack.c.h.b16 %v2329
        %v2653 = vunpack.c.l.b16 %v2330
        %v2654 = vunpack.c.h.b16 %v2330
        %v2655 = vunpack.c.l.b16 %v2331
        %v2656 = vunpack.c.h.b16 %v2331
        %v2657 = vunpack.c.l.b16 %v2332
        %v2658 = vunpack.c.h.b16 %v2332
        %v2659 = vunpack.c.l.b16 %v2333
        %v2660 = vunpack.c.h.b16 %v2333
        %v2661 = vunpack.c.l.b16 %v2334
        %v2662 = vunpack.c.h.b16 %v2334
        %v2663 = vunpack.c.l.b16 %v2335
        %v2664 = vunpack.c.h.b16 %v2335
        %v2665 = vunpack.c.l.b16 %v2336
        %v2666 = vunpack.c.h.b16 %v2336
        %v2667 = vunpack.c.l.b16 %v2337
        %v2668 = vunpack.c.h.b16 %v2337
        %v2669 = vunpack.c.l.b16 %v2338
        %v2670 = vunpack.c.h.b16 %v2338
        %v2671 = vunpack.c.l.b16 %v2339
        %v2672 = vunpack.c.h.b16 %v2339
        %v2673 = vunpack.c.l.b16 %v2340
        %v2674 = vunpack.c.h.b16 %v2340
        %v2675 = vunpack.c.l.b16 %v2341
        %v2676 = vunpack.c.h.b16 %v2341
        %v2677 = vunpack.c.l.b16 %v2342
        %v2678 = vunpack.c.h.b16 %v2342
        %v2679 = vunpack.c.l.b16 %v2343
        %v2680 = vunpack.c.h.b16 %v2343
        %v2681 = vunpack.c.l.b16 %v2344
        %v2682 = vunpack.c.h.b16 %v2344
        %v2683 = vunpack.c.l.b16 %v2345
        %v2684 = vunpack.c.h.b16 %v2345
        %v2685 = vunpack.c.l.b16 %v2346
        %v2686 = vunpack.c.h.b16 %v2346
        %v2687 = vunpack.c.l.b16 %v2347
        %v2688 = vunpack.c.h.b16 %v2347
        %v2689 = vunpack.c.l.b16 %v2348
        %v2690 = vunpack.c.h.b16 %v2348
        %v2691 = vunpack.c.l.b16 %v2349
        %v2692 = vunpack.c.h.b16 %v2349
        %v2693 = vunpack.c.l.b16 %v2350
        %v2694 = vunpack.c.h.b16 %v2350
        %v2695 = vunpack.c.l.b16 %v2351
        %v2696 = vunpack.c.h.b16 %v2351
        %v2697 = vunpack.c.l.b16 %v2352
        %v2698 = vunpack.c.h.b16 %v2352
        %v2699 = vunpack.c.l.b16 %v2353
        %v2700 = vunpack.c.h.b16 %v2353
        %v2701 = vunpack.c.l.b16 %v2354
        %v2702 = vunpack.c.h.b16 %v2354
        %v2703 = vunpack.c.l.b16 %v2355
        %v2704 = vunpack.c.h.b16 %v2355
        %v2705 = vunpack.c.l.b16 %v2356
        %v2706 = vunpack.c.h.b16 %v2356
        %v2707 = vunpack.c.l.b16 %v2357
        %v2708 = vunpack.c.h.b16 %v2357
        %v2709 = vunpack.c.l.b16 %v2358
        %v2710 = vunpack.c.h.b16 %v2358
        %v2711 = vunpack.c.l.b16 %v2359
        %v2712 = vunpack.c.h.b16 %v2359
        %v2713 = vunpack.c.l.b16 %v2360
        %v2714 = vunpack.c.h.b16 %v2360
        %v2715 = vunpack.c.l.b16 %v2361
        %v2716 = vunpack.c.h.b16 %v2361
        %v2717 = vunpack.c.l.b16 %v2362
        %v2718 = vunpack.c.h.b16 %v2362
        %v2719 = vunpack.c.l.b16 %v2363
        %v2720 = vunpack.c.h.b16 %v2363
        %v2721 = vunpack.c.l.b16 %v2364
        %v2722 = vunpack.c.h.b16 %v2364
        %v2723 = vunpack.c.l.b16 %v2365
        %v2724 = vunpack.c.h.b16 %v2365
        %v2725 = vunpack.c.l.b16 %v2366
        %v2726 = vunpack.c.h.b16 %v2366
        %v2727 = vunpack.c.l.b16 %v2367
        %v2728 = vunpack.c.h.b16 %v2367
        %v2729 = vunpack.c.l.b16 %v2368
        %v2730 = vunpack.c.h.b16 %v2368
        %v2731 = vunpack.c.l.b16 %v2369
        %v2732 = vunpack.c.h.b16 %v2369
        %v2733 = vunpack.c.l.b16 %v2370
        %v2734 = vunpack.c.h.b16 %v2370
        %v2735 = vunpack.c.l.b16 %v2371
        %v2736 = vunpack.c.h.b16 %v2371
        %v2737 = vunpack.c.l.b16 %v2372
        %v2738 = vunpack.c.h.b16 %v2372
        %v2739 = vunpack.c.l.b16 %v2373
        %v2740 = vunpack.c.h.b16 %v2373
        %v2741 = vunpack.c.l.b16 %v2374
        %v2742 = vunpack.c.h.b16 %v2374
        %v2743 = vunpack.c.l.b16 %v2375
        %v2744 = vunpack.c.h.b16 %v2375
        %v2745 = vunpack.c.l.b16 %v2376
        %v2746 = vunpack.c.h.b16 %v2376
        %v2747 = vunpack.c.l.b16 %v2377
        %v2748 = vunpack.c.h.b16 %v2377
        %v2749 = vunpack.c.l.b16 %v2378
        %v2750 = vunpack.c.h.b16 %v2378
        %v2751 = vunpack.c.l.b16 %v2379
        %v2752 = vunpack.c.h.b16 %v2379
        %v2753 = vunpack.c.l.b16 %v2380
        %v2754 = vunpack.c.h.b16 %v2380
        %v2755 = vunpack.c.l.b16 %v2381
        %v2756 = vunpack.c.h.b16 %v2381
        %v2757 = vunpack.c.l.b16 %v2382
        %v2758 = vunpack.c.h.b16 %v2382
        %v2759 = vunpack.c.l.b16 %v2383
        %v2760 = vunpack.c.h.b16 %v2383
        %v2761 = vunpack.c.l.b16 %v2384
        %v2762 = vunpack.c.h.b16 %v2384
        %v2763 = vunpack.c.l.b16 %v2385
        %v2764 = vunpack.c.h.b16 %v2385
        %v2765 = vunpack.c.l.b16 %v2386
        %v2766 = vunpack.c.h.b16 %v2386
        %v2767 = vunpack.c.l.b16 %v2387
        %v2768 = vunpack.c.h.b16 %v2387
        %v2769 = vunpack.c.l.b16 %v2388
        %v2770 = vunpack.c.h.b16 %v2388
        %v2771 = vunpack.c.l.b16 %v2389
        %v2772 = vunpack.c.h.b16 %v2389
        %v2773 = vunpack.c.l.b16 %v2390
        %v2774 = vunpack.c.h.b16 %v2390
        %v2775 = vunpack.c.l.b16 %v2391
        %v2776 = vunpack.c.h.b16 %v2391
        %v2777 = vunpack.c.l.b16 %v2392
        %v2778 = vunpack.c.h.b16 %v2392
        %v2779 = vunpack.c.l.b16 %v2393
        %v2780 = vunpack.c.h.b16 %v2393
        %v2781 = vunpack.c.l.b16 %v2394
        %v2782 = vunpack.c.h.b16 %v2394
        %v2783 = vunpack.c.l.b16 %v2395
        %v2784 = vunpack.c.h.b16 %v2395
        %v2785 = vunpack.c.l.b16 %v2396
        %v2786 = vunpack.c.h.b16 %v2396
        %v2787 = vunpack.c.l.b16 %v2397
        %v2788 = vunpack.c.h.b16 %v2397
        %v2789 = vunpack.c.l.b16 %v2398
        %v2790 = vunpack.c.h.b16 %v2398
        %v2791 = vunpack.c.l.b16 %v2399
        %v2792 = vunpack.c.h.b16 %v2399
        %v2793 = vunpack.c.l.b16 %v2400
        %v2794 = vunpack.c.h.b16 %v2400
        %v2795 = vunpack.c.l.b16 %v2401
        %v2796 = vunpack.c.h.b16 %v2401
        %v2797 = vunpack.c.l.b16 %v2402
        %v2798 = vunpack.c.h.b16 %v2402
        %v2799 = vunpack.c.l.b16 %v2403
        %v2800 = vunpack.c.h.b16 %v2403
        %v2801 = vunpack.c.l.b16 %v2404
        %v2802 = vunpack.c.h.b16 %v2404
        %v2803 = vunpack.c.l.b16 %v2405
        %v2804 = vunpack.c.h.b16 %v2405
        %v2805 = vunpack.c.l.b16 %v2406
        %v2806 = vunpack.c.h.b16 %v2406
        %v2807 = vunpack.c.l.b16 %v2407
        %v2808 = vunpack.c.h.b16 %v2407
        %v2809 = vunpack.c.l.b16 %v2408
        %v2810 = vunpack.c.h.b16 %v2408
        %v2811 = vunpack.c.l.b16 %v2409
        %v2812 = vunpack.c.h.b16 %v2409
        %v2813 = vunpack.c.l.b16 %v2410
        %v2814 = vunpack.c.h.b16 %v2410
        %v2815 = vunpack.c.l.b16 %v2411
        %v2816 = vunpack.c.h.b16 %v2411
        %v2817 = vunpack.c.l.b16 %v2412
        %v2818 = vunpack.c.h.b16 %v2412
        %v2819 = vpack.c.b16 %v2567, %v2563
        %v2820 = vpack.c.b16 %v2568, %v2564
        %v2821 = vpack.c.b16 %v2569, %v2565
        %v2822 = vpack.c.b16 %v2570, %v2566
        %v2823 = vpack.c.b16 %v2575, %v2571
        %v2824 = vpack.c.b16 %v2576, %v2572
        %v2825 = vpack.c.b16 %v2577, %v2573
        %v2826 = vpack.c.b16 %v2578, %v2574
        %v2827 = vpack.c.b16 %v2583, %v2579
        %v2828 = vpack.c.b16 %v2584, %v2580
        %v2829 = vpack.c.b16 %v2585, %v2581
        %v2830 = vpack.c.b16 %v2586, %v2582
        %v2831 = vpack.c.b16 %v2591, %v2587
        %v2832 = vpack.c.b16 %v2592, %v2588
        %v2833 = vpack.c.b16 %v2593, %v2589
        %v2834 = vpack.c.b16 %v2594, %v2590
        %v2835 = vpack.c.b16 %v2599, %v2595
        %v2836 = vpack.c.b16 %v2600, %v2596
        %v2837 = vpack.c.b16 %v2601, %v2597
        %v2838 = vpack.c.b16 %v2602, %v2598
        %v2839 = vpack.c.b16 %v2607, %v2603
        %v2840 = vpack.c.b16 %v2608, %v2604
        %v2841 = vpack.c.b16 %v2609, %v2605
        %v2842 = vpack.c.b16 %v2610, %v2606
        %v2843 = vpack.c.b16 %v2615, %v2611
        %v2844 = vpack.c.b16 %v2616, %v2612
        %v2845 = vpack.c.b16 %v2617, %v2613
        %v2846 = vpack.c.b16 %v2618, %v2614
        %v2847 = vpack.c.b16 %v2623, %v2619
        %v2848 = vpack.c.b16 %v2624, %v2620
        %v2849 = vpack.c.b16 %v2625, %v2621
        %v2850 = vpack.c.b16 %v2626, %v2622
        %v2851 = vpack.c.b16 %v2631, %v2627
        %v2852 = vpack.c.b16 %v2632, %v2628
        %v2853 = vpack.c.b16 %v2633, %v2629
        %v2854 = vpack.c.b16 %v2634, %v2630
        %v2855 = vpack.c.b16 %v2639, %v2635
        %v2856 = vpack.c.b16 %v2640, %v2636
        %v2857 = vpack.c.b16 %v2641, %v2637
        %v2858 = vpack.c.b16 %v2642, %v2638
        %v2859 = vpack.c.b16 %v2647, %v2643
        %v2860 = vpack.c.b16 %v2648, %v2644
        %v2861 = vpack.c.b16 %v2649, %v2645
        %v2862 = vpack.c.b16 %v2650, %v2646
        %v2863 = vpack.c.b16 %v2655, %v2651
        %v2864 = vpack.c.b16 %v2656, %v2652
        %v2865 = vpack.c.b16 %v2657, %v2653
        %v2866 = vpack.c.b16 %v2658, %v2654
        %v2867 = vpack.c.b16 %v2663, %v2659
        %v2868 = vpack.c.b16 %v2664, %v2660
        %v2869 = vpack.c.b16 %v2665, %v2661
        %v2870 = vpack.c.b16 %v2666, %v2662
        %v2871 = vpack.c.b16 %v2671, %v2667
        %v2872 = vpack.c.b16 %v2672, %v2668
        %v2873 = vpack.c.b16 %v2673, %v2669
        %v2874 = vpack.c.b16 %v2674, %v2670
        %v2875 = vpack.c.b16 %v2679, %v2675
        %v2876 = vpack.c.b16 %v2680, %v2676
        %v2877 = vpack.c.b16 %v2681, %v2677
        %v2878 = vpack.c.b16 %v2682, %v2678
        %v2879 = vpack.c.b16 %v2687, %v2683
        %v2880 = vpack.c.b16 %v2688, %v2684
        %v2881 = vpack.c.b16 %v2689, %v2685
        %v2882 = vpack.c.b16 %v2690, %v2686
        %v2883 = vpack.c.b16 %v2695, %v2691
        %v2884 = vpack.c.b16 %v2696, %v2692
        %v2885 = vpack.c.b16 %v2697, %v2693
        %v2886 = vpack.c.b16 %v2698, %v2694
        %v2887 = vpack.c.b16 %v2703, %v2699
        %v2888 = vpack.c.b16 %v2704, %v2700
        %v2889 = vpack.c.b16 %v2705, %v2701
        %v2890 = vpack.c.b16 %v2706, %v2702
        %v2891 = vpack.c.b16 %v2711, %v2707
        %v2892 = vpack.c.b16 %v2712, %v2708
        %v2893 = vpack.c.b16 %v2713, %v2709
        %v2894 = vpack.c.b16 %v2714, %v2710
        %v2895 = vpack.c.b16 %v2719, %v2715
        %v2896 = vpack.c.b16 %v2720, %v2716
        %v2897 = vpack.c.b16 %v2721, %v2717
        %v2898 = vpack.c.b16 %v2722, %v2718
        %v2899 = vpack.c.b16 %v2727, %v2723
        %v2900 = vpack.c.b16 %v2728, %v2724
        %v2901 = vpack.c.b16 %v2729, %v2725
        %v2902 = vpack.c.b16 %v2730, %v2726
        %v2903 = vpack.c.b16 %v2735, %v2731
        %v2904 = vpack.c.b16 %v2736, %v2732
        %v2905 = vpack.c.b16 %v2737, %v2733
        %v2906 = vpack.c.b16 %v2738, %v2734
        %v2907 = vpack.c.b16 %v2743, %v2739
        %v2908 = vpack.c.b16 %v2744, %v2740
        %v2909 = vpack.c.b16 %v2745, %v2741
        %v2910 = vpack.c.b16 %v2746, %v2742
        %v2911 = vpack.c.b16 %v2751, %v2747
        %v2912 = vpack.c.b16 %v2752, %v2748
        %v2913 = vpack.c.b16 %v2753, %v2749
        %v2914 = vpack.c.b16 %v2754, %v2750
        %v2915 = vpack.c.b16 %v2759, %v2755
        %v2916 = vpack.c.b16 %v2760, %v2756
        %v2917 = vpack.c.b16 %v2761, %v2757
        %v2918 = vpack.c.b16 %v2762, %v2758
        %v2919 = vpack.c.b16 %v2767, %v2763
        %v2920 = vpack.c.b16 %v2768, %v2764
        %v2921 = vpack.c.b16 %v2769, %v2765
        %v2922 = vpack.c.b16 %v2770, %v2766
        %v2923 = vpack.c.b16 %v2775, %v2771
        %v2924 = vpack.c.b16 %v2776, %v2772
        %v2925 = vpack.c.b16 %v2777, %v2773
        %v2926 = vpack.c.b16 %v2778, %v2774
        %v2927 = vpack.c.b16 %v2783, %v2779
        %v2928 = vpack.c.b16 %v2784, %v2780
        %v2929 = vpack.c.b16 %v2785, %v2781
        %v2930 = vpack.c.b16 %v2786, %v2782
        %v2931 = vpack.c.b16 %v2791, %v2787
        %v2932 = vpack.c.b16 %v2792, %v2788
        %v2933 = vpack.c.b16 %v2793, %v2789
        %v2934 = vpack.c.b16 %v2794, %v2790
        %v2935 = vpack.c.b16 %v2799, %v2795
        %v2936 = vpack.c.b16 %v2800, %v2796
        %v2937 = vpack.c.b16 %v2801, %v2797
        %v2938 = vpack.c.b16 %v2802, %v2798
        %v2939 = vpack.c.b16 %v2807, %v2803
        %v2940 = vpack.c.b16 %v2808, %v2804
        %v2941 = vpack.c.b16 %v2809, %v2805
        %v2942 = vpack.c.b16 %v2810, %v2806
        %v2943 = vpack.c.b16 %v2815, %v2811
        %v2944 = vpack.c.b16 %v2816, %v2812
        %v2945 = vpack.c.b16 %v2817, %v2813
        %v2946 = vpack.c.b16 %v2818, %v2814
        %3075 = vmatprep.subr.bf16.mxu0 %v2820
        %3076 = vmatpush1.bf16.msra.mxu0 %v2819
        %3077 = vmatprep.subr.bf16.mxu0 %v2824
        %3078 = vmatpush1.bf16.msra.mxu0 %v2823
        %3079 = vmatprep.subr.bf16.mxu0 %v2828
        %3080 = vmatpush1.bf16.msra.mxu0 %v2827
        %3081 = vmatprep.subr.bf16.mxu0 %v2832
        %3082 = vmatpush1.bf16.msra.mxu0 %v2831
        %3083 = vmatprep.subr.bf16.mxu0 %v2836
        %3084 = vmatpush1.bf16.msra.mxu0 %v2835
        %3085 = vmatprep.subr.bf16.mxu0 %v2840
        %3086 = vmatpush1.bf16.msra.mxu0 %v2839
        %3087 = vmatprep.subr.bf16.mxu0 %v2844
        %3088 = vmatpush1.bf16.msra.mxu0 %v2843
        %3089 = vmatprep.subr.bf16.mxu0 %v2848
        %3090 = vmatpush1.bf16.msra.mxu0 %v2847
        %3091 = vmatprep.subr.bf16.mxu0 %v2852
        %3092 = vmatpush1.bf16.msra.mxu0 %v2851
        %3093 = vmatprep.subr.bf16.mxu0 %v2856
        %3094 = vmatpush1.bf16.msra.mxu0 %v2855
        %3095 = vmatprep.subr.bf16.mxu0 %v2860
        %3096 = vmatpush1.bf16.msra.mxu0 %v2859
        %3097 = vmatprep.subr.bf16.mxu0 %v2864
        %3098 = vmatpush1.bf16.msra.mxu0 %v2863
        %3099 = vmatprep.subr.bf16.mxu0 %v2868
        %3100 = vmatpush1.bf16.msra.mxu0 %v2867
        %3101 = vmatprep.subr.bf16.mxu0 %v2872
        %3102 = vmatpush1.bf16.msra.mxu0 %v2871
        %3103 = vmatprep.subr.bf16.mxu0 %v2876
        %3104 = vmatpush1.bf16.msra.mxu0 %v2875
        %3105 = vmatprep.subr.bf16.mxu0 %v2880
        %3106 = vmatpush1.bf16.msra.mxu0 %v2879
        %3107 = vmatprep.mubr.bf16.mxu0 %v2270
        %3108 = vmatmul.mubr.bf16.gmra.mrb[0].mxu0 %v2269
        %v3109 = vpop.f32.mrb[0].mxu0
        %v3110 = vadd.f32 %v2418, %v3109
        %v3111 = vpop.f32.mrb[0].mxu0
        %v3112 = vadd.f32 %v2422, %v3111
        %v3113 = vpop.f32.mrb[0].mxu0
        %v3114 = vadd.f32 %v2418, %v3113
        %v3115 = vpop.f32.mrb[0].mxu0
        %v3116 = vadd.f32 %v2422, %v3115
        %3117 = vmatprep.mubr.bf16.mxu0 %v2274
        %3118 = vmatmul.mubr.bf16.gmra.mrb[0].mxu0 %v2273
        %v3119 = vpop.f32.mrb[0].mxu0
        %v3120 = vadd.f32 %v2418, %v3119
        %v3121 = vpop.f32.mrb[0].mxu0
        %v3122 = vadd.f32 %v2422, %v3121
        %v3123 = vpop.f32.mrb[0].mxu0
        %v3124 = vadd.f32 %v2418, %v3123
        %v3125 = vpop.f32.mrb[0].mxu0
        %v3126 = vadd.f32 %v2422, %v3125
        %3127 = vmatprep.mubr.bf16.mxu0 %v2278
        %3128 = vmatmul.mubr.bf16.gmra.mrb[0].mxu0 %v2277
        %v3129 = vpop.f32.mrb[0].mxu0
        %v3130 = vadd.f32 %v2418, %v3129
        %v3131 = vpop.f32.mrb[0].mxu0
        %v3132 = vadd.f32 %v2422, %v3131
        %v3133 = vpop.f32.mrb[0].mxu0
        %v3134 = vadd.f32 %v2418, %v3133
        %v3135 = vpop.f32.mrb[0].mxu0
        %v3136 = vadd.f32 %v2422, %v3135
        %3137 = vmatprep.mubr.bf16.mxu0 %v2282
        %3138 = vmatmul.mubr.bf16.gmra.mrb[0].mxu0 %v2281
        %v3139 = vpop.f32.mrb[0].mxu0
        %v3140 = vadd.f32 %v2418, %v3139
        %v3141 = vpop.f32.mrb[0].mxu0
        %v3142 = vadd.f32 %v2422, %v3141
        %v3143 = vpop.f32.mrb[0].mxu0
        %v3144 = vadd.f32 %v2418, %v3143
        %v3145 = vpop.f32.mrb[0].mxu0
        %v3146 = vadd.f32 %v2422, %v3145
        %3147 = vdwg.mxu0
        %3148 = vmatprep.subr.bf16.mxu0 %v2884
        %3149 = vmatpush1.bf16.msra.mxu0 %v2883
        %3150 = vmatprep.subr.bf16.mxu0 %v2888
        %3151 = vmatpush1.bf16.msra.mxu0 %v2887
        %3152 = vmatprep.subr.bf16.mxu0 %v2892
        %3153 = vmatpush1.bf16.msra.mxu0 %v2891
        %3154 = vmatprep.subr.bf16.mxu0 %v2896
        %3155 = vmatpush1.bf16.msra.mxu0 %v2895
        %3156 = vmatprep.subr.bf16.mxu0 %v2900
        %3157 = vmatpush1.bf16.msra.mxu0 %v2899
        %3158 = vmatprep.subr.bf16.mxu0 %v2904
        %3159 = vmatpush1.bf16.msra.mxu0 %v2903
        %3160 = vmatprep.subr.bf16.mxu0 %v2908
        %3161 = vmatpush1.bf16.msra.mxu0 %v2907
        %3162 = vmatprep.subr.bf16.mxu0 %v2912
        %3163 = vmatpush1.bf16.msra.mxu0 %v2911
        %3164 = vmatprep.subr.bf16.mxu0 %v2916
        %3165 = vmatpush1.bf16.msra.mxu0 %v2915
        %3166 = vmatprep.subr.bf16.mxu0 %v2920
        %3167 = vmatpush1.bf16.msra.mxu0 %v2919
        %3168 = vmatprep.subr.bf16.mxu0 %v2924
        %3169 = vmatpush1.bf16.msra.mxu0 %v2923
        %3170 = vmatprep.subr.bf16.mxu0 %v2928
        %3171 = vmatpush1.bf16.msra.mxu0 %v2927
        %3172 = vmatprep.subr.bf16.mxu0 %v2932
        %3173 = vmatpush1.bf16.msra.mxu0 %v2931
        %3174 = vmatprep.subr.bf16.mxu0 %v2936
        %3175 = vmatpush1.bf16.msra.mxu0 %v2935
        %3176 = vmatprep.subr.bf16.mxu0 %v2940
        %3177 = vmatpush1.bf16.msra.mxu0 %v2939
        %3178 = vmatprep.subr.bf16.mxu0 %v2944
        %3179 = vmatpush1.bf16.msra.mxu0 %v2943
        %3180 = vmatprep.mubr.bf16.mxu0 %v2272
        %3181 = vmatmul.mubr.bf16.gmra.mrb[0].mxu0 %v2271
        %v3182 = vpop.f32.mrb[0].mxu0
        %v3183 = vadd.f32 %v3110, %v3182
        %v3184 = vpop.f32.mrb[0].mxu0
        %v3185 = vadd.f32 %v3112, %v3184
        %v3186 = vpop.f32.mrb[0].mxu0
        %v3187 = vadd.f32 %v3114, %v3186
        %v3188 = vpop.f32.mrb[0].mxu0
        %v3189 = vadd.f32 %v3116, %v3188
        %3190 = vmatprep.mubr.bf16.mxu0 %v2276
        %3191 = vmatmul.mubr.bf16.gmra.mrb[0].mxu0 %v2275
        %v3192 = vpop.f32.mrb[0].mxu0
        %v3193 = vadd.f32 %v3120, %v3192
        %v3194 = vpop.f32.mrb[0].mxu0
        %v3195 = vadd.f32 %v3122, %v3194
        %v3196 = vpop.f32.mrb[0].mxu0
        %v3197 = vadd.f32 %v3124, %v3196
        %v3198 = vpop.f32.mrb[0].mxu0
        %v3199 = vadd.f32 %v3126, %v3198
        %3200 = vmatprep.mubr.bf16.mxu0 %v2280
        %3201 = vmatmul.mubr.bf16.gmra.mrb[0].mxu0 %v2279
        %v3202 = vpop.f32.mrb[0].mxu0
        %v3203 = vadd.f32 %v3130, %v3202
        %v3204 = vpop.f32.mrb[0].mxu0
        %v3205 = vadd.f32 %v3132, %v3204
        %v3206 = vpop.f32.mrb[0].mxu0
        %v3207 = vadd.f32 %v3134, %v3206
        %v3208 = vpop.f32.mrb[0].mxu0
        %v3209 = vadd.f32 %v3136, %v3208
        %3210 = vmatprep.mubr.bf16.mxu0 %v2284
        %3211 = vmatmul.mubr.bf16.gmra.mrb[0].mxu0 %v2283
        %v3212 = vpop.f32.mrb[0].mxu0
        %v3213 = vadd.f32 %v3140, %v3212
        %v3214 = vpop.f32.mrb[0].mxu0
        %v3215 = vadd.f32 %v3142, %v3214
        %v3216 = vpop.f32.mrb[0].mxu0
        %v3217 = vadd.f32 %v3144, %v3216
        %v3218 = vpop.f32.mrb[0].mxu0
        %v3219 = vadd.f32 %v3146, %v3218
        %3220 = vdwg.mxu0
        %3221 = vmatprep.subr.bf16.mxu0 %v2822
        %3222 = vmatpush1.bf16.msra.mxu0 %v2821
        %3223 = vmatprep.subr.bf16.mxu0 %v2826
        %3224 = vmatpush1.bf16.msra.mxu0 %v2825
        %3225 = vmatprep.subr.bf16.mxu0 %v2830
        %3226 = vmatpush1.bf16.msra.mxu0 %v2829
        %3227 = vmatprep.subr.bf16.mxu0 %v2834
        %3228 = vmatpush1.bf16.msra.mxu0 %v2833
        %3229 = vmatprep.subr.bf16.mxu0 %v2838
        %3230 = vmatpush1.bf16.msra.mxu0 %v2837
        %3231 = vmatprep.subr.bf16.mxu0 %v2842
        %3232 = vmatpush1.bf16.msra.mxu0 %v2841
        %3233 = vmatprep.subr.bf16.mxu0 %v2846
        %3234 = vmatpush1.bf16.msra.mxu0 %v2845
        %3235 = vmatprep.subr.bf16.mxu0 %v2850
        %3236 = vmatpush1.bf16.msra.mxu0 %v2849
        %3237 = vmatprep.subr.bf16.mxu0 %v2854
        %3238 = vmatpush1.bf16.msra.mxu0 %v2853
        %3239 = vmatprep.subr.bf16.mxu0 %v2858
        %3240 = vmatpush1.bf16.msra.mxu0 %v2857
        %3241 = vmatprep.subr.bf16.mxu0 %v2862
        %3242 = vmatpush1.bf16.msra.mxu0 %v2861
        %3243 = vmatprep.subr.bf16.mxu0 %v2866
        %3244 = vmatpush1.bf16.msra.mxu0 %v2865
        %3245 = vmatprep.subr.bf16.mxu0 %v2870
        %3246 = vmatpush1.bf16.msra.mxu0 %v2869
        %3247 = vmatprep.subr.bf16.mxu0 %v2874
        %3248 = vmatpush1.bf16.msra.mxu0 %v2873
        %3249 = vmatprep.subr.bf16.mxu0 %v2878
        %3250 = vmatpush1.bf16.msra.mxu0 %v2877
        %3251 = vmatprep.subr.bf16.mxu0 %v2882
        %3252 = vmatpush1.bf16.msra.mxu0 %v2881
        %3253 = vmatprep.mubr.bf16.mxu0 %v2270
        %3254 = vmatmul.mubr.bf16.gmra.mrb[0].mxu0 %v2269
        %v3255 = vpop.f32.mrb[0].mxu0
        %v3256 = vadd.f32 %v2426, %v3255
        %v3257 = vpop.f32.mrb[0].mxu0
        %v3258 = vadd.f32 %v2430, %v3257
        %v3259 = vpop.f32.mrb[0].mxu0
        %v3260 = vadd.f32 %v2426, %v3259
        %v3261 = vpop.f32.mrb[0].mxu0
        %v3262 = vadd.f32 %v2430, %v3261
        %3263 = vmatprep.mubr.bf16.mxu0 %v2274
        %3264 = vmatmul.mubr.bf16.gmra.mrb[0].mxu0 %v2273
        %v3265 = vpop.f32.mrb[0].mxu0
        %v3266 = vadd.f32 %v2426, %v3265
        %v3267 = vpop.f32.mrb[0].mxu0
        %v3268 = vadd.f32 %v2430, %v3267
        %v3269 = vpop.f32.mrb[0].mxu0
        %v3270 = vadd.f32 %v2426, %v3269
        %v3271 = vpop.f32.mrb[0].mxu0
        %v3272 = vadd.f32 %v2430, %v3271
        %3273 = vmatprep.mubr.bf16.mxu0 %v2278
        %3274 = vmatmul.mubr.bf16.gmra.mrb[0].mxu0 %v2277
        %v3275 = vpop.f32.mrb[0].mxu0
        %v3276 = vadd.f32 %v2426, %v3275
        %v3277 = vpop.f32.mrb[0].mxu0
        %v3278 = vadd.f32 %v2430, %v3277
        %v3279 = vpop.f32.mrb[0].mxu0
        %v3280 = vadd.f32 %v2426, %v3279
        %v3281 = vpop.f32.mrb[0].mxu0
        %v3282 = vadd.f32 %v2430, %v3281
        %3283 = vmatprep.mubr.bf16.mxu0 %v2282
        %3284 = vmatmul.mubr.bf16.gmra.mrb[0].mxu0 %v2281
        %v3285 = vpop.f32.mrb[0].mxu0
        %v3286 = vadd.f32 %v2426, %v3285
        %v3287 = vpop.f32.mrb[0].mxu0
        %v3288 = vadd.f32 %v2430, %v3287
        %v3289 = vpop.f32.mrb[0].mxu0
        %v3290 = vadd.f32 %v2426, %v3289
        %v3291 = vpop.f32.mrb[0].mxu0
        %v3292 = vadd.f32 %v2430, %v3291
        %3293 = vdwg.mxu0
        %3294 = vmatprep.subr.bf16.mxu0 %v2886
        %3295 = vmatpush1.bf16.msra.mxu0 %v2885
        %3296 = vmatprep.subr.bf16.mxu0 %v2890
        %3297 = vmatpush1.bf16.msra.mxu0 %v2889
        %3298 = vmatprep.subr.bf16.mxu0 %v2894
        %3299 = vmatpush1.bf16.msra.mxu0 %v2893
        %3300 = vmatprep.subr.bf16.mxu0 %v2898
        %3301 = vmatpush1.bf16.msra.mxu0 %v2897
        %3302 = vmatprep.subr.bf16.mxu0 %v2902
        %3303 = vmatpush1.bf16.msra.mxu0 %v2901
        %3304 = vmatprep.subr.bf16.mxu0 %v2906
        %3305 = vmatpush1.bf16.msra.mxu0 %v2905
        %3306 = vmatprep.subr.bf16.mxu0 %v2910
        %3307 = vmatpush1.bf16.msra.mxu0 %v2909
        %3308 = vmatprep.subr.bf16.mxu0 %v2914
        %3309 = vmatpush1.bf16.msra.mxu0 %v2913
        %3310 = vmatprep.subr.bf16.mxu0 %v2918
        %3311 = vmatpush1.bf16.msra.mxu0 %v2917
        %3312 = vmatprep.subr.bf16.mxu0 %v2922
        %3313 = vmatpush1.bf16.msra.mxu0 %v2921
        %3314 = vmatprep.subr.bf16.mxu0 %v2926
        %3315 = vmatpush1.bf16.msra.mxu0 %v2925
        %3316 = vmatprep.subr.bf16.mxu0 %v2930
        %3317 = vmatpush1.bf16.msra.mxu0 %v2929
        %3318 = vmatprep.subr.bf16.mxu0 %v2934
        %3319 = vmatpush1.bf16.msra.mxu0 %v2933
        %3320 = vmatprep.subr.bf16.mxu0 %v2938
        %3321 = vmatpush1.bf16.msra.mxu0 %v2937
        %3322 = vmatprep.subr.bf16.mxu0 %v2942
        %3323 = vmatpush1.bf16.msra.mxu0 %v2941
        %3324 = vmatprep.subr.bf16.mxu0 %v2946
        %3325 = vmatpush1.bf16.msra.mxu0 %v2945
        %3326 = vmatprep.mubr.bf16.mxu0 %v2272
        %3327 = vmatmul.mubr.bf16.gmra.mrb[0].mxu0 %v2271
        %v3328 = vpop.f32.mrb[0].mxu0
        %v3329 = vadd.f32 %v3256, %v3328
        %v3330 = vpop.f32.mrb[0].mxu0
        %v3331 = vadd.f32 %v3258, %v3330
        %v3332 = vpop.f32.mrb[0].mxu0
        %v3333 = vadd.f32 %v3260, %v3332
        %v3334 = vpop.f32.mrb[0].mxu0
        %v3335 = vadd.f32 %v3262, %v3334
        %3336 = vmatprep.mubr.bf16.mxu0 %v2276
        %3337 = vmatmul.mubr.bf16.gmra.mrb[0].mxu0 %v2275
        %v3338 = vpop.f32.mrb[0].mxu0
        %v3339 = vadd.f32 %v3266, %v3338
        %v3340 = vpop.f32.mrb[0].mxu0
        %v3341 = vadd.f32 %v3268, %v3340
        %v3342 = vpop.f32.mrb[0].mxu0
        %v3343 = vadd.f32 %v3270, %v3342
        %v3344 = vpop.f32.mrb[0].mxu0
        %v3345 = vadd.f32 %v3272, %v3344
        %3346 = vmatprep.mubr.bf16.mxu0 %v2280
        %3347 = vmatmul.mubr.bf16.gmra.mrb[0].mxu0 %v2279
        %v3348 = vpop.f32.mrb[0].mxu0
        %v3349 = vadd.f32 %v3276, %v3348
        %v3350 = vpop.f32.mrb[0].mxu0
        %v3351 = vadd.f32 %v3278, %v3350
        %v3352 = vpop.f32.mrb[0].mxu0
        %v3353 = vadd.f32 %v3280, %v3352
        %v3354 = vpop.f32.mrb[0].mxu0
        %v3355 = vadd.f32 %v3282, %v3354
        %3356 = vmatprep.mubr.bf16.mxu0 %v2284
        %3357 = vmatmul.mubr.bf16.gmra.mrb[0].mxu0 %v2283
        %v3358 = vpop.f32.mrb[0].mxu0
        %v3359 = vadd.f32 %v3286, %v3358
        %v3360 = vpop.f32.mrb[0].mxu0
        %v3361 = vadd.f32 %v3288, %v3360
        %v3362 = vpop.f32.mrb[0].mxu0
        %v3363 = vadd.f32 %v3290, %v3362
        %v3364 = vpop.f32.mrb[0].mxu0
        %v3365 = vadd.f32 %v3292, %v3364
        %3366 = vdwg.mxu0
        %v3367 = vmul.f32 %v3183, 0.01
        %v3368 = vmul.f32 %v3185, 0.01
        %v3369 = vmul.f32 %v3329, 0.01
        %v3370 = vmul.f32 %v3331, 0.01
        %v3371 = vmul.f32 %v3187, 0.01
        %v3372 = vmul.f32 %v3189, 0.01
        %v3373 = vmul.f32 %v3333, 0.01
        %v3374 = vmul.f32 %v3335, 0.01
        %v3375 = vmul.f32 %v3193, 0.01
        %v3376 = vmul.f32 %v3195, 0.01
        %v3377 = vmul.f32 %v3339, 0.01
        %v3378 = vmul.f32 %v3341, 0.01
        %v3379 = vmul.f32 %v3197, 0.01
        %v3380 = vmul.f32 %v3199, 0.01
        %v3381 = vmul.f32 %v3343, 0.01
        %v3382 = vmul.f32 %v3345, 0.01
        %v3383 = vmul.f32 %v3203, 0.01
        %v3384 = vmul.f32 %v3205, 0.01
        %v3385 = vmul.f32 %v3349, 0.01
        %v3386 = vmul.f32 %v3351, 0.01
        %v3387 = vmul.f32 %v3207, 0.01
        %v3388 = vmul.f32 %v3209, 0.01
        %v3389 = vmul.f32 %v3353, 0.01
        %v3390 = vmul.f32 %v3355, 0.01
        %v3391 = vmul.f32 %v3213, 0.01
        %v3392 = vmul.f32 %v3215, 0.01
        %v3393 = vmul.f32 %v3359, 0.01
        %v3394 = vmul.f32 %v3361, 0.01
        %v3395 = vmul.f32 %v3217, 0.01
        %v3396 = vmul.f32 %v3219, 0.01
        %v3397 = vmul.f32 %v3363, 0.01
        %v3398 = vmul.f32 %v3365, 0.01
        %v3399 = vmax.f32 %v3183, %v3367
        %v3400 = vmax.f32 %v3185, %v3368
        %v3401 = vmax.f32 %v3329, %v3369
        %v3402 = vmax.f32 %v3331, %v3370
        %v3403 = vmax.f32 %v3187, %v3371
        %v3404 = vmax.f32 %v3189, %v3372
        %v3405 = vmax.f32 %v3333, %v3373
        %v3406 = vmax.f32 %v3335, %v3374
        %v3407 = vmax.f32 %v3193, %v3375
        %v3408 = vmax.f32 %v3195, %v3376
        %v3409 = vmax.f32 %v3339, %v3377
        %v3410 = vmax.f32 %v3341, %v3378
        %v3411 = vmax.f32 %v3197, %v3379
        %v3412 = vmax.f32 %v3199, %v3380
        %v3413 = vmax.f32 %v3343, %v3381
        %v3414 = vmax.f32 %v3345, %v3382
        %v3415 = vmax.f32 %v3203, %v3383
        %v3416 = vmax.f32 %v3205, %v3384
        %v3417 = vmax.f32 %v3349, %v3385
        %v3418 = vmax.f32 %v3351, %v3386
        %v3419 = vmax.f32 %v3207, %v3387
        %v3420 = vmax.f32 %v3209, %v3388
        %v3421 = vmax.f32 %v3353, %v3389
        %v3422 = vmax.f32 %v3355, %v3390
        %v3423 = vmax.f32 %v3213, %v3391
        %v3424 = vmax.f32 %v3215, %v3392
        %v3425 = vmax.f32 %v3359, %v3393
        %v3426 = vmax.f32 %v3361, %v3394
        %v3427 = vmax.f32 %v3217, %v3395
        %v3428 = vmax.f32 %v3219, %v3396
        %v3429 = vmax.f32 %v3363, %v3397
        %v3430 = vmax.f32 %v3365, %v3398
        %v3431 = vpack.c.bf16 %v3403, %v3399
        %v3432 = vpack.c.bf16 %v3404, %v3400
        %v3433 = vpack.c.bf16 %v3411, %v3407
        %v3434 = vpack.c.bf16 %v3412, %v3408
        %v3435 = vpack.c.bf16 %v3419, %v3415
        %v3436 = vpack.c.bf16 %v3420, %v3416
        %v3437 = vpack.c.bf16 %v3427, %v3423
        %v3438 = vpack.c.bf16 %v3428, %v3424
        %v3439 = vld [vmem:[%s23] sm:$0xff]
        %v3440 = vld [vmem:[%s23 + $0x8] sm:$0xff]
        %v3441 = vld [vmem:[%s23 + $0x10] sm:$0xff]
        %v3442 = vld [vmem:[%s23 + $0x18] sm:$0xff]
        %v3443 = vld [vmem:[%s23 + $0x20] sm:$0xff]
        %v3444 = vld [vmem:[%s23 + $0x28] sm:$0xff]
        %v3445 = vld [vmem:[%s23 + $0x30] sm:$0xff]
        %v3446 = vld [vmem:[%s23 + $0x38] sm:$0xff]
        %v3447 = vld [vmem:[%s23 + $0x40] sm:$0xff]
        %v3448 = vld [vmem:[%s23 + $0x48] sm:$0xff]
        %v3449 = vld [vmem:[%s23 + $0x50] sm:$0xff]
        %v3450 = vld [vmem:[%s23 + $0x58] sm:$0xff]
        %v3451 = vld [vmem:[%s23 + $0x60] sm:$0xff]
        %v3452 = vld [vmem:[%s23 + $0x68] sm:$0xff]
        %v3453 = vld [vmem:[%s23 + $0x70] sm:$0xff]
        %v3454 = vld [vmem:[%s23 + $0x78] sm:$0xff]
        %v3455 = vld [vmem:[%s23 + $0x80] sm:$0xff]
        %v3456 = vld [vmem:[%s23 + $0x88] sm:$0xff]
        %v3457 = vld [vmem:[%s23 + $0x90] sm:$0xff]
        %v3458 = vld [vmem:[%s23 + $0x98] sm:$0xff]
        %v3459 = vld [vmem:[%s23 + $0xa0] sm:$0xff]
        %v3460 = vld [vmem:[%s23 + $0xa8] sm:$0xff]
        %v3461 = vld [vmem:[%s23 + $0xb0] sm:$0xff]
        %v3462 = vld [vmem:[%s23 + $0xb8] sm:$0xff]
        %v3463 = vld [vmem:[%s23 + $0xc0] sm:$0xff]
        %v3464 = vld [vmem:[%s23 + $0xc8] sm:$0xff]
        %v3465 = vld [vmem:[%s23 + $0xd0] sm:$0xff]
        %v3466 = vld [vmem:[%s23 + $0xd8] sm:$0xff]
        %v3467 = vld [vmem:[%s23 + $0xe0] sm:$0xff]
        %v3468 = vld [vmem:[%s23 + $0xe8] sm:$0xff]
        %v3469 = vld [vmem:[%s23 + $0xf0] sm:$0xff]
        %v3470 = vld [vmem:[%s23 + $0xf8] sm:$0xff]
        %v3471 = vld [vmem:[%s23 + $0x100] sm:$0xff]
        %v3472 = vld [vmem:[%s23 + $0x108] sm:$0xff]
        %v3473 = vld [vmem:[%s23 + $0x110] sm:$0xff]
        %v3474 = vld [vmem:[%s23 + $0x118] sm:$0xff]
        %v3475 = vld [vmem:[%s23 + $0x120] sm:$0xff]
        %v3476 = vld [vmem:[%s23 + $0x128] sm:$0xff]
        %v3477 = vld [vmem:[%s23 + $0x130] sm:$0xff]
        %v3478 = vld [vmem:[%s23 + $0x138] sm:$0xff]
        %v3479 = vld [vmem:[%s23 + $0x140] sm:$0xff]
        %v3480 = vld [vmem:[%s23 + $0x148] sm:$0xff]
        %v3481 = vld [vmem:[%s23 + $0x150] sm:$0xff]
        %v3482 = vld [vmem:[%s23 + $0x158] sm:$0xff]
        %v3483 = vld [vmem:[%s23 + $0x160] sm:$0xff]
        %v3484 = vld [vmem:[%s23 + $0x168] sm:$0xff]
        %v3485 = vld [vmem:[%s23 + $0x170] sm:$0xff]
        %v3486 = vld [vmem:[%s23 + $0x178] sm:$0xff]
        %v3487 = vld [vmem:[%s23 + $0x180] sm:$0xff]
        %v3488 = vld [vmem:[%s23 + $0x188] sm:$0xff]
        %v3489 = vld [vmem:[%s23 + $0x190] sm:$0xff]
        %v3490 = vld [vmem:[%s23 + $0x198] sm:$0xff]
        %v3491 = vld [vmem:[%s23 + $0x1a0] sm:$0xff]
        %v3492 = vld [vmem:[%s23 + $0x1a8] sm:$0xff]
        %v3493 = vld [vmem:[%s23 + $0x1b0] sm:$0xff]
        %v3494 = vld [vmem:[%s23 + $0x1b8] sm:$0xff]
        %v3495 = vld [vmem:[%s23 + $0x1c0] sm:$0xff]
        %v3496 = vld [vmem:[%s23 + $0x1c8] sm:$0xff]
        %v3497 = vld [vmem:[%s23 + $0x1d0] sm:$0xff]
        %v3498 = vld [vmem:[%s23 + $0x1d8] sm:$0xff]
        %v3499 = vld [vmem:[%s23 + $0x1e0] sm:$0xff]
        %v3500 = vld [vmem:[%s23 + $0x1e8] sm:$0xff]
        %v3501 = vld [vmem:[%s23 + $0x1f0] sm:$0xff]
        %v3502 = vld [vmem:[%s23 + $0x1f8] sm:$0xff]
        %v3503 = vld [vmem:[%s25] sm:$0xf]
        %v3505 = vlaneseq
        %v3506 = vshrl.u32 %v3505, 7
        %v3507 = vsub.s32 0, %v3506
        %v3508 = vrot.slane %v3503, %v3507
        %v3509 = vlaneseq
        %v3510 = vshrl.u32 %v3509, 7
        %v3511 = vsub.s32 1, %v3510
        %v3512 = vrot.slane %v3503, %v3511
        %v3513 = vlaneseq
        %v3514 = vshrl.u32 %v3513, 7
        %v3515 = vsub.s32 2, %v3514
        %v3516 = vrot.slane %v3503, %v3515
        %v3517 = vlaneseq
        %v3518 = vshrl.u32 %v3517, 7
        %v3519 = vsub.s32 3, %v3518
        %v3520 = vrot.slane %v3503, %v3519
        %v3589 = vunpack.c.l.b16 %v3439
        %v3590 = vunpack.c.h.b16 %v3439
        %v3591 = vunpack.c.l.b16 %v3440
        %v3592 = vunpack.c.h.b16 %v3440
        %v3593 = vunpack.c.l.b16 %v3441
        %v3594 = vunpack.c.h.b16 %v3441
        %v3595 = vunpack.c.l.b16 %v3442
        %v3596 = vunpack.c.h.b16 %v3442
        %v3597 = vunpack.c.l.b16 %v3443
        %v3598 = vunpack.c.h.b16 %v3443
        %v3599 = vunpack.c.l.b16 %v3444
        %v3600 = vunpack.c.h.b16 %v3444
        %v3601 = vunpack.c.l.b16 %v3445
        %v3602 = vunpack.c.h.b16 %v3445
        %v3603 = vunpack.c.l.b16 %v3446
        %v3604 = vunpack.c.h.b16 %v3446
        %v3605 = vunpack.c.l.b16 %v3447
        %v3606 = vunpack.c.h.b16 %v3447
        %v3607 = vunpack.c.l.b16 %v3448
        %v3608 = vunpack.c.h.b16 %v3448
        %v3609 = vunpack.c.l.b16 %v3449
        %v3610 = vunpack.c.h.b16 %v3449
        %v3611 = vunpack.c.l.b16 %v3450
        %v3612 = vunpack.c.h.b16 %v3450
        %v3613 = vunpack.c.l.b16 %v3451
        %v3614 = vunpack.c.h.b16 %v3451
        %v3615 = vunpack.c.l.b16 %v3452
        %v3616 = vunpack.c.h.b16 %v3452
        %v3617 = vunpack.c.l.b16 %v3453
        %v3618 = vunpack.c.h.b16 %v3453
        %v3619 = vunpack.c.l.b16 %v3454
        %v3620 = vunpack.c.h.b16 %v3454
        %v3621 = vunpack.c.l.b16 %v3455
        %v3622 = vunpack.c.h.b16 %v3455
        %v3623 = vunpack.c.l.b16 %v3456
        %v3624 = vunpack.c.h.b16 %v3456
        %v3625 = vunpack.c.l.b16 %v3457
        %v3626 = vunpack.c.h.b16 %v3457
        %v3627 = vunpack.c.l.b16 %v3458
        %v3628 = vunpack.c.h.b16 %v3458
        %v3629 = vunpack.c.l.b16 %v3459
        %v3630 = vunpack.c.h.b16 %v3459
        %v3631 = vunpack.c.l.b16 %v3460
        %v3632 = vunpack.c.h.b16 %v3460
        %v3633 = vunpack.c.l.b16 %v3461
        %v3634 = vunpack.c.h.b16 %v3461
        %v3635 = vunpack.c.l.b16 %v3462
        %v3636 = vunpack.c.h.b16 %v3462
        %v3637 = vunpack.c.l.b16 %v3463
        %v3638 = vunpack.c.h.b16 %v3463
        %v3639 = vunpack.c.l.b16 %v3464
        %v3640 = vunpack.c.h.b16 %v3464
        %v3641 = vunpack.c.l.b16 %v3465
        %v3642 = vunpack.c.h.b16 %v3465
        %v3643 = vunpack.c.l.b16 %v3466
        %v3644 = vunpack.c.h.b16 %v3466
        %v3645 = vunpack.c.l.b16 %v3467
        %v3646 = vunpack.c.h.b16 %v3467
        %v3647 = vunpack.c.l.b16 %v3468
        %v3648 = vunpack.c.h.b16 %v3468
        %v3649 = vunpack.c.l.b16 %v3469
        %v3650 = vunpack.c.h.b16 %v3469
        %v3651 = vunpack.c.l.b16 %v3470
        %v3652 = vunpack.c.h.b16 %v3470
        %v3653 = vunpack.c.l.b16 %v3471
        %v3654 = vunpack.c.h.b16 %v3471
        %v3655 = vunpack.c.l.b16 %v3472
        %v3656 = vunpack.c.h.b16 %v3472
        %v3657 = vunpack.c.l.b16 %v3473
        %v3658 = vunpack.c.h.b16 %v3473
        %v3659 = vunpack.c.l.b16 %v3474
        %v3660 = vunpack.c.h.b16 %v3474
        %v3661 = vunpack.c.l.b16 %v3475
        %v3662 = vunpack.c.h.b16 %v3475
        %v3663 = vunpack.c.l.b16 %v3476
        %v3664 = vunpack.c.h.b16 %v3476
        %v3665 = vunpack.c.l.b16 %v3477
        %v3666 = vunpack.c.h.b16 %v3477
        %v3667 = vunpack.c.l.b16 %v3478
        %v3668 = vunpack.c.h.b16 %v3478
        %v3669 = vunpack.c.l.b16 %v3479
        %v3670 = vunpack.c.h.b16 %v3479
        %v3671 = vunpack.c.l.b16 %v3480
        %v3672 = vunpack.c.h.b16 %v3480
        %v3673 = vunpack.c.l.b16 %v3481
        %v3674 = vunpack.c.h.b16 %v3481
        %v3675 = vunpack.c.l.b16 %v3482
        %v3676 = vunpack.c.h.b16 %v3482
        %v3677 = vunpack.c.l.b16 %v3483
        %v3678 = vunpack.c.h.b16 %v3483
        %v3679 = vunpack.c.l.b16 %v3484
        %v3680 = vunpack.c.h.b16 %v3484
        %v3681 = vunpack.c.l.b16 %v3485
        %v3682 = vunpack.c.h.b16 %v3485
        %v3683 = vunpack.c.l.b16 %v3486
        %v3684 = vunpack.c.h.b16 %v3486
        %v3685 = vunpack.c.l.b16 %v3487
        %v3686 = vunpack.c.h.b16 %v3487
        %v3687 = vunpack.c.l.b16 %v3488
        %v3688 = vunpack.c.h.b16 %v3488
        %v3689 = vunpack.c.l.b16 %v3489
        %v3690 = vunpack.c.h.b16 %v3489
        %v3691 = vunpack.c.l.b16 %v3490
        %v3692 = vunpack.c.h.b16 %v3490
        %v3693 = vunpack.c.l.b16 %v3491
        %v3694 = vunpack.c.h.b16 %v3491
        %v3695 = vunpack.c.l.b16 %v3492
        %v3696 = vunpack.c.h.b16 %v3492
        %v3697 = vunpack.c.l.b16 %v3493
        %v3698 = vunpack.c.h.b16 %v3493
        %v3699 = vunpack.c.l.b16 %v3494
        %v3700 = vunpack.c.h.b16 %v3494
        %v3701 = vunpack.c.l.b16 %v3495
        %v3702 = vunpack.c.h.b16 %v3495
        %v3703 = vunpack.c.l.b16 %v3496
        %v3704 = vunpack.c.h.b16 %v3496
        %v3705 = vunpack.c.l.b16 %v3497
        %v3706 = vunpack.c.h.b16 %v3497
        %v3707 = vunpack.c.l.b16 %v3498
        %v3708 = vunpack.c.h.b16 %v3498
        %v3709 = vunpack.c.l.b16 %v3499
        %v3710 = vunpack.c.h.b16 %v3499
        %v3711 = vunpack.c.l.b16 %v3500
        %v3712 = vunpack.c.h.b16 %v3500
        %v3713 = vunpack.c.l.b16 %v3501
        %v3714 = vunpack.c.h.b16 %v3501
        %v3715 = vunpack.c.l.b16 %v3502
        %v3716 = vunpack.c.h.b16 %v3502
        %v3717 = vpack.c.b16 %v3593, %v3589
        %v3718 = vpack.c.b16 %v3594, %v3590
        %v3719 = vpack.c.b16 %v3595, %v3591
        %v3720 = vpack.c.b16 %v3596, %v3592
        %v3721 = vpack.c.b16 %v3601, %v3597
        %v3722 = vpack.c.b16 %v3602, %v3598
        %v3723 = vpack.c.b16 %v3603, %v3599
        %v3724 = vpack.c.b16 %v3604, %v3600
        %v3725 = vpack.c.b16 %v3609, %v3605
        %v3726 = vpack.c.b16 %v3610, %v3606
        %v3727 = vpack.c.b16 %v3611, %v3607
        %v3728 = vpack.c.b16 %v3612, %v3608
        %v3729 = vpack.c.b16 %v3617, %v3613
        %v3730 = vpack.c.b16 %v3618, %v3614
        %v3731 = vpack.c.b16 %v3619, %v3615
        %v3732 = vpack.c.b16 %v3620, %v3616
        %v3733 = vpack.c.b16 %v3625, %v3621
        %v3734 = vpack.c.b16 %v3626, %v3622
        %v3735 = vpack.c.b16 %v3627, %v3623
        %v3736 = vpack.c.b16 %v3628, %v3624
        %v3737 = vpack.c.b16 %v3633, %v3629
        %v3738 = vpack.c.b16 %v3634, %v3630
        %v3739 = vpack.c.b16 %v3635, %v3631
        %v3740 = vpack.c.b16 %v3636, %v3632
        %v3741 = vpack.c.b16 %v3641, %v3637
        %v3742 = vpack.c.b16 %v3642, %v3638
        %v3743 = vpack.c.b16 %v3643, %v3639
        %v3744 = vpack.c.b16 %v3644, %v3640
        %v3745 = vpack.c.b16 %v3649, %v3645
        %v3746 = vpack.c.b16 %v3650, %v3646
        %v3747 = vpack.c.b16 %v3651, %v3647
        %v3748 = vpack.c.b16 %v3652, %v3648
        %v3749 = vpack.c.b16 %v3657, %v3653
        %v3750 = vpack.c.b16 %v3658, %v3654
        %v3751 = vpack.c.b16 %v3659, %v3655
        %v3752 = vpack.c.b16 %v3660, %v3656
        %v3753 = vpack.c.b16 %v3665, %v3661
        %v3754 = vpack.c.b16 %v3666, %v3662
        %v3755 = vpack.c.b16 %v3667, %v3663
        %v3756 = vpack.c.b16 %v3668, %v3664
        %v3757 = vpack.c.b16 %v3673, %v3669
        %v3758 = vpack.c.b16 %v3674, %v3670
        %v3759 = vpack.c.b16 %v3675, %v3671
        %v3760 = vpack.c.b16 %v3676, %v3672
        %v3761 = vpack.c.b16 %v3681, %v3677
        %v3762 = vpack.c.b16 %v3682, %v3678
        %v3763 = vpack.c.b16 %v3683, %v3679
        %v3764 = vpack.c.b16 %v3684, %v3680
        %v3765 = vpack.c.b16 %v3689, %v3685
        %v3766 = vpack.c.b16 %v3690, %v3686
        %v3767 = vpack.c.b16 %v3691, %v3687
        %v3768 = vpack.c.b16 %v3692, %v3688
        %v3769 = vpack.c.b16 %v3697, %v3693
        %v3770 = vpack.c.b16 %v3698, %v3694
        %v3771 = vpack.c.b16 %v3699, %v3695
        %v3772 = vpack.c.b16 %v3700, %v3696
        %v3773 = vpack.c.b16 %v3705, %v3701
        %v3774 = vpack.c.b16 %v3706, %v3702
        %v3775 = vpack.c.b16 %v3707, %v3703
        %v3776 = vpack.c.b16 %v3708, %v3704
        %v3777 = vpack.c.b16 %v3713, %v3709
        %v3778 = vpack.c.b16 %v3714, %v3710
        %v3779 = vpack.c.b16 %v3715, %v3711
        %v3780 = vpack.c.b16 %v3716, %v3712
        %3845 = vmatprep.subr.bf16.mxu0 %v3718
        %3846 = vmatpush1.bf16.msra.mxu0 %v3717
        %3847 = vmatprep.subr.bf16.mxu0 %v3722
        %3848 = vmatpush1.bf16.msra.mxu0 %v3721
        %3849 = vmatprep.subr.bf16.mxu0 %v3726
        %3850 = vmatpush1.bf16.msra.mxu0 %v3725
        %3851 = vmatprep.subr.bf16.mxu0 %v3730
        %3852 = vmatpush1.bf16.msra.mxu0 %v3729
        %3853 = vmatprep.subr.bf16.mxu0 %v3734
        %3854 = vmatpush1.bf16.msra.mxu0 %v3733
        %3855 = vmatprep.subr.bf16.mxu0 %v3738
        %3856 = vmatpush1.bf16.msra.mxu0 %v3737
        %3857 = vmatprep.subr.bf16.mxu0 %v3742
        %3858 = vmatpush1.bf16.msra.mxu0 %v3741
        %3859 = vmatprep.subr.bf16.mxu0 %v3746
        %3860 = vmatpush1.bf16.msra.mxu0 %v3745
        %3861 = vmatprep.subr.bf16.mxu0 %v3750
        %3862 = vmatpush1.bf16.msra.mxu0 %v3749
        %3863 = vmatprep.subr.bf16.mxu0 %v3754
        %3864 = vmatpush1.bf16.msra.mxu0 %v3753
        %3865 = vmatprep.subr.bf16.mxu0 %v3758
        %3866 = vmatpush1.bf16.msra.mxu0 %v3757
        %3867 = vmatprep.subr.bf16.mxu0 %v3762
        %3868 = vmatpush1.bf16.msra.mxu0 %v3761
        %3869 = vmatprep.subr.bf16.mxu0 %v3766
        %3870 = vmatpush1.bf16.msra.mxu0 %v3765
        %3871 = vmatprep.subr.bf16.mxu0 %v3770
        %3872 = vmatpush1.bf16.msra.mxu0 %v3769
        %3873 = vmatprep.subr.bf16.mxu0 %v3774
        %3874 = vmatpush1.bf16.msra.mxu0 %v3773
        %3875 = vmatprep.subr.bf16.mxu0 %v3778
        %3876 = vmatpush1.bf16.msra.mxu0 %v3777
        %3877 = vmatprep.mubr.bf16.mxu0 %v3432
        %3878 = vmatmul.mubr.bf16.gmra.mrb[0].mxu0 %v3431
        %v3879 = vpop.f32.mrb[0].mxu0
        %v3880 = vadd.f32 %v3508, %v3879
        %v3881 = vpop.f32.mrb[0].mxu0
        %v3882 = vadd.f32 %v3512, %v3881
        %v3883 = vpop.f32.mrb[0].mxu0
        %v3884 = vadd.f32 %v3508, %v3883
        %v3885 = vpop.f32.mrb[0].mxu0
        %v3886 = vadd.f32 %v3512, %v3885
        %3887 = vmatprep.mubr.bf16.mxu0 %v3434
        %3888 = vmatmul.mubr.bf16.gmra.mrb[0].mxu0 %v3433
        %v3889 = vpop.f32.mrb[0].mxu0
        %v3890 = vadd.f32 %v3508, %v3889
        %v3891 = vpop.f32.mrb[0].mxu0
        %v3892 = vadd.f32 %v3512, %v3891
        %v3893 = vpop.f32.mrb[0].mxu0
        %v3894 = vadd.f32 %v3508, %v3893
        %v3895 = vpop.f32.mrb[0].mxu0
        %v3896 = vadd.f32 %v3512, %v3895
        %3897 = vmatprep.mubr.bf16.mxu0 %v3436
        %3898 = vmatmul.mubr.bf16.gmra.mrb[0].mxu0 %v3435
        %v3899 = vpop.f32.mrb[0].mxu0
        %v3900 = vadd.f32 %v3508, %v3899
        %v3901 = vpop.f32.mrb[0].mxu0
        %v3902 = vadd.f32 %v3512, %v3901
        %v3903 = vpop.f32.mrb[0].mxu0
        %v3904 = vadd.f32 %v3508, %v3903
        %v3905 = vpop.f32.mrb[0].mxu0
        %v3906 = vadd.f32 %v3512, %v3905
        %3907 = vmatprep.mubr.bf16.mxu0 %v3438
        %3908 = vmatmul.mubr.bf16.gmra.mrb[0].mxu0 %v3437
        %v3909 = vpop.f32.mrb[0].mxu0
        %v3910 = vadd.f32 %v3508, %v3909
        %v3911 = vpop.f32.mrb[0].mxu0
        %v3912 = vadd.f32 %v3512, %v3911
        %v3913 = vpop.f32.mrb[0].mxu0
        %v3914 = vadd.f32 %v3508, %v3913
        %v3915 = vpop.f32.mrb[0].mxu0
        %v3916 = vadd.f32 %v3512, %v3915
        %3917 = vdwg.mxu0
        %3918 = vmatprep.subr.bf16.mxu0 %v3720
        %3919 = vmatpush1.bf16.msra.mxu0 %v3719
        %3920 = vmatprep.subr.bf16.mxu0 %v3724
        %3921 = vmatpush1.bf16.msra.mxu0 %v3723
        %3922 = vmatprep.subr.bf16.mxu0 %v3728
        %3923 = vmatpush1.bf16.msra.mxu0 %v3727
        %3924 = vmatprep.subr.bf16.mxu0 %v3732
        %3925 = vmatpush1.bf16.msra.mxu0 %v3731
        %3926 = vmatprep.subr.bf16.mxu0 %v3736
        %3927 = vmatpush1.bf16.msra.mxu0 %v3735
        %3928 = vmatprep.subr.bf16.mxu0 %v3740
        %3929 = vmatpush1.bf16.msra.mxu0 %v3739
        %3930 = vmatprep.subr.bf16.mxu0 %v3744
        %3931 = vmatpush1.bf16.msra.mxu0 %v3743
        %3932 = vmatprep.subr.bf16.mxu0 %v3748
        %3933 = vmatpush1.bf16.msra.mxu0 %v3747
        %3934 = vmatprep.subr.bf16.mxu0 %v3752
        %3935 = vmatpush1.bf16.msra.mxu0 %v3751
        %3936 = vmatprep.subr.bf16.mxu0 %v3756
        %3937 = vmatpush1.bf16.msra.mxu0 %v3755
        %3938 = vmatprep.subr.bf16.mxu0 %v3760
        %3939 = vmatpush1.bf16.msra.mxu0 %v3759
        %3940 = vmatprep.subr.bf16.mxu0 %v3764
        %3941 = vmatpush1.bf16.msra.mxu0 %v3763
        %3942 = vmatprep.subr.bf16.mxu0 %v3768
        %3943 = vmatpush1.bf16.msra.mxu0 %v3767
        %3944 = vmatprep.subr.bf16.mxu0 %v3772
        %3945 = vmatpush1.bf16.msra.mxu0 %v3771
        %3946 = vmatprep.subr.bf16.mxu0 %v3776
        %3947 = vmatpush1.bf16.msra.mxu0 %v3775
        %3948 = vmatprep.subr.bf16.mxu0 %v3780
        %3949 = vmatpush1.bf16.msra.mxu0 %v3779
        %3950 = vmatprep.mubr.bf16.mxu0 %v3432
        %3951 = vmatmul.mubr.bf16.gmra.mrb[0].mxu0 %v3431
        %v3952 = vpop.f32.mrb[0].mxu0
        %v3953 = vadd.f32 %v3516, %v3952
        %v3954 = vpop.f32.mrb[0].mxu0
        %v3955 = vadd.f32 %v3520, %v3954
        %v3956 = vpop.f32.mrb[0].mxu0
        %v3957 = vadd.f32 %v3516, %v3956
        %v3958 = vpop.f32.mrb[0].mxu0
        %v3959 = vadd.f32 %v3520, %v3958
        %3960 = vmatprep.mubr.bf16.mxu0 %v3434
        %3961 = vmatmul.mubr.bf16.gmra.mrb[0].mxu0 %v3433
        %v3962 = vpop.f32.mrb[0].mxu0
        %v3963 = vadd.f32 %v3516, %v3962
        %v3964 = vpop.f32.mrb[0].mxu0
        %v3965 = vadd.f32 %v3520, %v3964
        %v3966 = vpop.f32.mrb[0].mxu0
        %v3967 = vadd.f32 %v3516, %v3966
        %v3968 = vpop.f32.mrb[0].mxu0
        %v3969 = vadd.f32 %v3520, %v3968
        %3970 = vmatprep.mubr.bf16.mxu0 %v3436
        %3971 = vmatmul.mubr.bf16.gmra.mrb[0].mxu0 %v3435
        %v3972 = vpop.f32.mrb[0].mxu0
        %v3973 = vadd.f32 %v3516, %v3972
        %v3974 = vpop.f32.mrb[0].mxu0
        %v3975 = vadd.f32 %v3520, %v3974
        %v3976 = vpop.f32.mrb[0].mxu0
        %v3977 = vadd.f32 %v3516, %v3976
        %v3978 = vpop.f32.mrb[0].mxu0
        %v3979 = vadd.f32 %v3520, %v3978
        %3980 = vmatprep.mubr.bf16.mxu0 %v3438
        %3981 = vmatmul.mubr.bf16.gmra.mrb[0].mxu0 %v3437
        %v3982 = vpop.f32.mrb[0].mxu0
        %v3983 = vadd.f32 %v3516, %v3982
        %v3984 = vpop.f32.mrb[0].mxu0
        %v3985 = vadd.f32 %v3520, %v3984
        %v3986 = vpop.f32.mrb[0].mxu0
        %v3987 = vadd.f32 %v3516, %v3986
        %v3988 = vpop.f32.mrb[0].mxu0
        %v3989 = vadd.f32 %v3520, %v3988
        %3990 = vdwg.mxu0
        %v3991 = vmul.f32 %v3880, 0.01
        %v3992 = vmul.f32 %v3882, 0.01
        %v3993 = vmul.f32 %v3953, 0.01
        %v3994 = vmul.f32 %v3955, 0.01
        %v3995 = vmul.f32 %v3884, 0.01
        %v3996 = vmul.f32 %v3886, 0.01
        %v3997 = vmul.f32 %v3957, 0.01
        %v3998 = vmul.f32 %v3959, 0.01
        %v3999 = vmul.f32 %v3890, 0.01
        %v4000 = vmul.f32 %v3892, 0.01
        %v4001 = vmul.f32 %v3963, 0.01
        %v4002 = vmul.f32 %v3965, 0.01
        %v4003 = vmul.f32 %v3894, 0.01
        %v4004 = vmul.f32 %v3896, 0.01
        %v4005 = vmul.f32 %v3967, 0.01
        %v4006 = vmul.f32 %v3969, 0.01
        %v4007 = vmul.f32 %v3900, 0.01
        %v4008 = vmul.f32 %v3902, 0.01
        %v4009 = vmul.f32 %v3973, 0.01
        %v4010 = vmul.f32 %v3975, 0.01
        %v4011 = vmul.f32 %v3904, 0.01
        %v4012 = vmul.f32 %v3906, 0.01
        %v4013 = vmul.f32 %v3977, 0.01
        %v4014 = vmul.f32 %v3979, 0.01
        %v4015 = vmul.f32 %v3910, 0.01
        %v4016 = vmul.f32 %v3912, 0.01
        %v4017 = vmul.f32 %v3983, 0.01
        %v4018 = vmul.f32 %v3985, 0.01
        %v4019 = vmul.f32 %v3914, 0.01
        %v4020 = vmul.f32 %v3916, 0.01
        %v4021 = vmul.f32 %v3987, 0.01
        %v4022 = vmul.f32 %v3989, 0.01
        %v4023 = vmax.f32 %v3880, %v3991
        %v4024 = vmax.f32 %v3882, %v3992
        %v4025 = vmax.f32 %v3953, %v3993
        %v4026 = vmax.f32 %v3955, %v3994
        %v4027 = vmax.f32 %v3884, %v3995
        %v4028 = vmax.f32 %v3886, %v3996
        %v4029 = vmax.f32 %v3957, %v3997
        %v4030 = vmax.f32 %v3959, %v3998
        %v4031 = vmax.f32 %v3890, %v3999
        %v4032 = vmax.f32 %v3892, %v4000
        %v4033 = vmax.f32 %v3963, %v4001
        %v4034 = vmax.f32 %v3965, %v4002
        %v4035 = vmax.f32 %v3894, %v4003
        %v4036 = vmax.f32 %v3896, %v4004
        %v4037 = vmax.f32 %v3967, %v4005
        %v4038 = vmax.f32 %v3969, %v4006
        %v4039 = vmax.f32 %v3900, %v4007
        %v4040 = vmax.f32 %v3902, %v4008
        %v4041 = vmax.f32 %v3973, %v4009
        %v4042 = vmax.f32 %v3975, %v4010
        %v4043 = vmax.f32 %v3904, %v4011
        %v4044 = vmax.f32 %v3906, %v4012
        %v4045 = vmax.f32 %v3977, %v4013
        %v4046 = vmax.f32 %v3979, %v4014
        %v4047 = vmax.f32 %v3910, %v4015
        %v4048 = vmax.f32 %v3912, %v4016
        %v4049 = vmax.f32 %v3983, %v4017
        %v4050 = vmax.f32 %v3985, %v4018
        %v4051 = vmax.f32 %v3914, %v4019
        %v4052 = vmax.f32 %v3916, %v4020
        %v4053 = vmax.f32 %v3987, %v4021
        %v4054 = vmax.f32 %v3989, %v4022
        %v4055 = vpack.c.bf16 %v4027, %v4023
        %v4056 = vpack.c.bf16 %v4028, %v4024
        %v4057 = vpack.c.bf16 %v4029, %v4025
        %v4058 = vpack.c.bf16 %v4030, %v4026
        %v4059 = vpack.c.bf16 %v4035, %v4031
        %v4060 = vpack.c.bf16 %v4036, %v4032
        %v4061 = vpack.c.bf16 %v4037, %v4033
        %v4062 = vpack.c.bf16 %v4038, %v4034
        %v4063 = vpack.c.bf16 %v4043, %v4039
        %v4064 = vpack.c.bf16 %v4044, %v4040
        %v4065 = vpack.c.bf16 %v4045, %v4041
        %v4066 = vpack.c.bf16 %v4046, %v4042
        %v4067 = vpack.c.bf16 %v4051, %v4047
        %v4068 = vpack.c.bf16 %v4052, %v4048
        %v4069 = vpack.c.bf16 %v4053, %v4049
        %v4070 = vpack.c.bf16 %v4054, %v4050
        %v4071 = vld [vmem:[%s27] sm:$0xf]
        %v4072 = vld [vmem:[%s27 + $0x4] sm:$0xf]
        %v4073 = vld [vmem:[%s27 + $0x8] sm:$0xf]
        %v4074 = vld [vmem:[%s27 + $0xc] sm:$0xf]
        %v4075 = vld [vmem:[%s27 + $0x10] sm:$0xf]
        %v4076 = vld [vmem:[%s27 + $0x14] sm:$0xf]
        %v4077 = vld [vmem:[%s27 + $0x18] sm:$0xf]
        %v4078 = vld [vmem:[%s27 + $0x1c] sm:$0xf]
        %v4079 = vld [vmem:[%s27 + $0x20] sm:$0xf]
        %v4080 = vld [vmem:[%s27 + $0x24] sm:$0xf]
        %v4081 = vld [vmem:[%s27 + $0x28] sm:$0xf]
        %v4082 = vld [vmem:[%s27 + $0x2c] sm:$0xf]
        %v4083 = vld [vmem:[%s27 + $0x30] sm:$0xf]
        %v4084 = vld [vmem:[%s27 + $0x34] sm:$0xf]
        %v4085 = vld [vmem:[%s27 + $0x38] sm:$0xf]
        %v4086 = vld [vmem:[%s27 + $0x3c] sm:$0xf]
        %v4087 = vld [vmem:[%s27 + $0x40] sm:$0xf]
        %v4088 = vld [vmem:[%s27 + $0x44] sm:$0xf]
        %v4089 = vld [vmem:[%s27 + $0x48] sm:$0xf]
        %v4090 = vld [vmem:[%s27 + $0x4c] sm:$0xf]
        %v4091 = vld [vmem:[%s27 + $0x50] sm:$0xf]
        %v4092 = vld [vmem:[%s27 + $0x54] sm:$0xf]
        %v4093 = vld [vmem:[%s27 + $0x58] sm:$0xf]
        %v4094 = vld [vmem:[%s27 + $0x5c] sm:$0xf]
        %v4095 = vld [vmem:[%s27 + $0x60] sm:$0xf]
        %v4096 = vld [vmem:[%s27 + $0x64] sm:$0xf]
        %v4097 = vld [vmem:[%s27 + $0x68] sm:$0xf]
        %v4098 = vld [vmem:[%s27 + $0x6c] sm:$0xf]
        %v4099 = vld [vmem:[%s27 + $0x70] sm:$0xf]
        %v4100 = vld [vmem:[%s27 + $0x74] sm:$0xf]
        %v4101 = vld [vmem:[%s27 + $0x78] sm:$0xf]
        %v4102 = vld [vmem:[%s27 + $0x7c] sm:$0xf]
        %v4103 = vld [vmem:[%s27 + $0x80] sm:$0xf]
        %v4104 = vld [vmem:[%s27 + $0x84] sm:$0xf]
        %v4105 = vld [vmem:[%s27 + $0x88] sm:$0xf]
        %v4106 = vld [vmem:[%s27 + $0x8c] sm:$0xf]
        %v4107 = vld [vmem:[%s27 + $0x90] sm:$0xf]
        %v4108 = vld [vmem:[%s27 + $0x94] sm:$0xf]
        %v4109 = vld [vmem:[%s27 + $0x98] sm:$0xf]
        %v4110 = vld [vmem:[%s27 + $0x9c] sm:$0xf]
        %v4111 = vld [vmem:[%s27 + $0xa0] sm:$0xf]
        %v4112 = vld [vmem:[%s27 + $0xa4] sm:$0xf]
        %v4113 = vld [vmem:[%s27 + $0xa8] sm:$0xf]
        %v4114 = vld [vmem:[%s27 + $0xac] sm:$0xf]
        %v4115 = vld [vmem:[%s27 + $0xb0] sm:$0xf]
        %v4116 = vld [vmem:[%s27 + $0xb4] sm:$0xf]
        %v4117 = vld [vmem:[%s27 + $0xb8] sm:$0xf]
        %v4118 = vld [vmem:[%s27 + $0xbc] sm:$0xf]
        %v4119 = vld [vmem:[%s27 + $0xc0] sm:$0xf]
        %v4120 = vld [vmem:[%s27 + $0xc4] sm:$0xf]
        %v4121 = vld [vmem:[%s27 + $0xc8] sm:$0xf]
        %v4122 = vld [vmem:[%s27 + $0xcc] sm:$0xf]
        %v4123 = vld [vmem:[%s27 + $0xd0] sm:$0xf]
        %v4124 = vld [vmem:[%s27 + $0xd4] sm:$0xf]
        %v4125 = vld [vmem:[%s27 + $0xd8] sm:$0xf]
        %v4126 = vld [vmem:[%s27 + $0xdc] sm:$0xf]
        %v4127 = vld [vmem:[%s27 + $0xe0] sm:$0xf]
        %v4128 = vld [vmem:[%s27 + $0xe4] sm:$0xf]
        %v4129 = vld [vmem:[%s27 + $0xe8] sm:$0xf]
        %v4130 = vld [vmem:[%s27 + $0xec] sm:$0xf]
        %v4131 = vld [vmem:[%s27 + $0xf0] sm:$0xf]
        %v4132 = vld [vmem:[%s27 + $0xf4] sm:$0xf]
        %v4133 = vld [vmem:[%s27 + $0xf8] sm:$0xf]
        %v4134 = vld [vmem:[%s27 + $0xfc] sm:$0xf]
        %v4135 = vld [vmem:[%s29] sm:$0x1]
        %v4137 = vlaneseq
        %v4138 = vshrl.u32 %v4137, 7
        %v4139 = vsub.s32 0, %v4138
        %v4140 = vrot.slane %v4135, %v4139
        %v4206 = vunpack.c.l.b16 %v4071
        %v4207 = vunpack.c.l.b16 %v4072
        %v4208 = vunpack.c.l.b16 %v4073
        %v4209 = vunpack.c.l.b16 %v4074
        %v4210 = vunpack.c.l.b16 %v4075
        %v4211 = vunpack.c.l.b16 %v4076
        %v4212 = vunpack.c.l.b16 %v4077
        %v4213 = vunpack.c.l.b16 %v4078
        %v4214 = vunpack.c.l.b16 %v4079
        %v4215 = vunpack.c.l.b16 %v4080
        %v4216 = vunpack.c.l.b16 %v4081
        %v4217 = vunpack.c.l.b16 %v4082
        %v4218 = vunpack.c.l.b16 %v4083
        %v4219 = vunpack.c.l.b16 %v4084
        %v4220 = vunpack.c.l.b16 %v4085
        %v4221 = vunpack.c.l.b16 %v4086
        %v4222 = vunpack.c.l.b16 %v4087
        %v4223 = vunpack.c.l.b16 %v4088
        %v4224 = vunpack.c.l.b16 %v4089
        %v4225 = vunpack.c.l.b16 %v4090
        %v4226 = vunpack.c.l.b16 %v4091
        %v4227 = vunpack.c.l.b16 %v4092
        %v4228 = vunpack.c.l.b16 %v4093
        %v4229 = vunpack.c.l.b16 %v4094
        %v4230 = vunpack.c.l.b16 %v4095
        %v4231 = vunpack.c.l.b16 %v4096
        %v4232 = vunpack.c.l.b16 %v4097
        %v4233 = vunpack.c.l.b16 %v4098
        %v4234 = vunpack.c.l.b16 %v4099
        %v4235 = vunpack.c.l.b16 %v4100
        %v4236 = vunpack.c.l.b16 %v4101
        %v4237 = vunpack.c.l.b16 %v4102
        %v4238 = vunpack.c.l.b16 %v4103
        %v4239 = vunpack.c.l.b16 %v4104
        %v4240 = vunpack.c.l.b16 %v4105
        %v4241 = vunpack.c.l.b16 %v4106
        %v4242 = vunpack.c.l.b16 %v4107
        %v4243 = vunpack.c.l.b16 %v4108
        %v4244 = vunpack.c.l.b16 %v4109
        %v4245 = vunpack.c.l.b16 %v4110
        %v4246 = vunpack.c.l.b16 %v4111
        %v4247 = vunpack.c.l.b16 %v4112
        %v4248 = vunpack.c.l.b16 %v4113
        %v4249 = vunpack.c.l.b16 %v4114
        %v4250 = vunpack.c.l.b16 %v4115
        %v4251 = vunpack.c.l.b16 %v4116
        %v4252 = vunpack.c.l.b16 %v4117
        %v4253 = vunpack.c.l.b16 %v4118
        %v4254 = vunpack.c.l.b16 %v4119
        %v4255 = vunpack.c.l.b16 %v4120
        %v4256 = vunpack.c.l.b16 %v4121
        %v4257 = vunpack.c.l.b16 %v4122
        %v4258 = vunpack.c.l.b16 %v4123
        %v4259 = vunpack.c.l.b16 %v4124
        %v4260 = vunpack.c.l.b16 %v4125
        %v4261 = vunpack.c.l.b16 %v4126
        %v4262 = vunpack.c.l.b16 %v4127
        %v4263 = vunpack.c.l.b16 %v4128
        %v4264 = vunpack.c.l.b16 %v4129
        %v4265 = vunpack.c.l.b16 %v4130
        %v4266 = vunpack.c.l.b16 %v4131
        %v4267 = vunpack.c.l.b16 %v4132
        %v4268 = vunpack.c.l.b16 %v4133
        %v4269 = vunpack.c.l.b16 %v4134
        %v4270 = vpack.c.b16 %v4207, %v4206
        %v4271 = vpack.c.b16 %v4209, %v4208
        %v4272 = vpack.c.b16 %v4211, %v4210
        %v4273 = vpack.c.b16 %v4213, %v4212
        %v4274 = vpack.c.b16 %v4215, %v4214
        %v4275 = vpack.c.b16 %v4217, %v4216
        %v4276 = vpack.c.b16 %v4219, %v4218
        %v4277 = vpack.c.b16 %v4221, %v4220
        %v4278 = vpack.c.b16 %v4223, %v4222
        %v4279 = vpack.c.b16 %v4225, %v4224
        %v4280 = vpack.c.b16 %v4227, %v4226
        %v4281 = vpack.c.b16 %v4229, %v4228
        %v4282 = vpack.c.b16 %v4231, %v4230
        %v4283 = vpack.c.b16 %v4233, %v4232
        %v4284 = vpack.c.b16 %v4235, %v4234
        %v4285 = vpack.c.b16 %v4237, %v4236
        %v4286 = vpack.c.b16 %v4239, %v4238
        %v4287 = vpack.c.b16 %v4241, %v4240
        %v4288 = vpack.c.b16 %v4243, %v4242
        %v4289 = vpack.c.b16 %v4245, %v4244
        %v4290 = vpack.c.b16 %v4247, %v4246
        %v4291 = vpack.c.b16 %v4249, %v4248
        %v4292 = vpack.c.b16 %v4251, %v4250
        %v4293 = vpack.c.b16 %v4253, %v4252
        %v4294 = vpack.c.b16 %v4255, %v4254
        %v4295 = vpack.c.b16 %v4257, %v4256
        %v4296 = vpack.c.b16 %v4259, %v4258
        %v4297 = vpack.c.b16 %v4261, %v4260
        %v4298 = vpack.c.b16 %v4263, %v4262
        %v4299 = vpack.c.b16 %v4265, %v4264
        %v4300 = vpack.c.b16 %v4267, %v4266
        %v4301 = vpack.c.b16 %v4269, %v4268
        %4334 = vmatprep.subr.bf16.mxu0 0
        %4335 = vmatpush1.bf16.msra.mxu0 %v4270
        %4336 = vmatprep.subr.bf16.mxu0 0
        %4337 = vmatpush1.bf16.msra.mxu0 %v4271
        %4338 = vmatprep.subr.bf16.mxu0 0
        %4339 = vmatpush1.bf16.msra.mxu0 %v4272
        %4340 = vmatprep.subr.bf16.mxu0 0
        %4341 = vmatpush1.bf16.msra.mxu0 %v4273
        %4342 = vmatprep.subr.bf16.mxu0 0
        %4343 = vmatpush1.bf16.msra.mxu0 %v4274
        %4344 = vmatprep.subr.bf16.mxu0 0
        %4345 = vmatpush1.bf16.msra.mxu0 %v4275
        %4346 = vmatprep.subr.bf16.mxu0 0
        %4347 = vmatpush1.bf16.msra.mxu0 %v4276
        %4348 = vmatprep.subr.bf16.mxu0 0
        %4349 = vmatpush1.bf16.msra.mxu0 %v4277
        %4350 = vmatprep.subr.bf16.mxu0 0
        %4351 = vmatpush1.bf16.msra.mxu0 %v4278
        %4352 = vmatprep.subr.bf16.mxu0 0
        %4353 = vmatpush1.bf16.msra.mxu0 %v4279
        %4354 = vmatprep.subr.bf16.mxu0 0
        %4355 = vmatpush1.bf16.msra.mxu0 %v4280
        %4356 = vmatprep.subr.bf16.mxu0 0
        %4357 = vmatpush1.bf16.msra.mxu0 %v4281
        %4358 = vmatprep.subr.bf16.mxu0 0
        %4359 = vmatpush1.bf16.msra.mxu0 %v4282
        %4360 = vmatprep.subr.bf16.mxu0 0
        %4361 = vmatpush1.bf16.msra.mxu0 %v4283
        %4362 = vmatprep.subr.bf16.mxu0 0
        %4363 = vmatpush1.bf16.msra.mxu0 %v4284
        %4364 = vmatprep.subr.bf16.mxu0 0
        %4365 = vmatpush1.bf16.msra.mxu0 %v4285
        %4366 = vmatprep.mubr.bf16.mxu0 %v4056
        %4367 = vmatmul.mubr.bf16.gmra.mrb[0].mxu0 %v4055
        %v4368 = vpop.f32.mrb[0].mxu0
        %v4369 = vadd.f32 %v4140, %v4368
        %v4370 = vpop.f32.mrb[0].mxu0
        %v4371 = vpop.f32.mrb[0].mxu0
        %v4372 = vadd.f32 %v4140, %v4371
        %v4373 = vpop.f32.mrb[0].mxu0
        %4374 = vmatprep.mubr.bf16.mxu0 %v4060
        %4375 = vmatmul.mubr.bf16.gmra.mrb[0].mxu0 %v4059
        %v4376 = vpop.f32.mrb[0].mxu0
        %v4377 = vadd.f32 %v4140, %v4376
        %v4378 = vpop.f32.mrb[0].mxu0
        %v4379 = vpop.f32.mrb[0].mxu0
        %v4380 = vadd.f32 %v4140, %v4379
        %v4381 = vpop.f32.mrb[0].mxu0
        %4382 = vmatprep.mubr.bf16.mxu0 %v4064
        %4383 = vmatmul.mubr.bf16.gmra.mrb[0].mxu0 %v4063
        %v4384 = vpop.f32.mrb[0].mxu0
        %v4385 = vadd.f32 %v4140, %v4384
        %v4386 = vpop.f32.mrb[0].mxu0
        %v4387 = vpop.f32.mrb[0].mxu0
        %v4388 = vadd.f32 %v4140, %v4387
        %v4389 = vpop.f32.mrb[0].mxu0
        %4390 = vmatprep.mubr.bf16.mxu0 %v4068
        %4391 = vmatmul.mubr.bf16.gmra.mrb[0].mxu0 %v4067
        %v4392 = vpop.f32.mrb[0].mxu0
        %v4393 = vadd.f32 %v4140, %v4392
        %v4394 = vpop.f32.mrb[0].mxu0
        %v4395 = vpop.f32.mrb[0].mxu0
        %v4396 = vadd.f32 %v4140, %v4395
        %v4397 = vpop.f32.mrb[0].mxu0
        %4398 = vdwg.mxu0
        %4399 = vmatprep.subr.bf16.mxu0 0
        %4400 = vmatpush1.bf16.msra.mxu0 %v4286
        %4401 = vmatprep.subr.bf16.mxu0 0
        %4402 = vmatpush1.bf16.msra.mxu0 %v4287
        %4403 = vmatprep.subr.bf16.mxu0 0
        %4404 = vmatpush1.bf16.msra.mxu0 %v4288
        %4405 = vmatprep.subr.bf16.mxu0 0
        %4406 = vmatpush1.bf16.msra.mxu0 %v4289
        %4407 = vmatprep.subr.bf16.mxu0 0
        %4408 = vmatpush1.bf16.msra.mxu0 %v4290
        %4409 = vmatprep.subr.bf16.mxu0 0
        %4410 = vmatpush1.bf16.msra.mxu0 %v4291
        %4411 = vmatprep.subr.bf16.mxu0 0
        %4412 = vmatpush1.bf16.msra.mxu0 %v4292
        %4413 = vmatprep.subr.bf16.mxu0 0
        %4414 = vmatpush1.bf16.msra.mxu0 %v4293
        %4415 = vmatprep.subr.bf16.mxu0 0
        %4416 = vmatpush1.bf16.msra.mxu0 %v4294
        %4417 = vmatprep.subr.bf16.mxu0 0
        %4418 = vmatpush1.bf16.msra.mxu0 %v4295
        %4419 = vmatprep.subr.bf16.mxu0 0
        %4420 = vmatpush1.bf16.msra.mxu0 %v4296
        %4421 = vmatprep.subr.bf16.mxu0 0
        %4422 = vmatpush1.bf16.msra.mxu0 %v4297
        %4423 = vmatprep.subr.bf16.mxu0 0
        %4424 = vmatpush1.bf16.msra.mxu0 %v4298
        %4425 = vmatprep.subr.bf16.mxu0 0
        %4426 = vmatpush1.bf16.msra.mxu0 %v4299
        %4427 = vmatprep.subr.bf16.mxu0 0
        %4428 = vmatpush1.bf16.msra.mxu0 %v4300
        %4429 = vmatprep.subr.bf16.mxu0 0
        %4430 = vmatpush1.bf16.msra.mxu0 %v4301
        %4431 = vmatprep.mubr.bf16.mxu0 %v4058
        %4432 = vmatmul.mubr.bf16.gmra.mrb[0].mxu0 %v4057
        %v4433 = vpop.f32.mrb[0].mxu0
        %v4434 = vadd.f32 %v4369, %v4433
        %v4435 = vpop.f32.mrb[0].mxu0
        %v4436 = vpop.f32.mrb[0].mxu0
        %v4437 = vadd.f32 %v4372, %v4436
        %v4438 = vpop.f32.mrb[0].mxu0
        %4439 = vmatprep.mubr.bf16.mxu0 %v4062
        %4440 = vmatmul.mubr.bf16.gmra.mrb[0].mxu0 %v4061
        %v4441 = vpop.f32.mrb[0].mxu0
        %v4442 = vadd.f32 %v4377, %v4441
        %v4443 = vpop.f32.mrb[0].mxu0
        %v4444 = vpop.f32.mrb[0].mxu0
        %v4445 = vadd.f32 %v4380, %v4444
        %v4446 = vpop.f32.mrb[0].mxu0
        %4447 = vmatprep.mubr.bf16.mxu0 %v4066
        %4448 = vmatmul.mubr.bf16.gmra.mrb[0].mxu0 %v4065
        %v4449 = vpop.f32.mrb[0].mxu0
        %v4450 = vadd.f32 %v4385, %v4449
        %v4451 = vpop.f32.mrb[0].mxu0
        %v4452 = vpop.f32.mrb[0].mxu0
        %v4453 = vadd.f32 %v4388, %v4452
        %v4454 = vpop.f32.mrb[0].mxu0
        %4455 = vmatprep.mubr.bf16.mxu0 %v4070
        %4456 = vmatmul.mubr.bf16.gmra.mrb[0].mxu0 %v4069
        %v4457 = vpop.f32.mrb[0].mxu0
        %v4458 = vadd.f32 %v4393, %v4457
        %v4459 = vpop.f32.mrb[0].mxu0
        %v4460 = vpop.f32.mrb[0].mxu0
        %v4461 = vadd.f32 %v4396, %v4460
        %v4462 = vpop.f32.mrb[0].mxu0
        %4463 = vdwg.mxu0
        %v4464 = vmul.f32 %v4434, 0.01
        %v4465 = vmul.f32 %v4437, 0.01
        %v4466 = vmul.f32 %v4442, 0.01
        %v4467 = vmul.f32 %v4445, 0.01
        %v4468 = vmul.f32 %v4450, 0.01
        %v4469 = vmul.f32 %v4453, 0.01
        %v4470 = vmul.f32 %v4458, 0.01
        %v4471 = vmul.f32 %v4461, 0.01
        %v4472 = vmax.f32 %v4434, %v4464
        %v4473 = vmax.f32 %v4437, %v4465
        %v4474 = vmax.f32 %v4442, %v4466
        %v4475 = vmax.f32 %v4445, %v4467
        %v4476 = vmax.f32 %v4450, %v4468
        %v4477 = vmax.f32 %v4453, %v4469
        %v4478 = vmax.f32 %v4458, %v4470
        %v4479 = vmax.f32 %v4461, %v4471
        %v4480 = vpack.c.bf16 %v3405, %v3401
        %v4481 = vpack.c.bf16 %v3406, %v3402
        %v4482 = vpack.c.bf16 %v3413, %v3409
        %v4483 = vpack.c.bf16 %v3414, %v3410
        %v4484 = vpack.c.bf16 %v3421, %v3417
        %v4485 = vpack.c.bf16 %v3422, %v3418
        %v4486 = vpack.c.bf16 %v3429, %v3425
        %v4487 = vpack.c.bf16 %v3430, %v3426
        %v4488 = vld [vmem:[%s31] sm:$0xff]
        %v4489 = vld [vmem:[%s31 + $0x8] sm:$0xff]
        %v4490 = vld [vmem:[%s31 + $0x10] sm:$0xff]
        %v4491 = vld [vmem:[%s31 + $0x18] sm:$0xff]
        %v4492 = vld [vmem:[%s31 + $0x20] sm:$0xff]
        %v4493 = vld [vmem:[%s31 + $0x28] sm:$0xff]
        %v4494 = vld [vmem:[%s31 + $0x30] sm:$0xff]
        %v4495 = vld [vmem:[%s31 + $0x38] sm:$0xff]
        %v4496 = vld [vmem:[%s31 + $0x40] sm:$0xff]
        %v4497 = vld [vmem:[%s31 + $0x48] sm:$0xff]
        %v4498 = vld [vmem:[%s31 + $0x50] sm:$0xff]
        %v4499 = vld [vmem:[%s31 + $0x58] sm:$0xff]
        %v4500 = vld [vmem:[%s31 + $0x60] sm:$0xff]
        %v4501 = vld [vmem:[%s31 + $0x68] sm:$0xff]
        %v4502 = vld [vmem:[%s31 + $0x70] sm:$0xff]
        %v4503 = vld [vmem:[%s31 + $0x78] sm:$0xff]
        %v4504 = vld [vmem:[%s31 + $0x80] sm:$0xff]
        %v4505 = vld [vmem:[%s31 + $0x88] sm:$0xff]
        %v4506 = vld [vmem:[%s31 + $0x90] sm:$0xff]
        %v4507 = vld [vmem:[%s31 + $0x98] sm:$0xff]
        %v4508 = vld [vmem:[%s31 + $0xa0] sm:$0xff]
        %v4509 = vld [vmem:[%s31 + $0xa8] sm:$0xff]
        %v4510 = vld [vmem:[%s31 + $0xb0] sm:$0xff]
        %v4511 = vld [vmem:[%s31 + $0xb8] sm:$0xff]
        %v4512 = vld [vmem:[%s31 + $0xc0] sm:$0xff]
        %v4513 = vld [vmem:[%s31 + $0xc8] sm:$0xff]
        %v4514 = vld [vmem:[%s31 + $0xd0] sm:$0xff]
        %v4515 = vld [vmem:[%s31 + $0xd8] sm:$0xff]
        %v4516 = vld [vmem:[%s31 + $0xe0] sm:$0xff]
        %v4517 = vld [vmem:[%s31 + $0xe8] sm:$0xff]
        %v4518 = vld [vmem:[%s31 + $0xf0] sm:$0xff]
        %v4519 = vld [vmem:[%s31 + $0xf8] sm:$0xff]
        %v4520 = vld [vmem:[%s31 + $0x100] sm:$0xff]
        %v4521 = vld [vmem:[%s31 + $0x108] sm:$0xff]
        %v4522 = vld [vmem:[%s31 + $0x110] sm:$0xff]
        %v4523 = vld [vmem:[%s31 + $0x118] sm:$0xff]
        %v4524 = vld [vmem:[%s31 + $0x120] sm:$0xff]
        %v4525 = vld [vmem:[%s31 + $0x128] sm:$0xff]
        %v4526 = vld [vmem:[%s31 + $0x130] sm:$0xff]
        %v4527 = vld [vmem:[%s31 + $0x138] sm:$0xff]
        %v4528 = vld [vmem:[%s31 + $0x140] sm:$0xff]
        %v4529 = vld [vmem:[%s31 + $0x148] sm:$0xff]
        %v4530 = vld [vmem:[%s31 + $0x150] sm:$0xff]
        %v4531 = vld [vmem:[%s31 + $0x158] sm:$0xff]
        %v4532 = vld [vmem:[%s31 + $0x160] sm:$0xff]
        %v4533 = vld [vmem:[%s31 + $0x168] sm:$0xff]
        %v4534 = vld [vmem:[%s31 + $0x170] sm:$0xff]
        %v4535 = vld [vmem:[%s31 + $0x178] sm:$0xff]
        %v4536 = vld [vmem:[%s31 + $0x180] sm:$0xff]
        %v4537 = vld [vmem:[%s31 + $0x188] sm:$0xff]
        %v4538 = vld [vmem:[%s31 + $0x190] sm:$0xff]
        %v4539 = vld [vmem:[%s31 + $0x198] sm:$0xff]
        %v4540 = vld [vmem:[%s31 + $0x1a0] sm:$0xff]
        %v4541 = vld [vmem:[%s31 + $0x1a8] sm:$0xff]
        %v4542 = vld [vmem:[%s31 + $0x1b0] sm:$0xff]
        %v4543 = vld [vmem:[%s31 + $0x1b8] sm:$0xff]
        %v4544 = vld [vmem:[%s31 + $0x1c0] sm:$0xff]
        %v4545 = vld [vmem:[%s31 + $0x1c8] sm:$0xff]
        %v4546 = vld [vmem:[%s31 + $0x1d0] sm:$0xff]
        %v4547 = vld [vmem:[%s31 + $0x1d8] sm:$0xff]
        %v4548 = vld [vmem:[%s31 + $0x1e0] sm:$0xff]
        %v4549 = vld [vmem:[%s31 + $0x1e8] sm:$0xff]
        %v4550 = vld [vmem:[%s31 + $0x1f0] sm:$0xff]
        %v4551 = vld [vmem:[%s31 + $0x1f8] sm:$0xff]
        %v4552 = vld [vmem:[%s33] sm:$0xf]
        %v4554 = vlaneseq
        %v4555 = vshrl.u32 %v4554, 7
        %v4556 = vsub.s32 0, %v4555
        %v4557 = vrot.slane %v4552, %v4556
        %v4558 = vlaneseq
        %v4559 = vshrl.u32 %v4558, 7
        %v4560 = vsub.s32 1, %v4559
        %v4561 = vrot.slane %v4552, %v4560
        %v4562 = vlaneseq
        %v4563 = vshrl.u32 %v4562, 7
        %v4564 = vsub.s32 2, %v4563
        %v4565 = vrot.slane %v4552, %v4564
        %v4566 = vlaneseq
        %v4567 = vshrl.u32 %v4566, 7
        %v4568 = vsub.s32 3, %v4567
        %v4569 = vrot.slane %v4552, %v4568
        %v4638 = vunpack.c.l.b16 %v4488
        %v4639 = vunpack.c.h.b16 %v4488
        %v4640 = vunpack.c.l.b16 %v4489
        %v4641 = vunpack.c.h.b16 %v4489
        %v4642 = vunpack.c.l.b16 %v4490
        %v4643 = vunpack.c.h.b16 %v4490
        %v4644 = vunpack.c.l.b16 %v4491
        %v4645 = vunpack.c.h.b16 %v4491
        %v4646 = vunpack.c.l.b16 %v4492
        %v4647 = vunpack.c.h.b16 %v4492
        %v4648 = vunpack.c.l.b16 %v4493
        %v4649 = vunpack.c.h.b16 %v4493
        %v4650 = vunpack.c.l.b16 %v4494
        %v4651 = vunpack.c.h.b16 %v4494
        %v4652 = vunpack.c.l.b16 %v4495
        %v4653 = vunpack.c.h.b16 %v4495
        %v4654 = vunpack.c.l.b16 %v4496
        %v4655 = vunpack.c.h.b16 %v4496
        %v4656 = vunpack.c.l.b16 %v4497
        %v4657 = vunpack.c.h.b16 %v4497
        %v4658 = vunpack.c.l.b16 %v4498
        %v4659 = vunpack.c.h.b16 %v4498
        %v4660 = vunpack.c.l.b16 %v4499
        %v4661 = vunpack.c.h.b16 %v4499
        %v4662 = vunpack.c.l.b16 %v4500
        %v4663 = vunpack.c.h.b16 %v4500
        %v4664 = vunpack.c.l.b16 %v4501
        %v4665 = vunpack.c.h.b16 %v4501
        %v4666 = vunpack.c.l.b16 %v4502
        %v4667 = vunpack.c.h.b16 %v4502
        %v4668 = vunpack.c.l.b16 %v4503
        %v4669 = vunpack.c.h.b16 %v4503
        %v4670 = vunpack.c.l.b16 %v4504
        %v4671 = vunpack.c.h.b16 %v4504
        %v4672 = vunpack.c.l.b16 %v4505
        %v4673 = vunpack.c.h.b16 %v4505
        %v4674 = vunpack.c.l.b16 %v4506
        %v4675 = vunpack.c.h.b16 %v4506
        %v4676 = vunpack.c.l.b16 %v4507
        %v4677 = vunpack.c.h.b16 %v4507
        %v4678 = vunpack.c.l.b16 %v4508
        %v4679 = vunpack.c.h.b16 %v4508
        %v4680 = vunpack.c.l.b16 %v4509
        %v4681 = vunpack.c.h.b16 %v4509
        %v4682 = vunpack.c.l.b16 %v4510
        %v4683 = vunpack.c.h.b16 %v4510
        %v4684 = vunpack.c.l.b16 %v4511
        %v4685 = vunpack.c.h.b16 %v4511
        %v4686 = vunpack.c.l.b16 %v4512
        %v4687 = vunpack.c.h.b16 %v4512
        %v4688 = vunpack.c.l.b16 %v4513
        %v4689 = vunpack.c.h.b16 %v4513
        %v4690 = vunpack.c.l.b16 %v4514
        %v4691 = vunpack.c.h.b16 %v4514
        %v4692 = vunpack.c.l.b16 %v4515
        %v4693 = vunpack.c.h.b16 %v4515
        %v4694 = vunpack.c.l.b16 %v4516
        %v4695 = vunpack.c.h.b16 %v4516
        %v4696 = vunpack.c.l.b16 %v4517
        %v4697 = vunpack.c.h.b16 %v4517
        %v4698 = vunpack.c.l.b16 %v4518
        %v4699 = vunpack.c.h.b16 %v4518
        %v4700 = vunpack.c.l.b16 %v4519
        %v4701 = vunpack.c.h.b16 %v4519
        %v4702 = vunpack.c.l.b16 %v4520
        %v4703 = vunpack.c.h.b16 %v4520
        %v4704 = vunpack.c.l.b16 %v4521
        %v4705 = vunpack.c.h.b16 %v4521
        %v4706 = vunpack.c.l.b16 %v4522
        %v4707 = vunpack.c.h.b16 %v4522
        %v4708 = vunpack.c.l.b16 %v4523
        %v4709 = vunpack.c.h.b16 %v4523
        %v4710 = vunpack.c.l.b16 %v4524
        %v4711 = vunpack.c.h.b16 %v4524
        %v4712 = vunpack.c.l.b16 %v4525
        %v4713 = vunpack.c.h.b16 %v4525
        %v4714 = vunpack.c.l.b16 %v4526
        %v4715 = vunpack.c.h.b16 %v4526
        %v4716 = vunpack.c.l.b16 %v4527
        %v4717 = vunpack.c.h.b16 %v4527
        %v4718 = vunpack.c.l.b16 %v4528
        %v4719 = vunpack.c.h.b16 %v4528
        %v4720 = vunpack.c.l.b16 %v4529
        %v4721 = vunpack.c.h.b16 %v4529
        %v4722 = vunpack.c.l.b16 %v4530
        %v4723 = vunpack.c.h.b16 %v4530
        %v4724 = vunpack.c.l.b16 %v4531
        %v4725 = vunpack.c.h.b16 %v4531
        %v4726 = vunpack.c.l.b16 %v4532
        %v4727 = vunpack.c.h.b16 %v4532
        %v4728 = vunpack.c.l.b16 %v4533
        %v4729 = vunpack.c.h.b16 %v4533
        %v4730 = vunpack.c.l.b16 %v4534
        %v4731 = vunpack.c.h.b16 %v4534
        %v4732 = vunpack.c.l.b16 %v4535
        %v4733 = vunpack.c.h.b16 %v4535
        %v4734 = vunpack.c.l.b16 %v4536
        %v4735 = vunpack.c.h.b16 %v4536
        %v4736 = vunpack.c.l.b16 %v4537
        %v4737 = vunpack.c.h.b16 %v4537
        %v4738 = vunpack.c.l.b16 %v4538
        %v4739 = vunpack.c.h.b16 %v4538
        %v4740 = vunpack.c.l.b16 %v4539
        %v4741 = vunpack.c.h.b16 %v4539
        %v4742 = vunpack.c.l.b16 %v4540
        %v4743 = vunpack.c.h.b16 %v4540
        %v4744 = vunpack.c.l.b16 %v4541
        %v4745 = vunpack.c.h.b16 %v4541
        %v4746 = vunpack.c.l.b16 %v4542
        %v4747 = vunpack.c.h.b16 %v4542
        %v4748 = vunpack.c.l.b16 %v4543
        %v4749 = vunpack.c.h.b16 %v4543
        %v4750 = vunpack.c.l.b16 %v4544
        %v4751 = vunpack.c.h.b16 %v4544
        %v4752 = vunpack.c.l.b16 %v4545
        %v4753 = vunpack.c.h.b16 %v4545
        %v4754 = vunpack.c.l.b16 %v4546
        %v4755 = vunpack.c.h.b16 %v4546
        %v4756 = vunpack.c.l.b16 %v4547
        %v4757 = vunpack.c.h.b16 %v4547
        %v4758 = vunpack.c.l.b16 %v4548
        %v4759 = vunpack.c.h.b16 %v4548
        %v4760 = vunpack.c.l.b16 %v4549
        %v4761 = vunpack.c.h.b16 %v4549
        %v4762 = vunpack.c.l.b16 %v4550
        %v4763 = vunpack.c.h.b16 %v4550
        %v4764 = vunpack.c.l.b16 %v4551
        %v4765 = vunpack.c.h.b16 %v4551
        %v4766 = vpack.c.b16 %v4642, %v4638
        %v4767 = vpack.c.b16 %v4643, %v4639
        %v4768 = vpack.c.b16 %v4644, %v4640
        %v4769 = vpack.c.b16 %v4645, %v4641
        %v4770 = vpack.c.b16 %v4650, %v4646
        %v4771 = vpack.c.b16 %v4651, %v4647
        %v4772 = vpack.c.b16 %v4652, %v4648
        %v4773 = vpack.c.b16 %v4653, %v4649
        %v4774 = vpack.c.b16 %v4658, %v4654
        %v4775 = vpack.c.b16 %v4659, %v4655
        %v4776 = vpack.c.b16 %v4660, %v4656
        %v4777 = vpack.c.b16 %v4661, %v4657
        %v4778 = vpack.c.b16 %v4666, %v4662
        %v4779 = vpack.c.b16 %v4667, %v4663
        %v4780 = vpack.c.b16 %v4668, %v4664
        %v4781 = vpack.c.b16 %v4669, %v4665
        %v4782 = vpack.c.b16 %v4674, %v4670
        %v4783 = vpack.c.b16 %v4675, %v4671
        %v4784 = vpack.c.b16 %v4676, %v4672
        %v4785 = vpack.c.b16 %v4677, %v4673
        %v4786 = vpack.c.b16 %v4682, %v4678
        %v4787 = vpack.c.b16 %v4683, %v4679
        %v4788 = vpack.c.b16 %v4684, %v4680
        %v4789 = vpack.c.b16 %v4685, %v4681
        %v4790 = vpack.c.b16 %v4690, %v4686
        %v4791 = vpack.c.b16 %v4691, %v4687
        %v4792 = vpack.c.b16 %v4692, %v4688
        %v4793 = vpack.c.b16 %v4693, %v4689
        %v4794 = vpack.c.b16 %v4698, %v4694
        %v4795 = vpack.c.b16 %v4699, %v4695
        %v4796 = vpack.c.b16 %v4700, %v4696
        %v4797 = vpack.c.b16 %v4701, %v4697
        %v4798 = vpack.c.b16 %v4706, %v4702
        %v4799 = vpack.c.b16 %v4707, %v4703
        %v4800 = vpack.c.b16 %v4708, %v4704
        %v4801 = vpack.c.b16 %v4709, %v4705
        %v4802 = vpack.c.b16 %v4714, %v4710
        %v4803 = vpack.c.b16 %v4715, %v4711
        %v4804 = vpack.c.b16 %v4716, %v4712
        %v4805 = vpack.c.b16 %v4717, %v4713
        %v4806 = vpack.c.b16 %v4722, %v4718
        %v4807 = vpack.c.b16 %v4723, %v4719
        %v4808 = vpack.c.b16 %v4724, %v4720
        %v4809 = vpack.c.b16 %v4725, %v4721
        %v4810 = vpack.c.b16 %v4730, %v4726
        %v4811 = vpack.c.b16 %v4731, %v4727
        %v4812 = vpack.c.b16 %v4732, %v4728
        %v4813 = vpack.c.b16 %v4733, %v4729
        %v4814 = vpack.c.b16 %v4738, %v4734
        %v4815 = vpack.c.b16 %v4739, %v4735
        %v4816 = vpack.c.b16 %v4740, %v4736
        %v4817 = vpack.c.b16 %v4741, %v4737
        %v4818 = vpack.c.b16 %v4746, %v4742
        %v4819 = vpack.c.b16 %v4747, %v4743
        %v4820 = vpack.c.b16 %v4748, %v4744
        %v4821 = vpack.c.b16 %v4749, %v4745
        %v4822 = vpack.c.b16 %v4754, %v4750
        %v4823 = vpack.c.b16 %v4755, %v4751
        %v4824 = vpack.c.b16 %v4756, %v4752
        %v4825 = vpack.c.b16 %v4757, %v4753
        %v4826 = vpack.c.b16 %v4762, %v4758
        %v4827 = vpack.c.b16 %v4763, %v4759
        %v4828 = vpack.c.b16 %v4764, %v4760
        %v4829 = vpack.c.b16 %v4765, %v4761
        %4894 = vmatprep.subr.bf16.mxu0 %v4767
        %4895 = vmatpush1.bf16.msra.mxu0 %v4766
        %4896 = vmatprep.subr.bf16.mxu0 %v4771
        %4897 = vmatpush1.bf16.msra.mxu0 %v4770
        %4898 = vmatprep.subr.bf16.mxu0 %v4775
        %4899 = vmatpush1.bf16.msra.mxu0 %v4774
        %4900 = vmatprep.subr.bf16.mxu0 %v4779
        %4901 = vmatpush1.bf16.msra.mxu0 %v4778
        %4902 = vmatprep.subr.bf16.mxu0 %v4783
        %4903 = vmatpush1.bf16.msra.mxu0 %v4782
        %4904 = vmatprep.subr.bf16.mxu0 %v4787
        %4905 = vmatpush1.bf16.msra.mxu0 %v4786
        %4906 = vmatprep.subr.bf16.mxu0 %v4791
        %4907 = vmatpush1.bf16.msra.mxu0 %v4790
        %4908 = vmatprep.subr.bf16.mxu0 %v4795
        %4909 = vmatpush1.bf16.msra.mxu0 %v4794
        %4910 = vmatprep.subr.bf16.mxu0 %v4799
        %4911 = vmatpush1.bf16.msra.mxu0 %v4798
        %4912 = vmatprep.subr.bf16.mxu0 %v4803
        %4913 = vmatpush1.bf16.msra.mxu0 %v4802
        %4914 = vmatprep.subr.bf16.mxu0 %v4807
        %4915 = vmatpush1.bf16.msra.mxu0 %v4806
        %4916 = vmatprep.subr.bf16.mxu0 %v4811
        %4917 = vmatpush1.bf16.msra.mxu0 %v4810
        %4918 = vmatprep.subr.bf16.mxu0 %v4815
        %4919 = vmatpush1.bf16.msra.mxu0 %v4814
        %4920 = vmatprep.subr.bf16.mxu0 %v4819
        %4921 = vmatpush1.bf16.msra.mxu0 %v4818
        %4922 = vmatprep.subr.bf16.mxu0 %v4823
        %4923 = vmatpush1.bf16.msra.mxu0 %v4822
        %4924 = vmatprep.subr.bf16.mxu0 %v4827
        %4925 = vmatpush1.bf16.msra.mxu0 %v4826
        %4926 = vmatprep.mubr.bf16.mxu0 %v4481
        %4927 = vmatmul.mubr.bf16.gmra.mrb[0].mxu0 %v4480
        %v4928 = vpop.f32.mrb[0].mxu0
        %v4929 = vadd.f32 %v4557, %v4928
        %v4930 = vpop.f32.mrb[0].mxu0
        %v4931 = vadd.f32 %v4561, %v4930
        %v4932 = vpop.f32.mrb[0].mxu0
        %v4933 = vadd.f32 %v4557, %v4932
        %v4934 = vpop.f32.mrb[0].mxu0
        %v4935 = vadd.f32 %v4561, %v4934
        %4936 = vmatprep.mubr.bf16.mxu0 %v4483
        %4937 = vmatmul.mubr.bf16.gmra.mrb[0].mxu0 %v4482
        %v4938 = vpop.f32.mrb[0].mxu0
        %v4939 = vadd.f32 %v4557, %v4938
        %v4940 = vpop.f32.mrb[0].mxu0
        %v4941 = vadd.f32 %v4561, %v4940
        %v4942 = vpop.f32.mrb[0].mxu0
        %v4943 = vadd.f32 %v4557, %v4942
        %v4944 = vpop.f32.mrb[0].mxu0
        %v4945 = vadd.f32 %v4561, %v4944
        %4946 = vmatprep.mubr.bf16.mxu0 %v4485
        %4947 = vmatmul.mubr.bf16.gmra.mrb[0].mxu0 %v4484
        %v4948 = vpop.f32.mrb[0].mxu0
        %v4949 = vadd.f32 %v4557, %v4948
        %v4950 = vpop.f32.mrb[0].mxu0
        %v4951 = vadd.f32 %v4561, %v4950
        %v4952 = vpop.f32.mrb[0].mxu0
        %v4953 = vadd.f32 %v4557, %v4952
        %v4954 = vpop.f32.mrb[0].mxu0
        %v4955 = vadd.f32 %v4561, %v4954
        %4956 = vmatprep.mubr.bf16.mxu0 %v4487
        %4957 = vmatmul.mubr.bf16.gmra.mrb[0].mxu0 %v4486
        %v4958 = vpop.f32.mrb[0].mxu0
        %v4959 = vadd.f32 %v4557, %v4958
        %v4960 = vpop.f32.mrb[0].mxu0
        %v4961 = vadd.f32 %v4561, %v4960
        %v4962 = vpop.f32.mrb[0].mxu0
        %v4963 = vadd.f32 %v4557, %v4962
        %v4964 = vpop.f32.mrb[0].mxu0
        %v4965 = vadd.f32 %v4561, %v4964
        %4966 = vdwg.mxu0
        %4967 = vmatprep.subr.bf16.mxu0 %v4769
        %4968 = vmatpush1.bf16.msra.mxu0 %v4768
        %4969 = vmatprep.subr.bf16.mxu0 %v4773
        %4970 = vmatpush1.bf16.msra.mxu0 %v4772
        %4971 = vmatprep.subr.bf16.mxu0 %v4777
        %4972 = vmatpush1.bf16.msra.mxu0 %v4776
        %4973 = vmatprep.subr.bf16.mxu0 %v4781
        %4974 = vmatpush1.bf16.msra.mxu0 %v4780
        %4975 = vmatprep.subr.bf16.mxu0 %v4785
        %4976 = vmatpush1.bf16.msra.mxu0 %v4784
        %4977 = vmatprep.subr.bf16.mxu0 %v4789
        %4978 = vmatpush1.bf16.msra.mxu0 %v4788
        %4979 = vmatprep.subr.bf16.mxu0 %v4793
        %4980 = vmatpush1.bf16.msra.mxu0 %v4792
        %4981 = vmatprep.subr.bf16.mxu0 %v4797
        %4982 = vmatpush1.bf16.msra.mxu0 %v4796
        %4983 = vmatprep.subr.bf16.mxu0 %v4801
        %4984 = vmatpush1.bf16.msra.mxu0 %v4800
        %4985 = vmatprep.subr.bf16.mxu0 %v4805
        %4986 = vmatpush1.bf16.msra.mxu0 %v4804
        %4987 = vmatprep.subr.bf16.mxu0 %v4809
        %4988 = vmatpush1.bf16.msra.mxu0 %v4808
        %4989 = vmatprep.subr.bf16.mxu0 %v4813
        %4990 = vmatpush1.bf16.msra.mxu0 %v4812
        %4991 = vmatprep.subr.bf16.mxu0 %v4817
        %4992 = vmatpush1.bf16.msra.mxu0 %v4816
        %4993 = vmatprep.subr.bf16.mxu0 %v4821
        %4994 = vmatpush1.bf16.msra.mxu0 %v4820
        %4995 = vmatprep.subr.bf16.mxu0 %v4825
        %4996 = vmatpush1.bf16.msra.mxu0 %v4824
        %4997 = vmatprep.subr.bf16.mxu0 %v4829
        %4998 = vmatpush1.bf16.msra.mxu0 %v4828
        %4999 = vmatprep.mubr.bf16.mxu0 %v4481
        %5000 = vmatmul.mubr.bf16.gmra.mrb[0].mxu0 %v4480
        %v5001 = vpop.f32.mrb[0].mxu0
        %v5002 = vadd.f32 %v4565, %v5001
        %v5003 = vpop.f32.mrb[0].mxu0
        %v5004 = vadd.f32 %v4569, %v5003
        %v5005 = vpop.f32.mrb[0].mxu0
        %v5006 = vadd.f32 %v4565, %v5005
        %v5007 = vpop.f32.mrb[0].mxu0
        %v5008 = vadd.f32 %v4569, %v5007
        %5009 = vmatprep.mubr.bf16.mxu0 %v4483
        %5010 = vmatmul.mubr.bf16.gmra.mrb[0].mxu0 %v4482
        %v5011 = vpop.f32.mrb[0].mxu0
        %v5012 = vadd.f32 %v4565, %v5011
        %v5013 = vpop.f32.mrb[0].mxu0
        %v5014 = vadd.f32 %v4569, %v5013
        %v5015 = vpop.f32.mrb[0].mxu0
        %v5016 = vadd.f32 %v4565, %v5015
        %v5017 = vpop.f32.mrb[0].mxu0
        %v5018 = vadd.f32 %v4569, %v5017
        %5019 = vmatprep.mubr.bf16.mxu0 %v4485
        %5020 = vmatmul.mubr.bf16.gmra.mrb[0].mxu0 %v4484
        %v5021 = vpop.f32.mrb[0].mxu0
        %v5022 = vadd.f32 %v4565, %v5021
        %v5023 = vpop.f32.mrb[0].mxu0
        %v5024 = vadd.f32 %v4569, %v5023
        %v5025 = vpop.f32.mrb[0].mxu0
        %v5026 = vadd.f32 %v4565, %v5025
        %v5027 = vpop.f32.mrb[0].mxu0
        %v5028 = vadd.f32 %v4569, %v5027
        %5029 = vmatprep.mubr.bf16.mxu0 %v4487
        %5030 = vmatmul.mubr.bf16.gmra.mrb[0].mxu0 %v4486
        %v5031 = vpop.f32.mrb[0].mxu0
        %v5032 = vadd.f32 %v4565, %v5031
        %v5033 = vpop.f32.mrb[0].mxu0
        %v5034 = vadd.f32 %v4569, %v5033
        %v5035 = vpop.f32.mrb[0].mxu0
        %v5036 = vadd.f32 %v4565, %v5035
        %v5037 = vpop.f32.mrb[0].mxu0
        %v5038 = vadd.f32 %v4569, %v5037
        %5039 = vdwg.mxu0
        %v5040 = vmul.f32 %v4929, 0.01
        %v5041 = vmul.f32 %v4931, 0.01
        %v5042 = vmul.f32 %v5002, 0.01
        %v5043 = vmul.f32 %v5004, 0.01
        %v5044 = vmul.f32 %v4933, 0.01
        %v5045 = vmul.f32 %v4935, 0.01
        %v5046 = vmul.f32 %v5006, 0.01
        %v5047 = vmul.f32 %v5008, 0.01
        %v5048 = vmul.f32 %v4939, 0.01
        %v5049 = vmul.f32 %v4941, 0.01
        %v5050 = vmul.f32 %v5012, 0.01
        %v5051 = vmul.f32 %v5014, 0.01
        %v5052 = vmul.f32 %v4943, 0.01
        %v5053 = vmul.f32 %v4945, 0.01
        %v5054 = vmul.f32 %v5016, 0.01
        %v5055 = vmul.f32 %v5018, 0.01
        %v5056 = vmul.f32 %v4949, 0.01
        %v5057 = vmul.f32 %v4951, 0.01
        %v5058 = vmul.f32 %v5022, 0.01
        %v5059 = vmul.f32 %v5024, 0.01
        %v5060 = vmul.f32 %v4953, 0.01
        %v5061 = vmul.f32 %v4955, 0.01
        %v5062 = vmul.f32 %v5026, 0.01
        %v5063 = vmul.f32 %v5028, 0.01
        %v5064 = vmul.f32 %v4959, 0.01
        %v5065 = vmul.f32 %v4961, 0.01
        %v5066 = vmul.f32 %v5032, 0.01
        %v5067 = vmul.f32 %v5034, 0.01
        %v5068 = vmul.f32 %v4963, 0.01
        %v5069 = vmul.f32 %v4965, 0.01
        %v5070 = vmul.f32 %v5036, 0.01
        %v5071 = vmul.f32 %v5038, 0.01
        %v5072 = vmax.f32 %v4929, %v5040
        %v5073 = vmax.f32 %v4931, %v5041
        %v5074 = vmax.f32 %v5002, %v5042
        %v5075 = vmax.f32 %v5004, %v5043
        %v5076 = vmax.f32 %v4933, %v5044
        %v5077 = vmax.f32 %v4935, %v5045
        %v5078 = vmax.f32 %v5006, %v5046
        %v5079 = vmax.f32 %v5008, %v5047
        %v5080 = vmax.f32 %v4939, %v5048
        %v5081 = vmax.f32 %v4941, %v5049
        %v5082 = vmax.f32 %v5012, %v5050
        %v5083 = vmax.f32 %v5014, %v5051
        %v5084 = vmax.f32 %v4943, %v5052
        %v5085 = vmax.f32 %v4945, %v5053
        %v5086 = vmax.f32 %v5016, %v5054
        %v5087 = vmax.f32 %v5018, %v5055
        %v5088 = vmax.f32 %v4949, %v5056
        %v5089 = vmax.f32 %v4951, %v5057
        %v5090 = vmax.f32 %v5022, %v5058
        %v5091 = vmax.f32 %v5024, %v5059
        %v5092 = vmax.f32 %v4953, %v5060
        %v5093 = vmax.f32 %v4955, %v5061
        %v5094 = vmax.f32 %v5026, %v5062
        %v5095 = vmax.f32 %v5028, %v5063
        %v5096 = vmax.f32 %v4959, %v5064
        %v5097 = vmax.f32 %v4961, %v5065
        %v5098 = vmax.f32 %v5032, %v5066
        %v5099 = vmax.f32 %v5034, %v5067
        %v5100 = vmax.f32 %v4963, %v5068
        %v5101 = vmax.f32 %v4965, %v5069
        %v5102 = vmax.f32 %v5036, %v5070
        %v5103 = vmax.f32 %v5038, %v5071
        %v5104 = vpack.c.bf16 %v5076, %v5072
        %v5105 = vpack.c.bf16 %v5077, %v5073
        %v5106 = vpack.c.bf16 %v5078, %v5074
        %v5107 = vpack.c.bf16 %v5079, %v5075
        %v5108 = vpack.c.bf16 %v5084, %v5080
        %v5109 = vpack.c.bf16 %v5085, %v5081
        %v5110 = vpack.c.bf16 %v5086, %v5082
        %v5111 = vpack.c.bf16 %v5087, %v5083
        %v5112 = vpack.c.bf16 %v5092, %v5088
        %v5113 = vpack.c.bf16 %v5093, %v5089
        %v5114 = vpack.c.bf16 %v5094, %v5090
        %v5115 = vpack.c.bf16 %v5095, %v5091
        %v5116 = vpack.c.bf16 %v5100, %v5096
        %v5117 = vpack.c.bf16 %v5101, %v5097
        %v5118 = vpack.c.bf16 %v5102, %v5098
        %v5119 = vpack.c.bf16 %v5103, %v5099
        %v5120 = vld [vmem:[%s35] sm:$0xf]
        %v5121 = vld [vmem:[%s35 + $0x4] sm:$0xf]
        %v5122 = vld [vmem:[%s35 + $0x8] sm:$0xf]
        %v5123 = vld [vmem:[%s35 + $0xc] sm:$0xf]
        %v5124 = vld [vmem:[%s35 + $0x10] sm:$0xf]
        %v5125 = vld [vmem:[%s35 + $0x14] sm:$0xf]
        %v5126 = vld [vmem:[%s35 + $0x18] sm:$0xf]
        %v5127 = vld [vmem:[%s35 + $0x1c] sm:$0xf]
        %v5128 = vld [vmem:[%s35 + $0x20] sm:$0xf]
        %v5129 = vld [vmem:[%s35 + $0x24] sm:$0xf]
        %v5130 = vld [vmem:[%s35 + $0x28] sm:$0xf]
        %v5131 = vld [vmem:[%s35 + $0x2c] sm:$0xf]
        %v5132 = vld [vmem:[%s35 + $0x30] sm:$0xf]
        %v5133 = vld [vmem:[%s35 + $0x34] sm:$0xf]
        %v5134 = vld [vmem:[%s35 + $0x38] sm:$0xf]
        %v5135 = vld [vmem:[%s35 + $0x3c] sm:$0xf]
        %v5136 = vld [vmem:[%s35 + $0x40] sm:$0xf]
        %v5137 = vld [vmem:[%s35 + $0x44] sm:$0xf]
        %v5138 = vld [vmem:[%s35 + $0x48] sm:$0xf]
        %v5139 = vld [vmem:[%s35 + $0x4c] sm:$0xf]
        %v5140 = vld [vmem:[%s35 + $0x50] sm:$0xf]
        %v5141 = vld [vmem:[%s35 + $0x54] sm:$0xf]
        %v5142 = vld [vmem:[%s35 + $0x58] sm:$0xf]
        %v5143 = vld [vmem:[%s35 + $0x5c] sm:$0xf]
        %v5144 = vld [vmem:[%s35 + $0x60] sm:$0xf]
        %v5145 = vld [vmem:[%s35 + $0x64] sm:$0xf]
        %v5146 = vld [vmem:[%s35 + $0x68] sm:$0xf]
        %v5147 = vld [vmem:[%s35 + $0x6c] sm:$0xf]
        %v5148 = vld [vmem:[%s35 + $0x70] sm:$0xf]
        %v5149 = vld [vmem:[%s35 + $0x74] sm:$0xf]
        %v5150 = vld [vmem:[%s35 + $0x78] sm:$0xf]
        %v5151 = vld [vmem:[%s35 + $0x7c] sm:$0xf]
        %v5152 = vld [vmem:[%s35 + $0x80] sm:$0xf]
        %v5153 = vld [vmem:[%s35 + $0x84] sm:$0xf]
        %v5154 = vld [vmem:[%s35 + $0x88] sm:$0xf]
        %v5155 = vld [vmem:[%s35 + $0x8c] sm:$0xf]
        %v5156 = vld [vmem:[%s35 + $0x90] sm:$0xf]
        %v5157 = vld [vmem:[%s35 + $0x94] sm:$0xf]
        %v5158 = vld [vmem:[%s35 + $0x98] sm:$0xf]
        %v5159 = vld [vmem:[%s35 + $0x9c] sm:$0xf]
        %v5160 = vld [vmem:[%s35 + $0xa0] sm:$0xf]
        %v5161 = vld [vmem:[%s35 + $0xa4] sm:$0xf]
        %v5162 = vld [vmem:[%s35 + $0xa8] sm:$0xf]
        %v5163 = vld [vmem:[%s35 + $0xac] sm:$0xf]
        %v5164 = vld [vmem:[%s35 + $0xb0] sm:$0xf]
        %v5165 = vld [vmem:[%s35 + $0xb4] sm:$0xf]
        %v5166 = vld [vmem:[%s35 + $0xb8] sm:$0xf]
        %v5167 = vld [vmem:[%s35 + $0xbc] sm:$0xf]
        %v5168 = vld [vmem:[%s35 + $0xc0] sm:$0xf]
        %v5169 = vld [vmem:[%s35 + $0xc4] sm:$0xf]
        %v5170 = vld [vmem:[%s35 + $0xc8] sm:$0xf]
        %v5171 = vld [vmem:[%s35 + $0xcc] sm:$0xf]
        %v5172 = vld [vmem:[%s35 + $0xd0] sm:$0xf]
        %v5173 = vld [vmem:[%s35 + $0xd4] sm:$0xf]
        %v5174 = vld [vmem:[%s35 + $0xd8] sm:$0xf]
        %v5175 = vld [vmem:[%s35 + $0xdc] sm:$0xf]
        %v5176 = vld [vmem:[%s35 + $0xe0] sm:$0xf]
        %v5177 = vld [vmem:[%s35 + $0xe4] sm:$0xf]
        %v5178 = vld [vmem:[%s35 + $0xe8] sm:$0xf]
        %v5179 = vld [vmem:[%s35 + $0xec] sm:$0xf]
        %v5180 = vld [vmem:[%s35 + $0xf0] sm:$0xf]
        %v5181 = vld [vmem:[%s35 + $0xf4] sm:$0xf]
        %v5182 = vld [vmem:[%s35 + $0xf8] sm:$0xf]
        %v5183 = vld [vmem:[%s35 + $0xfc] sm:$0xf]
        %v5184 = vld [vmem:[%s37] sm:$0x1]
        %v5186 = vlaneseq
        %v5187 = vshrl.u32 %v5186, 7
        %v5188 = vsub.s32 0, %v5187
        %v5189 = vrot.slane %v5184, %v5188
        %v5255 = vunpack.c.l.b16 %v5120
        %v5256 = vunpack.c.l.b16 %v5121
        %v5257 = vunpack.c.l.b16 %v5122
        %v5258 = vunpack.c.l.b16 %v5123
        %v5259 = vunpack.c.l.b16 %v5124
        %v5260 = vunpack.c.l.b16 %v5125
        %v5261 = vunpack.c.l.b16 %v5126
        %v5262 = vunpack.c.l.b16 %v5127
        %v5263 = vunpack.c.l.b16 %v5128
        %v5264 = vunpack.c.l.b16 %v5129
        %v5265 = vunpack.c.l.b16 %v5130
        %v5266 = vunpack.c.l.b16 %v5131
        %v5267 = vunpack.c.l.b16 %v5132
        %v5268 = vunpack.c.l.b16 %v5133
        %v5269 = vunpack.c.l.b16 %v5134
        %v5270 = vunpack.c.l.b16 %v5135
        %v5271 = vunpack.c.l.b16 %v5136
        %v5272 = vunpack.c.l.b16 %v5137
        %v5273 = vunpack.c.l.b16 %v5138
        %v5274 = vunpack.c.l.b16 %v5139
        %v5275 = vunpack.c.l.b16 %v5140
        %v5276 = vunpack.c.l.b16 %v5141
        %v5277 = vunpack.c.l.b16 %v5142
        %v5278 = vunpack.c.l.b16 %v5143
        %v5279 = vunpack.c.l.b16 %v5144
        %v5280 = vunpack.c.l.b16 %v5145
        %v5281 = vunpack.c.l.b16 %v5146
        %v5282 = vunpack.c.l.b16 %v5147
        %v5283 = vunpack.c.l.b16 %v5148
        %v5284 = vunpack.c.l.b16 %v5149
        %v5285 = vunpack.c.l.b16 %v5150
        %v5286 = vunpack.c.l.b16 %v5151
        %v5287 = vunpack.c.l.b16 %v5152
        %v5288 = vunpack.c.l.b16 %v5153
        %v5289 = vunpack.c.l.b16 %v5154
        %v5290 = vunpack.c.l.b16 %v5155
        %v5291 = vunpack.c.l.b16 %v5156
        %v5292 = vunpack.c.l.b16 %v5157
        %v5293 = vunpack.c.l.b16 %v5158
        %v5294 = vunpack.c.l.b16 %v5159
        %v5295 = vunpack.c.l.b16 %v5160
        %v5296 = vunpack.c.l.b16 %v5161
        %v5297 = vunpack.c.l.b16 %v5162
        %v5298 = vunpack.c.l.b16 %v5163
        %v5299 = vunpack.c.l.b16 %v5164
        %v5300 = vunpack.c.l.b16 %v5165
        %v5301 = vunpack.c.l.b16 %v5166
        %v5302 = vunpack.c.l.b16 %v5167
        %v5303 = vunpack.c.l.b16 %v5168
        %v5304 = vunpack.c.l.b16 %v5169
        %v5305 = vunpack.c.l.b16 %v5170
        %v5306 = vunpack.c.l.b16 %v5171
        %v5307 = vunpack.c.l.b16 %v5172
        %v5308 = vunpack.c.l.b16 %v5173
        %v5309 = vunpack.c.l.b16 %v5174
        %v5310 = vunpack.c.l.b16 %v5175
        %v5311 = vunpack.c.l.b16 %v5176
        %v5312 = vunpack.c.l.b16 %v5177
        %v5313 = vunpack.c.l.b16 %v5178
        %v5314 = vunpack.c.l.b16 %v5179
        %v5315 = vunpack.c.l.b16 %v5180
        %v5316 = vunpack.c.l.b16 %v5181
        %v5317 = vunpack.c.l.b16 %v5182
        %v5318 = vunpack.c.l.b16 %v5183
        %v5319 = vpack.c.b16 %v5256, %v5255
        %v5320 = vpack.c.b16 %v5258, %v5257
        %v5321 = vpack.c.b16 %v5260, %v5259
        %v5322 = vpack.c.b16 %v5262, %v5261
        %v5323 = vpack.c.b16 %v5264, %v5263
        %v5324 = vpack.c.b16 %v5266, %v5265
        %v5325 = vpack.c.b16 %v5268, %v5267
        %v5326 = vpack.c.b16 %v5270, %v5269
        %v5327 = vpack.c.b16 %v5272, %v5271
        %v5328 = vpack.c.b16 %v5274, %v5273
        %v5329 = vpack.c.b16 %v5276, %v5275
        %v5330 = vpack.c.b16 %v5278, %v5277
        %v5331 = vpack.c.b16 %v5280, %v5279
        %v5332 = vpack.c.b16 %v5282, %v5281
        %v5333 = vpack.c.b16 %v5284, %v5283
        %v5334 = vpack.c.b16 %v5286, %v5285
        %v5335 = vpack.c.b16 %v5288, %v5287
        %v5336 = vpack.c.b16 %v5290, %v5289
        %v5337 = vpack.c.b16 %v5292, %v5291
        %v5338 = vpack.c.b16 %v5294, %v5293
        %v5339 = vpack.c.b16 %v5296, %v5295
        %v5340 = vpack.c.b16 %v5298, %v5297
        %v5341 = vpack.c.b16 %v5300, %v5299
        %v5342 = vpack.c.b16 %v5302, %v5301
        %v5343 = vpack.c.b16 %v5304, %v5303
        %v5344 = vpack.c.b16 %v5306, %v5305
        %v5345 = vpack.c.b16 %v5308, %v5307
        %v5346 = vpack.c.b16 %v5310, %v5309
        %v5347 = vpack.c.b16 %v5312, %v5311
        %v5348 = vpack.c.b16 %v5314, %v5313
        %v5349 = vpack.c.b16 %v5316, %v5315
        %v5350 = vpack.c.b16 %v5318, %v5317
        %5383 = vmatprep.subr.bf16.mxu0 0
        %5384 = vmatpush1.bf16.msra.mxu0 %v5319
        %5385 = vmatprep.subr.bf16.mxu0 0
        %5386 = vmatpush1.bf16.msra.mxu0 %v5320
        %5387 = vmatprep.subr.bf16.mxu0 0
        %5388 = vmatpush1.bf16.msra.mxu0 %v5321
        %5389 = vmatprep.subr.bf16.mxu0 0
        %5390 = vmatpush1.bf16.msra.mxu0 %v5322
        %5391 = vmatprep.subr.bf16.mxu0 0
        %5392 = vmatpush1.bf16.msra.mxu0 %v5323
        %5393 = vmatprep.subr.bf16.mxu0 0
        %5394 = vmatpush1.bf16.msra.mxu0 %v5324
        %5395 = vmatprep.subr.bf16.mxu0 0
        %5396 = vmatpush1.bf16.msra.mxu0 %v5325
        %5397 = vmatprep.subr.bf16.mxu0 0
        %5398 = vmatpush1.bf16.msra.mxu0 %v5326
        %5399 = vmatprep.subr.bf16.mxu0 0
        %5400 = vmatpush1.bf16.msra.mxu0 %v5327
        %5401 = vmatprep.subr.bf16.mxu0 0
        %5402 = vmatpush1.bf16.msra.mxu0 %v5328
        %5403 = vmatprep.subr.bf16.mxu0 0
        %5404 = vmatpush1.bf16.msra.mxu0 %v5329
        %5405 = vmatprep.subr.bf16.mxu0 0
        %5406 = vmatpush1.bf16.msra.mxu0 %v5330
        %5407 = vmatprep.subr.bf16.mxu0 0
        %5408 = vmatpush1.bf16.msra.mxu0 %v5331
        %5409 = vmatprep.subr.bf16.mxu0 0
        %5410 = vmatpush1.bf16.msra.mxu0 %v5332
        %5411 = vmatprep.subr.bf16.mxu0 0
        %5412 = vmatpush1.bf16.msra.mxu0 %v5333
        %5413 = vmatprep.subr.bf16.mxu0 0
        %5414 = vmatpush1.bf16.msra.mxu0 %v5334
        %5415 = vmatprep.mubr.bf16.mxu0 %v5105
        %5416 = vmatmul.mubr.bf16.gmra.mrb[0].mxu0 %v5104
        %v5417 = vpop.f32.mrb[0].mxu0
        %v5418 = vadd.f32 %v5189, %v5417
        %v5419 = vpop.f32.mrb[0].mxu0
        %v5420 = vpop.f32.mrb[0].mxu0
        %v5421 = vadd.f32 %v5189, %v5420
        %v5422 = vpop.f32.mrb[0].mxu0
        %5423 = vmatprep.mubr.bf16.mxu0 %v5109
        %5424 = vmatmul.mubr.bf16.gmra.mrb[0].mxu0 %v5108
        %v5425 = vpop.f32.mrb[0].mxu0
        %v5426 = vadd.f32 %v5189, %v5425
        %v5427 = vpop.f32.mrb[0].mxu0
        %v5428 = vpop.f32.mrb[0].mxu0
        %v5429 = vadd.f32 %v5189, %v5428
        %v5430 = vpop.f32.mrb[0].mxu0
        %5431 = vmatprep.mubr.bf16.mxu0 %v5113
        %5432 = vmatmul.mubr.bf16.gmra.mrb[0].mxu0 %v5112
        %v5433 = vpop.f32.mrb[0].mxu0
        %v5434 = vadd.f32 %v5189, %v5433
        %v5435 = vpop.f32.mrb[0].mxu0
        %v5436 = vpop.f32.mrb[0].mxu0
        %v5437 = vadd.f32 %v5189, %v5436
        %v5438 = vpop.f32.mrb[0].mxu0
        %5439 = vmatprep.mubr.bf16.mxu0 %v5117
        %5440 = vmatmul.mubr.bf16.gmra.mrb[0].mxu0 %v5116
        %v5441 = vpop.f32.mrb[0].mxu0
        %v5442 = vadd.f32 %v5189, %v5441
        %v5443 = vpop.f32.mrb[0].mxu0
        %v5444 = vpop.f32.mrb[0].mxu0
        %v5445 = vadd.f32 %v5189, %v5444
        %v5446 = vpop.f32.mrb[0].mxu0
        %5447 = vdwg.mxu0
        %5448 = vmatprep.subr.bf16.mxu0 0
        %5449 = vmatpush1.bf16.msra.mxu0 %v5335
        %5450 = vmatprep.subr.bf16.mxu0 0
        %5451 = vmatpush1.bf16.msra.mxu0 %v5336
        %5452 = vmatprep.subr.bf16.mxu0 0
        %5453 = vmatpush1.bf16.msra.mxu0 %v5337
        %5454 = vmatprep.subr.bf16.mxu0 0
        %5455 = vmatpush1.bf16.msra.mxu0 %v5338
        %5456 = vmatprep.subr.bf16.mxu0 0
        %5457 = vmatpush1.bf16.msra.mxu0 %v5339
        %5458 = vmatprep.subr.bf16.mxu0 0
        %5459 = vmatpush1.bf16.msra.mxu0 %v5340
        %5460 = vmatprep.subr.bf16.mxu0 0
        %5461 = vmatpush1.bf16.msra.mxu0 %v5341
        %5462 = vmatprep.subr.bf16.mxu0 0
        %5463 = vmatpush1.bf16.msra.mxu0 %v5342
        %5464 = vmatprep.subr.bf16.mxu0 0
        %5465 = vmatpush1.bf16.msra.mxu0 %v5343
        %5466 = vmatprep.subr.bf16.mxu0 0
        %5467 = vmatpush1.bf16.msra.mxu0 %v5344
        %5468 = vmatprep.subr.bf16.mxu0 0
        %5469 = vmatpush1.bf16.msra.mxu0 %v5345
        %5470 = vmatprep.subr.bf16.mxu0 0
        %5471 = vmatpush1.bf16.msra.mxu0 %v5346
        %5472 = vmatprep.subr.bf16.mxu0 0
        %5473 = vmatpush1.bf16.msra.mxu0 %v5347
        %5474 = vmatprep.subr.bf16.mxu0 0
        %5475 = vmatpush1.bf16.msra.mxu0 %v5348
        %5476 = vmatprep.subr.bf16.mxu0 0
        %5477 = vmatpush1.bf16.msra.mxu0 %v5349
        %5478 = vmatprep.subr.bf16.mxu0 0
        %5479 = vmatpush1.bf16.msra.mxu0 %v5350
        %5480 = vmatprep.mubr.bf16.mxu0 %v5107
        %5481 = vmatmul.mubr.bf16.gmra.mrb[0].mxu0 %v5106
        %v5482 = vpop.f32.mrb[0].mxu0
        %v5483 = vadd.f32 %v5418, %v5482
        %v5484 = vpop.f32.mrb[0].mxu0
        %v5485 = vpop.f32.mrb[0].mxu0
        %v5486 = vadd.f32 %v5421, %v5485
        %v5487 = vpop.f32.mrb[0].mxu0
        %5488 = vmatprep.mubr.bf16.mxu0 %v5111
        %5489 = vmatmul.mubr.bf16.gmra.mrb[0].mxu0 %v5110
        %v5490 = vpop.f32.mrb[0].mxu0
        %v5491 = vadd.f32 %v5426, %v5490
        %v5492 = vpop.f32.mrb[0].mxu0
        %v5493 = vpop.f32.mrb[0].mxu0
        %v5494 = vadd.f32 %v5429, %v5493
        %v5495 = vpop.f32.mrb[0].mxu0
        %5496 = vmatprep.mubr.bf16.mxu0 %v5115
        %5497 = vmatmul.mubr.bf16.gmra.mrb[0].mxu0 %v5114
        %v5498 = vpop.f32.mrb[0].mxu0
        %v5499 = vadd.f32 %v5434, %v5498
        %v5500 = vpop.f32.mrb[0].mxu0
        %v5501 = vpop.f32.mrb[0].mxu0
        %v5502 = vadd.f32 %v5437, %v5501
        %v5503 = vpop.f32.mrb[0].mxu0
        %5504 = vmatprep.mubr.bf16.mxu0 %v5119
        %5505 = vmatmul.mubr.bf16.gmra.mrb[0].mxu0 %v5118
        %v5506 = vpop.f32.mrb[0].mxu0
        %v5507 = vadd.f32 %v5442, %v5506
        %v5508 = vpop.f32.mrb[0].mxu0
        %v5509 = vpop.f32.mrb[0].mxu0
        %v5510 = vadd.f32 %v5445, %v5509
        %v5511 = vpop.f32.mrb[0].mxu0
        %5512 = vdwg.mxu0
        %v5513 = vmul.f32 %v5483, 0.01
        %v5514 = vmul.f32 %v5486, 0.01
        %v5515 = vmul.f32 %v5491, 0.01
        %v5516 = vmul.f32 %v5494, 0.01
        %v5517 = vmul.f32 %v5499, 0.01
        %v5518 = vmul.f32 %v5502, 0.01
        %v5519 = vmul.f32 %v5507, 0.01
        %v5520 = vmul.f32 %v5510, 0.01
        %v5521 = vmax.f32 %v5483, %v5513
        %v5522 = vmax.f32 %v5486, %v5514
        %v5523 = vmax.f32 %v5491, %v5515
        %v5524 = vmax.f32 %v5494, %v5516
        %v5525 = vmax.f32 %v5499, %v5517
        %v5526 = vmax.f32 %v5502, %v5518
        %v5527 = vmax.f32 %v5507, %v5519
        %v5528 = vmax.f32 %v5510, %v5520
        %vm5529 = vcmask 523264
        %v5530 = vsel %vm5529, %v4472, 0.0
        %v5531 = vsel %vm5529, %v4473, 0.0
        %v5532 = vadd.f32 %v5530, %v5531
        %v5533 = vsel %vm5529, %v4474, 0.0
        %v5534 = vadd.f32 %v5532, %v5533
        %v5535 = vsel %vm5529, %v4475, 0.0
        %v5536 = vadd.f32 %v5534, %v5535
        %v5537 = vsel %vm5529, %v4476, 0.0
        %v5538 = vadd.f32 %v5536, %v5537
        %v5539 = vsel %vm5529, %v4477, 0.0
        %v5540 = vadd.f32 %v5538, %v5539
        %v5541 = vsel %vm5529, %v4478, 0.0
        %v5542 = vadd.f32 %v5540, %v5541
        %v5543 = vsel %vm5529, %v4479, 0.0
        %v5544 = vadd.f32 %v5542, %v5543
        %v5545 = vrot.slane %v5544, 4
        %v5546 = vadd.f32 %v5544, %v5545
        %v5547 = vrot.slane %v5546, 2
        %v5548 = vadd.f32 %v5546, %v5547
        %v5549 = vrot.slane %v5548, 1
        %v5550 = vadd.f32 %v5548, %v5549
        %v5551 = vrcp.pop 64.0
        %v5552 = vmul.f32 %v5550, %v5551
        %v5553 = vsel %vm5529, %v5521, -inf
        %v5554 = vsel %vm5529, %v5522, -inf
        %v5555 = vsel %vm5529, %v5523, -inf
        %v5556 = vsel %vm5529, %v5524, -inf
        %v5557 = vsel %vm5529, %v5525, -inf
        %v5558 = vmax.f32 %v5553, %v5557
        %v5559 = vsel %vm5529, %v5526, -inf
        %v5560 = vmax.f32 %v5554, %v5559
        %v5561 = vsel %vm5529, %v5527, -inf
        %v5562 = vmax.f32 %v5555, %v5561
        %v5563 = vsel %vm5529, %v5528, -inf
        %v5564 = vmax.f32 %v5556, %v5563
        %v5565 = vmax.f32 %v5558, %v5560
        %v5566 = vmax.f32 %v5562, %v5564
        %v5567 = vmax.f32 %v5565, %v5566
        %v5568 = vrot.slane %v5567, 4
        %v5569 = vmax.f32 %v5567, %v5568
        %v5570 = vrot.slane %v5569, 2
        %v5571 = vmax.f32 %v5569, %v5570
        %v5572 = vrot.slane %v5571, 1
        %v5573 = vmax.f32 %v5571, %v5572
        %v5574 = vpack.c.bf16 %v4473, %v4472
        %v5575 = vpack.c.bf16 %v4475, %v4474
        %v5576 = vpack.c.bf16 %v4477, %v4476
        %v5577 = vpack.c.bf16 %v4479, %v4478
        %v5578 = vld [vmem:[%s39] sm:$0xf]
        %v5579 = vld [vmem:[%s39 + $0x4] sm:$0xf]
        %v5580 = vld [vmem:[%s39 + $0x8] sm:$0xf]
        %v5581 = vld [vmem:[%s39 + $0xc] sm:$0xf]
        %v5582 = vld [vmem:[%s39 + $0x10] sm:$0xf]
        %v5583 = vld [vmem:[%s39 + $0x14] sm:$0xf]
        %v5584 = vld [vmem:[%s39 + $0x18] sm:$0xf]
        %v5585 = vld [vmem:[%s39 + $0x1c] sm:$0xf]
        %v5586 = vpack.c.bf16 %v5522, %v5521
        %v5587 = vpack.c.bf16 %v5524, %v5523
        %v5588 = vpack.c.bf16 %v5526, %v5525
        %v5589 = vpack.c.bf16 %v5528, %v5527
        %v5590 = vld [vmem:[%s41] sm:$0xf]
        %v5591 = vld [vmem:[%s41 + $0x4] sm:$0xf]
        %v5592 = vld [vmem:[%s41 + $0x8] sm:$0xf]
        %v5593 = vld [vmem:[%s41 + $0xc] sm:$0xf]
        %v5594 = vld [vmem:[%s41 + $0x10] sm:$0xf]
        %v5595 = vld [vmem:[%s41 + $0x14] sm:$0xf]
        %v5596 = vld [vmem:[%s41 + $0x18] sm:$0xf]
        %v5597 = vld [vmem:[%s41 + $0x1c] sm:$0xf]
        %v5606 = vunpack.c.l.b16 %v5590
        %v5607 = vunpack.c.l.b16 %v5591
        %v5608 = vunpack.c.l.b16 %v5592
        %v5609 = vunpack.c.l.b16 %v5593
        %v5610 = vunpack.c.l.b16 %v5594
        %v5611 = vunpack.c.l.b16 %v5595
        %v5612 = vunpack.c.l.b16 %v5596
        %v5613 = vunpack.c.l.b16 %v5597
        %v5614 = vpack.c.b16 %v5607, %v5606
        %v5615 = vpack.c.b16 %v5609, %v5608
        %v5616 = vpack.c.b16 %v5611, %v5610
        %v5617 = vpack.c.b16 %v5613, %v5612
        %v5623 = vsel %vm5529, %v5586, 0
        %v5626 = vsel %vm5529, %v5587, 0
        %v5629 = vsel %vm5529, %v5588, 0
        %v5632 = vsel %vm5529, %v5589, 0
        %5634 = vmatprep.subr.bf16.mxu0 0
        %5635 = vmatpush1.bf16.msra.mxu0 %v5614
        %5636 = vmatprep.subr.bf16.mxu0 0
        %5637 = vmatpush1.bf16.msra.mxu0 %v5615
        %5638 = vmatprep.subr.bf16.mxu0 0
        %5639 = vmatpush1.bf16.msra.mxu0 %v5616
        %5640 = vmatprep.subr.bf16.mxu0 0
        %5641 = vmatpush1.bf16.msra.mxu0 %v5617
        %5642 = vmatprep.subr.bf16.mxu0 0
        %5643 = vmatpush1.bf16.msra.mxu0 0
        %5644 = vmatprep.subr.bf16.mxu0 0
        %5645 = vmatpush1.bf16.msra.mxu0 0
        %5646 = vmatprep.subr.bf16.mxu0 0
        %5647 = vmatpush1.bf16.msra.mxu0 0
        %5648 = vmatprep.subr.bf16.mxu0 0
        %5649 = vmatpush1.bf16.msra.mxu0 0
        %5650 = vmatprep.subr.bf16.mxu0 0
        %5651 = vmatpush1.bf16.msra.mxu0 0
        %5652 = vmatprep.subr.bf16.mxu0 0
        %5653 = vmatpush1.bf16.msra.mxu0 0
        %5654 = vmatprep.subr.bf16.mxu0 0
        %5655 = vmatpush1.bf16.msra.mxu0 0
        %5656 = vmatprep.subr.bf16.mxu0 0
        %5657 = vmatpush1.bf16.msra.mxu0 0
        %5658 = vmatprep.subr.bf16.mxu0 0
        %5659 = vmatpush1.bf16.msra.mxu0 0
        %5660 = vmatprep.subr.bf16.mxu0 0
        %5661 = vmatpush1.bf16.msra.mxu0 0
        %5662 = vmatprep.subr.bf16.mxu0 0
        %5663 = vmatpush1.bf16.msra.mxu0 0
        %5664 = vmatprep.subr.bf16.mxu0 0
        %5665 = vmatpush1.bf16.msra.mxu0 0
        %5666 = vmatprep.mubr.bf16.mxu0 0
        %5667 = vmatmul.mubr.bf16.gmra.mrb[0].mxu0 %v5623
        %v5668 = vpop.f32.mrb[0].mxu0
        %v5669 = vadd.f32 0.0, %v5668
        %v5670 = vpop.f32.mrb[0].mxu0
        %v5671 = vpop.f32.mrb[0].mxu0
        %v5672 = vadd.f32 0.0, %v5671
        %v5673 = vpop.f32.mrb[0].mxu0
        %5674 = vmatprep.mubr.bf16.mxu0 0
        %5675 = vmatmul.mubr.bf16.gmra.mrb[0].mxu0 %v5626
        %v5676 = vpop.f32.mrb[0].mxu0
        %v5677 = vadd.f32 0.0, %v5676
        %v5678 = vpop.f32.mrb[0].mxu0
        %v5679 = vpop.f32.mrb[0].mxu0
        %v5680 = vadd.f32 0.0, %v5679
        %v5681 = vpop.f32.mrb[0].mxu0
        %5682 = vmatprep.mubr.bf16.mxu0 0
        %5683 = vmatmul.mubr.bf16.gmra.mrb[0].mxu0 %v5629
        %v5684 = vpop.f32.mrb[0].mxu0
        %v5685 = vadd.f32 0.0, %v5684
        %v5686 = vpop.f32.mrb[0].mxu0
        %v5687 = vpop.f32.mrb[0].mxu0
        %v5688 = vadd.f32 0.0, %v5687
        %v5689 = vpop.f32.mrb[0].mxu0
        %5690 = vmatprep.mubr.bf16.mxu0 0
        %5691 = vmatmul.mubr.bf16.gmra.mrb[0].mxu0 %v5632
        %v5692 = vpop.f32.mrb[0].mxu0
        %v5693 = vadd.f32 0.0, %v5692
        %v5694 = vpop.f32.mrb[0].mxu0
        %v5695 = vpop.f32.mrb[0].mxu0
        %v5696 = vadd.f32 0.0, %v5695
        %v5697 = vpop.f32.mrb[0].mxu0
        %5698 = vdwg.mxu0
        %v5707 = vunpack.c.l.b16 %v5578
        %v5708 = vunpack.c.l.b16 %v5579
        %v5709 = vunpack.c.l.b16 %v5580
        %v5710 = vunpack.c.l.b16 %v5581
        %v5711 = vunpack.c.l.b16 %v5582
        %v5712 = vunpack.c.l.b16 %v5583
        %v5713 = vunpack.c.l.b16 %v5584
        %v5714 = vunpack.c.l.b16 %v5585
        %v5715 = vpack.c.b16 %v5708, %v5707
        %v5716 = vpack.c.b16 %v5710, %v5709
        %v5717 = vpack.c.b16 %v5712, %v5711
        %v5718 = vpack.c.b16 %v5714, %v5713
        %v5724 = vsel %vm5529, %v5574, 0
        %v5727 = vsel %vm5529, %v5575, 0
        %v5730 = vsel %vm5529, %v5576, 0
        %v5733 = vsel %vm5529, %v5577, 0
        %5735 = vmatprep.subr.bf16.mxu0 0
        %5736 = vmatpush1.bf16.msra.mxu0 %v5715
        %5737 = vmatprep.subr.bf16.mxu0 0
        %5738 = vmatpush1.bf16.msra.mxu0 %v5716
        %5739 = vmatprep.subr.bf16.mxu0 0
        %5740 = vmatpush1.bf16.msra.mxu0 %v5717
        %5741 = vmatprep.subr.bf16.mxu0 0
        %5742 = vmatpush1.bf16.msra.mxu0 %v5718
        %5743 = vmatprep.subr.bf16.mxu0 0
        %5744 = vmatpush1.bf16.msra.mxu0 0
        %5745 = vmatprep.subr.bf16.mxu0 0
        %5746 = vmatpush1.bf16.msra.mxu0 0
        %5747 = vmatprep.subr.bf16.mxu0 0
        %5748 = vmatpush1.bf16.msra.mxu0 0
        %5749 = vmatprep.subr.bf16.mxu0 0
        %5750 = vmatpush1.bf16.msra.mxu0 0
        %5751 = vmatprep.subr.bf16.mxu0 0
        %5752 = vmatpush1.bf16.msra.mxu0 0
        %5753 = vmatprep.subr.bf16.mxu0 0
        %5754 = vmatpush1.bf16.msra.mxu0 0
        %5755 = vmatprep.subr.bf16.mxu0 0
        %5756 = vmatpush1.bf16.msra.mxu0 0
        %5757 = vmatprep.subr.bf16.mxu0 0
        %5758 = vmatpush1.bf16.msra.mxu0 0
        %5759 = vmatprep.subr.bf16.mxu0 0
        %5760 = vmatpush1.bf16.msra.mxu0 0
        %5761 = vmatprep.subr.bf16.mxu0 0
        %5762 = vmatpush1.bf16.msra.mxu0 0
        %5763 = vmatprep.subr.bf16.mxu0 0
        %5764 = vmatpush1.bf16.msra.mxu0 0
        %5765 = vmatprep.subr.bf16.mxu0 0
        %5766 = vmatpush1.bf16.msra.mxu0 0
        %5767 = vmatprep.mubr.bf16.mxu0 0
        %5768 = vmatmul.mubr.bf16.gmra.mrb[0].mxu0 %v5724
        %v5769 = vpop.f32.mrb[0].mxu0
        %v5770 = vadd.f32 %v5669, %v5769
        %v5771 = vpop.f32.mrb[0].mxu0
        %v5772 = vpop.f32.mrb[0].mxu0
        %v5773 = vadd.f32 %v5672, %v5772
        %v5774 = vpop.f32.mrb[0].mxu0
        %5775 = vmatprep.mubr.bf16.mxu0 0
        %5776 = vmatmul.mubr.bf16.gmra.mrb[0].mxu0 %v5727
        %v5777 = vpop.f32.mrb[0].mxu0
        %v5778 = vadd.f32 %v5677, %v5777
        %v5779 = vpop.f32.mrb[0].mxu0
        %v5780 = vpop.f32.mrb[0].mxu0
        %v5781 = vadd.f32 %v5680, %v5780
        %v5782 = vpop.f32.mrb[0].mxu0
        %5783 = vmatprep.mubr.bf16.mxu0 0
        %5784 = vmatmul.mubr.bf16.gmra.mrb[0].mxu0 %v5730
        %v5785 = vpop.f32.mrb[0].mxu0
        %v5786 = vadd.f32 %v5685, %v5785
        %v5787 = vpop.f32.mrb[0].mxu0
        %v5788 = vpop.f32.mrb[0].mxu0
        %v5789 = vadd.f32 %v5688, %v5788
        %v5790 = vpop.f32.mrb[0].mxu0
        %5791 = vmatprep.mubr.bf16.mxu0 0
        %5792 = vmatmul.mubr.bf16.gmra.mrb[0].mxu0 %v5733
        %v5793 = vpop.f32.mrb[0].mxu0
        %v5794 = vadd.f32 %v5693, %v5793
        %v5795 = vpop.f32.mrb[0].mxu0
        %v5796 = vpop.f32.mrb[0].mxu0
        %v5797 = vadd.f32 %v5696, %v5796
        %v5798 = vpop.f32.mrb[0].mxu0
        %5799 = vdwg.mxu0
        %v5800 = vld [vmem:[#allocation2] sm:$0x1]
        %v5802 = vlaneseq
        %v5803 = vshrl.u32 %v5802, 7
        %v5804 = vsub.s32 0, %v5803
        %v5805 = vrot.slane %v5800, %v5804
        %v5807 = vadd.f32 %v5770, %v5805
        %v5808 = vadd.f32 %v5773, %v5805
        %v5809 = vadd.f32 %v5778, %v5805
        %v5810 = vadd.f32 %v5781, %v5805
        %v5811 = vadd.f32 %v5786, %v5805
        %v5812 = vadd.f32 %v5789, %v5805
        %v5813 = vadd.f32 %v5794, %v5805
        %v5814 = vadd.f32 %v5797, %v5805
        %vm5815 = vcmask 7168
        %v5816 = vsel %vm5815, %v5807, -inf
        %v5817 = vsel %vm5815, %v5808, -inf
        %v5818 = vsel %vm5815, %v5809, -inf
        %v5819 = vsel %vm5815, %v5810, -inf
        %v5820 = vsel %vm5815, %v5811, -inf
        %v5821 = vmax.f32 %v5816, %v5820
        %v5822 = vsel %vm5815, %v5812, -inf
        %v5823 = vmax.f32 %v5817, %v5822
        %v5824 = vsel %vm5815, %v5813, -inf
        %v5825 = vmax.f32 %v5818, %v5824
        %v5826 = vsel %vm5815, %v5814, -inf
        %v5827 = vmax.f32 %v5819, %v5826
        %v5828 = vmax.f32 %v5821, %v5823
        %v5829 = vmax.f32 %v5825, %v5827
        %v5830 = vmax.f32 %v5828, %v5829
        %v5831 = vrot.slane %v5830, 4
        %v5832 = vmax.f32 %v5830, %v5831
        %v5833 = vrot.slane %v5832, 2
        %v5834 = vmax.f32 %v5832, %v5833
        %v5835 = vrot.slane %v5834, 1
        %v5836 = vmax.f32 %v5834, %v5835
        %v5837 = vsub.f32 %v5807, %v5836
        %v5838 = vsub.f32 %v5808, %v5836
        %v5839 = vsub.f32 %v5809, %v5836
        %v5840 = vsub.f32 %v5810, %v5836
        %v5841 = vsub.f32 %v5811, %v5836
        %v5842 = vsub.f32 %v5812, %v5836
        %v5843 = vsub.f32 %v5813, %v5836
        %v5844 = vsub.f32 %v5814, %v5836
        %v5845 = vmul.f32 %v5837, 1.442695
        %v5846 = vpow.pop %v5845
        %v5847 = vmul.f32 %v5838, 1.442695
        %v5848 = vpow.pop %v5847
        %v5849 = vmul.f32 %v5839, 1.442695
        %v5850 = vpow.pop %v5849
        %v5851 = vmul.f32 %v5840, 1.442695
        %v5852 = vpow.pop %v5851
        %v5853 = vmul.f32 %v5841, 1.442695
        %v5854 = vpow.pop %v5853
        %v5855 = vmul.f32 %v5842, 1.442695
        %v5856 = vpow.pop %v5855
        %v5857 = vmul.f32 %v5843, 1.442695
        %v5858 = vpow.pop %v5857
        %v5859 = vmul.f32 %v5844, 1.442695
        %v5860 = vpow.pop %v5859
        %v5861 = vsel %vm5815, %v5846, 0.0
        %v5862 = vsel %vm5815, %v5848, 0.0
        %v5863 = vadd.f32 %v5861, %v5862
        %v5864 = vsel %vm5815, %v5850, 0.0
        %v5865 = vadd.f32 %v5863, %v5864
        %v5866 = vsel %vm5815, %v5852, 0.0
        %v5867 = vadd.f32 %v5865, %v5866
        %v5868 = vsel %vm5815, %v5854, 0.0
        %v5869 = vadd.f32 %v5867, %v5868
        %v5870 = vsel %vm5815, %v5856, 0.0
        %v5871 = vadd.f32 %v5869, %v5870
        %v5872 = vsel %vm5815, %v5858, 0.0
        %v5873 = vadd.f32 %v5871, %v5872
        %v5874 = vsel %vm5815, %v5860, 0.0
        %v5875 = vadd.f32 %v5873, %v5874
        %v5876 = vrot.slane %v5875, 4
        %v5877 = vadd.f32 %v5875, %v5876
        %v5878 = vrot.slane %v5877, 2
        %v5879 = vadd.f32 %v5877, %v5878
        %v5880 = vrot.slane %v5879, 1
        %v5881 = vadd.f32 %v5879, %v5880
        %v5882 = vrcp.pop %v5881
        %v5883 = vmul.f32 %v5846, %v5882
        %v5884 = vmul.f32 %v5848, %v5882
        %v5885 = vmul.f32 %v5850, %v5882
        %v5886 = vmul.f32 %v5852, %v5882
        %v5887 = vmul.f32 %v5854, %v5882
        %v5888 = vmul.f32 %v5856, %v5882
        %v5889 = vmul.f32 %v5858, %v5882
        %v5890 = vmul.f32 %v5860, %v5882
        %5892 = vset.pattern.permute.xlu0 0
        %5893 = vperm.xlu0 %5892, %v5883
        %v5894 = vpop.permute.xlu0 %5893
        %5897 = vset.pattern.permute.xlu0 0
        %5898 = vperm.xlu0 %5897, %v5884
        %v5899 = vpop.permute.xlu0 %5898
        %5902 = vset.pattern.permute.xlu0 0
        %5903 = vperm.xlu0 %5902, %v5885
        %v5904 = vpop.permute.xlu0 %5903
        %5907 = vset.pattern.permute.xlu0 0
        %5908 = vperm.xlu0 %5907, %v5886
        %v5909 = vpop.permute.xlu0 %5908
        %5912 = vset.pattern.permute.xlu0 0
        %5913 = vperm.xlu0 %5912, %v5887
        %v5914 = vpop.permute.xlu0 %5913
        %5917 = vset.pattern.permute.xlu0 0
        %5918 = vperm.xlu0 %5917, %v5888
        %v5919 = vpop.permute.xlu0 %5918
        %5922 = vset.pattern.permute.xlu0 0
        %5923 = vperm.xlu0 %5922, %v5889
        %v5924 = vpop.permute.xlu0 %5923
        %5927 = vset.pattern.permute.xlu0 0
        %5928 = vperm.xlu0 %5927, %v5890
        %v5929 = vpop.permute.xlu0 %5928
        %v5931 = vmul.f32 %v5894, %v2237
        %v5932 = vmul.f32 %v5894, %v2238
        %v5933 = vmul.f32 %v5894, %v2239
        %v5934 = vmul.f32 %v5894, %v2240
        %v5935 = vmul.f32 %v5899, %v2241
        %v5936 = vmul.f32 %v5899, %v2242
        %v5937 = vmul.f32 %v5899, %v2243
        %v5938 = vmul.f32 %v5899, %v2244
        %v5939 = vmul.f32 %v5904, %v2245
        %v5940 = vmul.f32 %v5904, %v2246
        %v5941 = vmul.f32 %v5904, %v2247
        %v5942 = vmul.f32 %v5904, %v2248
        %v5943 = vmul.f32 %v5909, %v2249
        %v5944 = vmul.f32 %v5909, %v2250
        %v5945 = vmul.f32 %v5909, %v2251
        %v5946 = vmul.f32 %v5909, %v2252
        %v5947 = vmul.f32 %v5914, %v2253
        %v5948 = vmul.f32 %v5914, %v2254
        %v5949 = vmul.f32 %v5914, %v2255
        %v5950 = vmul.f32 %v5914, %v2256
        %v5951 = vmul.f32 %v5919, %v2257
        %v5952 = vmul.f32 %v5919, %v2258
        %v5953 = vmul.f32 %v5919, %v2259
        %v5954 = vmul.f32 %v5919, %v2260
        %v5955 = vmul.f32 %v5924, %v2261
        %v5956 = vmul.f32 %v5924, %v2262
        %v5957 = vmul.f32 %v5924, %v2263
        %v5958 = vmul.f32 %v5924, %v2264
        %v5959 = vmul.f32 %v5929, %v2265
        %v5960 = vmul.f32 %v5929, %v2266
        %v5961 = vmul.f32 %v5929, %v2267
        %v5962 = vmul.f32 %v5929, %v2268
        %v5963 = vadd.f32 %v5931, %v5935
        %v5964 = vadd.f32 %v5963, %v5939
        %v5965 = vadd.f32 %v5964, %v5943
        %v5966 = vadd.f32 %v5965, %v5947
        %v5967 = vadd.f32 %v5966, %v5951
        %v5968 = vadd.f32 %v5967, %v5955
        %v5969 = vadd.f32 %v5968, %v5959
        %v5970 = vrot.slane %v5969, 4
        %v5971 = vadd.f32 %v5969, %v5970
        %v5972 = vrot.slane %v5971, 2
        %v5973 = vadd.f32 %v5971, %v5972
        %v5974 = vrot.slane %v5973, 1
        %v5975 = vadd.f32 %v5973, %v5974
        %v5976 = vadd.f32 %v5932, %v5936
        %v5977 = vadd.f32 %v5976, %v5940
        %v5978 = vadd.f32 %v5977, %v5944
        %v5979 = vadd.f32 %v5978, %v5948
        %v5980 = vadd.f32 %v5979, %v5952
        %v5981 = vadd.f32 %v5980, %v5956
        %v5982 = vadd.f32 %v5981, %v5960
        %v5983 = vrot.slane %v5982, 4
        %v5984 = vadd.f32 %v5982, %v5983
        %v5985 = vrot.slane %v5984, 2
        %v5986 = vadd.f32 %v5984, %v5985
        %v5987 = vrot.slane %v5986, 1
        %v5988 = vadd.f32 %v5986, %v5987
        %v5989 = vadd.f32 %v5933, %v5937
        %v5990 = vadd.f32 %v5989, %v5941
        %v5991 = vadd.f32 %v5990, %v5945
        %v5992 = vadd.f32 %v5991, %v5949
        %v5993 = vadd.f32 %v5992, %v5953
        %v5994 = vadd.f32 %v5993, %v5957
        %v5995 = vadd.f32 %v5994, %v5961
        %v5996 = vrot.slane %v5995, 4
        %v5997 = vadd.f32 %v5995, %v5996
        %v5998 = vrot.slane %v5997, 2
        %v5999 = vadd.f32 %v5997, %v5998
        %v6000 = vrot.slane %v5999, 1
        %v6001 = vadd.f32 %v5999, %v6000
        %v6002 = vadd.f32 %v5934, %v5938
        %v6003 = vadd.f32 %v6002, %v5942
        %v6004 = vadd.f32 %v6003, %v5946
        %v6005 = vadd.f32 %v6004, %v5950
        %v6006 = vadd.f32 %v6005, %v5954
        %v6007 = vadd.f32 %v6006, %v5958
        %v6008 = vadd.f32 %v6007, %v5962
        %v6009 = vrot.slane %v6008, 4
        %v6010 = vadd.f32 %v6008, %v6009
        %v6011 = vrot.slane %v6010, 2
        %v6012 = vadd.f32 %v6010, %v6011
        %v6013 = vrot.slane %v6012, 1
        %v6014 = vadd.f32 %v6012, %v6013
        %v6015 = vld [vmem:[%s1296] sm:$0xff]
        %v6016 = vld [vmem:[%s1296 + $0x8] sm:$0xff]
        %v6017 = vld [vmem:[%s1296 + $0x10] sm:$0xff]
        %v6018 = vld [vmem:[%s1296 + $0x18] sm:$0xff]
        %v6019 = vld [vmem:[%s1296 + $0x20] sm:$0xff]
        %v6020 = vld [vmem:[%s1296 + $0x28] sm:$0xff]
        %v6021 = vld [vmem:[%s1296 + $0x30] sm:$0xff]
        %v6022 = vld [vmem:[%s1296 + $0x38] sm:$0xff]
        %v6023 = vpack.c.bf16 %v6016, %v6015
        %v6024 = vpack.c.bf16 %v6018, %v6017
        %v6025 = vpack.c.bf16 %v6020, %v6019
        %v6026 = vpack.c.bf16 %v6022, %v6021
        %v6027 = vld [vmem:[%s45] sm:$0xff]
        %v6028 = vld [vmem:[%s47] sm:$0x3]
        %v6030 = vlaneseq
        %v6031 = vshrl.u32 %v6030, 7
        %v6032 = vsub.s32 0, %v6031
        %v6033 = vrot.slane %v6028, %v6032
        %v6034 = vlaneseq
        %v6035 = vshrl.u32 %v6034, 7
        %v6036 = vsub.s32 1, %v6035
        %v6037 = vrot.slane %v6028, %v6036
        %v6041 = vunpack.c.l.b16 %v6027
        %v6042 = vunpack.c.h.b16 %v6027
        %v6043 = vpack.c.b16 %v6041, %v6041
        %v6044 = vpack.c.b16 %v6042, %v6042
        %vm6045 = vcmask 64512
        %v6047 = vsel %vm6045, %v6023, 0
        %v6050 = vsel %vm6045, %v6024, 0
        %v6053 = vsel %vm6045, %v6025, 0
        %v6056 = vsel %vm6045, %v6026, 0
        %v6059 = vsel %vm1340, %v6043, 0
        %v6062 = vsel %vm1340, %v6044, 0
        %6064 = vmatprep.subr.bf16.mxu0 %v6062
        %6065 = vmatpush1.bf16.msra.mxu0 %v6059
        %6066 = vmatprep.subr.bf16.mxu0 0
        %6067 = vmatpush1.bf16.msra.mxu0 0
        %6068 = vmatprep.subr.bf16.mxu0 0
        %6069 = vmatpush1.bf16.msra.mxu0 0
        %6070 = vmatprep.subr.bf16.mxu0 0
        %6071 = vmatpush1.bf16.msra.mxu0 0
        %6072 = vmatprep.subr.bf16.mxu0 0
        %6073 = vmatpush1.bf16.msra.mxu0 0
        %6074 = vmatprep.subr.bf16.mxu0 0
        %6075 = vmatpush1.bf16.msra.mxu0 0
        %6076 = vmatprep.subr.bf16.mxu0 0
        %6077 = vmatpush1.bf16.msra.mxu0 0
        %6078 = vmatprep.subr.bf16.mxu0 0
        %6079 = vmatpush1.bf16.msra.mxu0 0
        %6080 = vmatprep.subr.bf16.mxu0 0
        %6081 = vmatpush1.bf16.msra.mxu0 0
        %6082 = vmatprep.subr.bf16.mxu0 0
        %6083 = vmatpush1.bf16.msra.mxu0 0
        %6084 = vmatprep.subr.bf16.mxu0 0
        %6085 = vmatpush1.bf16.msra.mxu0 0
        %6086 = vmatprep.subr.bf16.mxu0 0
        %6087 = vmatpush1.bf16.msra.mxu0 0
        %6088 = vmatprep.subr.bf16.mxu0 0
        %6089 = vmatpush1.bf16.msra.mxu0 0
        %6090 = vmatprep.subr.bf16.mxu0 0
        %6091 = vmatpush1.bf16.msra.mxu0 0
        %6092 = vmatprep.subr.bf16.mxu0 0
        %6093 = vmatpush1.bf16.msra.mxu0 0
        %6094 = vmatprep.subr.bf16.mxu0 0
        %6095 = vmatpush1.bf16.msra.mxu0 0
        %6096 = vmatprep.mubr.bf16.mxu0 0
        %6097 = vmatmul.mubr.bf16.gmra.mrb[0].mxu0 %v6047
        %v6098 = vpop.f32.mrb[0].mxu0
        %v6099 = vadd.f32 %v6033, %v6098
        %v6100 = vpop.f32.mrb[0].mxu0
        %v6101 = vadd.f32 %v6037, %v6100
        %v6102 = vpop.f32.mrb[0].mxu0
        %v6103 = vadd.f32 %v6033, %v6102
        %v6104 = vpop.f32.mrb[0].mxu0
        %v6105 = vadd.f32 %v6037, %v6104
        %6106 = vmatprep.mubr.bf16.mxu0 0
        %6107 = vmatmul.mubr.bf16.gmra.mrb[0].mxu0 %v6050
        %v6108 = vpop.f32.mrb[0].mxu0
        %v6109 = vadd.f32 %v6033, %v6108
        %v6110 = vpop.f32.mrb[0].mxu0
        %v6111 = vadd.f32 %v6037, %v6110
        %v6112 = vpop.f32.mrb[0].mxu0
        %v6113 = vadd.f32 %v6033, %v6112
        %v6114 = vpop.f32.mrb[0].mxu0
        %v6115 = vadd.f32 %v6037, %v6114
        %6116 = vmatprep.mubr.bf16.mxu0 0
        %6117 = vmatmul.mubr.bf16.gmra.mrb[0].mxu0 %v6053
        %v6118 = vpop.f32.mrb[0].mxu0
        %v6119 = vadd.f32 %v6033, %v6118
        %v6120 = vpop.f32.mrb[0].mxu0
        %v6121 = vadd.f32 %v6037, %v6120
        %v6122 = vpop.f32.mrb[0].mxu0
        %v6123 = vadd.f32 %v6033, %v6122
        %v6124 = vpop.f32.mrb[0].mxu0
        %v6125 = vadd.f32 %v6037, %v6124
        %6126 = vmatprep.mubr.bf16.mxu0 0
        %6127 = vmatmul.mubr.bf16.gmra.mrb[0].mxu0 %v6056
        %v6128 = vpop.f32.mrb[0].mxu0
        %v6129 = vadd.f32 %v6033, %v6128
        %v6130 = vpop.f32.mrb[0].mxu0
        %v6131 = vadd.f32 %v6037, %v6130
        %v6132 = vpop.f32.mrb[0].mxu0
        %v6133 = vadd.f32 %v6033, %v6132
        %v6134 = vpop.f32.mrb[0].mxu0
        %v6135 = vadd.f32 %v6037, %v6134
        %6136 = vdwg.mxu0
        %v6137 = vmul.f32 %v6099, 0.01
        %v6138 = vmul.f32 %v6101, 0.01
        %v6139 = vmul.f32 %v6103, 0.01
        %v6140 = vmul.f32 %v6105, 0.01
        %v6141 = vmul.f32 %v6109, 0.01
        %v6142 = vmul.f32 %v6111, 0.01
        %v6143 = vmul.f32 %v6113, 0.01
        %v6144 = vmul.f32 %v6115, 0.01
        %v6145 = vmul.f32 %v6119, 0.01
        %v6146 = vmul.f32 %v6121, 0.01
        %v6147 = vmul.f32 %v6123, 0.01
        %v6148 = vmul.f32 %v6125, 0.01
        %v6149 = vmul.f32 %v6129, 0.01
        %v6150 = vmul.f32 %v6131, 0.01
        %v6151 = vmul.f32 %v6133, 0.01
        %v6152 = vmul.f32 %v6135, 0.01
        %v6153 = vmax.f32 %v6099, %v6137
        %v6154 = vmax.f32 %v6101, %v6138
        %v6155 = vmax.f32 %v6103, %v6139
        %v6156 = vmax.f32 %v6105, %v6140
        %v6157 = vmax.f32 %v6109, %v6141
        %v6158 = vmax.f32 %v6111, %v6142
        %v6159 = vmax.f32 %v6113, %v6143
        %v6160 = vmax.f32 %v6115, %v6144
        %v6161 = vmax.f32 %v6119, %v6145
        %v6162 = vmax.f32 %v6121, %v6146
        %v6163 = vmax.f32 %v6123, %v6147
        %v6164 = vmax.f32 %v6125, %v6148
        %v6165 = vmax.f32 %v6129, %v6149
        %v6166 = vmax.f32 %v6131, %v6150
        %v6167 = vmax.f32 %v6133, %v6151
        %v6168 = vmax.f32 %v6135, %v6152
        %v6169 = vpack.c.bf16 %v6155, %v6153
        %v6170 = vpack.c.bf16 %v6156, %v6154
        %v6171 = vpack.c.bf16 %v6159, %v6157
        %v6172 = vpack.c.bf16 %v6160, %v6158
        %v6173 = vpack.c.bf16 %v6163, %v6161
        %v6174 = vpack.c.bf16 %v6164, %v6162
        %v6175 = vpack.c.bf16 %v6167, %v6165
        %v6176 = vpack.c.bf16 %v6168, %v6166
        %v6177 = vld [vmem:[%s49] sm:$0xff]
        %v6178 = vld [vmem:[%s49 + $0x8] sm:$0xf]
        %v6179 = vld [vmem:[%s49 + $0xc] sm:$0xff]
        %v6180 = vld [vmem:[%s49 + $0x14] sm:$0xf]
        %v6181 = vld [vmem:[%s49 + $0x18] sm:$0xff]
        %v6182 = vld [vmem:[%s49 + $0x20] sm:$0xf]
        %v6183 = vld [vmem:[%s49 + $0x24] sm:$0xff]
        %v6184 = vld [vmem:[%s49 + $0x2c] sm:$0xf]
        %v6185 = vld [vmem:[%s49 + $0x30] sm:$0xff]
        %v6186 = vld [vmem:[%s49 + $0x38] sm:$0xf]
        %v6187 = vld [vmem:[%s49 + $0x3c] sm:$0xff]
        %v6188 = vld [vmem:[%s49 + $0x44] sm:$0xf]
        %v6189 = vld [vmem:[%s49 + $0x48] sm:$0xff]
        %v6190 = vld [vmem:[%s49 + $0x50] sm:$0xf]
        %v6191 = vld [vmem:[%s49 + $0x54] sm:$0xff]
        %v6192 = vld [vmem:[%s49 + $0x5c] sm:$0xf]
        %v6193 = vld [vmem:[%s49 + $0x60] sm:$0xff]
        %v6194 = vld [vmem:[%s49 + $0x68] sm:$0xf]
        %v6195 = vld [vmem:[%s49 + $0x6c] sm:$0xff]
        %v6196 = vld [vmem:[%s49 + $0x74] sm:$0xf]
        %v6197 = vld [vmem:[%s49 + $0x78] sm:$0xff]
        %v6198 = vld [vmem:[%s49 + $0x80] sm:$0xf]
        %v6199 = vld [vmem:[%s49 + $0x84] sm:$0xff]
        %v6200 = vld [vmem:[%s49 + $0x8c] sm:$0xf]
        %v6201 = vld [vmem:[%s49 + $0x90] sm:$0xff]
        %v6202 = vld [vmem:[%s49 + $0x98] sm:$0xf]
        %v6203 = vld [vmem:[%s49 + $0x9c] sm:$0xff]
        %v6204 = vld [vmem:[%s49 + $0xa4] sm:$0xf]
        %v6205 = vld [vmem:[%s49 + $0xa8] sm:$0xff]
        %v6206 = vld [vmem:[%s49 + $0xb0] sm:$0xf]
        %v6207 = vld [vmem:[%s49 + $0xb4] sm:$0xff]
        %v6208 = vld [vmem:[%s49 + $0xbc] sm:$0xf]
        %v6209 = vld [vmem:[%s49 + $0xc0] sm:$0xff]
        %v6210 = vld [vmem:[%s49 + $0xc8] sm:$0xf]
        %v6211 = vld [vmem:[%s49 + $0xcc] sm:$0xff]
        %v6212 = vld [vmem:[%s49 + $0xd4] sm:$0xf]
        %v6213 = vld [vmem:[%s49 + $0xd8] sm:$0xff]
        %v6214 = vld [vmem:[%s49 + $0xe0] sm:$0xf]
        %v6215 = vld [vmem:[%s49 + $0xe4] sm:$0xff]
        %v6216 = vld [vmem:[%s49 + $0xec] sm:$0xf]
        %v6217 = vld [vmem:[%s49 + $0xf0] sm:$0xff]
        %v6218 = vld [vmem:[%s49 + $0xf8] sm:$0xf]
        %v6219 = vld [vmem:[%s49 + $0xfc] sm:$0xff]
        %v6220 = vld [vmem:[%s49 + $0x104] sm:$0xf]
        %v6221 = vld [vmem:[%s49 + $0x108] sm:$0xff]
        %v6222 = vld [vmem:[%s49 + $0x110] sm:$0xf]
        %v6223 = vld [vmem:[%s49 + $0x114] sm:$0xff]
        %v6224 = vld [vmem:[%s49 + $0x11c] sm:$0xf]
        %v6225 = vld [vmem:[%s51] sm:$0x7]
        %v6227 = vlaneseq
        %v6228 = vshrl.u32 %v6227, 7
        %v6229 = vsub.s32 0, %v6228
        %v6230 = vrot.slane %v6225, %v6229
        %v6231 = vlaneseq
        %v6232 = vshrl.u32 %v6231, 7
        %v6233 = vsub.s32 1, %v6232
        %v6234 = vrot.slane %v6225, %v6233
        %v6235 = vlaneseq
        %v6236 = vshrl.u32 %v6235, 7
        %v6237 = vsub.s32 2, %v6236
        %v6238 = vrot.slane %v6225, %v6237
        %v6290 = vunpack.c.l.b16 %v6177
        %v6291 = vunpack.c.h.b16 %v6177
        %v6292 = vunpack.c.l.b16 %v6178
        %v6293 = vunpack.c.l.b16 %v6179
        %v6294 = vunpack.c.h.b16 %v6179
        %v6295 = vunpack.c.l.b16 %v6180
        %v6296 = vunpack.c.l.b16 %v6181
        %v6297 = vunpack.c.h.b16 %v6181
        %v6298 = vunpack.c.l.b16 %v6182
        %v6299 = vunpack.c.l.b16 %v6183
        %v6300 = vunpack.c.h.b16 %v6183
        %v6301 = vunpack.c.l.b16 %v6184
        %v6302 = vunpack.c.l.b16 %v6185
        %v6303 = vunpack.c.h.b16 %v6185
        %v6304 = vunpack.c.l.b16 %v6186
        %v6305 = vunpack.c.l.b16 %v6187
        %v6306 = vunpack.c.h.b16 %v6187
        %v6307 = vunpack.c.l.b16 %v6188
        %v6308 = vunpack.c.l.b16 %v6189
        %v6309 = vunpack.c.h.b16 %v6189
        %v6310 = vunpack.c.l.b16 %v6190
        %v6311 = vunpack.c.l.b16 %v6191
        %v6312 = vunpack.c.h.b16 %v6191
        %v6313 = vunpack.c.l.b16 %v6192
        %v6314 = vunpack.c.l.b16 %v6193
        %v6315 = vunpack.c.h.b16 %v6193
        %v6316 = vunpack.c.l.b16 %v6194
        %v6317 = vunpack.c.l.b16 %v6195
        %v6318 = vunpack.c.h.b16 %v6195
        %v6319 = vunpack.c.l.b16 %v6196
        %v6320 = vunpack.c.l.b16 %v6197
        %v6321 = vunpack.c.h.b16 %v6197
        %v6322 = vunpack.c.l.b16 %v6198
        %v6323 = vunpack.c.l.b16 %v6199
        %v6324 = vunpack.c.h.b16 %v6199
        %v6325 = vunpack.c.l.b16 %v6200
        %v6326 = vunpack.c.l.b16 %v6201
        %v6327 = vunpack.c.h.b16 %v6201
        %v6328 = vunpack.c.l.b16 %v6202
        %v6329 = vunpack.c.l.b16 %v6203
        %v6330 = vunpack.c.h.b16 %v6203
        %v6331 = vunpack.c.l.b16 %v6204
        %v6332 = vunpack.c.l.b16 %v6205
        %v6333 = vunpack.c.h.b16 %v6205
        %v6334 = vunpack.c.l.b16 %v6206
        %v6335 = vunpack.c.l.b16 %v6207
        %v6336 = vunpack.c.h.b16 %v6207
        %v6337 = vunpack.c.l.b16 %v6208
        %v6338 = vunpack.c.l.b16 %v6209
        %v6339 = vunpack.c.h.b16 %v6209
        %v6340 = vunpack.c.l.b16 %v6210
        %v6341 = vunpack.c.l.b16 %v6211
        %v6342 = vunpack.c.h.b16 %v6211
        %v6343 = vunpack.c.l.b16 %v6212
        %v6344 = vunpack.c.l.b16 %v6213
        %v6345 = vunpack.c.h.b16 %v6213
        %v6346 = vunpack.c.l.b16 %v6214
        %v6347 = vunpack.c.l.b16 %v6215
        %v6348 = vunpack.c.h.b16 %v6215
        %v6349 = vunpack.c.l.b16 %v6216
        %v6350 = vunpack.c.l.b16 %v6217
        %v6351 = vunpack.c.h.b16 %v6217
        %v6352 = vunpack.c.l.b16 %v6218
        %v6353 = vunpack.c.l.b16 %v6219
        %v6354 = vunpack.c.h.b16 %v6219
        %v6355 = vunpack.c.l.b16 %v6220
        %v6356 = vunpack.c.l.b16 %v6221
        %v6357 = vunpack.c.h.b16 %v6221
        %v6358 = vunpack.c.l.b16 %v6222
        %v6359 = vunpack.c.l.b16 %v6223
        %v6360 = vunpack.c.h.b16 %v6223
        %v6361 = vunpack.c.l.b16 %v6224
        %v6362 = vpack.c.b16 %v6293, %v6290
        %v6363 = vpack.c.b16 %v6294, %v6291
        %v6364 = vpack.c.b16 %v6295, %v6292
        %v6365 = vpack.c.b16 %v6299, %v6296
        %v6366 = vpack.c.b16 %v6300, %v6297
        %v6367 = vpack.c.b16 %v6301, %v6298
        %v6368 = vpack.c.b16 %v6305, %v6302
        %v6369 = vpack.c.b16 %v6306, %v6303
        %v6370 = vpack.c.b16 %v6307, %v6304
        %v6371 = vpack.c.b16 %v6311, %v6308
        %v6372 = vpack.c.b16 %v6312, %v6309
        %v6373 = vpack.c.b16 %v6313, %v6310
        %v6374 = vpack.c.b16 %v6317, %v6314
        %v6375 = vpack.c.b16 %v6318, %v6315
        %v6376 = vpack.c.b16 %v6319, %v6316
        %v6377 = vpack.c.b16 %v6323, %v6320
        %v6378 = vpack.c.b16 %v6324, %v6321
        %v6379 = vpack.c.b16 %v6325, %v6322
        %v6380 = vpack.c.b16 %v6329, %v6326
        %v6381 = vpack.c.b16 %v6330, %v6327
        %v6382 = vpack.c.b16 %v6331, %v6328
        %v6383 = vpack.c.b16 %v6335, %v6332
        %v6384 = vpack.c.b16 %v6336, %v6333
        %v6385 = vpack.c.b16 %v6337, %v6334
        %v6386 = vpack.c.b16 %v6341, %v6338
        %v6387 = vpack.c.b16 %v6342, %v6339
        %v6388 = vpack.c.b16 %v6343, %v6340
        %v6389 = vpack.c.b16 %v6347, %v6344
        %v6390 = vpack.c.b16 %v6348, %v6345
        %v6391 = vpack.c.b16 %v6349, %v6346
        %v6392 = vpack.c.b16 %v6353, %v6350
        %v6393 = vpack.c.b16 %v6354, %v6351
        %v6394 = vpack.c.b16 %v6355, %v6352
        %v6395 = vpack.c.b16 %v6359, %v6356
        %v6396 = vpack.c.b16 %v6360, %v6357
        %v6397 = vpack.c.b16 %v6361, %v6358
        %v6435 = vsel %vm5529, %v6170, 0
        %v6438 = vsel %vm5529, %v6172, 0
        %v6441 = vsel %vm5529, %v6174, 0
        %v6444 = vsel %vm5529, %v6176, 0
        %6446 = vmatprep.subr.bf16.mxu0 %v6363
        %6447 = vmatpush1.bf16.msra.mxu0 %v6362
        %6448 = vmatprep.subr.bf16.mxu0 %v6366
        %6449 = vmatpush1.bf16.msra.mxu0 %v6365
        %6450 = vmatprep.subr.bf16.mxu0 %v6369
        %6451 = vmatpush1.bf16.msra.mxu0 %v6368
        %6452 = vmatprep.subr.bf16.mxu0 %v6372
        %6453 = vmatpush1.bf16.msra.mxu0 %v6371
        %6454 = vmatprep.subr.bf16.mxu0 %v6375
        %6455 = vmatpush1.bf16.msra.mxu0 %v6374
        %6456 = vmatprep.subr.bf16.mxu0 %v6378
        %6457 = vmatpush1.bf16.msra.mxu0 %v6377
        %6458 = vmatprep.subr.bf16.mxu0 %v6381
        %6459 = vmatpush1.bf16.msra.mxu0 %v6380
        %6460 = vmatprep.subr.bf16.mxu0 %v6384
        %6461 = vmatpush1.bf16.msra.mxu0 %v6383
        %6462 = vmatprep.subr.bf16.mxu0 %v6387
        %6463 = vmatpush1.bf16.msra.mxu0 %v6386
        %6464 = vmatprep.subr.bf16.mxu0 %v6390
        %6465 = vmatpush1.bf16.msra.mxu0 %v6389
        %6466 = vmatprep.subr.bf16.mxu0 %v6393
        %6467 = vmatpush1.bf16.msra.mxu0 %v6392
        %6468 = vmatprep.subr.bf16.mxu0 %v6396
        %6469 = vmatpush1.bf16.msra.mxu0 %v6395
        %6470 = vmatprep.subr.bf16.mxu0 0
        %6471 = vmatpush1.bf16.msra.mxu0 0
        %6472 = vmatprep.subr.bf16.mxu0 0
        %6473 = vmatpush1.bf16.msra.mxu0 0
        %6474 = vmatprep.subr.bf16.mxu0 0
        %6475 = vmatpush1.bf16.msra.mxu0 0
        %6476 = vmatprep.subr.bf16.mxu0 0
        %6477 = vmatpush1.bf16.msra.mxu0 0
        %6478 = vmatprep.mubr.bf16.mxu0 %v6435
        %6479 = vmatmul.mubr.bf16.gmra.mrb[0].mxu0 %v6169
        %v6480 = vpop.f32.mrb[0].mxu0
        %v6481 = vadd.f32 %v6230, %v6480
        %v6482 = vpop.f32.mrb[0].mxu0
        %v6483 = vadd.f32 %v6234, %v6482
        %v6484 = vpop.f32.mrb[0].mxu0
        %v6485 = vadd.f32 %v6230, %v6484
        %v6486 = vpop.f32.mrb[0].mxu0
        %v6487 = vadd.f32 %v6234, %v6486
        %6488 = vmatprep.mubr.bf16.mxu0 %v6438
        %6489 = vmatmul.mubr.bf16.gmra.mrb[0].mxu0 %v6171
        %v6490 = vpop.f32.mrb[0].mxu0
        %v6491 = vadd.f32 %v6230, %v6490
        %v6492 = vpop.f32.mrb[0].mxu0
        %v6493 = vadd.f32 %v6234, %v6492
        %v6494 = vpop.f32.mrb[0].mxu0
        %v6495 = vadd.f32 %v6230, %v6494
        %v6496 = vpop.f32.mrb[0].mxu0
        %v6497 = vadd.f32 %v6234, %v6496
        %6498 = vmatprep.mubr.bf16.mxu0 %v6441
        %6499 = vmatmul.mubr.bf16.gmra.mrb[0].mxu0 %v6173
        %v6500 = vpop.f32.mrb[0].mxu0
        %v6501 = vadd.f32 %v6230, %v6500
        %v6502 = vpop.f32.mrb[0].mxu0
        %v6503 = vadd.f32 %v6234, %v6502
        %v6504 = vpop.f32.mrb[0].mxu0
        %v6505 = vadd.f32 %v6230, %v6504
        %v6506 = vpop.f32.mrb[0].mxu0
        %v6507 = vadd.f32 %v6234, %v6506
        %6508 = vmatprep.mubr.bf16.mxu0 %v6444
        %6509 = vmatmul.mubr.bf16.gmra.mrb[0].mxu0 %v6175
        %v6510 = vpop.f32.mrb[0].mxu0
        %v6511 = vadd.f32 %v6230, %v6510
        %v6512 = vpop.f32.mrb[0].mxu0
        %v6513 = vadd.f32 %v6234, %v6512
        %v6514 = vpop.f32.mrb[0].mxu0
        %v6515 = vadd.f32 %v6230, %v6514
        %v6516 = vpop.f32.mrb[0].mxu0
        %v6517 = vadd.f32 %v6234, %v6516
        %6518 = vdwg.mxu0
        %6519 = vmatprep.subr.bf16.mxu0 0
        %6520 = vmatpush1.bf16.msra.mxu0 %v6364
        %6521 = vmatprep.subr.bf16.mxu0 0
        %6522 = vmatpush1.bf16.msra.mxu0 %v6367
        %6523 = vmatprep.subr.bf16.mxu0 0
        %6524 = vmatpush1.bf16.msra.mxu0 %v6370
        %6525 = vmatprep.subr.bf16.mxu0 0
        %6526 = vmatpush1.bf16.msra.mxu0 %v6373
        %6527 = vmatprep.subr.bf16.mxu0 0
        %6528 = vmatpush1.bf16.msra.mxu0 %v6376
        %6529 = vmatprep.subr.bf16.mxu0 0
        %6530 = vmatpush1.bf16.msra.mxu0 %v6379
        %6531 = vmatprep.subr.bf16.mxu0 0
        %6532 = vmatpush1.bf16.msra.mxu0 %v6382
        %6533 = vmatprep.subr.bf16.mxu0 0
        %6534 = vmatpush1.bf16.msra.mxu0 %v6385
        %6535 = vmatprep.subr.bf16.mxu0 0
        %6536 = vmatpush1.bf16.msra.mxu0 %v6388
        %6537 = vmatprep.subr.bf16.mxu0 0
        %6538 = vmatpush1.bf16.msra.mxu0 %v6391
        %6539 = vmatprep.subr.bf16.mxu0 0
        %6540 = vmatpush1.bf16.msra.mxu0 %v6394
        %6541 = vmatprep.subr.bf16.mxu0 0
        %6542 = vmatpush1.bf16.msra.mxu0 %v6397
        %6543 = vmatprep.subr.bf16.mxu0 0
        %6544 = vmatpush1.bf16.msra.mxu0 0
        %6545 = vmatprep.subr.bf16.mxu0 0
        %6546 = vmatpush1.bf16.msra.mxu0 0
        %6547 = vmatprep.subr.bf16.mxu0 0
        %6548 = vmatpush1.bf16.msra.mxu0 0
        %6549 = vmatprep.subr.bf16.mxu0 0
        %6550 = vmatpush1.bf16.msra.mxu0 0
        %6551 = vmatprep.mubr.bf16.mxu0 %v6435
        %6552 = vmatmul.mubr.bf16.gmra.mrb[0].mxu0 %v6169
        %v6553 = vpop.f32.mrb[0].mxu0
        %v6554 = vadd.f32 %v6238, %v6553
        %v6555 = vpop.f32.mrb[0].mxu0
        %v6556 = vpop.f32.mrb[0].mxu0
        %v6557 = vadd.f32 %v6238, %v6556
        %v6558 = vpop.f32.mrb[0].mxu0
        %6559 = vmatprep.mubr.bf16.mxu0 %v6438
        %6560 = vmatmul.mubr.bf16.gmra.mrb[0].mxu0 %v6171
        %v6561 = vpop.f32.mrb[0].mxu0
        %v6562 = vadd.f32 %v6238, %v6561
        %v6563 = vpop.f32.mrb[0].mxu0
        %v6564 = vpop.f32.mrb[0].mxu0
        %v6565 = vadd.f32 %v6238, %v6564
        %v6566 = vpop.f32.mrb[0].mxu0
        %6567 = vmatprep.mubr.bf16.mxu0 %v6441
        %6568 = vmatmul.mubr.bf16.gmra.mrb[0].mxu0 %v6173
        %v6569 = vpop.f32.mrb[0].mxu0
        %v6570 = vadd.f32 %v6238, %v6569
        %v6571 = vpop.f32.mrb[0].mxu0
        %v6572 = vpop.f32.mrb[0].mxu0
        %v6573 = vadd.f32 %v6238, %v6572
        %v6574 = vpop.f32.mrb[0].mxu0
        %6575 = vmatprep.mubr.bf16.mxu0 %v6444
        %6576 = vmatmul.mubr.bf16.gmra.mrb[0].mxu0 %v6175
        %v6577 = vpop.f32.mrb[0].mxu0
        %v6578 = vadd.f32 %v6238, %v6577
        %v6579 = vpop.f32.mrb[0].mxu0
        %v6580 = vpop.f32.mrb[0].mxu0
        %v6581 = vadd.f32 %v6238, %v6580
        %v6582 = vpop.f32.mrb[0].mxu0
        %6583 = vdwg.mxu0
        %v6584 = vmul.f32 %v6481, 0.01
        %v6585 = vmul.f32 %v6483, 0.01
        %v6586 = vmul.f32 %v6554, 0.01
        %v6587 = vmul.f32 %v6485, 0.01
        %v6588 = vmul.f32 %v6487, 0.01
        %v6589 = vmul.f32 %v6557, 0.01
        %v6590 = vmul.f32 %v6491, 0.01
        %v6591 = vmul.f32 %v6493, 0.01
        %v6592 = vmul.f32 %v6562, 0.01
        %v6593 = vmul.f32 %v6495, 0.01
        %v6594 = vmul.f32 %v6497, 0.01
        %v6595 = vmul.f32 %v6565, 0.01
        %v6596 = vmul.f32 %v6501, 0.01
        %v6597 = vmul.f32 %v6503, 0.01
        %v6598 = vmul.f32 %v6570, 0.01
        %v6599 = vmul.f32 %v6505, 0.01
        %v6600 = vmul.f32 %v6507, 0.01
        %v6601 = vmul.f32 %v6573, 0.01
        %v6602 = vmul.f32 %v6511, 0.01
        %v6603 = vmul.f32 %v6513, 0.01
        %v6604 = vmul.f32 %v6578, 0.01
        %v6605 = vmul.f32 %v6515, 0.01
        %v6606 = vmul.f32 %v6517, 0.01
        %v6607 = vmul.f32 %v6581, 0.01
        %v6608 = vmax.f32 %v6481, %v6584
        %v6609 = vmax.f32 %v6483, %v6585
        %v6610 = vmax.f32 %v6554, %v6586
        %v6611 = vmax.f32 %v6485, %v6587
        %v6612 = vmax.f32 %v6487, %v6588
        %v6613 = vmax.f32 %v6557, %v6589
        %v6614 = vmax.f32 %v6491, %v6590
        %v6615 = vmax.f32 %v6493, %v6591
        %v6616 = vmax.f32 %v6562, %v6592
        %v6617 = vmax.f32 %v6495, %v6593
        %v6618 = vmax.f32 %v6497, %v6594
        %v6619 = vmax.f32 %v6565, %v6595
        %v6620 = vmax.f32 %v6501, %v6596
        %v6621 = vmax.f32 %v6503, %v6597
        %v6622 = vmax.f32 %v6570, %v6598
        %v6623 = vmax.f32 %v6505, %v6599
        %v6624 = vmax.f32 %v6507, %v6600
        %v6625 = vmax.f32 %v6573, %v6601
        %v6626 = vmax.f32 %v6511, %v6602
        %v6627 = vmax.f32 %v6513, %v6603
        %v6628 = vmax.f32 %v6578, %v6604
        %v6629 = vmax.f32 %v6515, %v6605
        %v6630 = vmax.f32 %v6517, %v6606
        %v6631 = vmax.f32 %v6581, %v6607
        %v6632 = vpack.c.bf16 %v6611, %v6608
        %v6633 = vpack.c.bf16 %v6612, %v6609
        %v6634 = vpack.c.bf16 %v6613, %v6610
        %v6635 = vpack.c.bf16 %v6617, %v6614
        %v6636 = vpack.c.bf16 %v6618, %v6615
        %v6637 = vpack.c.bf16 %v6619, %v6616
        %v6638 = vpack.c.bf16 %v6623, %v6620
        %v6639 = vpack.c.bf16 %v6624, %v6621
        %v6640 = vpack.c.bf16 %v6625, %v6622
        %v6641 = vpack.c.bf16 %v6629, %v6626
        %v6642 = vpack.c.bf16 %v6630, %v6627
        %v6643 = vpack.c.bf16 %v6631, %v6628
        %v6644 = vld [vmem:[%s53] sm:$0xff]
        %v6645 = vld [vmem:[%s53 + $0x8] sm:$0xff]
        %v6646 = vld [vmem:[%s53 + $0x10] sm:$0xff]
        %v6647 = vld [vmem:[%s53 + $0x18] sm:$0xff]
        %v6648 = vld [vmem:[%s53 + $0x20] sm:$0xff]
        %v6649 = vld [vmem:[%s53 + $0x28] sm:$0xff]
        %v6650 = vld [vmem:[%s53 + $0x30] sm:$0xff]
        %v6651 = vld [vmem:[%s53 + $0x38] sm:$0xff]
        %v6652 = vld [vmem:[%s53 + $0x40] sm:$0xff]
        %v6653 = vld [vmem:[%s53 + $0x48] sm:$0xff]
        %v6654 = vld [vmem:[%s53 + $0x50] sm:$0xff]
        %v6655 = vld [vmem:[%s53 + $0x58] sm:$0xff]
        %v6656 = vld [vmem:[%s53 + $0x60] sm:$0xff]
        %v6657 = vld [vmem:[%s53 + $0x68] sm:$0xff]
        %v6658 = vld [vmem:[%s53 + $0x70] sm:$0xff]
        %v6659 = vld [vmem:[%s53 + $0x78] sm:$0xff]
        %v6660 = vld [vmem:[%s53 + $0x80] sm:$0xff]
        %v6661 = vld [vmem:[%s53 + $0x88] sm:$0xff]
        %v6662 = vld [vmem:[%s53 + $0x90] sm:$0xff]
        %v6663 = vld [vmem:[%s53 + $0x98] sm:$0xff]
        %v6664 = vld [vmem:[%s53 + $0xa0] sm:$0xff]
        %v6665 = vld [vmem:[%s53 + $0xa8] sm:$0xff]
        %v6666 = vld [vmem:[%s53 + $0xb0] sm:$0xff]
        %v6667 = vld [vmem:[%s53 + $0xb8] sm:$0xff]
        %v6668 = vld [vmem:[%s53 + $0xc0] sm:$0xff]
        %v6669 = vld [vmem:[%s53 + $0xc8] sm:$0xff]
        %v6670 = vld [vmem:[%s53 + $0xd0] sm:$0xff]
        %v6671 = vld [vmem:[%s53 + $0xd8] sm:$0xff]
        %v6672 = vld [vmem:[%s53 + $0xe0] sm:$0xff]
        %v6673 = vld [vmem:[%s53 + $0xe8] sm:$0xff]
        %v6674 = vld [vmem:[%s53 + $0xf0] sm:$0xff]
        %v6675 = vld [vmem:[%s53 + $0xf8] sm:$0xff]
        %v6676 = vld [vmem:[%s53 + $0x100] sm:$0xff]
        %v6677 = vld [vmem:[%s53 + $0x108] sm:$0xff]
        %v6678 = vld [vmem:[%s53 + $0x110] sm:$0xff]
        %v6679 = vld [vmem:[%s53 + $0x118] sm:$0xff]
        %v6680 = vld [vmem:[%s53 + $0x120] sm:$0xff]
        %v6681 = vld [vmem:[%s53 + $0x128] sm:$0xff]
        %v6682 = vld [vmem:[%s53 + $0x130] sm:$0xff]
        %v6683 = vld [vmem:[%s53 + $0x138] sm:$0xff]
        %v6684 = vld [vmem:[%s53 + $0x140] sm:$0xff]
        %v6685 = vld [vmem:[%s53 + $0x148] sm:$0xff]
        %v6686 = vld [vmem:[%s53 + $0x150] sm:$0xff]
        %v6687 = vld [vmem:[%s53 + $0x158] sm:$0xff]
        %v6688 = vld [vmem:[%s53 + $0x160] sm:$0xff]
        %v6689 = vld [vmem:[%s53 + $0x168] sm:$0xff]
        %v6690 = vld [vmem:[%s53 + $0x170] sm:$0xff]
        %v6691 = vld [vmem:[%s53 + $0x178] sm:$0xff]
        %v6692 = vld [vmem:[%s53 + $0x180] sm:$0xff]
        %v6693 = vld [vmem:[%s53 + $0x188] sm:$0xff]
        %v6694 = vld [vmem:[%s53 + $0x190] sm:$0xff]
        %v6695 = vld [vmem:[%s53 + $0x198] sm:$0xff]
        %v6696 = vld [vmem:[%s53 + $0x1a0] sm:$0xff]
        %v6697 = vld [vmem:[%s53 + $0x1a8] sm:$0xff]
        %v6698 = vld [vmem:[%s53 + $0x1b0] sm:$0xff]
        %v6699 = vld [vmem:[%s53 + $0x1b8] sm:$0xff]
        %v6700 = vld [vmem:[%s53 + $0x1c0] sm:$0xff]
        %v6701 = vld [vmem:[%s53 + $0x1c8] sm:$0xff]
        %v6702 = vld [vmem:[%s53 + $0x1d0] sm:$0xff]
        %v6703 = vld [vmem:[%s53 + $0x1d8] sm:$0xff]
        %v6704 = vld [vmem:[%s53 + $0x1e0] sm:$0xff]
        %v6705 = vld [vmem:[%s53 + $0x1e8] sm:$0xff]
        %v6706 = vld [vmem:[%s53 + $0x1f0] sm:$0xff]
        %v6707 = vld [vmem:[%s53 + $0x1f8] sm:$0xff]
        %v6708 = vld [vmem:[%s53 + $0x200] sm:$0xff]
        %v6709 = vld [vmem:[%s53 + $0x208] sm:$0xff]
        %v6710 = vld [vmem:[%s53 + $0x210] sm:$0xff]
        %v6711 = vld [vmem:[%s53 + $0x218] sm:$0xff]
        %v6712 = vld [vmem:[%s53 + $0x220] sm:$0xff]
        %v6713 = vld [vmem:[%s53 + $0x228] sm:$0xff]
        %v6714 = vld [vmem:[%s53 + $0x230] sm:$0xff]
        %v6715 = vld [vmem:[%s53 + $0x238] sm:$0xff]
        %v6716 = vld [vmem:[%s53 + $0x240] sm:$0xff]
        %v6717 = vld [vmem:[%s53 + $0x248] sm:$0xff]
        %v6718 = vld [vmem:[%s53 + $0x250] sm:$0xff]
        %v6719 = vld [vmem:[%s53 + $0x258] sm:$0xff]
        %v6720 = vld [vmem:[%s53 + $0x260] sm:$0xff]
        %v6721 = vld [vmem:[%s53 + $0x268] sm:$0xff]
        %v6722 = vld [vmem:[%s53 + $0x270] sm:$0xff]
        %v6723 = vld [vmem:[%s53 + $0x278] sm:$0xff]
        %v6724 = vld [vmem:[%s53 + $0x280] sm:$0xff]
        %v6725 = vld [vmem:[%s53 + $0x288] sm:$0xff]
        %v6726 = vld [vmem:[%s53 + $0x290] sm:$0xff]
        %v6727 = vld [vmem:[%s53 + $0x298] sm:$0xff]
        %v6728 = vld [vmem:[%s53 + $0x2a0] sm:$0xff]
        %v6729 = vld [vmem:[%s53 + $0x2a8] sm:$0xff]
        %v6730 = vld [vmem:[%s53 + $0x2b0] sm:$0xff]
        %v6731 = vld [vmem:[%s53 + $0x2b8] sm:$0xff]
        %v6732 = vld [vmem:[%s53 + $0x2c0] sm:$0xff]
        %v6733 = vld [vmem:[%s53 + $0x2c8] sm:$0xff]
        %v6734 = vld [vmem:[%s53 + $0x2d0] sm:$0xff]
        %v6735 = vld [vmem:[%s53 + $0x2d8] sm:$0xff]
        %v6736 = vld [vmem:[%s53 + $0x2e0] sm:$0xff]
        %v6737 = vld [vmem:[%s53 + $0x2e8] sm:$0xff]
        %v6738 = vld [vmem:[%s53 + $0x2f0] sm:$0xff]
        %v6739 = vld [vmem:[%s53 + $0x2f8] sm:$0xff]
        %v6740 = vld [vmem:[%s55] sm:$0xf]
        %v6742 = vlaneseq
        %v6743 = vshrl.u32 %v6742, 7
        %v6744 = vsub.s32 0, %v6743
        %v6745 = vrot.slane %v6740, %v6744
        %v6746 = vlaneseq
        %v6747 = vshrl.u32 %v6746, 7
        %v6748 = vsub.s32 1, %v6747
        %v6749 = vrot.slane %v6740, %v6748
        %v6750 = vlaneseq
        %v6751 = vshrl.u32 %v6750, 7
        %v6752 = vsub.s32 2, %v6751
        %v6753 = vrot.slane %v6740, %v6752
        %v6754 = vlaneseq
        %v6755 = vshrl.u32 %v6754, 7
        %v6756 = vsub.s32 3, %v6755
        %v6757 = vrot.slane %v6740, %v6756
        %v6858 = vunpack.c.l.b16 %v6644
        %v6859 = vunpack.c.h.b16 %v6644
        %v6860 = vunpack.c.l.b16 %v6645
        %v6861 = vunpack.c.h.b16 %v6645
        %v6862 = vunpack.c.l.b16 %v6646
        %v6863 = vunpack.c.h.b16 %v6646
        %v6864 = vunpack.c.l.b16 %v6647
        %v6865 = vunpack.c.h.b16 %v6647
        %v6866 = vunpack.c.l.b16 %v6648
        %v6867 = vunpack.c.h.b16 %v6648
        %v6868 = vunpack.c.l.b16 %v6649
        %v6869 = vunpack.c.h.b16 %v6649
        %v6870 = vunpack.c.l.b16 %v6650
        %v6871 = vunpack.c.h.b16 %v6650
        %v6872 = vunpack.c.l.b16 %v6651
        %v6873 = vunpack.c.h.b16 %v6651
        %v6874 = vunpack.c.l.b16 %v6652
        %v6875 = vunpack.c.h.b16 %v6652
        %v6876 = vunpack.c.l.b16 %v6653
        %v6877 = vunpack.c.h.b16 %v6653
        %v6878 = vunpack.c.l.b16 %v6654
        %v6879 = vunpack.c.h.b16 %v6654
        %v6880 = vunpack.c.l.b16 %v6655
        %v6881 = vunpack.c.h.b16 %v6655
        %v6882 = vunpack.c.l.b16 %v6656
        %v6883 = vunpack.c.h.b16 %v6656
        %v6884 = vunpack.c.l.b16 %v6657
        %v6885 = vunpack.c.h.b16 %v6657
        %v6886 = vunpack.c.l.b16 %v6658
        %v6887 = vunpack.c.h.b16 %v6658
        %v6888 = vunpack.c.l.b16 %v6659
        %v6889 = vunpack.c.h.b16 %v6659
        %v6890 = vunpack.c.l.b16 %v6660
        %v6891 = vunpack.c.h.b16 %v6660
        %v6892 = vunpack.c.l.b16 %v6661
        %v6893 = vunpack.c.h.b16 %v6661
        %v6894 = vunpack.c.l.b16 %v6662
        %v6895 = vunpack.c.h.b16 %v6662
        %v6896 = vunpack.c.l.b16 %v6663
        %v6897 = vunpack.c.h.b16 %v6663
        %v6898 = vunpack.c.l.b16 %v6664
        %v6899 = vunpack.c.h.b16 %v6664
        %v6900 = vunpack.c.l.b16 %v6665
        %v6901 = vunpack.c.h.b16 %v6665
        %v6902 = vunpack.c.l.b16 %v6666
        %v6903 = vunpack.c.h.b16 %v6666
        %v6904 = vunpack.c.l.b16 %v6667
        %v6905 = vunpack.c.h.b16 %v6667
        %v6906 = vunpack.c.l.b16 %v6668
        %v6907 = vunpack.c.h.b16 %v6668
        %v6908 = vunpack.c.l.b16 %v6669
        %v6909 = vunpack.c.h.b16 %v6669
        %v6910 = vunpack.c.l.b16 %v6670
        %v6911 = vunpack.c.h.b16 %v6670
        %v6912 = vunpack.c.l.b16 %v6671
        %v6913 = vunpack.c.h.b16 %v6671
        %v6914 = vunpack.c.l.b16 %v6672
        %v6915 = vunpack.c.h.b16 %v6672
        %v6916 = vunpack.c.l.b16 %v6673
        %v6917 = vunpack.c.h.b16 %v6673
        %v6918 = vunpack.c.l.b16 %v6674
        %v6919 = vunpack.c.h.b16 %v6674
        %v6920 = vunpack.c.l.b16 %v6675
        %v6921 = vunpack.c.h.b16 %v6675
        %v6922 = vunpack.c.l.b16 %v6676
        %v6923 = vunpack.c.h.b16 %v6676
        %v6924 = vunpack.c.l.b16 %v6677
        %v6925 = vunpack.c.h.b16 %v6677
        %v6926 = vunpack.c.l.b16 %v6678
        %v6927 = vunpack.c.h.b16 %v6678
        %v6928 = vunpack.c.l.b16 %v6679
        %v6929 = vunpack.c.h.b16 %v6679
        %v6930 = vunpack.c.l.b16 %v6680
        %v6931 = vunpack.c.h.b16 %v6680
        %v6932 = vunpack.c.l.b16 %v6681
        %v6933 = vunpack.c.h.b16 %v6681
        %v6934 = vunpack.c.l.b16 %v6682
        %v6935 = vunpack.c.h.b16 %v6682
        %v6936 = vunpack.c.l.b16 %v6683
        %v6937 = vunpack.c.h.b16 %v6683
        %v6938 = vunpack.c.l.b16 %v6684
        %v6939 = vunpack.c.h.b16 %v6684
        %v6940 = vunpack.c.l.b16 %v6685
        %v6941 = vunpack.c.h.b16 %v6685
        %v6942 = vunpack.c.l.b16 %v6686
        %v6943 = vunpack.c.h.b16 %v6686
        %v6944 = vunpack.c.l.b16 %v6687
        %v6945 = vunpack.c.h.b16 %v6687
        %v6946 = vunpack.c.l.b16 %v6688
        %v6947 = vunpack.c.h.b16 %v6688
        %v6948 = vunpack.c.l.b16 %v6689
        %v6949 = vunpack.c.h.b16 %v6689
        %v6950 = vunpack.c.l.b16 %v6690
        %v6951 = vunpack.c.h.b16 %v6690
        %v6952 = vunpack.c.l.b16 %v6691
        %v6953 = vunpack.c.h.b16 %v6691
        %v6954 = vunpack.c.l.b16 %v6692
        %v6955 = vunpack.c.h.b16 %v6692
        %v6956 = vunpack.c.l.b16 %v6693
        %v6957 = vunpack.c.h.b16 %v6693
        %v6958 = vunpack.c.l.b16 %v6694
        %v6959 = vunpack.c.h.b16 %v6694
        %v6960 = vunpack.c.l.b16 %v6695
        %v6961 = vunpack.c.h.b16 %v6695
        %v6962 = vunpack.c.l.b16 %v6696
        %v6963 = vunpack.c.h.b16 %v6696
        %v6964 = vunpack.c.l.b16 %v6697
        %v6965 = vunpack.c.h.b16 %v6697
        %v6966 = vunpack.c.l.b16 %v6698
        %v6967 = vunpack.c.h.b16 %v6698
        %v6968 = vunpack.c.l.b16 %v6699
        %v6969 = vunpack.c.h.b16 %v6699
        %v6970 = vunpack.c.l.b16 %v6700
        %v6971 = vunpack.c.h.b16 %v6700
        %v6972 = vunpack.c.l.b16 %v6701
        %v6973 = vunpack.c.h.b16 %v6701
        %v6974 = vunpack.c.l.b16 %v6702
        %v6975 = vunpack.c.h.b16 %v6702
        %v6976 = vunpack.c.l.b16 %v6703
        %v6977 = vunpack.c.h.b16 %v6703
        %v6978 = vunpack.c.l.b16 %v6704
        %v6979 = vunpack.c.h.b16 %v6704
        %v6980 = vunpack.c.l.b16 %v6705
        %v6981 = vunpack.c.h.b16 %v6705
        %v6982 = vunpack.c.l.b16 %v6706
        %v6983 = vunpack.c.h.b16 %v6706
        %v6984 = vunpack.c.l.b16 %v6707
        %v6985 = vunpack.c.h.b16 %v6707
        %v6986 = vunpack.c.l.b16 %v6708
        %v6987 = vunpack.c.h.b16 %v6708
        %v6988 = vunpack.c.l.b16 %v6709
        %v6989 = vunpack.c.h.b16 %v6709
        %v6990 = vunpack.c.l.b16 %v6710
        %v6991 = vunpack.c.h.b16 %v6710
        %v6992 = vunpack.c.l.b16 %v6711
        %v6993 = vunpack.c.h.b16 %v6711
        %v6994 = vunpack.c.l.b16 %v6712
        %v6995 = vunpack.c.h.b16 %v6712
        %v6996 = vunpack.c.l.b16 %v6713
        %v6997 = vunpack.c.h.b16 %v6713
        %v6998 = vunpack.c.l.b16 %v6714
        %v6999 = vunpack.c.h.b16 %v6714
        %v7000 = vunpack.c.l.b16 %v6715
        %v7001 = vunpack.c.h.b16 %v6715
        %v7002 = vunpack.c.l.b16 %v6716
        %v7003 = vunpack.c.h.b16 %v6716
        %v7004 = vunpack.c.l.b16 %v6717
        %v7005 = vunpack.c.h.b16 %v6717
        %v7006 = vunpack.c.l.b16 %v6718
        %v7007 = vunpack.c.h.b16 %v6718
        %v7008 = vunpack.c.l.b16 %v6719
        %v7009 = vunpack.c.h.b16 %v6719
        %v7010 = vunpack.c.l.b16 %v6720
        %v7011 = vunpack.c.h.b16 %v6720
        %v7012 = vunpack.c.l.b16 %v6721
        %v7013 = vunpack.c.h.b16 %v6721
        %v7014 = vunpack.c.l.b16 %v6722
        %v7015 = vunpack.c.h.b16 %v6722
        %v7016 = vunpack.c.l.b16 %v6723
        %v7017 = vunpack.c.h.b16 %v6723
        %v7018 = vunpack.c.l.b16 %v6724
        %v7019 = vunpack.c.h.b16 %v6724
        %v7020 = vunpack.c.l.b16 %v6725
        %v7021 = vunpack.c.h.b16 %v6725
        %v7022 = vunpack.c.l.b16 %v6726
        %v7023 = vunpack.c.h.b16 %v6726
        %v7024 = vunpack.c.l.b16 %v6727
        %v7025 = vunpack.c.h.b16 %v6727
        %v7026 = vunpack.c.l.b16 %v6728
        %v7027 = vunpack.c.h.b16 %v6728
        %v7028 = vunpack.c.l.b16 %v6729
        %v7029 = vunpack.c.h.b16 %v6729
        %v7030 = vunpack.c.l.b16 %v6730
        %v7031 = vunpack.c.h.b16 %v6730
        %v7032 = vunpack.c.l.b16 %v6731
        %v7033 = vunpack.c.h.b16 %v6731
        %v7034 = vunpack.c.l.b16 %v6732
        %v7035 = vunpack.c.h.b16 %v6732
        %v7036 = vunpack.c.l.b16 %v6733
        %v7037 = vunpack.c.h.b16 %v6733
        %v7038 = vunpack.c.l.b16 %v6734
        %v7039 = vunpack.c.h.b16 %v6734
        %v7040 = vunpack.c.l.b16 %v6735
        %v7041 = vunpack.c.h.b16 %v6735
        %v7042 = vunpack.c.l.b16 %v6736
        %v7043 = vunpack.c.h.b16 %v6736
        %v7044 = vunpack.c.l.b16 %v6737
        %v7045 = vunpack.c.h.b16 %v6737
        %v7046 = vunpack.c.l.b16 %v6738
        %v7047 = vunpack.c.h.b16 %v6738
        %v7048 = vunpack.c.l.b16 %v6739
        %v7049 = vunpack.c.h.b16 %v6739
        %v7050 = vpack.c.b16 %v6862, %v6858
        %v7051 = vpack.c.b16 %v6863, %v6859
        %v7052 = vpack.c.b16 %v6864, %v6860
        %v7053 = vpack.c.b16 %v6865, %v6861
        %v7054 = vpack.c.b16 %v6870, %v6866
        %v7055 = vpack.c.b16 %v6871, %v6867
        %v7056 = vpack.c.b16 %v6872, %v6868
        %v7057 = vpack.c.b16 %v6873, %v6869
        %v7058 = vpack.c.b16 %v6878, %v6874
        %v7059 = vpack.c.b16 %v6879, %v6875
        %v7060 = vpack.c.b16 %v6880, %v6876
        %v7061 = vpack.c.b16 %v6881, %v6877
        %v7062 = vpack.c.b16 %v6886, %v6882
        %v7063 = vpack.c.b16 %v6887, %v6883
        %v7064 = vpack.c.b16 %v6888, %v6884
        %v7065 = vpack.c.b16 %v6889, %v6885
        %v7066 = vpack.c.b16 %v6894, %v6890
        %v7067 = vpack.c.b16 %v6895, %v6891
        %v7068 = vpack.c.b16 %v6896, %v6892
        %v7069 = vpack.c.b16 %v6897, %v6893
        %v7070 = vpack.c.b16 %v6902, %v6898
        %v7071 = vpack.c.b16 %v6903, %v6899
        %v7072 = vpack.c.b16 %v6904, %v6900
        %v7073 = vpack.c.b16 %v6905, %v6901
        %v7074 = vpack.c.b16 %v6910, %v6906
        %v7075 = vpack.c.b16 %v6911, %v6907
        %v7076 = vpack.c.b16 %v6912, %v6908
        %v7077 = vpack.c.b16 %v6913, %v6909
        %v7078 = vpack.c.b16 %v6918, %v6914
        %v7079 = vpack.c.b16 %v6919, %v6915
        %v7080 = vpack.c.b16 %v6920, %v6916
        %v7081 = vpack.c.b16 %v6921, %v6917
        %v7082 = vpack.c.b16 %v6926, %v6922
        %v7083 = vpack.c.b16 %v6927, %v6923
        %v7084 = vpack.c.b16 %v6928, %v6924
        %v7085 = vpack.c.b16 %v6929, %v6925
        %v7086 = vpack.c.b16 %v6934, %v6930
        %v7087 = vpack.c.b16 %v6935, %v6931
        %v7088 = vpack.c.b16 %v6936, %v6932
        %v7089 = vpack.c.b16 %v6937, %v6933
        %v7090 = vpack.c.b16 %v6942, %v6938
        %v7091 = vpack.c.b16 %v6943, %v6939
        %v7092 = vpack.c.b16 %v6944, %v6940
        %v7093 = vpack.c.b16 %v6945, %v6941
        %v7094 = vpack.c.b16 %v6950, %v6946
        %v7095 = vpack.c.b16 %v6951, %v6947
        %v7096 = vpack.c.b16 %v6952, %v6948
        %v7097 = vpack.c.b16 %v6953, %v6949
        %v7098 = vpack.c.b16 %v6958, %v6954
        %v7099 = vpack.c.b16 %v6959, %v6955
        %v7100 = vpack.c.b16 %v6960, %v6956
        %v7101 = vpack.c.b16 %v6961, %v6957
        %v7102 = vpack.c.b16 %v6966, %v6962
        %v7103 = vpack.c.b16 %v6967, %v6963
        %v7104 = vpack.c.b16 %v6968, %v6964
        %v7105 = vpack.c.b16 %v6969, %v6965
        %v7106 = vpack.c.b16 %v6974, %v6970
        %v7107 = vpack.c.b16 %v6975, %v6971
        %v7108 = vpack.c.b16 %v6976, %v6972
        %v7109 = vpack.c.b16 %v6977, %v6973
        %v7110 = vpack.c.b16 %v6982, %v6978
        %v7111 = vpack.c.b16 %v6983, %v6979
        %v7112 = vpack.c.b16 %v6984, %v6980
        %v7113 = vpack.c.b16 %v6985, %v6981
        %v7114 = vpack.c.b16 %v6990, %v6986
        %v7115 = vpack.c.b16 %v6991, %v6987
        %v7116 = vpack.c.b16 %v6992, %v6988
        %v7117 = vpack.c.b16 %v6993, %v6989
        %v7118 = vpack.c.b16 %v6998, %v6994
        %v7119 = vpack.c.b16 %v6999, %v6995
        %v7120 = vpack.c.b16 %v7000, %v6996
        %v7121 = vpack.c.b16 %v7001, %v6997
        %v7122 = vpack.c.b16 %v7006, %v7002
        %v7123 = vpack.c.b16 %v7007, %v7003
        %v7124 = vpack.c.b16 %v7008, %v7004
        %v7125 = vpack.c.b16 %v7009, %v7005
        %v7126 = vpack.c.b16 %v7014, %v7010
        %v7127 = vpack.c.b16 %v7015, %v7011
        %v7128 = vpack.c.b16 %v7016, %v7012
        %v7129 = vpack.c.b16 %v7017, %v7013
        %v7130 = vpack.c.b16 %v7022, %v7018
        %v7131 = vpack.c.b16 %v7023, %v7019
        %v7132 = vpack.c.b16 %v7024, %v7020
        %v7133 = vpack.c.b16 %v7025, %v7021
        %v7134 = vpack.c.b16 %v7030, %v7026
        %v7135 = vpack.c.b16 %v7031, %v7027
        %v7136 = vpack.c.b16 %v7032, %v7028
        %v7137 = vpack.c.b16 %v7033, %v7029
        %v7138 = vpack.c.b16 %v7038, %v7034
        %v7139 = vpack.c.b16 %v7039, %v7035
        %v7140 = vpack.c.b16 %v7040, %v7036
        %v7141 = vpack.c.b16 %v7041, %v7037
        %v7142 = vpack.c.b16 %v7046, %v7042
        %v7143 = vpack.c.b16 %v7047, %v7043
        %v7144 = vpack.c.b16 %v7048, %v7044
        %v7145 = vpack.c.b16 %v7049, %v7045
        %7242 = vmatprep.subr.bf16.mxu0 %v7051
        %7243 = vmatpush1.bf16.msra.mxu0 %v7050
        %7244 = vmatprep.subr.bf16.mxu0 %v7055
        %7245 = vmatpush1.bf16.msra.mxu0 %v7054
        %7246 = vmatprep.subr.bf16.mxu0 %v7059
        %7247 = vmatpush1.bf16.msra.mxu0 %v7058
        %7248 = vmatprep.subr.bf16.mxu0 %v7063
        %7249 = vmatpush1.bf16.msra.mxu0 %v7062
        %7250 = vmatprep.subr.bf16.mxu0 %v7067
        %7251 = vmatpush1.bf16.msra.mxu0 %v7066
        %7252 = vmatprep.subr.bf16.mxu0 %v7071
        %7253 = vmatpush1.bf16.msra.mxu0 %v7070
        %7254 = vmatprep.subr.bf16.mxu0 %v7075
        %7255 = vmatpush1.bf16.msra.mxu0 %v7074
        %7256 = vmatprep.subr.bf16.mxu0 %v7079
        %7257 = vmatpush1.bf16.msra.mxu0 %v7078
        %7258 = vmatprep.subr.bf16.mxu0 %v7083
        %7259 = vmatpush1.bf16.msra.mxu0 %v7082
        %7260 = vmatprep.subr.bf16.mxu0 %v7087
        %7261 = vmatpush1.bf16.msra.mxu0 %v7086
        %7262 = vmatprep.subr.bf16.mxu0 %v7091
        %7263 = vmatpush1.bf16.msra.mxu0 %v7090
        %7264 = vmatprep.subr.bf16.mxu0 %v7095
        %7265 = vmatpush1.bf16.msra.mxu0 %v7094
        %7266 = vmatprep.subr.bf16.mxu0 %v7099
        %7267 = vmatpush1.bf16.msra.mxu0 %v7098
        %7268 = vmatprep.subr.bf16.mxu0 %v7103
        %7269 = vmatpush1.bf16.msra.mxu0 %v7102
        %7270 = vmatprep.subr.bf16.mxu0 %v7107
        %7271 = vmatpush1.bf16.msra.mxu0 %v7106
        %7272 = vmatprep.subr.bf16.mxu0 %v7111
        %7273 = vmatpush1.bf16.msra.mxu0 %v7110
        %7274 = vmatprep.mubr.bf16.mxu0 %v6633
        %7275 = vmatmul.mubr.bf16.gmra.mrb[0].mxu0 %v6632
        %v7276 = vpop.f32.mrb[0].mxu0
        %v7277 = vadd.f32 %v6745, %v7276
        %v7278 = vpop.f32.mrb[0].mxu0
        %v7279 = vadd.f32 %v6749, %v7278
        %v7280 = vpop.f32.mrb[0].mxu0
        %v7281 = vadd.f32 %v6745, %v7280
        %v7282 = vpop.f32.mrb[0].mxu0
        %v7283 = vadd.f32 %v6749, %v7282
        %7284 = vmatprep.mubr.bf16.mxu0 %v6636
        %7285 = vmatmul.mubr.bf16.gmra.mrb[0].mxu0 %v6635
        %v7286 = vpop.f32.mrb[0].mxu0
        %v7287 = vadd.f32 %v6745, %v7286
        %v7288 = vpop.f32.mrb[0].mxu0
        %v7289 = vadd.f32 %v6749, %v7288
        %v7290 = vpop.f32.mrb[0].mxu0
        %v7291 = vadd.f32 %v6745, %v7290
        %v7292 = vpop.f32.mrb[0].mxu0
        %v7293 = vadd.f32 %v6749, %v7292
        %7294 = vmatprep.mubr.bf16.mxu0 %v6639
        %7295 = vmatmul.mubr.bf16.gmra.mrb[0].mxu0 %v6638
        %v7296 = vpop.f32.mrb[0].mxu0
        %v7297 = vadd.f32 %v6745, %v7296
        %v7298 = vpop.f32.mrb[0].mxu0
        %v7299 = vadd.f32 %v6749, %v7298
        %v7300 = vpop.f32.mrb[0].mxu0
        %v7301 = vadd.f32 %v6745, %v7300
        %v7302 = vpop.f32.mrb[0].mxu0
        %v7303 = vadd.f32 %v6749, %v7302
        %7304 = vmatprep.mubr.bf16.mxu0 %v6642
        %7305 = vmatmul.mubr.bf16.gmra.mrb[0].mxu0 %v6641
        %v7306 = vpop.f32.mrb[0].mxu0
        %v7307 = vadd.f32 %v6745, %v7306
        %v7308 = vpop.f32.mrb[0].mxu0
        %v7309 = vadd.f32 %v6749, %v7308
        %v7310 = vpop.f32.mrb[0].mxu0
        %v7311 = vadd.f32 %v6745, %v7310
        %v7312 = vpop.f32.mrb[0].mxu0
        %v7313 = vadd.f32 %v6749, %v7312
        %7314 = vdwg.mxu0
        %7315 = vmatprep.subr.bf16.mxu0 %v7115
        %7316 = vmatpush1.bf16.msra.mxu0 %v7114
        %7317 = vmatprep.subr.bf16.mxu0 %v7119
        %7318 = vmatpush1.bf16.msra.mxu0 %v7118
        %7319 = vmatprep.subr.bf16.mxu0 %v7123
        %7320 = vmatpush1.bf16.msra.mxu0 %v7122
        %7321 = vmatprep.subr.bf16.mxu0 %v7127
        %7322 = vmatpush1.bf16.msra.mxu0 %v7126
        %7323 = vmatprep.subr.bf16.mxu0 %v7131
        %7324 = vmatpush1.bf16.msra.mxu0 %v7130
        %7325 = vmatprep.subr.bf16.mxu0 %v7135
        %7326 = vmatpush1.bf16.msra.mxu0 %v7134
        %7327 = vmatprep.subr.bf16.mxu0 %v7139
        %7328 = vmatpush1.bf16.msra.mxu0 %v7138
        %7329 = vmatprep.subr.bf16.mxu0 %v7143
        %7330 = vmatpush1.bf16.msra.mxu0 %v7142
        %7331 = vmatprep.subr.bf16.mxu0 0
        %7332 = vmatpush1.bf16.msra.mxu0 0
        %7333 = vmatprep.subr.bf16.mxu0 0
        %7334 = vmatpush1.bf16.msra.mxu0 0
        %7335 = vmatprep.subr.bf16.mxu0 0
        %7336 = vmatpush1.bf16.msra.mxu0 0
        %7337 = vmatprep.subr.bf16.mxu0 0
        %7338 = vmatpush1.bf16.msra.mxu0 0
        %7339 = vmatprep.subr.bf16.mxu0 0
        %7340 = vmatpush1.bf16.msra.mxu0 0
        %7341 = vmatprep.subr.bf16.mxu0 0
        %7342 = vmatpush1.bf16.msra.mxu0 0
        %7343 = vmatprep.subr.bf16.mxu0 0
        %7344 = vmatpush1.bf16.msra.mxu0 0
        %7345 = vmatprep.subr.bf16.mxu0 0
        %7346 = vmatpush1.bf16.msra.mxu0 0
        %7347 = vmatprep.mubr.bf16.mxu0 0
        %7348 = vmatmul.mubr.bf16.gmra.mrb[0].mxu0 %v6634
        %v7349 = vpop.f32.mrb[0].mxu0
        %v7350 = vadd.f32 %v7277, %v7349
        %v7351 = vpop.f32.mrb[0].mxu0
        %v7352 = vadd.f32 %v7279, %v7351
        %v7353 = vpop.f32.mrb[0].mxu0
        %v7354 = vadd.f32 %v7281, %v7353
        %v7355 = vpop.f32.mrb[0].mxu0
        %v7356 = vadd.f32 %v7283, %v7355
        %7357 = vmatprep.mubr.bf16.mxu0 0
        %7358 = vmatmul.mubr.bf16.gmra.mrb[0].mxu0 %v6637
        %v7359 = vpop.f32.mrb[0].mxu0
        %v7360 = vadd.f32 %v7287, %v7359
        %v7361 = vpop.f32.mrb[0].mxu0
        %v7362 = vadd.f32 %v7289, %v7361
        %v7363 = vpop.f32.mrb[0].mxu0
        %v7364 = vadd.f32 %v7291, %v7363
        %v7365 = vpop.f32.mrb[0].mxu0
        %v7366 = vadd.f32 %v7293, %v7365
        %7367 = vmatprep.mubr.bf16.mxu0 0
        %7368 = vmatmul.mubr.bf16.gmra.mrb[0].mxu0 %v6640
        %v7369 = vpop.f32.mrb[0].mxu0
        %v7370 = vadd.f32 %v7297, %v7369
        %v7371 = vpop.f32.mrb[0].mxu0
        %v7372 = vadd.f32 %v7299, %v7371
        %v7373 = vpop.f32.mrb[0].mxu0
        %v7374 = vadd.f32 %v7301, %v7373
        %v7375 = vpop.f32.mrb[0].mxu0
        %v7376 = vadd.f32 %v7303, %v7375
        %7377 = vmatprep.mubr.bf16.mxu0 0
        %7378 = vmatmul.mubr.bf16.gmra.mrb[0].mxu0 %v6643
        %v7379 = vpop.f32.mrb[0].mxu0
        %v7380 = vadd.f32 %v7307, %v7379
        %v7381 = vpop.f32.mrb[0].mxu0
        %v7382 = vadd.f32 %v7309, %v7381
        %v7383 = vpop.f32.mrb[0].mxu0
        %v7384 = vadd.f32 %v7311, %v7383
        %v7385 = vpop.f32.mrb[0].mxu0
        %v7386 = vadd.f32 %v7313, %v7385
        %7387 = vdwg.mxu0
        %7388 = vmatprep.subr.bf16.mxu0 %v7053
        %7389 = vmatpush1.bf16.msra.mxu0 %v7052
        %7390 = vmatprep.subr.bf16.mxu0 %v7057
        %7391 = vmatpush1.bf16.msra.mxu0 %v7056
        %7392 = vmatprep.subr.bf16.mxu0 %v7061
        %7393 = vmatpush1.bf16.msra.mxu0 %v7060
        %7394 = vmatprep.subr.bf16.mxu0 %v7065
        %7395 = vmatpush1.bf16.msra.mxu0 %v7064
        %7396 = vmatprep.subr.bf16.mxu0 %v7069
        %7397 = vmatpush1.bf16.msra.mxu0 %v7068
        %7398 = vmatprep.subr.bf16.mxu0 %v7073
        %7399 = vmatpush1.bf16.msra.mxu0 %v7072
        %7400 = vmatprep.subr.bf16.mxu0 %v7077
        %7401 = vmatpush1.bf16.msra.mxu0 %v7076
        %7402 = vmatprep.subr.bf16.mxu0 %v7081
        %7403 = vmatpush1.bf16.msra.mxu0 %v7080
        %7404 = vmatprep.subr.bf16.mxu0 %v7085
        %7405 = vmatpush1.bf16.msra.mxu0 %v7084
        %7406 = vmatprep.subr.bf16.mxu0 %v7089
        %7407 = vmatpush1.bf16.msra.mxu0 %v7088
        %7408 = vmatprep.subr.bf16.mxu0 %v7093
        %7409 = vmatpush1.bf16.msra.mxu0 %v7092
        %7410 = vmatprep.subr.bf16.mxu0 %v7097
        %7411 = vmatpush1.bf16.msra.mxu0 %v7096
        %7412 = vmatprep.subr.bf16.mxu0 %v7101
        %7413 = vmatpush1.bf16.msra.mxu0 %v7100
        %7414 = vmatprep.subr.bf16.mxu0 %v7105
        %7415 = vmatpush1.bf16.msra.mxu0 %v7104
        %7416 = vmatprep.subr.bf16.mxu0 %v7109
        %7417 = vmatpush1.bf16.msra.mxu0 %v7108
        %7418 = vmatprep.subr.bf16.mxu0 %v7113
        %7419 = vmatpush1.bf16.msra.mxu0 %v7112
        %7420 = vmatprep.mubr.bf16.mxu0 %v6633
        %7421 = vmatmul.mubr.bf16.gmra.mrb[0].mxu0 %v6632
        %v7422 = vpop.f32.mrb[0].mxu0
        %v7423 = vadd.f32 %v6753, %v7422
        %v7424 = vpop.f32.mrb[0].mxu0
        %v7425 = vadd.f32 %v6757, %v7424
        %v7426 = vpop.f32.mrb[0].mxu0
        %v7427 = vadd.f32 %v6753, %v7426
        %v7428 = vpop.f32.mrb[0].mxu0
        %v7429 = vadd.f32 %v6757, %v7428
        %7430 = vmatprep.mubr.bf16.mxu0 %v6636
        %7431 = vmatmul.mubr.bf16.gmra.mrb[0].mxu0 %v6635
        %v7432 = vpop.f32.mrb[0].mxu0
        %v7433 = vadd.f32 %v6753, %v7432
        %v7434 = vpop.f32.mrb[0].mxu0
        %v7435 = vadd.f32 %v6757, %v7434
        %v7436 = vpop.f32.mrb[0].mxu0
        %v7437 = vadd.f32 %v6753, %v7436
        %v7438 = vpop.f32.mrb[0].mxu0
        %v7439 = vadd.f32 %v6757, %v7438
        %7440 = vmatprep.mubr.bf16.mxu0 %v6639
        %7441 = vmatmul.mubr.bf16.gmra.mrb[0].mxu0 %v6638
        %v7442 = vpop.f32.mrb[0].mxu0
        %v7443 = vadd.f32 %v6753, %v7442
        %v7444 = vpop.f32.mrb[0].mxu0
        %v7445 = vadd.f32 %v6757, %v7444
        %v7446 = vpop.f32.mrb[0].mxu0
        %v7447 = vadd.f32 %v6753, %v7446
        %v7448 = vpop.f32.mrb[0].mxu0
        %v7449 = vadd.f32 %v6757, %v7448
        %7450 = vmatprep.mubr.bf16.mxu0 %v6642
        %7451 = vmatmul.mubr.bf16.gmra.mrb[0].mxu0 %v6641
        %v7452 = vpop.f32.mrb[0].mxu0
        %v7453 = vadd.f32 %v6753, %v7452
        %v7454 = vpop.f32.mrb[0].mxu0
        %v7455 = vadd.f32 %v6757, %v7454
        %v7456 = vpop.f32.mrb[0].mxu0
        %v7457 = vadd.f32 %v6753, %v7456
        %v7458 = vpop.f32.mrb[0].mxu0
        %v7459 = vadd.f32 %v6757, %v7458
        %7460 = vdwg.mxu0
        %7461 = vmatprep.subr.bf16.mxu0 %v7117
        %7462 = vmatpush1.bf16.msra.mxu0 %v7116
        %7463 = vmatprep.subr.bf16.mxu0 %v7121
        %7464 = vmatpush1.bf16.msra.mxu0 %v7120
        %7465 = vmatprep.subr.bf16.mxu0 %v7125
        %7466 = vmatpush1.bf16.msra.mxu0 %v7124
        %7467 = vmatprep.subr.bf16.mxu0 %v7129
        %7468 = vmatpush1.bf16.msra.mxu0 %v7128
        %7469 = vmatprep.subr.bf16.mxu0 %v7133
        %7470 = vmatpush1.bf16.msra.mxu0 %v7132
        %7471 = vmatprep.subr.bf16.mxu0 %v7137
        %7472 = vmatpush1.bf16.msra.mxu0 %v7136
        %7473 = vmatprep.subr.bf16.mxu0 %v7141
        %7474 = vmatpush1.bf16.msra.mxu0 %v7140
        %7475 = vmatprep.subr.bf16.mxu0 %v7145
        %7476 = vmatpush1.bf16.msra.mxu0 %v7144
        %7477 = vmatprep.subr.bf16.mxu0 0
        %7478 = vmatpush1.bf16.msra.mxu0 0
        %7479 = vmatprep.subr.bf16.mxu0 0
        %7480 = vmatpush1.bf16.msra.mxu0 0
        %7481 = vmatprep.subr.bf16.mxu0 0
        %7482 = vmatpush1.bf16.msra.mxu0 0
        %7483 = vmatprep.subr.bf16.mxu0 0
        %7484 = vmatpush1.bf16.msra.mxu0 0
        %7485 = vmatprep.subr.bf16.mxu0 0
        %7486 = vmatpush1.bf16.msra.mxu0 0
        %7487 = vmatprep.subr.bf16.mxu0 0
        %7488 = vmatpush1.bf16.msra.mxu0 0
        %7489 = vmatprep.subr.bf16.mxu0 0
        %7490 = vmatpush1.bf16.msra.mxu0 0
        %7491 = vmatprep.subr.bf16.mxu0 0
        %7492 = vmatpush1.bf16.msra.mxu0 0
        %7493 = vmatprep.mubr.bf16.mxu0 0
        %7494 = vmatmul.mubr.bf16.gmra.mrb[0].mxu0 %v6634
        %v7495 = vpop.f32.mrb[0].mxu0
        %v7496 = vadd.f32 %v7423, %v7495
        %v7497 = vpop.f32.mrb[0].mxu0
        %v7498 = vadd.f32 %v7425, %v7497
        %v7499 = vpop.f32.mrb[0].mxu0
        %v7500 = vadd.f32 %v7427, %v7499
        %v7501 = vpop.f32.mrb[0].mxu0
        %v7502 = vadd.f32 %v7429, %v7501
        %7503 = vmatprep.mubr.bf16.mxu0 0
        %7504 = vmatmul.mubr.bf16.gmra.mrb[0].mxu0 %v6637
        %v7505 = vpop.f32.mrb[0].mxu0
        %v7506 = vadd.f32 %v7433, %v7505
        %v7507 = vpop.f32.mrb[0].mxu0
        %v7508 = vadd.f32 %v7435, %v7507
        %v7509 = vpop.f32.mrb[0].mxu0
        %v7510 = vadd.f32 %v7437, %v7509
        %v7511 = vpop.f32.mrb[0].mxu0
        %v7512 = vadd.f32 %v7439, %v7511
        %7513 = vmatprep.mubr.bf16.mxu0 0
        %7514 = vmatmul.mubr.bf16.gmra.mrb[0].mxu0 %v6640
        %v7515 = vpop.f32.mrb[0].mxu0
        %v7516 = vadd.f32 %v7443, %v7515
        %v7517 = vpop.f32.mrb[0].mxu0
        %v7518 = vadd.f32 %v7445, %v7517
        %v7519 = vpop.f32.mrb[0].mxu0
        %v7520 = vadd.f32 %v7447, %v7519
        %v7521 = vpop.f32.mrb[0].mxu0
        %v7522 = vadd.f32 %v7449, %v7521
        %7523 = vmatprep.mubr.bf16.mxu0 0
        %7524 = vmatmul.mubr.bf16.gmra.mrb[0].mxu0 %v6643
        %v7525 = vpop.f32.mrb[0].mxu0
        %v7526 = vadd.f32 %v7453, %v7525
        %v7527 = vpop.f32.mrb[0].mxu0
        %v7528 = vadd.f32 %v7455, %v7527
        %v7529 = vpop.f32.mrb[0].mxu0
        %v7530 = vadd.f32 %v7457, %v7529
        %v7531 = vpop.f32.mrb[0].mxu0
        %v7532 = vadd.f32 %v7459, %v7531
        %7533 = vdwg.mxu0
        %v7534 = vmul.f32 %v7350, 0.01
        %v7535 = vmul.f32 %v7352, 0.01
        %v7536 = vmul.f32 %v7496, 0.01
        %v7537 = vmul.f32 %v7498, 0.01
        %v7538 = vmul.f32 %v7354, 0.01
        %v7539 = vmul.f32 %v7356, 0.01
        %v7540 = vmul.f32 %v7500, 0.01
        %v7541 = vmul.f32 %v7502, 0.01
        %v7542 = vmul.f32 %v7360, 0.01
        %v7543 = vmul.f32 %v7362, 0.01
        %v7544 = vmul.f32 %v7506, 0.01
        %v7545 = vmul.f32 %v7508, 0.01
        %v7546 = vmul.f32 %v7364, 0.01
        %v7547 = vmul.f32 %v7366, 0.01
        %v7548 = vmul.f32 %v7510, 0.01
        %v7549 = vmul.f32 %v7512, 0.01
        %v7550 = vmul.f32 %v7370, 0.01
        %v7551 = vmul.f32 %v7372, 0.01
        %v7552 = vmul.f32 %v7516, 0.01
        %v7553 = vmul.f32 %v7518, 0.01
        %v7554 = vmul.f32 %v7374, 0.01
        %v7555 = vmul.f32 %v7376, 0.01
        %v7556 = vmul.f32 %v7520, 0.01
        %v7557 = vmul.f32 %v7522, 0.01
        %v7558 = vmul.f32 %v7380, 0.01
        %v7559 = vmul.f32 %v7382, 0.01
        %v7560 = vmul.f32 %v7526, 0.01
        %v7561 = vmul.f32 %v7528, 0.01
        %v7562 = vmul.f32 %v7384, 0.01
        %v7563 = vmul.f32 %v7386, 0.01
        %v7564 = vmul.f32 %v7530, 0.01
        %v7565 = vmul.f32 %v7532, 0.01
        %v7566 = vmax.f32 %v7350, %v7534
        %v7567 = vmax.f32 %v7352, %v7535
        %v7568 = vmax.f32 %v7496, %v7536
        %v7569 = vmax.f32 %v7498, %v7537
        %v7570 = vmax.f32 %v7354, %v7538
        %v7571 = vmax.f32 %v7356, %v7539
        %v7572 = vmax.f32 %v7500, %v7540
        %v7573 = vmax.f32 %v7502, %v7541
        %v7574 = vmax.f32 %v7360, %v7542
        %v7575 = vmax.f32 %v7362, %v7543
        %v7576 = vmax.f32 %v7506, %v7544
        %v7577 = vmax.f32 %v7508, %v7545
        %v7578 = vmax.f32 %v7364, %v7546
        %v7579 = vmax.f32 %v7366, %v7547
        %v7580 = vmax.f32 %v7510, %v7548
        %v7581 = vmax.f32 %v7512, %v7549
        %v7582 = vmax.f32 %v7370, %v7550
        %v7583 = vmax.f32 %v7372, %v7551
        %v7584 = vmax.f32 %v7516, %v7552
        %v7585 = vmax.f32 %v7518, %v7553
        %v7586 = vmax.f32 %v7374, %v7554
        %v7587 = vmax.f32 %v7376, %v7555
        %v7588 = vmax.f32 %v7520, %v7556
        %v7589 = vmax.f32 %v7522, %v7557
        %v7590 = vmax.f32 %v7380, %v7558
        %v7591 = vmax.f32 %v7382, %v7559
        %v7592 = vmax.f32 %v7526, %v7560
        %v7593 = vmax.f32 %v7528, %v7561
        %v7594 = vmax.f32 %v7384, %v7562
        %v7595 = vmax.f32 %v7386, %v7563
        %v7596 = vmax.f32 %v7530, %v7564
        %v7597 = vmax.f32 %v7532, %v7565
        %v7598 = vpack.c.bf16 %v7570, %v7566
        %v7599 = vpack.c.bf16 %v7571, %v7567
        %v7600 = vpack.c.bf16 %v7572, %v7568
        %v7601 = vpack.c.bf16 %v7573, %v7569
        %v7602 = vpack.c.bf16 %v7578, %v7574
        %v7603 = vpack.c.bf16 %v7579, %v7575
        %v7604 = vpack.c.bf16 %v7580, %v7576
        %v7605 = vpack.c.bf16 %v7581, %v7577
        %v7606 = vpack.c.bf16 %v7586, %v7582
        %v7607 = vpack.c.bf16 %v7587, %v7583
        %v7608 = vpack.c.bf16 %v7588, %v7584
        %v7609 = vpack.c.bf16 %v7589, %v7585
        %v7610 = vpack.c.bf16 %v7594, %v7590
        %v7611 = vpack.c.bf16 %v7595, %v7591
        %v7612 = vpack.c.bf16 %v7596, %v7592
        %v7613 = vpack.c.bf16 %v7597, %v7593
        %v7614 = vld [vmem:[%s57] sm:$0xff]
        %v7615 = vld [vmem:[%s57 + $0x8] sm:$0xff]
        %v7616 = vld [vmem:[%s57 + $0x10] sm:$0xff]
        %v7617 = vld [vmem:[%s57 + $0x18] sm:$0xff]
        %v7618 = vld [vmem:[%s57 + $0x20] sm:$0xff]
        %v7619 = vld [vmem:[%s57 + $0x28] sm:$0xff]
        %v7620 = vld [vmem:[%s57 + $0x30] sm:$0xff]
        %v7621 = vld [vmem:[%s57 + $0x38] sm:$0xff]
        %v7622 = vld [vmem:[%s57 + $0x40] sm:$0xff]
        %v7623 = vld [vmem:[%s57 + $0x48] sm:$0xff]
        %v7624 = vld [vmem:[%s57 + $0x50] sm:$0xff]
        %v7625 = vld [vmem:[%s57 + $0x58] sm:$0xff]
        %v7626 = vld [vmem:[%s57 + $0x60] sm:$0xff]
        %v7627 = vld [vmem:[%s57 + $0x68] sm:$0xff]
        %v7628 = vld [vmem:[%s57 + $0x70] sm:$0xff]
        %v7629 = vld [vmem:[%s57 + $0x78] sm:$0xff]
        %v7630 = vld [vmem:[%s57 + $0x80] sm:$0xff]
        %v7631 = vld [vmem:[%s57 + $0x88] sm:$0xff]
        %v7632 = vld [vmem:[%s57 + $0x90] sm:$0xff]
        %v7633 = vld [vmem:[%s57 + $0x98] sm:$0xff]
        %v7634 = vld [vmem:[%s57 + $0xa0] sm:$0xff]
        %v7635 = vld [vmem:[%s57 + $0xa8] sm:$0xff]
        %v7636 = vld [vmem:[%s57 + $0xb0] sm:$0xff]
        %v7637 = vld [vmem:[%s57 + $0xb8] sm:$0xff]
        %v7638 = vld [vmem:[%s57 + $0xc0] sm:$0xff]
        %v7639 = vld [vmem:[%s57 + $0xc8] sm:$0xff]
        %v7640 = vld [vmem:[%s57 + $0xd0] sm:$0xff]
        %v7641 = vld [vmem:[%s57 + $0xd8] sm:$0xff]
        %v7642 = vld [vmem:[%s57 + $0xe0] sm:$0xff]
        %v7643 = vld [vmem:[%s57 + $0xe8] sm:$0xff]
        %v7644 = vld [vmem:[%s57 + $0xf0] sm:$0xff]
        %v7645 = vld [vmem:[%s57 + $0xf8] sm:$0xff]
        %v7646 = vld [vmem:[%s57 + $0x100] sm:$0xff]
        %v7647 = vld [vmem:[%s57 + $0x108] sm:$0xff]
        %v7648 = vld [vmem:[%s57 + $0x110] sm:$0xff]
        %v7649 = vld [vmem:[%s57 + $0x118] sm:$0xff]
        %v7650 = vld [vmem:[%s57 + $0x120] sm:$0xff]
        %v7651 = vld [vmem:[%s57 + $0x128] sm:$0xff]
        %v7652 = vld [vmem:[%s57 + $0x130] sm:$0xff]
        %v7653 = vld [vmem:[%s57 + $0x138] sm:$0xff]
        %v7654 = vld [vmem:[%s57 + $0x140] sm:$0xff]
        %v7655 = vld [vmem:[%s57 + $0x148] sm:$0xff]
        %v7656 = vld [vmem:[%s57 + $0x150] sm:$0xff]
        %v7657 = vld [vmem:[%s57 + $0x158] sm:$0xff]
        %v7658 = vld [vmem:[%s57 + $0x160] sm:$0xff]
        %v7659 = vld [vmem:[%s57 + $0x168] sm:$0xff]
        %v7660 = vld [vmem:[%s57 + $0x170] sm:$0xff]
        %v7661 = vld [vmem:[%s57 + $0x178] sm:$0xff]
        %v7662 = vld [vmem:[%s57 + $0x180] sm:$0xff]
        %v7663 = vld [vmem:[%s57 + $0x188] sm:$0xff]
        %v7664 = vld [vmem:[%s57 + $0x190] sm:$0xff]
        %v7665 = vld [vmem:[%s57 + $0x198] sm:$0xff]
        %v7666 = vld [vmem:[%s57 + $0x1a0] sm:$0xff]
        %v7667 = vld [vmem:[%s57 + $0x1a8] sm:$0xff]
        %v7668 = vld [vmem:[%s57 + $0x1b0] sm:$0xff]
        %v7669 = vld [vmem:[%s57 + $0x1b8] sm:$0xff]
        %v7670 = vld [vmem:[%s57 + $0x1c0] sm:$0xff]
        %v7671 = vld [vmem:[%s57 + $0x1c8] sm:$0xff]
        %v7672 = vld [vmem:[%s57 + $0x1d0] sm:$0xff]
        %v7673 = vld [vmem:[%s57 + $0x1d8] sm:$0xff]
        %v7674 = vld [vmem:[%s57 + $0x1e0] sm:$0xff]
        %v7675 = vld [vmem:[%s57 + $0x1e8] sm:$0xff]
        %v7676 = vld [vmem:[%s57 + $0x1f0] sm:$0xff]
        %v7677 = vld [vmem:[%s57 + $0x1f8] sm:$0xff]
        %v7678 = vld [vmem:[%s59] sm:$0x3]
        %v7680 = vlaneseq
        %v7681 = vshrl.u32 %v7680, 7
        %v7682 = vsub.s32 0, %v7681
        %v7683 = vrot.slane %v7678, %v7682
        %v7684 = vlaneseq
        %v7685 = vshrl.u32 %v7684, 7
        %v7686 = vsub.s32 1, %v7685
        %v7687 = vrot.slane %v7678, %v7686
        %v7754 = vunpack.c.l.b16 %v7614
        %v7755 = vunpack.c.h.b16 %v7614
        %v7756 = vunpack.c.l.b16 %v7615
        %v7757 = vunpack.c.h.b16 %v7615
        %v7758 = vunpack.c.l.b16 %v7616
        %v7759 = vunpack.c.h.b16 %v7616
        %v7760 = vunpack.c.l.b16 %v7617
        %v7761 = vunpack.c.h.b16 %v7617
        %v7762 = vunpack.c.l.b16 %v7618
        %v7763 = vunpack.c.h.b16 %v7618
        %v7764 = vunpack.c.l.b16 %v7619
        %v7765 = vunpack.c.h.b16 %v7619
        %v7766 = vunpack.c.l.b16 %v7620
        %v7767 = vunpack.c.h.b16 %v7620
        %v7768 = vunpack.c.l.b16 %v7621
        %v7769 = vunpack.c.h.b16 %v7621
        %v7770 = vunpack.c.l.b16 %v7622
        %v7771 = vunpack.c.h.b16 %v7622
        %v7772 = vunpack.c.l.b16 %v7623
        %v7773 = vunpack.c.h.b16 %v7623
        %v7774 = vunpack.c.l.b16 %v7624
        %v7775 = vunpack.c.h.b16 %v7624
        %v7776 = vunpack.c.l.b16 %v7625
        %v7777 = vunpack.c.h.b16 %v7625
        %v7778 = vunpack.c.l.b16 %v7626
        %v7779 = vunpack.c.h.b16 %v7626
        %v7780 = vunpack.c.l.b16 %v7627
        %v7781 = vunpack.c.h.b16 %v7627
        %v7782 = vunpack.c.l.b16 %v7628
        %v7783 = vunpack.c.h.b16 %v7628
        %v7784 = vunpack.c.l.b16 %v7629
        %v7785 = vunpack.c.h.b16 %v7629
        %v7786 = vunpack.c.l.b16 %v7630
        %v7787 = vunpack.c.h.b16 %v7630
        %v7788 = vunpack.c.l.b16 %v7631
        %v7789 = vunpack.c.h.b16 %v7631
        %v7790 = vunpack.c.l.b16 %v7632
        %v7791 = vunpack.c.h.b16 %v7632
        %v7792 = vunpack.c.l.b16 %v7633
        %v7793 = vunpack.c.h.b16 %v7633
        %v7794 = vunpack.c.l.b16 %v7634
        %v7795 = vunpack.c.h.b16 %v7634
        %v7796 = vunpack.c.l.b16 %v7635
        %v7797 = vunpack.c.h.b16 %v7635
        %v7798 = vunpack.c.l.b16 %v7636
        %v7799 = vunpack.c.h.b16 %v7636
        %v7800 = vunpack.c.l.b16 %v7637
        %v7801 = vunpack.c.h.b16 %v7637
        %v7802 = vunpack.c.l.b16 %v7638
        %v7803 = vunpack.c.h.b16 %v7638
        %v7804 = vunpack.c.l.b16 %v7639
        %v7805 = vunpack.c.h.b16 %v7639
        %v7806 = vunpack.c.l.b16 %v7640
        %v7807 = vunpack.c.h.b16 %v7640
        %v7808 = vunpack.c.l.b16 %v7641
        %v7809 = vunpack.c.h.b16 %v7641
        %v7810 = vunpack.c.l.b16 %v7642
        %v7811 = vunpack.c.h.b16 %v7642
        %v7812 = vunpack.c.l.b16 %v7643
        %v7813 = vunpack.c.h.b16 %v7643
        %v7814 = vunpack.c.l.b16 %v7644
        %v7815 = vunpack.c.h.b16 %v7644
        %v7816 = vunpack.c.l.b16 %v7645
        %v7817 = vunpack.c.h.b16 %v7645
        %v7818 = vunpack.c.l.b16 %v7646
        %v7819 = vunpack.c.h.b16 %v7646
        %v7820 = vunpack.c.l.b16 %v7647
        %v7821 = vunpack.c.h.b16 %v7647
        %v7822 = vunpack.c.l.b16 %v7648
        %v7823 = vunpack.c.h.b16 %v7648
        %v7824 = vunpack.c.l.b16 %v7649
        %v7825 = vunpack.c.h.b16 %v7649
        %v7826 = vunpack.c.l.b16 %v7650
        %v7827 = vunpack.c.h.b16 %v7650
        %v7828 = vunpack.c.l.b16 %v7651
        %v7829 = vunpack.c.h.b16 %v7651
        %v7830 = vunpack.c.l.b16 %v7652
        %v7831 = vunpack.c.h.b16 %v7652
        %v7832 = vunpack.c.l.b16 %v7653
        %v7833 = vunpack.c.h.b16 %v7653
        %v7834 = vunpack.c.l.b16 %v7654
        %v7835 = vunpack.c.h.b16 %v7654
        %v7836 = vunpack.c.l.b16 %v7655
        %v7837 = vunpack.c.h.b16 %v7655
        %v7838 = vunpack.c.l.b16 %v7656
        %v7839 = vunpack.c.h.b16 %v7656
        %v7840 = vunpack.c.l.b16 %v7657
        %v7841 = vunpack.c.h.b16 %v7657
        %v7842 = vunpack.c.l.b16 %v7658
        %v7843 = vunpack.c.h.b16 %v7658
        %v7844 = vunpack.c.l.b16 %v7659
        %v7845 = vunpack.c.h.b16 %v7659
        %v7846 = vunpack.c.l.b16 %v7660
        %v7847 = vunpack.c.h.b16 %v7660
        %v7848 = vunpack.c.l.b16 %v7661
        %v7849 = vunpack.c.h.b16 %v7661
        %v7850 = vunpack.c.l.b16 %v7662
        %v7851 = vunpack.c.h.b16 %v7662
        %v7852 = vunpack.c.l.b16 %v7663
        %v7853 = vunpack.c.h.b16 %v7663
        %v7854 = vunpack.c.l.b16 %v7664
        %v7855 = vunpack.c.h.b16 %v7664
        %v7856 = vunpack.c.l.b16 %v7665
        %v7857 = vunpack.c.h.b16 %v7665
        %v7858 = vunpack.c.l.b16 %v7666
        %v7859 = vunpack.c.h.b16 %v7666
        %v7860 = vunpack.c.l.b16 %v7667
        %v7861 = vunpack.c.h.b16 %v7667
        %v7862 = vunpack.c.l.b16 %v7668
        %v7863 = vunpack.c.h.b16 %v7668
        %v7864 = vunpack.c.l.b16 %v7669
        %v7865 = vunpack.c.h.b16 %v7669
        %v7866 = vunpack.c.l.b16 %v7670
        %v7867 = vunpack.c.h.b16 %v7670
        %v7868 = vunpack.c.l.b16 %v7671
        %v7869 = vunpack.c.h.b16 %v7671
        %v7870 = vunpack.c.l.b16 %v7672
        %v7871 = vunpack.c.h.b16 %v7672
        %v7872 = vunpack.c.l.b16 %v7673
        %v7873 = vunpack.c.h.b16 %v7673
        %v7874 = vunpack.c.l.b16 %v7674
        %v7875 = vunpack.c.h.b16 %v7674
        %v7876 = vunpack.c.l.b16 %v7675
        %v7877 = vunpack.c.h.b16 %v7675
        %v7878 = vunpack.c.l.b16 %v7676
        %v7879 = vunpack.c.h.b16 %v7676
        %v7880 = vunpack.c.l.b16 %v7677
        %v7881 = vunpack.c.h.b16 %v7677
        %v7882 = vpack.c.b16 %v7756, %v7754
        %v7883 = vpack.c.b16 %v7757, %v7755
        %v7884 = vpack.c.b16 %v7760, %v7758
        %v7885 = vpack.c.b16 %v7761, %v7759
        %v7886 = vpack.c.b16 %v7764, %v7762
        %v7887 = vpack.c.b16 %v7765, %v7763
        %v7888 = vpack.c.b16 %v7768, %v7766
        %v7889 = vpack.c.b16 %v7769, %v7767
        %v7890 = vpack.c.b16 %v7772, %v7770
        %v7891 = vpack.c.b16 %v7773, %v7771
        %v7892 = vpack.c.b16 %v7776, %v7774
        %v7893 = vpack.c.b16 %v7777, %v7775
        %v7894 = vpack.c.b16 %v7780, %v7778
        %v7895 = vpack.c.b16 %v7781, %v7779
        %v7896 = vpack.c.b16 %v7784, %v7782
        %v7897 = vpack.c.b16 %v7785, %v7783
        %v7898 = vpack.c.b16 %v7788, %v7786
        %v7899 = vpack.c.b16 %v7789, %v7787
        %v7900 = vpack.c.b16 %v7792, %v7790
        %v7901 = vpack.c.b16 %v7793, %v7791
        %v7902 = vpack.c.b16 %v7796, %v7794
        %v7903 = vpack.c.b16 %v7797, %v7795
        %v7904 = vpack.c.b16 %v7800, %v7798
        %v7905 = vpack.c.b16 %v7801, %v7799
        %v7906 = vpack.c.b16 %v7804, %v7802
        %v7907 = vpack.c.b16 %v7805, %v7803
        %v7908 = vpack.c.b16 %v7808, %v7806
        %v7909 = vpack.c.b16 %v7809, %v7807
        %v7910 = vpack.c.b16 %v7812, %v7810
        %v7911 = vpack.c.b16 %v7813, %v7811
        %v7912 = vpack.c.b16 %v7816, %v7814
        %v7913 = vpack.c.b16 %v7817, %v7815
        %v7914 = vpack.c.b16 %v7820, %v7818
        %v7915 = vpack.c.b16 %v7821, %v7819
        %v7916 = vpack.c.b16 %v7824, %v7822
        %v7917 = vpack.c.b16 %v7825, %v7823
        %v7918 = vpack.c.b16 %v7828, %v7826
        %v7919 = vpack.c.b16 %v7829, %v7827
        %v7920 = vpack.c.b16 %v7832, %v7830
        %v7921 = vpack.c.b16 %v7833, %v7831
        %v7922 = vpack.c.b16 %v7836, %v7834
        %v7923 = vpack.c.b16 %v7837, %v7835
        %v7924 = vpack.c.b16 %v7840, %v7838
        %v7925 = vpack.c.b16 %v7841, %v7839
        %v7926 = vpack.c.b16 %v7844, %v7842
        %v7927 = vpack.c.b16 %v7845, %v7843
        %v7928 = vpack.c.b16 %v7848, %v7846
        %v7929 = vpack.c.b16 %v7849, %v7847
        %v7930 = vpack.c.b16 %v7852, %v7850
        %v7931 = vpack.c.b16 %v7853, %v7851
        %v7932 = vpack.c.b16 %v7856, %v7854
        %v7933 = vpack.c.b16 %v7857, %v7855
        %v7934 = vpack.c.b16 %v7860, %v7858
        %v7935 = vpack.c.b16 %v7861, %v7859
        %v7936 = vpack.c.b16 %v7864, %v7862
        %v7937 = vpack.c.b16 %v7865, %v7863
        %v7938 = vpack.c.b16 %v7868, %v7866
        %v7939 = vpack.c.b16 %v7869, %v7867
        %v7940 = vpack.c.b16 %v7872, %v7870
        %v7941 = vpack.c.b16 %v7873, %v7871
        %v7942 = vpack.c.b16 %v7876, %v7874
        %v7943 = vpack.c.b16 %v7877, %v7875
        %v7944 = vpack.c.b16 %v7880, %v7878
        %v7945 = vpack.c.b16 %v7881, %v7879
        %8010 = vmatprep.subr.bf16.mxu0 %v7883
        %8011 = vmatpush1.bf16.msra.mxu0 %v7882
        %8012 = vmatprep.subr.bf16.mxu0 %v7885
        %8013 = vmatpush1.bf16.msra.mxu0 %v7884
        %8014 = vmatprep.subr.bf16.mxu0 %v7887
        %8015 = vmatpush1.bf16.msra.mxu0 %v7886
        %8016 = vmatprep.subr.bf16.mxu0 %v7889
        %8017 = vmatpush1.bf16.msra.mxu0 %v7888
        %8018 = vmatprep.subr.bf16.mxu0 %v7891
        %8019 = vmatpush1.bf16.msra.mxu0 %v7890
        %8020 = vmatprep.subr.bf16.mxu0 %v7893
        %8021 = vmatpush1.bf16.msra.mxu0 %v7892
        %8022 = vmatprep.subr.bf16.mxu0 %v7895
        %8023 = vmatpush1.bf16.msra.mxu0 %v7894
        %8024 = vmatprep.subr.bf16.mxu0 %v7897
        %8025 = vmatpush1.bf16.msra.mxu0 %v7896
        %8026 = vmatprep.subr.bf16.mxu0 %v7899
        %8027 = vmatpush1.bf16.msra.mxu0 %v7898
        %8028 = vmatprep.subr.bf16.mxu0 %v7901
        %8029 = vmatpush1.bf16.msra.mxu0 %v7900
        %8030 = vmatprep.subr.bf16.mxu0 %v7903
        %8031 = vmatpush1.bf16.msra.mxu0 %v7902
        %8032 = vmatprep.subr.bf16.mxu0 %v7905
        %8033 = vmatpush1.bf16.msra.mxu0 %v7904
        %8034 = vmatprep.subr.bf16.mxu0 %v7907
        %8035 = vmatpush1.bf16.msra.mxu0 %v7906
        %8036 = vmatprep.subr.bf16.mxu0 %v7909
        %8037 = vmatpush1.bf16.msra.mxu0 %v7908
        %8038 = vmatprep.subr.bf16.mxu0 %v7911
        %8039 = vmatpush1.bf16.msra.mxu0 %v7910
        %8040 = vmatprep.subr.bf16.mxu0 %v7913
        %8041 = vmatpush1.bf16.msra.mxu0 %v7912
        %8042 = vmatprep.mubr.bf16.mxu0 %v7599
        %8043 = vmatmul.mubr.bf16.gmra.mrb[0].mxu0 %v7598
        %v8044 = vpop.f32.mrb[0].mxu0
        %v8045 = vadd.f32 %v7683, %v8044
        %v8046 = vpop.f32.mrb[0].mxu0
        %v8047 = vadd.f32 %v7687, %v8046
        %v8048 = vpop.f32.mrb[0].mxu0
        %v8049 = vadd.f32 %v7683, %v8048
        %v8050 = vpop.f32.mrb[0].mxu0
        %v8051 = vadd.f32 %v7687, %v8050
        %8052 = vmatprep.mubr.bf16.mxu0 %v7603
        %8053 = vmatmul.mubr.bf16.gmra.mrb[0].mxu0 %v7602
        %v8054 = vpop.f32.mrb[0].mxu0
        %v8055 = vadd.f32 %v7683, %v8054
        %v8056 = vpop.f32.mrb[0].mxu0
        %v8057 = vadd.f32 %v7687, %v8056
        %v8058 = vpop.f32.mrb[0].mxu0
        %v8059 = vadd.f32 %v7683, %v8058
        %v8060 = vpop.f32.mrb[0].mxu0
        %v8061 = vadd.f32 %v7687, %v8060
        %8062 = vmatprep.mubr.bf16.mxu0 %v7607
        %8063 = vmatmul.mubr.bf16.gmra.mrb[0].mxu0 %v7606
        %v8064 = vpop.f32.mrb[0].mxu0
        %v8065 = vadd.f32 %v7683, %v8064
        %v8066 = vpop.f32.mrb[0].mxu0
        %v8067 = vadd.f32 %v7687, %v8066
        %v8068 = vpop.f32.mrb[0].mxu0
        %v8069 = vadd.f32 %v7683, %v8068
        %v8070 = vpop.f32.mrb[0].mxu0
        %v8071 = vadd.f32 %v7687, %v8070
        %8072 = vmatprep.mubr.bf16.mxu0 %v7611
        %8073 = vmatmul.mubr.bf16.gmra.mrb[0].mxu0 %v7610
        %v8074 = vpop.f32.mrb[0].mxu0
        %v8075 = vadd.f32 %v7683, %v8074
        %v8076 = vpop.f32.mrb[0].mxu0
        %v8077 = vadd.f32 %v7687, %v8076
        %v8078 = vpop.f32.mrb[0].mxu0
        %v8079 = vadd.f32 %v7683, %v8078
        %v8080 = vpop.f32.mrb[0].mxu0
        %v8081 = vadd.f32 %v7687, %v8080
        %8082 = vdwg.mxu0
        %8083 = vmatprep.subr.bf16.mxu0 %v7915
        %8084 = vmatpush1.bf16.msra.mxu0 %v7914
        %8085 = vmatprep.subr.bf16.mxu0 %v7917
        %8086 = vmatpush1.bf16.msra.mxu0 %v7916
        %8087 = vmatprep.subr.bf16.mxu0 %v7919
        %8088 = vmatpush1.bf16.msra.mxu0 %v7918
        %8089 = vmatprep.subr.bf16.mxu0 %v7921
        %8090 = vmatpush1.bf16.msra.mxu0 %v7920
        %8091 = vmatprep.subr.bf16.mxu0 %v7923
        %8092 = vmatpush1.bf16.msra.mxu0 %v7922
        %8093 = vmatprep.subr.bf16.mxu0 %v7925
        %8094 = vmatpush1.bf16.msra.mxu0 %v7924
        %8095 = vmatprep.subr.bf16.mxu0 %v7927
        %8096 = vmatpush1.bf16.msra.mxu0 %v7926
        %8097 = vmatprep.subr.bf16.mxu0 %v7929
        %8098 = vmatpush1.bf16.msra.mxu0 %v7928
        %8099 = vmatprep.subr.bf16.mxu0 %v7931
        %8100 = vmatpush1.bf16.msra.mxu0 %v7930
        %8101 = vmatprep.subr.bf16.mxu0 %v7933
        %8102 = vmatpush1.bf16.msra.mxu0 %v7932
        %8103 = vmatprep.subr.bf16.mxu0 %v7935
        %8104 = vmatpush1.bf16.msra.mxu0 %v7934
        %8105 = vmatprep.subr.bf16.mxu0 %v7937
        %8106 = vmatpush1.bf16.msra.mxu0 %v7936
        %8107 = vmatprep.subr.bf16.mxu0 %v7939
        %8108 = vmatpush1.bf16.msra.mxu0 %v7938
        %8109 = vmatprep.subr.bf16.mxu0 %v7941
        %8110 = vmatpush1.bf16.msra.mxu0 %v7940
        %8111 = vmatprep.subr.bf16.mxu0 %v7943
        %8112 = vmatpush1.bf16.msra.mxu0 %v7942
        %8113 = vmatprep.subr.bf16.mxu0 %v7945
        %8114 = vmatpush1.bf16.msra.mxu0 %v7944
        %8115 = vmatprep.mubr.bf16.mxu0 %v7601
        %8116 = vmatmul.mubr.bf16.gmra.mrb[0].mxu0 %v7600
        %v8117 = vpop.f32.mrb[0].mxu0
        %v8118 = vadd.f32 %v8045, %v8117
        %v8119 = vpop.f32.mrb[0].mxu0
        %v8120 = vadd.f32 %v8047, %v8119
        %v8121 = vpop.f32.mrb[0].mxu0
        %v8122 = vadd.f32 %v8049, %v8121
        %v8123 = vpop.f32.mrb[0].mxu0
        %v8124 = vadd.f32 %v8051, %v8123
        %8125 = vmatprep.mubr.bf16.mxu0 %v7605
        %8126 = vmatmul.mubr.bf16.gmra.mrb[0].mxu0 %v7604
        %v8127 = vpop.f32.mrb[0].mxu0
        %v8128 = vadd.f32 %v8055, %v8127
        %v8129 = vpop.f32.mrb[0].mxu0
        %v8130 = vadd.f32 %v8057, %v8129
        %v8131 = vpop.f32.mrb[0].mxu0
        %v8132 = vadd.f32 %v8059, %v8131
        %v8133 = vpop.f32.mrb[0].mxu0
        %v8134 = vadd.f32 %v8061, %v8133
        %8135 = vmatprep.mubr.bf16.mxu0 %v7609
        %8136 = vmatmul.mubr.bf16.gmra.mrb[0].mxu0 %v7608
        %v8137 = vpop.f32.mrb[0].mxu0
        %v8138 = vadd.f32 %v8065, %v8137
        %v8139 = vpop.f32.mrb[0].mxu0
        %v8140 = vadd.f32 %v8067, %v8139
        %v8141 = vpop.f32.mrb[0].mxu0
        %v8142 = vadd.f32 %v8069, %v8141
        %v8143 = vpop.f32.mrb[0].mxu0
        %v8144 = vadd.f32 %v8071, %v8143
        %8145 = vmatprep.mubr.bf16.mxu0 %v7613
        %8146 = vmatmul.mubr.bf16.gmra.mrb[0].mxu0 %v7612
        %v8147 = vpop.f32.mrb[0].mxu0
        %v8148 = vadd.f32 %v8075, %v8147
        %v8149 = vpop.f32.mrb[0].mxu0
        %v8150 = vadd.f32 %v8077, %v8149
        %v8151 = vpop.f32.mrb[0].mxu0
        %v8152 = vadd.f32 %v8079, %v8151
        %v8153 = vpop.f32.mrb[0].mxu0
        %v8154 = vadd.f32 %v8081, %v8153
        %8155 = vdwg.mxu0
        %v8156 = vmul.f32 %v8118, 0.01
        %v8157 = vmul.f32 %v8120, 0.01
        %v8158 = vmul.f32 %v8122, 0.01
        %v8159 = vmul.f32 %v8124, 0.01
        %v8160 = vmul.f32 %v8128, 0.01
        %v8161 = vmul.f32 %v8130, 0.01
        %v8162 = vmul.f32 %v8132, 0.01
        %v8163 = vmul.f32 %v8134, 0.01
        %v8164 = vmul.f32 %v8138, 0.01
        %v8165 = vmul.f32 %v8140, 0.01
        %v8166 = vmul.f32 %v8142, 0.01
        %v8167 = vmul.f32 %v8144, 0.01
        %v8168 = vmul.f32 %v8148, 0.01
        %v8169 = vmul.f32 %v8150, 0.01
        %v8170 = vmul.f32 %v8152, 0.01
        %v8171 = vmul.f32 %v8154, 0.01
        %v8172 = vmax.f32 %v8118, %v8156
        %v8173 = vmax.f32 %v8120, %v8157
        %v8174 = vmax.f32 %v8122, %v8158
        %v8175 = vmax.f32 %v8124, %v8159
        %v8176 = vmax.f32 %v8128, %v8160
        %v8177 = vmax.f32 %v8130, %v8161
        %v8178 = vmax.f32 %v8132, %v8162
        %v8179 = vmax.f32 %v8134, %v8163
        %v8180 = vmax.f32 %v8138, %v8164
        %v8181 = vmax.f32 %v8140, %v8165
        %v8182 = vmax.f32 %v8142, %v8166
        %v8183 = vmax.f32 %v8144, %v8167
        %v8184 = vmax.f32 %v8148, %v8168
        %v8185 = vmax.f32 %v8150, %v8169
        %v8186 = vmax.f32 %v8152, %v8170
        %v8187 = vmax.f32 %v8154, %v8171
        %v8188 = vpack.c.bf16 %v8174, %v8172
        %v8189 = vpack.c.bf16 %v8175, %v8173
        %v8190 = vpack.c.bf16 %v8178, %v8176
        %v8191 = vpack.c.bf16 %v8179, %v8177
        %v8192 = vpack.c.bf16 %v8182, %v8180
        %v8193 = vpack.c.bf16 %v8183, %v8181
        %v8194 = vpack.c.bf16 %v8186, %v8184
        %v8195 = vpack.c.bf16 %v8187, %v8185
        %v8196 = vld [vmem:[%s61] sm:$0xff]
        %v8197 = vld [vmem:[%s61 + $0x8] sm:$0xff]
        %v8198 = vld [vmem:[%s61 + $0x10] sm:$0xff]
        %v8199 = vld [vmem:[%s61 + $0x18] sm:$0xff]
        %v8200 = vld [vmem:[%s61 + $0x20] sm:$0xff]
        %v8201 = vld [vmem:[%s61 + $0x28] sm:$0xff]
        %v8202 = vld [vmem:[%s61 + $0x30] sm:$0xff]
        %v8203 = vld [vmem:[%s61 + $0x38] sm:$0xff]
        %v8204 = vld [vmem:[%s61 + $0x40] sm:$0xff]
        %v8205 = vld [vmem:[%s61 + $0x48] sm:$0xff]
        %v8206 = vld [vmem:[%s61 + $0x50] sm:$0xff]
        %v8207 = vld [vmem:[%s61 + $0x58] sm:$0xff]
        %v8208 = vld [vmem:[%s61 + $0x60] sm:$0xff]
        %v8209 = vld [vmem:[%s61 + $0x68] sm:$0xff]
        %v8210 = vld [vmem:[%s61 + $0x70] sm:$0xff]
        %v8211 = vld [vmem:[%s61 + $0x78] sm:$0xff]
        %v8212 = vld [vmem:[%s61 + $0x80] sm:$0xff]
        %v8213 = vld [vmem:[%s61 + $0x88] sm:$0xff]
        %v8214 = vld [vmem:[%s61 + $0x90] sm:$0xff]
        %v8215 = vld [vmem:[%s61 + $0x98] sm:$0xff]
        %v8216 = vld [vmem:[%s61 + $0xa0] sm:$0xff]
        %v8217 = vld [vmem:[%s61 + $0xa8] sm:$0xff]
        %v8218 = vld [vmem:[%s61 + $0xb0] sm:$0xff]
        %v8219 = vld [vmem:[%s61 + $0xb8] sm:$0xff]
        %v8220 = vld [vmem:[%s61 + $0xc0] sm:$0xff]
        %v8221 = vld [vmem:[%s61 + $0xc8] sm:$0xff]
        %v8222 = vld [vmem:[%s61 + $0xd0] sm:$0xff]
        %v8223 = vld [vmem:[%s61 + $0xd8] sm:$0xff]
        %v8224 = vld [vmem:[%s61 + $0xe0] sm:$0xff]
        %v8225 = vld [vmem:[%s61 + $0xe8] sm:$0xff]
        %v8226 = vld [vmem:[%s61 + $0xf0] sm:$0xff]
        %v8227 = vld [vmem:[%s61 + $0xf8] sm:$0xff]
        %v8228 = vld [vmem:[%s61 + $0x100] sm:$0xff]
        %v8229 = vld [vmem:[%s61 + $0x108] sm:$0xff]
        %v8230 = vld [vmem:[%s61 + $0x110] sm:$0xff]
        %v8231 = vld [vmem:[%s61 + $0x118] sm:$0xff]
        %v8232 = vld [vmem:[%s61 + $0x120] sm:$0xff]
        %v8233 = vld [vmem:[%s61 + $0x128] sm:$0xff]
        %v8234 = vld [vmem:[%s61 + $0x130] sm:$0xff]
        %v8235 = vld [vmem:[%s61 + $0x138] sm:$0xff]
        %v8236 = vld [vmem:[%s61 + $0x140] sm:$0xff]
        %v8237 = vld [vmem:[%s61 + $0x148] sm:$0xff]
        %v8238 = vld [vmem:[%s61 + $0x150] sm:$0xff]
        %v8239 = vld [vmem:[%s61 + $0x158] sm:$0xff]
        %v8240 = vld [vmem:[%s61 + $0x160] sm:$0xff]
        %v8241 = vld [vmem:[%s61 + $0x168] sm:$0xff]
        %v8242 = vld [vmem:[%s61 + $0x170] sm:$0xff]
        %v8243 = vld [vmem:[%s61 + $0x178] sm:$0xff]
        %v8244 = vld [vmem:[%s61 + $0x180] sm:$0xff]
        %v8245 = vld [vmem:[%s61 + $0x188] sm:$0xff]
        %v8246 = vld [vmem:[%s61 + $0x190] sm:$0xff]
        %v8247 = vld [vmem:[%s61 + $0x198] sm:$0xff]
        %v8248 = vld [vmem:[%s61 + $0x1a0] sm:$0xff]
        %v8249 = vld [vmem:[%s61 + $0x1a8] sm:$0xff]
        %v8250 = vld [vmem:[%s61 + $0x1b0] sm:$0xff]
        %v8251 = vld [vmem:[%s61 + $0x1b8] sm:$0xff]
        %v8252 = vld [vmem:[%s61 + $0x1c0] sm:$0xff]
        %v8253 = vld [vmem:[%s61 + $0x1c8] sm:$0xff]
        %v8254 = vld [vmem:[%s61 + $0x1d0] sm:$0xff]
        %v8255 = vld [vmem:[%s61 + $0x1d8] sm:$0xff]
        %v8256 = vld [vmem:[%s61 + $0x1e0] sm:$0xff]
        %v8257 = vld [vmem:[%s61 + $0x1e8] sm:$0xff]
        %v8258 = vld [vmem:[%s61 + $0x1f0] sm:$0xff]
        %v8259 = vld [vmem:[%s61 + $0x1f8] sm:$0xff]
        %v8260 = vld [vmem:[%s63] sm:$0xf]
        %v8262 = vlaneseq
        %v8263 = vshrl.u32 %v8262, 7
        %v8264 = vsub.s32 0, %v8263
        %v8265 = vrot.slane %v8260, %v8264
        %v8266 = vlaneseq
        %v8267 = vshrl.u32 %v8266, 7
        %v8268 = vsub.s32 1, %v8267
        %v8269 = vrot.slane %v8260, %v8268
        %v8270 = vlaneseq
        %v8271 = vshrl.u32 %v8270, 7
        %v8272 = vsub.s32 2, %v8271
        %v8273 = vrot.slane %v8260, %v8272
        %v8274 = vlaneseq
        %v8275 = vshrl.u32 %v8274, 7
        %v8276 = vsub.s32 3, %v8275
        %v8277 = vrot.slane %v8260, %v8276
        %v8346 = vunpack.c.l.b16 %v8196
        %v8347 = vunpack.c.h.b16 %v8196
        %v8348 = vunpack.c.l.b16 %v8197
        %v8349 = vunpack.c.h.b16 %v8197
        %v8350 = vunpack.c.l.b16 %v8198
        %v8351 = vunpack.c.h.b16 %v8198
        %v8352 = vunpack.c.l.b16 %v8199
        %v8353 = vunpack.c.h.b16 %v8199
        %v8354 = vunpack.c.l.b16 %v8200
        %v8355 = vunpack.c.h.b16 %v8200
        %v8356 = vunpack.c.l.b16 %v8201
        %v8357 = vunpack.c.h.b16 %v8201
        %v8358 = vunpack.c.l.b16 %v8202
        %v8359 = vunpack.c.h.b16 %v8202
        %v8360 = vunpack.c.l.b16 %v8203
        %v8361 = vunpack.c.h.b16 %v8203
        %v8362 = vunpack.c.l.b16 %v8204
        %v8363 = vunpack.c.h.b16 %v8204
        %v8364 = vunpack.c.l.b16 %v8205
        %v8365 = vunpack.c.h.b16 %v8205
        %v8366 = vunpack.c.l.b16 %v8206
        %v8367 = vunpack.c.h.b16 %v8206
        %v8368 = vunpack.c.l.b16 %v8207
        %v8369 = vunpack.c.h.b16 %v8207
        %v8370 = vunpack.c.l.b16 %v8208
        %v8371 = vunpack.c.h.b16 %v8208
        %v8372 = vunpack.c.l.b16 %v8209
        %v8373 = vunpack.c.h.b16 %v8209
        %v8374 = vunpack.c.l.b16 %v8210
        %v8375 = vunpack.c.h.b16 %v8210
        %v8376 = vunpack.c.l.b16 %v8211
        %v8377 = vunpack.c.h.b16 %v8211
        %v8378 = vunpack.c.l.b16 %v8212
        %v8379 = vunpack.c.h.b16 %v8212
        %v8380 = vunpack.c.l.b16 %v8213
        %v8381 = vunpack.c.h.b16 %v8213
        %v8382 = vunpack.c.l.b16 %v8214
        %v8383 = vunpack.c.h.b16 %v8214
        %v8384 = vunpack.c.l.b16 %v8215
        %v8385 = vunpack.c.h.b16 %v8215
        %v8386 = vunpack.c.l.b16 %v8216
        %v8387 = vunpack.c.h.b16 %v8216
        %v8388 = vunpack.c.l.b16 %v8217
        %v8389 = vunpack.c.h.b16 %v8217
        %v8390 = vunpack.c.l.b16 %v8218
        %v8391 = vunpack.c.h.b16 %v8218
        %v8392 = vunpack.c.l.b16 %v8219
        %v8393 = vunpack.c.h.b16 %v8219
        %v8394 = vunpack.c.l.b16 %v8220
        %v8395 = vunpack.c.h.b16 %v8220
        %v8396 = vunpack.c.l.b16 %v8221
        %v8397 = vunpack.c.h.b16 %v8221
        %v8398 = vunpack.c.l.b16 %v8222
        %v8399 = vunpack.c.h.b16 %v8222
        %v8400 = vunpack.c.l.b16 %v8223
        %v8401 = vunpack.c.h.b16 %v8223
        %v8402 = vunpack.c.l.b16 %v8224
        %v8403 = vunpack.c.h.b16 %v8224
        %v8404 = vunpack.c.l.b16 %v8225
        %v8405 = vunpack.c.h.b16 %v8225
        %v8406 = vunpack.c.l.b16 %v8226
        %v8407 = vunpack.c.h.b16 %v8226
        %v8408 = vunpack.c.l.b16 %v8227
        %v8409 = vunpack.c.h.b16 %v8227
        %v8410 = vunpack.c.l.b16 %v8228
        %v8411 = vunpack.c.h.b16 %v8228
        %v8412 = vunpack.c.l.b16 %v8229
        %v8413 = vunpack.c.h.b16 %v8229
        %v8414 = vunpack.c.l.b16 %v8230
        %v8415 = vunpack.c.h.b16 %v8230
        %v8416 = vunpack.c.l.b16 %v8231
        %v8417 = vunpack.c.h.b16 %v8231
        %v8418 = vunpack.c.l.b16 %v8232
        %v8419 = vunpack.c.h.b16 %v8232
        %v8420 = vunpack.c.l.b16 %v8233
        %v8421 = vunpack.c.h.b16 %v8233
        %v8422 = vunpack.c.l.b16 %v8234
        %v8423 = vunpack.c.h.b16 %v8234
        %v8424 = vunpack.c.l.b16 %v8235
        %v8425 = vunpack.c.h.b16 %v8235
        %v8426 = vunpack.c.l.b16 %v8236
        %v8427 = vunpack.c.h.b16 %v8236
        %v8428 = vunpack.c.l.b16 %v8237
        %v8429 = vunpack.c.h.b16 %v8237
        %v8430 = vunpack.c.l.b16 %v8238
        %v8431 = vunpack.c.h.b16 %v8238
        %v8432 = vunpack.c.l.b16 %v8239
        %v8433 = vunpack.c.h.b16 %v8239
        %v8434 = vunpack.c.l.b16 %v8240
        %v8435 = vunpack.c.h.b16 %v8240
        %v8436 = vunpack.c.l.b16 %v8241
        %v8437 = vunpack.c.h.b16 %v8241
        %v8438 = vunpack.c.l.b16 %v8242
        %v8439 = vunpack.c.h.b16 %v8242
        %v8440 = vunpack.c.l.b16 %v8243
        %v8441 = vunpack.c.h.b16 %v8243
        %v8442 = vunpack.c.l.b16 %v8244
        %v8443 = vunpack.c.h.b16 %v8244
        %v8444 = vunpack.c.l.b16 %v8245
        %v8445 = vunpack.c.h.b16 %v8245
        %v8446 = vunpack.c.l.b16 %v8246
        %v8447 = vunpack.c.h.b16 %v8246
        %v8448 = vunpack.c.l.b16 %v8247
        %v8449 = vunpack.c.h.b16 %v8247
        %v8450 = vunpack.c.l.b16 %v8248
        %v8451 = vunpack.c.h.b16 %v8248
        %v8452 = vunpack.c.l.b16 %v8249
        %v8453 = vunpack.c.h.b16 %v8249
        %v8454 = vunpack.c.l.b16 %v8250
        %v8455 = vunpack.c.h.b16 %v8250
        %v8456 = vunpack.c.l.b16 %v8251
        %v8457 = vunpack.c.h.b16 %v8251
        %v8458 = vunpack.c.l.b16 %v8252
        %v8459 = vunpack.c.h.b16 %v8252
        %v8460 = vunpack.c.l.b16 %v8253
        %v8461 = vunpack.c.h.b16 %v8253
        %v8462 = vunpack.c.l.b16 %v8254
        %v8463 = vunpack.c.h.b16 %v8254
        %v8464 = vunpack.c.l.b16 %v8255
        %v8465 = vunpack.c.h.b16 %v8255
        %v8466 = vunpack.c.l.b16 %v8256
        %v8467 = vunpack.c.h.b16 %v8256
        %v8468 = vunpack.c.l.b16 %v8257
        %v8469 = vunpack.c.h.b16 %v8257
        %v8470 = vunpack.c.l.b16 %v8258
        %v8471 = vunpack.c.h.b16 %v8258
        %v8472 = vunpack.c.l.b16 %v8259
        %v8473 = vunpack.c.h.b16 %v8259
        %v8474 = vpack.c.b16 %v8350, %v8346
        %v8475 = vpack.c.b16 %v8351, %v8347
        %v8476 = vpack.c.b16 %v8352, %v8348
        %v8477 = vpack.c.b16 %v8353, %v8349
        %v8478 = vpack.c.b16 %v8358, %v8354
        %v8479 = vpack.c.b16 %v8359, %v8355
        %v8480 = vpack.c.b16 %v8360, %v8356
        %v8481 = vpack.c.b16 %v8361, %v8357
        %v8482 = vpack.c.b16 %v8366, %v8362
        %v8483 = vpack.c.b16 %v8367, %v8363
        %v8484 = vpack.c.b16 %v8368, %v8364
        %v8485 = vpack.c.b16 %v8369, %v8365
        %v8486 = vpack.c.b16 %v8374, %v8370
        %v8487 = vpack.c.b16 %v8375, %v8371
        %v8488 = vpack.c.b16 %v8376, %v8372
        %v8489 = vpack.c.b16 %v8377, %v8373
        %v8490 = vpack.c.b16 %v8382, %v8378
        %v8491 = vpack.c.b16 %v8383, %v8379
        %v8492 = vpack.c.b16 %v8384, %v8380
        %v8493 = vpack.c.b16 %v8385, %v8381
        %v8494 = vpack.c.b16 %v8390, %v8386
        %v8495 = vpack.c.b16 %v8391, %v8387
        %v8496 = vpack.c.b16 %v8392, %v8388
        %v8497 = vpack.c.b16 %v8393, %v8389
        %v8498 = vpack.c.b16 %v8398, %v8394
        %v8499 = vpack.c.b16 %v8399, %v8395
        %v8500 = vpack.c.b16 %v8400, %v8396
        %v8501 = vpack.c.b16 %v8401, %v8397
        %v8502 = vpack.c.b16 %v8406, %v8402
        %v8503 = vpack.c.b16 %v8407, %v8403
        %v8504 = vpack.c.b16 %v8408, %v8404
        %v8505 = vpack.c.b16 %v8409, %v8405
        %v8506 = vpack.c.b16 %v8414, %v8410
        %v8507 = vpack.c.b16 %v8415, %v8411
        %v8508 = vpack.c.b16 %v8416, %v8412
        %v8509 = vpack.c.b16 %v8417, %v8413
        %v8510 = vpack.c.b16 %v8422, %v8418
        %v8511 = vpack.c.b16 %v8423, %v8419
        %v8512 = vpack.c.b16 %v8424, %v8420
        %v8513 = vpack.c.b16 %v8425, %v8421
        %v8514 = vpack.c.b16 %v8430, %v8426
        %v8515 = vpack.c.b16 %v8431, %v8427
        %v8516 = vpack.c.b16 %v8432, %v8428
        %v8517 = vpack.c.b16 %v8433, %v8429
        %v8518 = vpack.c.b16 %v8438, %v8434
        %v8519 = vpack.c.b16 %v8439, %v8435
        %v8520 = vpack.c.b16 %v8440, %v8436
        %v8521 = vpack.c.b16 %v8441, %v8437
        %v8522 = vpack.c.b16 %v8446, %v8442
        %v8523 = vpack.c.b16 %v8447, %v8443
        %v8524 = vpack.c.b16 %v8448, %v8444
        %v8525 = vpack.c.b16 %v8449, %v8445
        %v8526 = vpack.c.b16 %v8454, %v8450
        %v8527 = vpack.c.b16 %v8455, %v8451
        %v8528 = vpack.c.b16 %v8456, %v8452
        %v8529 = vpack.c.b16 %v8457, %v8453
        %v8530 = vpack.c.b16 %v8462, %v8458
        %v8531 = vpack.c.b16 %v8463, %v8459
        %v8532 = vpack.c.b16 %v8464, %v8460
        %v8533 = vpack.c.b16 %v8465, %v8461
        %v8534 = vpack.c.b16 %v8470, %v8466
        %v8535 = vpack.c.b16 %v8471, %v8467
        %v8536 = vpack.c.b16 %v8472, %v8468
        %v8537 = vpack.c.b16 %v8473, %v8469
        %8602 = vmatprep.subr.bf16.mxu0 %v8475
        %8603 = vmatpush1.bf16.msra.mxu0 %v8474
        %8604 = vmatprep.subr.bf16.mxu0 %v8479
        %8605 = vmatpush1.bf16.msra.mxu0 %v8478
        %8606 = vmatprep.subr.bf16.mxu0 %v8483
        %8607 = vmatpush1.bf16.msra.mxu0 %v8482
        %8608 = vmatprep.subr.bf16.mxu0 %v8487
        %8609 = vmatpush1.bf16.msra.mxu0 %v8486
        %8610 = vmatprep.subr.bf16.mxu0 %v8491
        %8611 = vmatpush1.bf16.msra.mxu0 %v8490
        %8612 = vmatprep.subr.bf16.mxu0 %v8495
        %8613 = vmatpush1.bf16.msra.mxu0 %v8494
        %8614 = vmatprep.subr.bf16.mxu0 %v8499
        %8615 = vmatpush1.bf16.msra.mxu0 %v8498
        %8616 = vmatprep.subr.bf16.mxu0 %v8503
        %8617 = vmatpush1.bf16.msra.mxu0 %v8502
        %8618 = vmatprep.subr.bf16.mxu0 %v8507
        %8619 = vmatpush1.bf16.msra.mxu0 %v8506
        %8620 = vmatprep.subr.bf16.mxu0 %v8511
        %8621 = vmatpush1.bf16.msra.mxu0 %v8510
        %8622 = vmatprep.subr.bf16.mxu0 %v8515
        %8623 = vmatpush1.bf16.msra.mxu0 %v8514
        %8624 = vmatprep.subr.bf16.mxu0 %v8519
        %8625 = vmatpush1.bf16.msra.mxu0 %v8518
        %8626 = vmatprep.subr.bf16.mxu0 %v8523
        %8627 = vmatpush1.bf16.msra.mxu0 %v8522
        %8628 = vmatprep.subr.bf16.mxu0 %v8527
        %8629 = vmatpush1.bf16.msra.mxu0 %v8526
        %8630 = vmatprep.subr.bf16.mxu0 %v8531
        %8631 = vmatpush1.bf16.msra.mxu0 %v8530
        %8632 = vmatprep.subr.bf16.mxu0 %v8535
        %8633 = vmatpush1.bf16.msra.mxu0 %v8534
        %8634 = vmatprep.mubr.bf16.mxu0 %v8189
        %8635 = vmatmul.mubr.bf16.gmra.mrb[0].mxu0 %v8188
        %v8636 = vpop.f32.mrb[0].mxu0
        %v8637 = vadd.f32 %v8265, %v8636
        %v8638 = vpop.f32.mrb[0].mxu0
        %v8639 = vadd.f32 %v8269, %v8638
        %v8640 = vpop.f32.mrb[0].mxu0
        %v8641 = vadd.f32 %v8265, %v8640
        %v8642 = vpop.f32.mrb[0].mxu0
        %v8643 = vadd.f32 %v8269, %v8642
        %8644 = vmatprep.mubr.bf16.mxu0 %v8191
        %8645 = vmatmul.mubr.bf16.gmra.mrb[0].mxu0 %v8190
        %v8646 = vpop.f32.mrb[0].mxu0
        %v8647 = vadd.f32 %v8265, %v8646
        %v8648 = vpop.f32.mrb[0].mxu0
        %v8649 = vadd.f32 %v8269, %v8648
        %v8650 = vpop.f32.mrb[0].mxu0
        %v8651 = vadd.f32 %v8265, %v8650
        %v8652 = vpop.f32.mrb[0].mxu0
        %v8653 = vadd.f32 %v8269, %v8652
        %8654 = vmatprep.mubr.bf16.mxu0 %v8193
        %8655 = vmatmul.mubr.bf16.gmra.mrb[0].mxu0 %v8192
        %v8656 = vpop.f32.mrb[0].mxu0
        %v8657 = vadd.f32 %v8265, %v8656
        %v8658 = vpop.f32.mrb[0].mxu0
        %v8659 = vadd.f32 %v8269, %v8658
        %v8660 = vpop.f32.mrb[0].mxu0
        %v8661 = vadd.f32 %v8265, %v8660
        %v8662 = vpop.f32.mrb[0].mxu0
        %v8663 = vadd.f32 %v8269, %v8662
        %8664 = vmatprep.mubr.bf16.mxu0 %v8195
        %8665 = vmatmul.mubr.bf16.gmra.mrb[0].mxu0 %v8194
        %v8666 = vpop.f32.mrb[0].mxu0
        %v8667 = vadd.f32 %v8265, %v8666
        %v8668 = vpop.f32.mrb[0].mxu0
        %v8669 = vadd.f32 %v8269, %v8668
        %v8670 = vpop.f32.mrb[0].mxu0
        %v8671 = vadd.f32 %v8265, %v8670
        %v8672 = vpop.f32.mrb[0].mxu0
        %v8673 = vadd.f32 %v8269, %v8672
        %8674 = vdwg.mxu0
        %8675 = vmatprep.subr.bf16.mxu0 %v8477
        %8676 = vmatpush1.bf16.msra.mxu0 %v8476
        %8677 = vmatprep.subr.bf16.mxu0 %v8481
        %8678 = vmatpush1.bf16.msra.mxu0 %v8480
        %8679 = vmatprep.subr.bf16.mxu0 %v8485
        %8680 = vmatpush1.bf16.msra.mxu0 %v8484
        %8681 = vmatprep.subr.bf16.mxu0 %v8489
        %8682 = vmatpush1.bf16.msra.mxu0 %v8488
        %8683 = vmatprep.subr.bf16.mxu0 %v8493
        %8684 = vmatpush1.bf16.msra.mxu0 %v8492
        %8685 = vmatprep.subr.bf16.mxu0 %v8497
        %8686 = vmatpush1.bf16.msra.mxu0 %v8496
        %8687 = vmatprep.subr.bf16.mxu0 %v8501
        %8688 = vmatpush1.bf16.msra.mxu0 %v8500
        %8689 = vmatprep.subr.bf16.mxu0 %v8505
        %8690 = vmatpush1.bf16.msra.mxu0 %v8504
        %8691 = vmatprep.subr.bf16.mxu0 %v8509
        %8692 = vmatpush1.bf16.msra.mxu0 %v8508
        %8693 = vmatprep.subr.bf16.mxu0 %v8513
        %8694 = vmatpush1.bf16.msra.mxu0 %v8512
        %8695 = vmatprep.subr.bf16.mxu0 %v8517
        %8696 = vmatpush1.bf16.msra.mxu0 %v8516
        %8697 = vmatprep.subr.bf16.mxu0 %v8521
        %8698 = vmatpush1.bf16.msra.mxu0 %v8520
        %8699 = vmatprep.subr.bf16.mxu0 %v8525
        %8700 = vmatpush1.bf16.msra.mxu0 %v8524
        %8701 = vmatprep.subr.bf16.mxu0 %v8529
        %8702 = vmatpush1.bf16.msra.mxu0 %v8528
        %8703 = vmatprep.subr.bf16.mxu0 %v8533
        %8704 = vmatpush1.bf16.msra.mxu0 %v8532
        %8705 = vmatprep.subr.bf16.mxu0 %v8537
        %8706 = vmatpush1.bf16.msra.mxu0 %v8536
        %8707 = vmatprep.mubr.bf16.mxu0 %v8189
        %8708 = vmatmul.mubr.bf16.gmra.mrb[0].mxu0 %v8188
        %v8709 = vpop.f32.mrb[0].mxu0
        %v8710 = vadd.f32 %v8273, %v8709
        %v8711 = vpop.f32.mrb[0].mxu0
        %v8712 = vadd.f32 %v8277, %v8711
        %v8713 = vpop.f32.mrb[0].mxu0
        %v8714 = vadd.f32 %v8273, %v8713
        %v8715 = vpop.f32.mrb[0].mxu0
        %v8716 = vadd.f32 %v8277, %v8715
        %8717 = vmatprep.mubr.bf16.mxu0 %v8191
        %8718 = vmatmul.mubr.bf16.gmra.mrb[0].mxu0 %v8190
        %v8719 = vpop.f32.mrb[0].mxu0
        %v8720 = vadd.f32 %v8273, %v8719
        %v8721 = vpop.f32.mrb[0].mxu0
        %v8722 = vadd.f32 %v8277, %v8721
        %v8723 = vpop.f32.mrb[0].mxu0
        %v8724 = vadd.f32 %v8273, %v8723
        %v8725 = vpop.f32.mrb[0].mxu0
        %v8726 = vadd.f32 %v8277, %v8725
        %8727 = vmatprep.mubr.bf16.mxu0 %v8193
        %8728 = vmatmul.mubr.bf16.gmra.mrb[0].mxu0 %v8192
        %v8729 = vpop.f32.mrb[0].mxu0
        %v8730 = vadd.f32 %v8273, %v8729
        %v8731 = vpop.f32.mrb[0].mxu0
        %v8732 = vadd.f32 %v8277, %v8731
        %v8733 = vpop.f32.mrb[0].mxu0
        %v8734 = vadd.f32 %v8273, %v8733
        %v8735 = vpop.f32.mrb[0].mxu0
        %v8736 = vadd.f32 %v8277, %v8735
        %8737 = vmatprep.mubr.bf16.mxu0 %v8195
        %8738 = vmatmul.mubr.bf16.gmra.mrb[0].mxu0 %v8194
        %v8739 = vpop.f32.mrb[0].mxu0
        %v8740 = vadd.f32 %v8273, %v8739
        %v8741 = vpop.f32.mrb[0].mxu0
        %v8742 = vadd.f32 %v8277, %v8741
        %v8743 = vpop.f32.mrb[0].mxu0
        %v8744 = vadd.f32 %v8273, %v8743
        %v8745 = vpop.f32.mrb[0].mxu0
        %v8746 = vadd.f32 %v8277, %v8745
        %8747 = vdwg.mxu0
        %v8748 = vmul.f32 %v8637, 0.01
        %v8749 = vmul.f32 %v8639, 0.01
        %v8750 = vmul.f32 %v8710, 0.01
        %v8751 = vmul.f32 %v8712, 0.01
        %v8752 = vmul.f32 %v8641, 0.01
        %v8753 = vmul.f32 %v8643, 0.01
        %v8754 = vmul.f32 %v8714, 0.01
        %v8755 = vmul.f32 %v8716, 0.01
        %v8756 = vmul.f32 %v8647, 0.01
        %v8757 = vmul.f32 %v8649, 0.01
        %v8758 = vmul.f32 %v8720, 0.01
        %v8759 = vmul.f32 %v8722, 0.01
        %v8760 = vmul.f32 %v8651, 0.01
        %v8761 = vmul.f32 %v8653, 0.01
        %v8762 = vmul.f32 %v8724, 0.01
        %v8763 = vmul.f32 %v8726, 0.01
        %v8764 = vmul.f32 %v8657, 0.01
        %v8765 = vmul.f32 %v8659, 0.01
        %v8766 = vmul.f32 %v8730, 0.01
        %v8767 = vmul.f32 %v8732, 0.01
        %v8768 = vmul.f32 %v8661, 0.01
        %v8769 = vmul.f32 %v8663, 0.01
        %v8770 = vmul.f32 %v8734, 0.01
        %v8771 = vmul.f32 %v8736, 0.01
        %v8772 = vmul.f32 %v8667, 0.01
        %v8773 = vmul.f32 %v8669, 0.01
        %v8774 = vmul.f32 %v8740, 0.01
        %v8775 = vmul.f32 %v8742, 0.01
        %v8776 = vmul.f32 %v8671, 0.01
        %v8777 = vmul.f32 %v8673, 0.01
        %v8778 = vmul.f32 %v8744, 0.01
        %v8779 = vmul.f32 %v8746, 0.01
        %v8780 = vmax.f32 %v8637, %v8748
        %v8781 = vmax.f32 %v8639, %v8749
        %v8782 = vmax.f32 %v8710, %v8750
        %v8783 = vmax.f32 %v8712, %v8751
        %v8784 = vmax.f32 %v8641, %v8752
        %v8785 = vmax.f32 %v8643, %v8753
        %v8786 = vmax.f32 %v8714, %v8754
        %v8787 = vmax.f32 %v8716, %v8755
        %v8788 = vmax.f32 %v8647, %v8756
        %v8789 = vmax.f32 %v8649, %v8757
        %v8790 = vmax.f32 %v8720, %v8758
        %v8791 = vmax.f32 %v8722, %v8759
        %v8792 = vmax.f32 %v8651, %v8760
        %v8793 = vmax.f32 %v8653, %v8761
        %v8794 = vmax.f32 %v8724, %v8762
        %v8795 = vmax.f32 %v8726, %v8763
        %v8796 = vmax.f32 %v8657, %v8764
        %v8797 = vmax.f32 %v8659, %v8765
        %v8798 = vmax.f32 %v8730, %v8766
        %v8799 = vmax.f32 %v8732, %v8767
        %v8800 = vmax.f32 %v8661, %v8768
        %v8801 = vmax.f32 %v8663, %v8769
        %v8802 = vmax.f32 %v8734, %v8770
        %v8803 = vmax.f32 %v8736, %v8771
        %v8804 = vmax.f32 %v8667, %v8772
        %v8805 = vmax.f32 %v8669, %v8773
        %v8806 = vmax.f32 %v8740, %v8774
        %v8807 = vmax.f32 %v8742, %v8775
        %v8808 = vmax.f32 %v8671, %v8776
        %v8809 = vmax.f32 %v8673, %v8777
        %v8810 = vmax.f32 %v8744, %v8778
        %v8811 = vmax.f32 %v8746, %v8779
        %v8812 = vpack.c.bf16 %v8784, %v8780
        %v8813 = vpack.c.bf16 %v8785, %v8781
        %v8814 = vpack.c.bf16 %v8786, %v8782
        %v8815 = vpack.c.bf16 %v8787, %v8783
        %v8816 = vpack.c.bf16 %v8792, %v8788
        %v8817 = vpack.c.bf16 %v8793, %v8789
        %v8818 = vpack.c.bf16 %v8794, %v8790
        %v8819 = vpack.c.bf16 %v8795, %v8791
        %v8820 = vpack.c.bf16 %v8800, %v8796
        %v8821 = vpack.c.bf16 %v8801, %v8797
        %v8822 = vpack.c.bf16 %v8802, %v8798
        %v8823 = vpack.c.bf16 %v8803, %v8799
        %v8824 = vpack.c.bf16 %v8808, %v8804
        %v8825 = vpack.c.bf16 %v8809, %v8805
        %v8826 = vpack.c.bf16 %v8810, %v8806
        %v8827 = vpack.c.bf16 %v8811, %v8807
        %v8828 = vld [vmem:[%s65] sm:$0xff]
        %v8829 = vld [vmem:[%s65 + $0x8] sm:$0xff]
        %v8830 = vld [vmem:[%s65 + $0x10] sm:$0xff]
        %v8831 = vld [vmem:[%s65 + $0x18] sm:$0xff]
        %v8832 = vld [vmem:[%s65 + $0x20] sm:$0xff]
        %v8833 = vld [vmem:[%s65 + $0x28] sm:$0xff]
        %v8834 = vld [vmem:[%s65 + $0x30] sm:$0xff]
        %v8835 = vld [vmem:[%s65 + $0x38] sm:$0xff]
        %v8836 = vld [vmem:[%s65 + $0x40] sm:$0xff]
        %v8837 = vld [vmem:[%s65 + $0x48] sm:$0xff]
        %v8838 = vld [vmem:[%s65 + $0x50] sm:$0xff]
        %v8839 = vld [vmem:[%s65 + $0x58] sm:$0xff]
        %v8840 = vld [vmem:[%s65 + $0x60] sm:$0xff]
        %v8841 = vld [vmem:[%s65 + $0x68] sm:$0xff]
        %v8842 = vld [vmem:[%s65 + $0x70] sm:$0xff]
        %v8843 = vld [vmem:[%s65 + $0x78] sm:$0xff]
        %v8844 = vld [vmem:[%s65 + $0x80] sm:$0xff]
        %v8845 = vld [vmem:[%s65 + $0x88] sm:$0xff]
        %v8846 = vld [vmem:[%s65 + $0x90] sm:$0xff]
        %v8847 = vld [vmem:[%s65 + $0x98] sm:$0xff]
        %v8848 = vld [vmem:[%s65 + $0xa0] sm:$0xff]
        %v8849 = vld [vmem:[%s65 + $0xa8] sm:$0xff]
        %v8850 = vld [vmem:[%s65 + $0xb0] sm:$0xff]
        %v8851 = vld [vmem:[%s65 + $0xb8] sm:$0xff]
        %v8852 = vld [vmem:[%s65 + $0xc0] sm:$0xff]
        %v8853 = vld [vmem:[%s65 + $0xc8] sm:$0xff]
        %v8854 = vld [vmem:[%s65 + $0xd0] sm:$0xff]
        %v8855 = vld [vmem:[%s65 + $0xd8] sm:$0xff]
        %v8856 = vld [vmem:[%s65 + $0xe0] sm:$0xff]
        %v8857 = vld [vmem:[%s65 + $0xe8] sm:$0xff]
        %v8858 = vld [vmem:[%s65 + $0xf0] sm:$0xff]
        %v8859 = vld [vmem:[%s65 + $0xf8] sm:$0xff]
        %v8860 = vld [vmem:[%s65 + $0x100] sm:$0xff]
        %v8861 = vld [vmem:[%s65 + $0x108] sm:$0xff]
        %v8862 = vld [vmem:[%s65 + $0x110] sm:$0xff]
        %v8863 = vld [vmem:[%s65 + $0x118] sm:$0xff]
        %v8864 = vld [vmem:[%s65 + $0x120] sm:$0xff]
        %v8865 = vld [vmem:[%s65 + $0x128] sm:$0xff]
        %v8866 = vld [vmem:[%s65 + $0x130] sm:$0xff]
        %v8867 = vld [vmem:[%s65 + $0x138] sm:$0xff]
        %v8868 = vld [vmem:[%s65 + $0x140] sm:$0xff]
        %v8869 = vld [vmem:[%s65 + $0x148] sm:$0xff]
        %v8870 = vld [vmem:[%s65 + $0x150] sm:$0xff]
        %v8871 = vld [vmem:[%s65 + $0x158] sm:$0xff]
        %v8872 = vld [vmem:[%s65 + $0x160] sm:$0xff]
        %v8873 = vld [vmem:[%s65 + $0x168] sm:$0xff]
        %v8874 = vld [vmem:[%s65 + $0x170] sm:$0xff]
        %v8875 = vld [vmem:[%s65 + $0x178] sm:$0xff]
        %v8876 = vld [vmem:[%s65 + $0x180] sm:$0xff]
        %v8877 = vld [vmem:[%s65 + $0x188] sm:$0xff]
        %v8878 = vld [vmem:[%s65 + $0x190] sm:$0xff]
        %v8879 = vld [vmem:[%s65 + $0x198] sm:$0xff]
        %v8880 = vld [vmem:[%s65 + $0x1a0] sm:$0xff]
        %v8881 = vld [vmem:[%s65 + $0x1a8] sm:$0xff]
        %v8882 = vld [vmem:[%s65 + $0x1b0] sm:$0xff]
        %v8883 = vld [vmem:[%s65 + $0x1b8] sm:$0xff]
        %v8884 = vld [vmem:[%s65 + $0x1c0] sm:$0xff]
        %v8885 = vld [vmem:[%s65 + $0x1c8] sm:$0xff]
        %v8886 = vld [vmem:[%s65 + $0x1d0] sm:$0xff]
        %v8887 = vld [vmem:[%s65 + $0x1d8] sm:$0xff]
        %v8888 = vld [vmem:[%s65 + $0x1e0] sm:$0xff]
        %v8889 = vld [vmem:[%s65 + $0x1e8] sm:$0xff]
        %v8890 = vld [vmem:[%s65 + $0x1f0] sm:$0xff]
        %v8891 = vld [vmem:[%s65 + $0x1f8] sm:$0xff]
        %v8892 = vld [vmem:[%s67] sm:$0x3]
        %v8894 = vlaneseq
        %v8895 = vshrl.u32 %v8894, 7
        %v8896 = vsub.s32 0, %v8895
        %v8897 = vrot.slane %v8892, %v8896
        %v8898 = vlaneseq
        %v8899 = vshrl.u32 %v8898, 7
        %v8900 = vsub.s32 1, %v8899
        %v8901 = vrot.slane %v8892, %v8900
        %v8968 = vunpack.c.l.b16 %v8828
        %v8969 = vunpack.c.h.b16 %v8828
        %v8970 = vunpack.c.l.b16 %v8829
        %v8971 = vunpack.c.h.b16 %v8829
        %v8972 = vunpack.c.l.b16 %v8830
        %v8973 = vunpack.c.h.b16 %v8830
        %v8974 = vunpack.c.l.b16 %v8831
        %v8975 = vunpack.c.h.b16 %v8831
        %v8976 = vunpack.c.l.b16 %v8832
        %v8977 = vunpack.c.h.b16 %v8832
        %v8978 = vunpack.c.l.b16 %v8833
        %v8979 = vunpack.c.h.b16 %v8833
        %v8980 = vunpack.c.l.b16 %v8834
        %v8981 = vunpack.c.h.b16 %v8834
        %v8982 = vunpack.c.l.b16 %v8835
        %v8983 = vunpack.c.h.b16 %v8835
        %v8984 = vunpack.c.l.b16 %v8836
        %v8985 = vunpack.c.h.b16 %v8836
        %v8986 = vunpack.c.l.b16 %v8837
        %v8987 = vunpack.c.h.b16 %v8837
        %v8988 = vunpack.c.l.b16 %v8838
        %v8989 = vunpack.c.h.b16 %v8838
        %v8990 = vunpack.c.l.b16 %v8839
        %v8991 = vunpack.c.h.b16 %v8839
        %v8992 = vunpack.c.l.b16 %v8840
        %v8993 = vunpack.c.h.b16 %v8840
        %v8994 = vunpack.c.l.b16 %v8841
        %v8995 = vunpack.c.h.b16 %v8841
        %v8996 = vunpack.c.l.b16 %v8842
        %v8997 = vunpack.c.h.b16 %v8842
        %v8998 = vunpack.c.l.b16 %v8843
        %v8999 = vunpack.c.h.b16 %v8843
        %v9000 = vunpack.c.l.b16 %v8844
        %v9001 = vunpack.c.h.b16 %v8844
        %v9002 = vunpack.c.l.b16 %v8845
        %v9003 = vunpack.c.h.b16 %v8845
        %v9004 = vunpack.c.l.b16 %v8846
        %v9005 = vunpack.c.h.b16 %v8846
        %v9006 = vunpack.c.l.b16 %v8847
        %v9007 = vunpack.c.h.b16 %v8847
        %v9008 = vunpack.c.l.b16 %v8848
        %v9009 = vunpack.c.h.b16 %v8848
        %v9010 = vunpack.c.l.b16 %v8849
        %v9011 = vunpack.c.h.b16 %v8849
        %v9012 = vunpack.c.l.b16 %v8850
        %v9013 = vunpack.c.h.b16 %v8850
        %v9014 = vunpack.c.l.b16 %v8851
        %v9015 = vunpack.c.h.b16 %v8851
        %v9016 = vunpack.c.l.b16 %v8852
        %v9017 = vunpack.c.h.b16 %v8852
        %v9018 = vunpack.c.l.b16 %v8853
        %v9019 = vunpack.c.h.b16 %v8853
        %v9020 = vunpack.c.l.b16 %v8854
        %v9021 = vunpack.c.h.b16 %v8854
        %v9022 = vunpack.c.l.b16 %v8855
        %v9023 = vunpack.c.h.b16 %v8855
        %v9024 = vunpack.c.l.b16 %v8856
        %v9025 = vunpack.c.h.b16 %v8856
        %v9026 = vunpack.c.l.b16 %v8857
        %v9027 = vunpack.c.h.b16 %v8857
        %v9028 = vunpack.c.l.b16 %v8858
        %v9029 = vunpack.c.h.b16 %v8858
        %v9030 = vunpack.c.l.b16 %v8859
        %v9031 = vunpack.c.h.b16 %v8859
        %v9032 = vunpack.c.l.b16 %v8860
        %v9033 = vunpack.c.h.b16 %v8860
        %v9034 = vunpack.c.l.b16 %v8861
        %v9035 = vunpack.c.h.b16 %v8861
        %v9036 = vunpack.c.l.b16 %v8862
        %v9037 = vunpack.c.h.b16 %v8862
        %v9038 = vunpack.c.l.b16 %v8863
        %v9039 = vunpack.c.h.b16 %v8863
        %v9040 = vunpack.c.l.b16 %v8864
        %v9041 = vunpack.c.h.b16 %v8864
        %v9042 = vunpack.c.l.b16 %v8865
        %v9043 = vunpack.c.h.b16 %v8865
        %v9044 = vunpack.c.l.b16 %v8866
        %v9045 = vunpack.c.h.b16 %v8866
        %v9046 = vunpack.c.l.b16 %v8867
        %v9047 = vunpack.c.h.b16 %v8867
        %v9048 = vunpack.c.l.b16 %v8868
        %v9049 = vunpack.c.h.b16 %v8868
        %v9050 = vunpack.c.l.b16 %v8869
        %v9051 = vunpack.c.h.b16 %v8869
        %v9052 = vunpack.c.l.b16 %v8870
        %v9053 = vunpack.c.h.b16 %v8870
        %v9054 = vunpack.c.l.b16 %v8871
        %v9055 = vunpack.c.h.b16 %v8871
        %v9056 = vunpack.c.l.b16 %v8872
        %v9057 = vunpack.c.h.b16 %v8872
        %v9058 = vunpack.c.l.b16 %v8873
        %v9059 = vunpack.c.h.b16 %v8873
        %v9060 = vunpack.c.l.b16 %v8874
        %v9061 = vunpack.c.h.b16 %v8874
        %v9062 = vunpack.c.l.b16 %v8875
        %v9063 = vunpack.c.h.b16 %v8875
        %v9064 = vunpack.c.l.b16 %v8876
        %v9065 = vunpack.c.h.b16 %v8876
        %v9066 = vunpack.c.l.b16 %v8877
        %v9067 = vunpack.c.h.b16 %v8877
        %v9068 = vunpack.c.l.b16 %v8878
        %v9069 = vunpack.c.h.b16 %v8878
        %v9070 = vunpack.c.l.b16 %v8879
        %v9071 = vunpack.c.h.b16 %v8879
        %v9072 = vunpack.c.l.b16 %v8880
        %v9073 = vunpack.c.h.b16 %v8880
        %v9074 = vunpack.c.l.b16 %v8881
        %v9075 = vunpack.c.h.b16 %v8881
        %v9076 = vunpack.c.l.b16 %v8882
        %v9077 = vunpack.c.h.b16 %v8882
        %v9078 = vunpack.c.l.b16 %v8883
        %v9079 = vunpack.c.h.b16 %v8883
        %v9080 = vunpack.c.l.b16 %v8884
        %v9081 = vunpack.c.h.b16 %v8884
        %v9082 = vunpack.c.l.b16 %v8885
        %v9083 = vunpack.c.h.b16 %v8885
        %v9084 = vunpack.c.l.b16 %v8886
        %v9085 = vunpack.c.h.b16 %v8886
        %v9086 = vunpack.c.l.b16 %v8887
        %v9087 = vunpack.c.h.b16 %v8887
        %v9088 = vunpack.c.l.b16 %v8888
        %v9089 = vunpack.c.h.b16 %v8888
        %v9090 = vunpack.c.l.b16 %v8889
        %v9091 = vunpack.c.h.b16 %v8889
        %v9092 = vunpack.c.l.b16 %v8890
        %v9093 = vunpack.c.h.b16 %v8890
        %v9094 = vunpack.c.l.b16 %v8891
        %v9095 = vunpack.c.h.b16 %v8891
        %v9096 = vpack.c.b16 %v8970, %v8968
        %v9097 = vpack.c.b16 %v8971, %v8969
        %v9098 = vpack.c.b16 %v8974, %v8972
        %v9099 = vpack.c.b16 %v8975, %v8973
        %v9100 = vpack.c.b16 %v8978, %v8976
        %v9101 = vpack.c.b16 %v8979, %v8977
        %v9102 = vpack.c.b16 %v8982, %v8980
        %v9103 = vpack.c.b16 %v8983, %v8981
        %v9104 = vpack.c.b16 %v8986, %v8984
        %v9105 = vpack.c.b16 %v8987, %v8985
        %v9106 = vpack.c.b16 %v8990, %v8988
        %v9107 = vpack.c.b16 %v8991, %v8989
        %v9108 = vpack.c.b16 %v8994, %v8992
        %v9109 = vpack.c.b16 %v8995, %v8993
        %v9110 = vpack.c.b16 %v8998, %v8996
        %v9111 = vpack.c.b16 %v8999, %v8997
        %v9112 = vpack.c.b16 %v9002, %v9000
        %v9113 = vpack.c.b16 %v9003, %v9001
        %v9114 = vpack.c.b16 %v9006, %v9004
        %v9115 = vpack.c.b16 %v9007, %v9005
        %v9116 = vpack.c.b16 %v9010, %v9008
        %v9117 = vpack.c.b16 %v9011, %v9009
        %v9118 = vpack.c.b16 %v9014, %v9012
        %v9119 = vpack.c.b16 %v9015, %v9013
        %v9120 = vpack.c.b16 %v9018, %v9016
        %v9121 = vpack.c.b16 %v9019, %v9017
        %v9122 = vpack.c.b16 %v9022, %v9020
        %v9123 = vpack.c.b16 %v9023, %v9021
        %v9124 = vpack.c.b16 %v9026, %v9024
        %v9125 = vpack.c.b16 %v9027, %v9025
        %v9126 = vpack.c.b16 %v9030, %v9028
        %v9127 = vpack.c.b16 %v9031, %v9029
        %v9128 = vpack.c.b16 %v9034, %v9032
        %v9129 = vpack.c.b16 %v9035, %v9033
        %v9130 = vpack.c.b16 %v9038, %v9036
        %v9131 = vpack.c.b16 %v9039, %v9037
        %v9132 = vpack.c.b16 %v9042, %v9040
        %v9133 = vpack.c.b16 %v9043, %v9041
        %v9134 = vpack.c.b16 %v9046, %v9044
        %v9135 = vpack.c.b16 %v9047, %v9045
        %v9136 = vpack.c.b16 %v9050, %v9048
        %v9137 = vpack.c.b16 %v9051, %v9049
        %v9138 = vpack.c.b16 %v9054, %v9052
        %v9139 = vpack.c.b16 %v9055, %v9053
        %v9140 = vpack.c.b16 %v9058, %v9056
        %v9141 = vpack.c.b16 %v9059, %v9057
        %v9142 = vpack.c.b16 %v9062, %v9060
        %v9143 = vpack.c.b16 %v9063, %v9061
        %v9144 = vpack.c.b16 %v9066, %v9064
        %v9145 = vpack.c.b16 %v9067, %v9065
        %v9146 = vpack.c.b16 %v9070, %v9068
        %v9147 = vpack.c.b16 %v9071, %v9069
        %v9148 = vpack.c.b16 %v9074, %v9072
        %v9149 = vpack.c.b16 %v9075, %v9073
        %v9150 = vpack.c.b16 %v9078, %v9076
        %v9151 = vpack.c.b16 %v9079, %v9077
        %v9152 = vpack.c.b16 %v9082, %v9080
        %v9153 = vpack.c.b16 %v9083, %v9081
        %v9154 = vpack.c.b16 %v9086, %v9084
        %v9155 = vpack.c.b16 %v9087, %v9085
        %v9156 = vpack.c.b16 %v9090, %v9088
        %v9157 = vpack.c.b16 %v9091, %v9089
        %v9158 = vpack.c.b16 %v9094, %v9092
        %v9159 = vpack.c.b16 %v9095, %v9093
        %9224 = vmatprep.subr.bf16.mxu0 %v9097
        %9225 = vmatpush1.bf16.msra.mxu0 %v9096
        %9226 = vmatprep.subr.bf16.mxu0 %v9099
        %9227 = vmatpush1.bf16.msra.mxu0 %v9098
        %9228 = vmatprep.subr.bf16.mxu0 %v9101
        %9229 = vmatpush1.bf16.msra.mxu0 %v9100
        %9230 = vmatprep.subr.bf16.mxu0 %v9103
        %9231 = vmatpush1.bf16.msra.mxu0 %v9102
        %9232 = vmatprep.subr.bf16.mxu0 %v9105
        %9233 = vmatpush1.bf16.msra.mxu0 %v9104
        %9234 = vmatprep.subr.bf16.mxu0 %v9107
        %9235 = vmatpush1.bf16.msra.mxu0 %v9106
        %9236 = vmatprep.subr.bf16.mxu0 %v9109
        %9237 = vmatpush1.bf16.msra.mxu0 %v9108
        %9238 = vmatprep.subr.bf16.mxu0 %v9111
        %9239 = vmatpush1.bf16.msra.mxu0 %v9110
        %9240 = vmatprep.subr.bf16.mxu0 %v9113
        %9241 = vmatpush1.bf16.msra.mxu0 %v9112
        %9242 = vmatprep.subr.bf16.mxu0 %v9115
        %9243 = vmatpush1.bf16.msra.mxu0 %v9114
        %9244 = vmatprep.subr.bf16.mxu0 %v9117
        %9245 = vmatpush1.bf16.msra.mxu0 %v9116
        %9246 = vmatprep.subr.bf16.mxu0 %v9119
        %9247 = vmatpush1.bf16.msra.mxu0 %v9118
        %9248 = vmatprep.subr.bf16.mxu0 %v9121
        %9249 = vmatpush1.bf16.msra.mxu0 %v9120
        %9250 = vmatprep.subr.bf16.mxu0 %v9123
        %9251 = vmatpush1.bf16.msra.mxu0 %v9122
        %9252 = vmatprep.subr.bf16.mxu0 %v9125
        %9253 = vmatpush1.bf16.msra.mxu0 %v9124
        %9254 = vmatprep.subr.bf16.mxu0 %v9127
        %9255 = vmatpush1.bf16.msra.mxu0 %v9126
        %9256 = vmatprep.mubr.bf16.mxu0 %v8813
        %9257 = vmatmul.mubr.bf16.gmra.mrb[0].mxu0 %v8812
        %v9258 = vpop.f32.mrb[0].mxu0
        %v9259 = vadd.f32 %v8897, %v9258
        %v9260 = vpop.f32.mrb[0].mxu0
        %v9261 = vadd.f32 %v8901, %v9260
        %v9262 = vpop.f32.mrb[0].mxu0
        %v9263 = vadd.f32 %v8897, %v9262
        %v9264 = vpop.f32.mrb[0].mxu0
        %v9265 = vadd.f32 %v8901, %v9264
        %9266 = vmatprep.mubr.bf16.mxu0 %v8817
        %9267 = vmatmul.mubr.bf16.gmra.mrb[0].mxu0 %v8816
        %v9268 = vpop.f32.mrb[0].mxu0
        %v9269 = vadd.f32 %v8897, %v9268
        %v9270 = vpop.f32.mrb[0].mxu0
        %v9271 = vadd.f32 %v8901, %v9270
        %v9272 = vpop.f32.mrb[0].mxu0
        %v9273 = vadd.f32 %v8897, %v9272
        %v9274 = vpop.f32.mrb[0].mxu0
        %v9275 = vadd.f32 %v8901, %v9274
        %9276 = vmatprep.mubr.bf16.mxu0 %v8821
        %9277 = vmatmul.mubr.bf16.gmra.mrb[0].mxu0 %v8820
        %v9278 = vpop.f32.mrb[0].mxu0
        %v9279 = vadd.f32 %v8897, %v9278
        %v9280 = vpop.f32.mrb[0].mxu0
        %v9281 = vadd.f32 %v8901, %v9280
        %v9282 = vpop.f32.mrb[0].mxu0
        %v9283 = vadd.f32 %v8897, %v9282
        %v9284 = vpop.f32.mrb[0].mxu0
        %v9285 = vadd.f32 %v8901, %v9284
        %9286 = vmatprep.mubr.bf16.mxu0 %v8825
        %9287 = vmatmul.mubr.bf16.gmra.mrb[0].mxu0 %v8824
        %v9288 = vpop.f32.mrb[0].mxu0
        %v9289 = vadd.f32 %v8897, %v9288
        %v9290 = vpop.f32.mrb[0].mxu0
        %v9291 = vadd.f32 %v8901, %v9290
        %v9292 = vpop.f32.mrb[0].mxu0
        %v9293 = vadd.f32 %v8897, %v9292
        %v9294 = vpop.f32.mrb[0].mxu0
        %v9295 = vadd.f32 %v8901, %v9294
        %9296 = vdwg.mxu0
        %9297 = vmatprep.subr.bf16.mxu0 %v9129
        %9298 = vmatpush1.bf16.msra.mxu0 %v9128
        %9299 = vmatprep.subr.bf16.mxu0 %v9131
        %9300 = vmatpush1.bf16.msra.mxu0 %v9130
        %9301 = vmatprep.subr.bf16.mxu0 %v9133
        %9302 = vmatpush1.bf16.msra.mxu0 %v9132
        %9303 = vmatprep.subr.bf16.mxu0 %v9135
        %9304 = vmatpush1.bf16.msra.mxu0 %v9134
        %9305 = vmatprep.subr.bf16.mxu0 %v9137
        %9306 = vmatpush1.bf16.msra.mxu0 %v9136
        %9307 = vmatprep.subr.bf16.mxu0 %v9139
        %9308 = vmatpush1.bf16.msra.mxu0 %v9138
        %9309 = vmatprep.subr.bf16.mxu0 %v9141
        %9310 = vmatpush1.bf16.msra.mxu0 %v9140
        %9311 = vmatprep.subr.bf16.mxu0 %v9143
        %9312 = vmatpush1.bf16.msra.mxu0 %v9142
        %9313 = vmatprep.subr.bf16.mxu0 %v9145
        %9314 = vmatpush1.bf16.msra.mxu0 %v9144
        %9315 = vmatprep.subr.bf16.mxu0 %v9147
        %9316 = vmatpush1.bf16.msra.mxu0 %v9146
        %9317 = vmatprep.subr.bf16.mxu0 %v9149
        %9318 = vmatpush1.bf16.msra.mxu0 %v9148
        %9319 = vmatprep.subr.bf16.mxu0 %v9151
        %9320 = vmatpush1.bf16.msra.mxu0 %v9150
        %9321 = vmatprep.subr.bf16.mxu0 %v9153
        %9322 = vmatpush1.bf16.msra.mxu0 %v9152
        %9323 = vmatprep.subr.bf16.mxu0 %v9155
        %9324 = vmatpush1.bf16.msra.mxu0 %v9154
        %9325 = vmatprep.subr.bf16.mxu0 %v9157
        %9326 = vmatpush1.bf16.msra.mxu0 %v9156
        %9327 = vmatprep.subr.bf16.mxu0 %v9159
        %9328 = vmatpush1.bf16.msra.mxu0 %v9158
        %9329 = vmatprep.mubr.bf16.mxu0 %v8815
        %9330 = vmatmul.mubr.bf16.gmra.mrb[0].mxu0 %v8814
        %v9331 = vpop.f32.mrb[0].mxu0
        %v9332 = vadd.f32 %v9259, %v9331
        %v9333 = vpop.f32.mrb[0].mxu0
        %v9334 = vadd.f32 %v9261, %v9333
        %v9335 = vpop.f32.mrb[0].mxu0
        %v9336 = vadd.f32 %v9263, %v9335
        %v9337 = vpop.f32.mrb[0].mxu0
        %v9338 = vadd.f32 %v9265, %v9337
        %9339 = vmatprep.mubr.bf16.mxu0 %v8819
        %9340 = vmatmul.mubr.bf16.gmra.mrb[0].mxu0 %v8818
        %v9341 = vpop.f32.mrb[0].mxu0
        %v9342 = vadd.f32 %v9269, %v9341
        %v9343 = vpop.f32.mrb[0].mxu0
        %v9344 = vadd.f32 %v9271, %v9343
        %v9345 = vpop.f32.mrb[0].mxu0
        %v9346 = vadd.f32 %v9273, %v9345
        %v9347 = vpop.f32.mrb[0].mxu0
        %v9348 = vadd.f32 %v9275, %v9347
        %9349 = vmatprep.mubr.bf16.mxu0 %v8823
        %9350 = vmatmul.mubr.bf16.gmra.mrb[0].mxu0 %v8822
        %v9351 = vpop.f32.mrb[0].mxu0
        %v9352 = vadd.f32 %v9279, %v9351
        %v9353 = vpop.f32.mrb[0].mxu0
        %v9354 = vadd.f32 %v9281, %v9353
        %v9355 = vpop.f32.mrb[0].mxu0
        %v9356 = vadd.f32 %v9283, %v9355
        %v9357 = vpop.f32.mrb[0].mxu0
        %v9358 = vadd.f32 %v9285, %v9357
        %9359 = vmatprep.mubr.bf16.mxu0 %v8827
        %9360 = vmatmul.mubr.bf16.gmra.mrb[0].mxu0 %v8826
        %v9361 = vpop.f32.mrb[0].mxu0
        %v9362 = vadd.f32 %v9289, %v9361
        %v9363 = vpop.f32.mrb[0].mxu0
        %v9364 = vadd.f32 %v9291, %v9363
        %v9365 = vpop.f32.mrb[0].mxu0
        %v9366 = vadd.f32 %v9293, %v9365
        %v9367 = vpop.f32.mrb[0].mxu0
        %v9368 = vadd.f32 %v9295, %v9367
        %9369 = vdwg.mxu0
        %v9370 = vmul.f32 %v9332, 0.01
        %v9371 = vmul.f32 %v9334, 0.01
        %v9372 = vmul.f32 %v9336, 0.01
        %v9373 = vmul.f32 %v9338, 0.01
        %v9374 = vmul.f32 %v9342, 0.01
        %v9375 = vmul.f32 %v9344, 0.01
        %v9376 = vmul.f32 %v9346, 0.01
        %v9377 = vmul.f32 %v9348, 0.01
        %v9378 = vmul.f32 %v9352, 0.01
        %v9379 = vmul.f32 %v9354, 0.01
        %v9380 = vmul.f32 %v9356, 0.01
        %v9381 = vmul.f32 %v9358, 0.01
        %v9382 = vmul.f32 %v9362, 0.01
        %v9383 = vmul.f32 %v9364, 0.01
        %v9384 = vmul.f32 %v9366, 0.01
        %v9385 = vmul.f32 %v9368, 0.01
        %v9386 = vmax.f32 %v9332, %v9370
        %v9387 = vmax.f32 %v9334, %v9371
        %v9388 = vmax.f32 %v9336, %v9372
        %v9389 = vmax.f32 %v9338, %v9373
        %v9390 = vmax.f32 %v9342, %v9374
        %v9391 = vmax.f32 %v9344, %v9375
        %v9392 = vmax.f32 %v9346, %v9376
        %v9393 = vmax.f32 %v9348, %v9377
        %v9394 = vmax.f32 %v9352, %v9378
        %v9395 = vmax.f32 %v9354, %v9379
        %v9396 = vmax.f32 %v9356, %v9380
        %v9397 = vmax.f32 %v9358, %v9381
        %v9398 = vmax.f32 %v9362, %v9382
        %v9399 = vmax.f32 %v9364, %v9383
        %v9400 = vmax.f32 %v9366, %v9384
        %v9401 = vmax.f32 %v9368, %v9385
        %v9402 = vmax.f32 %v9386, %v9390
        %v9403 = vmax.f32 %v9388, %v9392
        %v9404 = vmax.f32 %v9402, %v9394
        %v9405 = vmax.f32 %v9403, %v9396
        %v9406 = vmax.f32 %v9404, %v9398
        %v9407 = vmax.f32 %v9405, %v9400
        %v9408 = vmax.f32 %v9406, %v9407
        %v9409 = vrot.slane %v9408, 4
        %v9410 = vmax.f32 %v9408, %v9409
        %v9411 = vrot.slane %v9410, 2
        %v9412 = vmax.f32 %v9410, %v9411
        %v9413 = vrot.slane %v9412, 1
        %v9414 = vmax.f32 %v9412, %v9413
        %v9415 = vmax.f32 %v9387, %v9391
        %v9416 = vmax.f32 %v9389, %v9393
        %v9417 = vmax.f32 %v9415, %v9395
        %v9418 = vmax.f32 %v9416, %v9397
        %v9419 = vmax.f32 %v9417, %v9399
        %v9420 = vmax.f32 %v9418, %v9401
        %v9421 = vmax.f32 %v9419, %v9420
        %v9422 = vrot.slane %v9421, 4
        %v9423 = vmax.f32 %v9421, %v9422
        %v9424 = vrot.slane %v9423, 2
        %v9425 = vmax.f32 %v9423, %v9424
        %v9426 = vrot.slane %v9425, 1
        %v9427 = vmax.f32 %v9425, %v9426
        %v9428 = vld [vmem:[%s1299] sm:$0x1]
        %v9429 = vpack.c.bf16 %v5552, %v5552
        %v9430 = vld [vmem:[%s69] sm:$0xff]
        %v9431 = vld [vmem:[%s69 + $0x8] sm:$0xff]
        %v9432 = vld [vmem:[%s69 + $0x10] sm:$0xff]
        %v9433 = vld [vmem:[%s69 + $0x18] sm:$0xff]
        %v9434 = vld [vmem:[%s69 + $0x20] sm:$0xff]
        %v9435 = vld [vmem:[%s69 + $0x28] sm:$0xff]
        %v9436 = vld [vmem:[%s69 + $0x30] sm:$0xff]
        %v9437 = vld [vmem:[%s69 + $0x38] sm:$0xff]
        %v9438 = vpack.c.bf16 %v5573, %v5573
        %v9439 = vld [vmem:[%s71] sm:$0xff]
        %v9440 = vld [vmem:[%s71 + $0x8] sm:$0xff]
        %v9441 = vld [vmem:[%s71 + $0x10] sm:$0xff]
        %v9442 = vld [vmem:[%s71 + $0x18] sm:$0xff]
        %v9443 = vld [vmem:[%s71 + $0x20] sm:$0xff]
        %v9444 = vld [vmem:[%s71 + $0x28] sm:$0xff]
        %v9445 = vld [vmem:[%s71 + $0x30] sm:$0xff]
        %v9446 = vld [vmem:[%s71 + $0x38] sm:$0xff]
        %v9455 = vunpack.c.l.b16 %v9439
        %v9456 = vunpack.c.h.b16 %v9439
        %v9457 = vunpack.c.l.b16 %v9440
        %v9458 = vunpack.c.h.b16 %v9440
        %v9459 = vunpack.c.l.b16 %v9441
        %v9460 = vunpack.c.h.b16 %v9441
        %v9461 = vunpack.c.l.b16 %v9442
        %v9462 = vunpack.c.h.b16 %v9442
        %v9463 = vunpack.c.l.b16 %v9443
        %v9464 = vunpack.c.h.b16 %v9443
        %v9465 = vunpack.c.l.b16 %v9444
        %v9466 = vunpack.c.h.b16 %v9444
        %v9467 = vunpack.c.l.b16 %v9445
        %v9468 = vunpack.c.h.b16 %v9445
        %v9469 = vunpack.c.l.b16 %v9446
        %v9470 = vunpack.c.h.b16 %v9446
        %v9471 = vpack.c.b16 %v9457, %v9455
        %v9472 = vpack.c.b16 %v9458, %v9456
        %v9473 = vpack.c.b16 %v9461, %v9459
        %v9474 = vpack.c.b16 %v9462, %v9460
        %v9475 = vpack.c.b16 %v9465, %v9463
        %v9476 = vpack.c.b16 %v9466, %v9464
        %v9477 = vpack.c.b16 %v9469, %v9467
        %v9478 = vpack.c.b16 %v9470, %v9468
        %v9488 = vsel %vm5529, %v9438, 0
        %9490 = vmatprep.subr.bf16.mxu0 %v9472
        %9491 = vmatpush1.bf16.msra.mxu0 %v9471
        %9492 = vmatprep.subr.bf16.mxu0 %v9474
        %9493 = vmatpush1.bf16.msra.mxu0 %v9473
        %9494 = vmatprep.subr.bf16.mxu0 %v9476
        %9495 = vmatpush1.bf16.msra.mxu0 %v9475
        %9496 = vmatprep.subr.bf16.mxu0 %v9478
        %9497 = vmatpush1.bf16.msra.mxu0 %v9477
        %9498 = vmatprep.subr.bf16.mxu0 0
        %9499 = vmatpush1.bf16.msra.mxu0 0
        %9500 = vmatprep.subr.bf16.mxu0 0
        %9501 = vmatpush1.bf16.msra.mxu0 0
        %9502 = vmatprep.subr.bf16.mxu0 0
        %9503 = vmatpush1.bf16.msra.mxu0 0
        %9504 = vmatprep.subr.bf16.mxu0 0
        %9505 = vmatpush1.bf16.msra.mxu0 0
        %9506 = vmatprep.subr.bf16.mxu0 0
        %9507 = vmatpush1.bf16.msra.mxu0 0
        %9508 = vmatprep.subr.bf16.mxu0 0
        %9509 = vmatpush1.bf16.msra.mxu0 0
        %9510 = vmatprep.subr.bf16.mxu0 0
        %9511 = vmatpush1.bf16.msra.mxu0 0
        %9512 = vmatprep.subr.bf16.mxu0 0
        %9513 = vmatpush1.bf16.msra.mxu0 0
        %9514 = vmatprep.subr.bf16.mxu0 0
        %9515 = vmatpush1.bf16.msra.mxu0 0
        %9516 = vmatprep.subr.bf16.mxu0 0
        %9517 = vmatpush1.bf16.msra.mxu0 0
        %9518 = vmatprep.subr.bf16.mxu0 0
        %9519 = vmatpush1.bf16.msra.mxu0 0
        %9520 = vmatprep.subr.bf16.mxu0 0
        %9521 = vmatpush1.bf16.msra.mxu0 0
        %9522 = vmatprep.mubr.bf16.mxu0 0
        %9523 = vmatmul.mubr.bf16.gmra.mrb[0].mxu0 %v9488
        %v9524 = vpop.f32.mrb[0].mxu0
        %v9525 = vadd.f32 0.0, %v9524
        %v9526 = vpop.f32.mrb[0].mxu0
        %v9527 = vadd.f32 0.0, %v9526
        %v9528 = vpop.f32.mrb[0].mxu0
        %v9529 = vpop.f32.mrb[0].mxu0
        %9530 = vdwg.mxu0
        %v9539 = vunpack.c.l.b16 %v9430
        %v9540 = vunpack.c.h.b16 %v9430
        %v9541 = vunpack.c.l.b16 %v9431
        %v9542 = vunpack.c.h.b16 %v9431
        %v9543 = vunpack.c.l.b16 %v9432
        %v9544 = vunpack.c.h.b16 %v9432
        %v9545 = vunpack.c.l.b16 %v9433
        %v9546 = vunpack.c.h.b16 %v9433
        %v9547 = vunpack.c.l.b16 %v9434
        %v9548 = vunpack.c.h.b16 %v9434
        %v9549 = vunpack.c.l.b16 %v9435
        %v9550 = vunpack.c.h.b16 %v9435
        %v9551 = vunpack.c.l.b16 %v9436
        %v9552 = vunpack.c.h.b16 %v9436
        %v9553 = vunpack.c.l.b16 %v9437
        %v9554 = vunpack.c.h.b16 %v9437
        %v9555 = vpack.c.b16 %v9541, %v9539
        %v9556 = vpack.c.b16 %v9542, %v9540
        %v9557 = vpack.c.b16 %v9545, %v9543
        %v9558 = vpack.c.b16 %v9546, %v9544
        %v9559 = vpack.c.b16 %v9549, %v9547
        %v9560 = vpack.c.b16 %v9550, %v9548
        %v9561 = vpack.c.b16 %v9553, %v9551
        %v9562 = vpack.c.b16 %v9554, %v9552
        %v9572 = vsel %vm5529, %v9429, 0
        %9574 = vmatprep.subr.bf16.mxu0 %v9556
        %9575 = vmatpush1.bf16.msra.mxu0 %v9555
        %9576 = vmatprep.subr.bf16.mxu0 %v9558
        %9577 = vmatpush1.bf16.msra.mxu0 %v9557
        %9578 = vmatprep.subr.bf16.mxu0 %v9560
        %9579 = vmatpush1.bf16.msra.mxu0 %v9559
        %9580 = vmatprep.subr.bf16.mxu0 %v9562
        %9581 = vmatpush1.bf16.msra.mxu0 %v9561
        %9582 = vmatprep.subr.bf16.mxu0 0
        %9583 = vmatpush1.bf16.msra.mxu0 0
        %9584 = vmatprep.subr.bf16.mxu0 0
        %9585 = vmatpush1.bf16.msra.mxu0 0
        %9586 = vmatprep.subr.bf16.mxu0 0
        %9587 = vmatpush1.bf16.msra.mxu0 0
        %9588 = vmatprep.subr.bf16.mxu0 0
        %9589 = vmatpush1.bf16.msra.mxu0 0
        %9590 = vmatprep.subr.bf16.mxu0 0
        %9591 = vmatpush1.bf16.msra.mxu0 0
        %9592 = vmatprep.subr.bf16.mxu0 0
        %9593 = vmatpush1.bf16.msra.mxu0 0
        %9594 = vmatprep.subr.bf16.mxu0 0
        %9595 = vmatpush1.bf16.msra.mxu0 0
        %9596 = vmatprep.subr.bf16.mxu0 0
        %9597 = vmatpush1.bf16.msra.mxu0 0
        %9598 = vmatprep.subr.bf16.mxu0 0
        %9599 = vmatpush1.bf16.msra.mxu0 0
        %9600 = vmatprep.subr.bf16.mxu0 0
        %9601 = vmatpush1.bf16.msra.mxu0 0
        %9602 = vmatprep.subr.bf16.mxu0 0
        %9603 = vmatpush1.bf16.msra.mxu0 0
        %9604 = vmatprep.subr.bf16.mxu0 0
        %9605 = vmatpush1.bf16.msra.mxu0 0
        %9606 = vmatprep.mubr.bf16.mxu0 0
        %9607 = vmatmul.mubr.bf16.gmra.mrb[0].mxu0 %v9572
        %v9608 = vpop.f32.mrb[0].mxu0
        %v9609 = vadd.f32 %v9525, %v9608
        %v9610 = vpop.f32.mrb[0].mxu0
        %v9611 = vadd.f32 %v9527, %v9610
        %v9612 = vpop.f32.mrb[0].mxu0
        %v9613 = vpop.f32.mrb[0].mxu0
        %9614 = vdwg.mxu0
        %v9615 = vpack.c.bf16 %v5975, %v5975
        %v9616 = vpack.c.bf16 %v5988, %v5988
        %v9617 = vpack.c.bf16 %v6001, %v6001
        %v9618 = vpack.c.bf16 %v6014, %v6014
        %v9619 = vld [vmem:[%s73] sm:$0xff]
        %v9620 = vld [vmem:[%s73 + $0x8] sm:$0xff]
        %v9621 = vld [vmem:[%s73 + $0x10] sm:$0xff]
        %v9622 = vld [vmem:[%s73 + $0x18] sm:$0xff]
        %v9623 = vld [vmem:[%s73 + $0x20] sm:$0xff]
        %v9624 = vld [vmem:[%s73 + $0x28] sm:$0xff]
        %v9625 = vld [vmem:[%s73 + $0x30] sm:$0xff]
        %v9626 = vld [vmem:[%s73 + $0x38] sm:$0xff]
        %v9627 = vld [vmem:[%s73 + $0x40] sm:$0xff]
        %v9628 = vld [vmem:[%s73 + $0x48] sm:$0xff]
        %v9629 = vld [vmem:[%s73 + $0x50] sm:$0xff]
        %v9630 = vld [vmem:[%s73 + $0x58] sm:$0xff]
        %v9631 = vld [vmem:[%s73 + $0x60] sm:$0xff]
        %v9632 = vld [vmem:[%s73 + $0x68] sm:$0xff]
        %v9633 = vld [vmem:[%s73 + $0x70] sm:$0xff]
        %v9634 = vld [vmem:[%s73 + $0x78] sm:$0xff]
        %v9635 = vld [vmem:[%s73 + $0x80] sm:$0xff]
        %v9636 = vld [vmem:[%s73 + $0x88] sm:$0xff]
        %v9637 = vld [vmem:[%s73 + $0x90] sm:$0xff]
        %v9638 = vld [vmem:[%s73 + $0x98] sm:$0xff]
        %v9639 = vld [vmem:[%s73 + $0xa0] sm:$0xff]
        %v9640 = vld [vmem:[%s73 + $0xa8] sm:$0xff]
        %v9641 = vld [vmem:[%s73 + $0xb0] sm:$0xff]
        %v9642 = vld [vmem:[%s73 + $0xb8] sm:$0xff]
        %v9643 = vld [vmem:[%s73 + $0xc0] sm:$0xff]
        %v9644 = vld [vmem:[%s73 + $0xc8] sm:$0xff]
        %v9645 = vld [vmem:[%s73 + $0xd0] sm:$0xff]
        %v9646 = vld [vmem:[%s73 + $0xd8] sm:$0xff]
        %v9647 = vld [vmem:[%s73 + $0xe0] sm:$0xff]
        %v9648 = vld [vmem:[%s73 + $0xe8] sm:$0xff]
        %v9649 = vld [vmem:[%s73 + $0xf0] sm:$0xff]
        %v9650 = vld [vmem:[%s73 + $0xf8] sm:$0xff]
        %v9651 = vld [vmem:[%s73 + $0x100] sm:$0xff]
        %v9652 = vld [vmem:[%s73 + $0x108] sm:$0xff]
        %v9653 = vld [vmem:[%s73 + $0x110] sm:$0xff]
        %v9654 = vld [vmem:[%s73 + $0x118] sm:$0xff]
        %v9655 = vld [vmem:[%s73 + $0x120] sm:$0xff]
        %v9656 = vld [vmem:[%s73 + $0x128] sm:$0xff]
        %v9657 = vld [vmem:[%s73 + $0x130] sm:$0xff]
        %v9658 = vld [vmem:[%s73 + $0x138] sm:$0xff]
        %v9659 = vld [vmem:[%s73 + $0x140] sm:$0xff]
        %v9660 = vld [vmem:[%s73 + $0x148] sm:$0xff]
        %v9661 = vld [vmem:[%s73 + $0x150] sm:$0xff]
        %v9662 = vld [vmem:[%s73 + $0x158] sm:$0xff]
        %v9663 = vld [vmem:[%s73 + $0x160] sm:$0xff]
        %v9664 = vld [vmem:[%s73 + $0x168] sm:$0xff]
        %v9665 = vld [vmem:[%s73 + $0x170] sm:$0xff]
        %v9666 = vld [vmem:[%s73 + $0x178] sm:$0xff]
        %v9667 = vld [vmem:[%s73 + $0x180] sm:$0xff]
        %v9668 = vld [vmem:[%s73 + $0x188] sm:$0xff]
        %v9669 = vld [vmem:[%s73 + $0x190] sm:$0xff]
        %v9670 = vld [vmem:[%s73 + $0x198] sm:$0xff]
        %v9671 = vld [vmem:[%s73 + $0x1a0] sm:$0xff]
        %v9672 = vld [vmem:[%s73 + $0x1a8] sm:$0xff]
        %v9673 = vld [vmem:[%s73 + $0x1b0] sm:$0xff]
        %v9674 = vld [vmem:[%s73 + $0x1b8] sm:$0xff]
        %v9675 = vld [vmem:[%s73 + $0x1c0] sm:$0xff]
        %v9676 = vld [vmem:[%s73 + $0x1c8] sm:$0xff]
        %v9677 = vld [vmem:[%s73 + $0x1d0] sm:$0xff]
        %v9678 = vld [vmem:[%s73 + $0x1d8] sm:$0xff]
        %v9679 = vld [vmem:[%s73 + $0x1e0] sm:$0xff]
        %v9680 = vld [vmem:[%s73 + $0x1e8] sm:$0xff]
        %v9681 = vld [vmem:[%s73 + $0x1f0] sm:$0xff]
        %v9682 = vld [vmem:[%s73 + $0x1f8] sm:$0xff]
        %v9747 = vunpack.c.l.b16 %v9619
        %v9748 = vunpack.c.h.b16 %v9619
        %v9749 = vunpack.c.l.b16 %v9620
        %v9750 = vunpack.c.h.b16 %v9620
        %v9751 = vunpack.c.l.b16 %v9621
        %v9752 = vunpack.c.h.b16 %v9621
        %v9753 = vunpack.c.l.b16 %v9622
        %v9754 = vunpack.c.h.b16 %v9622
        %v9755 = vunpack.c.l.b16 %v9623
        %v9756 = vunpack.c.h.b16 %v9623
        %v9757 = vunpack.c.l.b16 %v9624
        %v9758 = vunpack.c.h.b16 %v9624
        %v9759 = vunpack.c.l.b16 %v9625
        %v9760 = vunpack.c.h.b16 %v9625
        %v9761 = vunpack.c.l.b16 %v9626
        %v9762 = vunpack.c.h.b16 %v9626
        %v9763 = vunpack.c.l.b16 %v9627
        %v9764 = vunpack.c.h.b16 %v9627
        %v9765 = vunpack.c.l.b16 %v9628
        %v9766 = vunpack.c.h.b16 %v9628
        %v9767 = vunpack.c.l.b16 %v9629
        %v9768 = vunpack.c.h.b16 %v9629
        %v9769 = vunpack.c.l.b16 %v9630
        %v9770 = vunpack.c.h.b16 %v9630
        %v9771 = vunpack.c.l.b16 %v9631
        %v9772 = vunpack.c.h.b16 %v9631
        %v9773 = vunpack.c.l.b16 %v9632
        %v9774 = vunpack.c.h.b16 %v9632
        %v9775 = vunpack.c.l.b16 %v9633
        %v9776 = vunpack.c.h.b16 %v9633
        %v9777 = vunpack.c.l.b16 %v9634
        %v9778 = vunpack.c.h.b16 %v9634
        %v9779 = vunpack.c.l.b16 %v9635
        %v9780 = vunpack.c.h.b16 %v9635
        %v9781 = vunpack.c.l.b16 %v9636
        %v9782 = vunpack.c.h.b16 %v9636
        %v9783 = vunpack.c.l.b16 %v9637
        %v9784 = vunpack.c.h.b16 %v9637
        %v9785 = vunpack.c.l.b16 %v9638
        %v9786 = vunpack.c.h.b16 %v9638
        %v9787 = vunpack.c.l.b16 %v9639
        %v9788 = vunpack.c.h.b16 %v9639
        %v9789 = vunpack.c.l.b16 %v9640
        %v9790 = vunpack.c.h.b16 %v9640
        %v9791 = vunpack.c.l.b16 %v9641
        %v9792 = vunpack.c.h.b16 %v9641
        %v9793 = vunpack.c.l.b16 %v9642
        %v9794 = vunpack.c.h.b16 %v9642
        %v9795 = vunpack.c.l.b16 %v9643
        %v9796 = vunpack.c.h.b16 %v9643
        %v9797 = vunpack.c.l.b16 %v9644
        %v9798 = vunpack.c.h.b16 %v9644
        %v9799 = vunpack.c.l.b16 %v9645
        %v9800 = vunpack.c.h.b16 %v9645
        %v9801 = vunpack.c.l.b16 %v9646
        %v9802 = vunpack.c.h.b16 %v9646
        %v9803 = vunpack.c.l.b16 %v9647
        %v9804 = vunpack.c.h.b16 %v9647
        %v9805 = vunpack.c.l.b16 %v9648
        %v9806 = vunpack.c.h.b16 %v9648
        %v9807 = vunpack.c.l.b16 %v9649
        %v9808 = vunpack.c.h.b16 %v9649
        %v9809 = vunpack.c.l.b16 %v9650
        %v9810 = vunpack.c.h.b16 %v9650
        %v9811 = vunpack.c.l.b16 %v9651
        %v9812 = vunpack.c.h.b16 %v9651
        %v9813 = vunpack.c.l.b16 %v9652
        %v9814 = vunpack.c.h.b16 %v9652
        %v9815 = vunpack.c.l.b16 %v9653
        %v9816 = vunpack.c.h.b16 %v9653
        %v9817 = vunpack.c.l.b16 %v9654
        %v9818 = vunpack.c.h.b16 %v9654
        %v9819 = vunpack.c.l.b16 %v9655
        %v9820 = vunpack.c.h.b16 %v9655
        %v9821 = vunpack.c.l.b16 %v9656
        %v9822 = vunpack.c.h.b16 %v9656
        %v9823 = vunpack.c.l.b16 %v9657
        %v9824 = vunpack.c.h.b16 %v9657
        %v9825 = vunpack.c.l.b16 %v9658
        %v9826 = vunpack.c.h.b16 %v9658
        %v9827 = vunpack.c.l.b16 %v9659
        %v9828 = vunpack.c.h.b16 %v9659
        %v9829 = vunpack.c.l.b16 %v9660
        %v9830 = vunpack.c.h.b16 %v9660
        %v9831 = vunpack.c.l.b16 %v9661
        %v9832 = vunpack.c.h.b16 %v9661
        %v9833 = vunpack.c.l.b16 %v9662
        %v9834 = vunpack.c.h.b16 %v9662
        %v9835 = vunpack.c.l.b16 %v9663
        %v9836 = vunpack.c.h.b16 %v9663
        %v9837 = vunpack.c.l.b16 %v9664
        %v9838 = vunpack.c.h.b16 %v9664
        %v9839 = vunpack.c.l.b16 %v9665
        %v9840 = vunpack.c.h.b16 %v9665
        %v9841 = vunpack.c.l.b16 %v9666
        %v9842 = vunpack.c.h.b16 %v9666
        %v9843 = vunpack.c.l.b16 %v9667
        %v9844 = vunpack.c.h.b16 %v9667
        %v9845 = vunpack.c.l.b16 %v9668
        %v9846 = vunpack.c.h.b16 %v9668
        %v9847 = vunpack.c.l.b16 %v9669
        %v9848 = vunpack.c.h.b16 %v9669
        %v9849 = vunpack.c.l.b16 %v9670
        %v9850 = vunpack.c.h.b16 %v9670
        %v9851 = vunpack.c.l.b16 %v9671
        %v9852 = vunpack.c.h.b16 %v9671
        %v9853 = vunpack.c.l.b16 %v9672
        %v9854 = vunpack.c.h.b16 %v9672
        %v9855 = vunpack.c.l.b16 %v9673
        %v9856 = vunpack.c.h.b16 %v9673
        %v9857 = vunpack.c.l.b16 %v9674
        %v9858 = vunpack.c.h.b16 %v9674
        %v9859 = vunpack.c.l.b16 %v9675
        %v9860 = vunpack.c.h.b16 %v9675
        %v9861 = vunpack.c.l.b16 %v9676
        %v9862 = vunpack.c.h.b16 %v9676
        %v9863 = vunpack.c.l.b16 %v9677
        %v9864 = vunpack.c.h.b16 %v9677
        %v9865 = vunpack.c.l.b16 %v9678
        %v9866 = vunpack.c.h.b16 %v9678
        %v9867 = vunpack.c.l.b16 %v9679
        %v9868 = vunpack.c.h.b16 %v9679
        %v9869 = vunpack.c.l.b16 %v9680
        %v9870 = vunpack.c.h.b16 %v9680
        %v9871 = vunpack.c.l.b16 %v9681
        %v9872 = vunpack.c.h.b16 %v9681
        %v9873 = vunpack.c.l.b16 %v9682
        %v9874 = vunpack.c.h.b16 %v9682
        %v9875 = vpack.c.b16 %v9749, %v9747
        %v9876 = vpack.c.b16 %v9750, %v9748
        %v9877 = vpack.c.b16 %v9753, %v9751
        %v9878 = vpack.c.b16 %v9754, %v9752
        %v9879 = vpack.c.b16 %v9757, %v9755
        %v9880 = vpack.c.b16 %v9758, %v9756
        %v9881 = vpack.c.b16 %v9761, %v9759
        %v9882 = vpack.c.b16 %v9762, %v9760
        %v9883 = vpack.c.b16 %v9765, %v9763
        %v9884 = vpack.c.b16 %v9766, %v9764
        %v9885 = vpack.c.b16 %v9769, %v9767
        %v9886 = vpack.c.b16 %v9770, %v9768
        %v9887 = vpack.c.b16 %v9773, %v9771
        %v9888 = vpack.c.b16 %v9774, %v9772
        %v9889 = vpack.c.b16 %v9777, %v9775
        %v9890 = vpack.c.b16 %v9778, %v9776
        %v9891 = vpack.c.b16 %v9781, %v9779
        %v9892 = vpack.c.b16 %v9782, %v9780
        %v9893 = vpack.c.b16 %v9785, %v9783
        %v9894 = vpack.c.b16 %v9786, %v9784
        %v9895 = vpack.c.b16 %v9789, %v9787
        %v9896 = vpack.c.b16 %v9790, %v9788
        %v9897 = vpack.c.b16 %v9793, %v9791
        %v9898 = vpack.c.b16 %v9794, %v9792
        %v9899 = vpack.c.b16 %v9797, %v9795
        %v9900 = vpack.c.b16 %v9798, %v9796
        %v9901 = vpack.c.b16 %v9801, %v9799
        %v9902 = vpack.c.b16 %v9802, %v9800
        %v9903 = vpack.c.b16 %v9805, %v9803
        %v9904 = vpack.c.b16 %v9806, %v9804
        %v9905 = vpack.c.b16 %v9809, %v9807
        %v9906 = vpack.c.b16 %v9810, %v9808
        %v9907 = vpack.c.b16 %v9813, %v9811
        %v9908 = vpack.c.b16 %v9814, %v9812
        %v9909 = vpack.c.b16 %v9817, %v9815
        %v9910 = vpack.c.b16 %v9818, %v9816
        %v9911 = vpack.c.b16 %v9821, %v9819
        %v9912 = vpack.c.b16 %v9822, %v9820
        %v9913 = vpack.c.b16 %v9825, %v9823
        %v9914 = vpack.c.b16 %v9826, %v9824
        %v9915 = vpack.c.b16 %v9829, %v9827
        %v9916 = vpack.c.b16 %v9830, %v9828
        %v9917 = vpack.c.b16 %v9833, %v9831
        %v9918 = vpack.c.b16 %v9834, %v9832
        %v9919 = vpack.c.b16 %v9837, %v9835
        %v9920 = vpack.c.b16 %v9838, %v9836
        %v9921 = vpack.c.b16 %v9841, %v9839
        %v9922 = vpack.c.b16 %v9842, %v9840
        %v9923 = vpack.c.b16 %v9845, %v9843
        %v9924 = vpack.c.b16 %v9846, %v9844
        %v9925 = vpack.c.b16 %v9849, %v9847
        %v9926 = vpack.c.b16 %v9850, %v9848
        %v9927 = vpack.c.b16 %v9853, %v9851
        %v9928 = vpack.c.b16 %v9854, %v9852
        %v9929 = vpack.c.b16 %v9857, %v9855
        %v9930 = vpack.c.b16 %v9858, %v9856
        %v9931 = vpack.c.b16 %v9861, %v9859
        %v9932 = vpack.c.b16 %v9862, %v9860
        %v9933 = vpack.c.b16 %v9865, %v9863
        %v9934 = vpack.c.b16 %v9866, %v9864
        %v9935 = vpack.c.b16 %v9869, %v9867
        %v9936 = vpack.c.b16 %v9870, %v9868
        %v9937 = vpack.c.b16 %v9873, %v9871
        %v9938 = vpack.c.b16 %v9874, %v9872
        %10003 = vmatprep.subr.bf16.mxu0 %v9876
        %10004 = vmatpush1.bf16.msra.mxu0 %v9875
        %10005 = vmatprep.subr.bf16.mxu0 %v9878
        %10006 = vmatpush1.bf16.msra.mxu0 %v9877
        %10007 = vmatprep.subr.bf16.mxu0 %v9880
        %10008 = vmatpush1.bf16.msra.mxu0 %v9879
        %10009 = vmatprep.subr.bf16.mxu0 %v9882
        %10010 = vmatpush1.bf16.msra.mxu0 %v9881
        %10011 = vmatprep.subr.bf16.mxu0 %v9884
        %10012 = vmatpush1.bf16.msra.mxu0 %v9883
        %10013 = vmatprep.subr.bf16.mxu0 %v9886
        %10014 = vmatpush1.bf16.msra.mxu0 %v9885
        %10015 = vmatprep.subr.bf16.mxu0 %v9888
        %10016 = vmatpush1.bf16.msra.mxu0 %v9887
        %10017 = vmatprep.subr.bf16.mxu0 %v9890
        %10018 = vmatpush1.bf16.msra.mxu0 %v9889
        %10019 = vmatprep.subr.bf16.mxu0 %v9892
        %10020 = vmatpush1.bf16.msra.mxu0 %v9891
        %10021 = vmatprep.subr.bf16.mxu0 %v9894
        %10022 = vmatpush1.bf16.msra.mxu0 %v9893
        %10023 = vmatprep.subr.bf16.mxu0 %v9896
        %10024 = vmatpush1.bf16.msra.mxu0 %v9895
        %10025 = vmatprep.subr.bf16.mxu0 %v9898
        %10026 = vmatpush1.bf16.msra.mxu0 %v9897
        %10027 = vmatprep.subr.bf16.mxu0 %v9900
        %10028 = vmatpush1.bf16.msra.mxu0 %v9899
        %10029 = vmatprep.subr.bf16.mxu0 %v9902
        %10030 = vmatpush1.bf16.msra.mxu0 %v9901
        %10031 = vmatprep.subr.bf16.mxu0 %v9904
        %10032 = vmatpush1.bf16.msra.mxu0 %v9903
        %10033 = vmatprep.subr.bf16.mxu0 %v9906
        %10034 = vmatpush1.bf16.msra.mxu0 %v9905
        %10035 = vmatprep.mubr.bf16.mxu0 %v9616
        %10036 = vmatmul.mubr.bf16.gmra.mrb[0].mxu0 %v9615
        %v10037 = vpop.f32.mrb[0].mxu0
        %v10038 = vadd.f32 0.0, %v10037
        %v10039 = vpop.f32.mrb[0].mxu0
        %v10040 = vadd.f32 0.0, %v10039
        %v10041 = vpop.f32.mrb[0].mxu0
        %v10042 = vpop.f32.mrb[0].mxu0
        %10043 = vdwg.mxu0
        %10044 = vmatprep.subr.bf16.mxu0 %v9908
        %10045 = vmatpush1.bf16.msra.mxu0 %v9907
        %10046 = vmatprep.subr.bf16.mxu0 %v9910
        %10047 = vmatpush1.bf16.msra.mxu0 %v9909
        %10048 = vmatprep.subr.bf16.mxu0 %v9912
        %10049 = vmatpush1.bf16.msra.mxu0 %v9911
        %10050 = vmatprep.subr.bf16.mxu0 %v9914
        %10051 = vmatpush1.bf16.msra.mxu0 %v9913
        %10052 = vmatprep.subr.bf16.mxu0 %v9916
        %10053 = vmatpush1.bf16.msra.mxu0 %v9915
        %10054 = vmatprep.subr.bf16.mxu0 %v9918
        %10055 = vmatpush1.bf16.msra.mxu0 %v9917
        %10056 = vmatprep.subr.bf16.mxu0 %v9920
        %10057 = vmatpush1.bf16.msra.mxu0 %v9919
        %10058 = vmatprep.subr.bf16.mxu0 %v9922
        %10059 = vmatpush1.bf16.msra.mxu0 %v9921
        %10060 = vmatprep.subr.bf16.mxu0 %v9924
        %10061 = vmatpush1.bf16.msra.mxu0 %v9923
        %10062 = vmatprep.subr.bf16.mxu0 %v9926
        %10063 = vmatpush1.bf16.msra.mxu0 %v9925
        %10064 = vmatprep.subr.bf16.mxu0 %v9928
        %10065 = vmatpush1.bf16.msra.mxu0 %v9927
        %10066 = vmatprep.subr.bf16.mxu0 %v9930
        %10067 = vmatpush1.bf16.msra.mxu0 %v9929
        %10068 = vmatprep.subr.bf16.mxu0 %v9932
        %10069 = vmatpush1.bf16.msra.mxu0 %v9931
        %10070 = vmatprep.subr.bf16.mxu0 %v9934
        %10071 = vmatpush1.bf16.msra.mxu0 %v9933
        %10072 = vmatprep.subr.bf16.mxu0 %v9936
        %10073 = vmatpush1.bf16.msra.mxu0 %v9935
        %10074 = vmatprep.subr.bf16.mxu0 %v9938
        %10075 = vmatpush1.bf16.msra.mxu0 %v9937
        %10076 = vmatprep.mubr.bf16.mxu0 %v9618
        %10077 = vmatmul.mubr.bf16.gmra.mrb[0].mxu0 %v9617
        %v10078 = vpop.f32.mrb[0].mxu0
        %v10079 = vadd.f32 %v10038, %v10078
        %v10080 = vpop.f32.mrb[0].mxu0
        %v10081 = vadd.f32 %v10040, %v10080
        %v10082 = vpop.f32.mrb[0].mxu0
        %v10083 = vpop.f32.mrb[0].mxu0
        %10084 = vdwg.mxu0
        %v10085 = vadd.f32 %v9609, %v10079
        %v10086 = vadd.f32 %v9611, %v10081
        %v10087 = vpack.c.bf16 %v9414, %v9414
        %v10088 = vpack.c.bf16 %v9427, %v9427
        %v10089 = vld [vmem:[%s75] sm:$0xff]
        %v10090 = vld [vmem:[%s75 + $0x8] sm:$0xff]
        %v10091 = vld [vmem:[%s75 + $0x10] sm:$0xff]
        %v10092 = vld [vmem:[%s75 + $0x18] sm:$0xff]
        %v10093 = vld [vmem:[%s75 + $0x20] sm:$0xff]
        %v10094 = vld [vmem:[%s75 + $0x28] sm:$0xff]
        %v10095 = vld [vmem:[%s75 + $0x30] sm:$0xff]
        %v10096 = vld [vmem:[%s75 + $0x38] sm:$0xff]
        %v10097 = vld [vmem:[%s75 + $0x40] sm:$0xff]
        %v10098 = vld [vmem:[%s75 + $0x48] sm:$0xff]
        %v10099 = vld [vmem:[%s75 + $0x50] sm:$0xff]
        %v10100 = vld [vmem:[%s75 + $0x58] sm:$0xff]
        %v10101 = vld [vmem:[%s75 + $0x60] sm:$0xff]
        %v10102 = vld [vmem:[%s75 + $0x68] sm:$0xff]
        %v10103 = vld [vmem:[%s75 + $0x70] sm:$0xff]
        %v10104 = vld [vmem:[%s75 + $0x78] sm:$0xff]
        %v10105 = vld [vmem:[%s75 + $0x80] sm:$0xff]
        %v10106 = vld [vmem:[%s75 + $0x88] sm:$0xff]
        %v10107 = vld [vmem:[%s75 + $0x90] sm:$0xff]
        %v10108 = vld [vmem:[%s75 + $0x98] sm:$0xff]
        %v10109 = vld [vmem:[%s75 + $0xa0] sm:$0xff]
        %v10110 = vld [vmem:[%s75 + $0xa8] sm:$0xff]
        %v10111 = vld [vmem:[%s75 + $0xb0] sm:$0xff]
        %v10112 = vld [vmem:[%s75 + $0xb8] sm:$0xff]
        %v10113 = vld [vmem:[%s75 + $0xc0] sm:$0xff]
        %v10114 = vld [vmem:[%s75 + $0xc8] sm:$0xff]
        %v10115 = vld [vmem:[%s75 + $0xd0] sm:$0xff]
        %v10116 = vld [vmem:[%s75 + $0xd8] sm:$0xff]
        %v10117 = vld [vmem:[%s75 + $0xe0] sm:$0xff]
        %v10118 = vld [vmem:[%s75 + $0xe8] sm:$0xff]
        %v10119 = vld [vmem:[%s75 + $0xf0] sm:$0xff]
        %v10120 = vld [vmem:[%s75 + $0xf8] sm:$0xff]
        %v10153 = vunpack.c.l.b16 %v10089
        %v10154 = vunpack.c.h.b16 %v10089
        %v10155 = vunpack.c.l.b16 %v10090
        %v10156 = vunpack.c.h.b16 %v10090
        %v10157 = vunpack.c.l.b16 %v10091
        %v10158 = vunpack.c.h.b16 %v10091
        %v10159 = vunpack.c.l.b16 %v10092
        %v10160 = vunpack.c.h.b16 %v10092
        %v10161 = vunpack.c.l.b16 %v10093
        %v10162 = vunpack.c.h.b16 %v10093
        %v10163 = vunpack.c.l.b16 %v10094
        %v10164 = vunpack.c.h.b16 %v10094
        %v10165 = vunpack.c.l.b16 %v10095
        %v10166 = vunpack.c.h.b16 %v10095
        %v10167 = vunpack.c.l.b16 %v10096
        %v10168 = vunpack.c.h.b16 %v10096
        %v10169 = vunpack.c.l.b16 %v10097
        %v10170 = vunpack.c.h.b16 %v10097
        %v10171 = vunpack.c.l.b16 %v10098
        %v10172 = vunpack.c.h.b16 %v10098
        %v10173 = vunpack.c.l.b16 %v10099
        %v10174 = vunpack.c.h.b16 %v10099
        %v10175 = vunpack.c.l.b16 %v10100
        %v10176 = vunpack.c.h.b16 %v10100
        %v10177 = vunpack.c.l.b16 %v10101
        %v10178 = vunpack.c.h.b16 %v10101
        %v10179 = vunpack.c.l.b16 %v10102
        %v10180 = vunpack.c.h.b16 %v10102
        %v10181 = vunpack.c.l.b16 %v10103
        %v10182 = vunpack.c.h.b16 %v10103
        %v10183 = vunpack.c.l.b16 %v10104
        %v10184 = vunpack.c.h.b16 %v10104
        %v10185 = vunpack.c.l.b16 %v10105
        %v10186 = vunpack.c.h.b16 %v10105
        %v10187 = vunpack.c.l.b16 %v10106
        %v10188 = vunpack.c.h.b16 %v10106
        %v10189 = vunpack.c.l.b16 %v10107
        %v10190 = vunpack.c.h.b16 %v10107
        %v10191 = vunpack.c.l.b16 %v10108
        %v10192 = vunpack.c.h.b16 %v10108
        %v10193 = vunpack.c.l.b16 %v10109
        %v10194 = vunpack.c.h.b16 %v10109
        %v10195 = vunpack.c.l.b16 %v10110
        %v10196 = vunpack.c.h.b16 %v10110
        %v10197 = vunpack.c.l.b16 %v10111
        %v10198 = vunpack.c.h.b16 %v10111
        %v10199 = vunpack.c.l.b16 %v10112
        %v10200 = vunpack.c.h.b16 %v10112
        %v10201 = vunpack.c.l.b16 %v10113
        %v10202 = vunpack.c.h.b16 %v10113
        %v10203 = vunpack.c.l.b16 %v10114
        %v10204 = vunpack.c.h.b16 %v10114
        %v10205 = vunpack.c.l.b16 %v10115
        %v10206 = vunpack.c.h.b16 %v10115
        %v10207 = vunpack.c.l.b16 %v10116
        %v10208 = vunpack.c.h.b16 %v10116
        %v10209 = vunpack.c.l.b16 %v10117
        %v10210 = vunpack.c.h.b16 %v10117
        %v10211 = vunpack.c.l.b16 %v10118
        %v10212 = vunpack.c.h.b16 %v10118
        %v10213 = vunpack.c.l.b16 %v10119
        %v10214 = vunpack.c.h.b16 %v10119
        %v10215 = vunpack.c.l.b16 %v10120
        %v10216 = vunpack.c.h.b16 %v10120
        %v10217 = vpack.c.b16 %v10155, %v10153
        %v10218 = vpack.c.b16 %v10156, %v10154
        %v10219 = vpack.c.b16 %v10159, %v10157
        %v10220 = vpack.c.b16 %v10160, %v10158
        %v10221 = vpack.c.b16 %v10163, %v10161
        %v10222 = vpack.c.b16 %v10164, %v10162
        %v10223 = vpack.c.b16 %v10167, %v10165
        %v10224 = vpack.c.b16 %v10168, %v10166
        %v10225 = vpack.c.b16 %v10171, %v10169
        %v10226 = vpack.c.b16 %v10172, %v10170
        %v10227 = vpack.c.b16 %v10175, %v10173
        %v10228 = vpack.c.b16 %v10176, %v10174
        %v10229 = vpack.c.b16 %v10179, %v10177
        %v10230 = vpack.c.b16 %v10180, %v10178
        %v10231 = vpack.c.b16 %v10183, %v10181
        %v10232 = vpack.c.b16 %v10184, %v10182
        %v10233 = vpack.c.b16 %v10187, %v10185
        %v10234 = vpack.c.b16 %v10188, %v10186
        %v10235 = vpack.c.b16 %v10191, %v10189
        %v10236 = vpack.c.b16 %v10192, %v10190
        %v10237 = vpack.c.b16 %v10195, %v10193
        %v10238 = vpack.c.b16 %v10196, %v10194
        %v10239 = vpack.c.b16 %v10199, %v10197
        %v10240 = vpack.c.b16 %v10200, %v10198
        %v10241 = vpack.c.b16 %v10203, %v10201
        %v10242 = vpack.c.b16 %v10204, %v10202
        %v10243 = vpack.c.b16 %v10207, %v10205
        %v10244 = vpack.c.b16 %v10208, %v10206
        %v10245 = vpack.c.b16 %v10211, %v10209
        %v10246 = vpack.c.b16 %v10212, %v10210
        %v10247 = vpack.c.b16 %v10215, %v10213
        %v10248 = vpack.c.b16 %v10216, %v10214
        %10281 = vmatprep.subr.bf16.mxu0 %v10218
        %10282 = vmatpush1.bf16.msra.mxu0 %v10217
        %10283 = vmatprep.subr.bf16.mxu0 %v10220
        %10284 = vmatpush1.bf16.msra.mxu0 %v10219
        %10285 = vmatprep.subr.bf16.mxu0 %v10222
        %10286 = vmatpush1.bf16.msra.mxu0 %v10221
        %10287 = vmatprep.subr.bf16.mxu0 %v10224
        %10288 = vmatpush1.bf16.msra.mxu0 %v10223
        %10289 = vmatprep.subr.bf16.mxu0 %v10226
        %10290 = vmatpush1.bf16.msra.mxu0 %v10225
        %10291 = vmatprep.subr.bf16.mxu0 %v10228
        %10292 = vmatpush1.bf16.msra.mxu0 %v10227
        %10293 = vmatprep.subr.bf16.mxu0 %v10230
        %10294 = vmatpush1.bf16.msra.mxu0 %v10229
        %10295 = vmatprep.subr.bf16.mxu0 %v10232
        %10296 = vmatpush1.bf16.msra.mxu0 %v10231
        %10297 = vmatprep.subr.bf16.mxu0 %v10234
        %10298 = vmatpush1.bf16.msra.mxu0 %v10233
        %10299 = vmatprep.subr.bf16.mxu0 %v10236
        %10300 = vmatpush1.bf16.msra.mxu0 %v10235
        %10301 = vmatprep.subr.bf16.mxu0 %v10238
        %10302 = vmatpush1.bf16.msra.mxu0 %v10237
        %10303 = vmatprep.subr.bf16.mxu0 %v10240
        %10304 = vmatpush1.bf16.msra.mxu0 %v10239
        %10305 = vmatprep.subr.bf16.mxu0 %v10242
        %10306 = vmatpush1.bf16.msra.mxu0 %v10241
        %10307 = vmatprep.subr.bf16.mxu0 %v10244
        %10308 = vmatpush1.bf16.msra.mxu0 %v10243
        %10309 = vmatprep.subr.bf16.mxu0 %v10246
        %10310 = vmatpush1.bf16.msra.mxu0 %v10245
        %10311 = vmatprep.subr.bf16.mxu0 %v10248
        %10312 = vmatpush1.bf16.msra.mxu0 %v10247
        %10313 = vmatprep.mubr.bf16.mxu0 %v10088
        %10314 = vmatmul.mubr.bf16.gmra.mrb[0].mxu0 %v10087
        %v10315 = vpop.f32.mrb[0].mxu0
        %v10316 = vadd.f32 0.0, %v10315
        %v10317 = vpop.f32.mrb[0].mxu0
        %v10318 = vadd.f32 0.0, %v10317
        %v10319 = vpop.f32.mrb[0].mxu0
        %v10320 = vpop.f32.mrb[0].mxu0
        %10321 = vdwg.mxu0
        %v10322 = vadd.f32 %v10085, %v10316
        %v10323 = vadd.f32 %v10086, %v10318
        %v10324 = vpack.c.bf16 %v9428, %v9428
        %v10325 = vld [vmem:[%s77] sm:$0xff]
        %v10326 = vld [vmem:[%s77 + $0x8] sm:$0xff]
        %v10327 = vld [vmem:[%s77 + $0x10] sm:$0xff]
        %v10328 = vld [vmem:[%s77 + $0x18] sm:$0xff]
        %v10329 = vld [vmem:[%s77 + $0x20] sm:$0xff]
        %v10330 = vld [vmem:[%s77 + $0x28] sm:$0xff]
        %v10331 = vld [vmem:[%s77 + $0x30] sm:$0xff]
        %v10332 = vld [vmem:[%s77 + $0x38] sm:$0xff]
        %v10341 = vunpack.c.l.b16 %v10325
        %v10342 = vunpack.c.h.b16 %v10325
        %v10343 = vunpack.c.l.b16 %v10326
        %v10344 = vunpack.c.h.b16 %v10326
        %v10345 = vunpack.c.l.b16 %v10327
        %v10346 = vunpack.c.h.b16 %v10327
        %v10347 = vunpack.c.l.b16 %v10328
        %v10348 = vunpack.c.h.b16 %v10328
        %v10349 = vunpack.c.l.b16 %v10329
        %v10350 = vunpack.c.h.b16 %v10329
        %v10351 = vunpack.c.l.b16 %v10330
        %v10352 = vunpack.c.h.b16 %v10330
        %v10353 = vunpack.c.l.b16 %v10331
        %v10354 = vunpack.c.h.b16 %v10331
        %v10355 = vunpack.c.l.b16 %v10332
        %v10356 = vunpack.c.h.b16 %v10332
        %v10357 = vpack.c.b16 %v10343, %v10341
        %v10358 = vpack.c.b16 %v10344, %v10342
        %v10359 = vpack.c.b16 %v10347, %v10345
        %v10360 = vpack.c.b16 %v10348, %v10346
        %v10361 = vpack.c.b16 %v10351, %v10349
        %v10362 = vpack.c.b16 %v10352, %v10350
        %v10363 = vpack.c.b16 %v10355, %v10353
        %v10364 = vpack.c.b16 %v10356, %v10354
        %v10374 = vsel %vm5529, %v10324, 0
        %10376 = vmatprep.subr.bf16.mxu0 %v10358
        %10377 = vmatpush1.bf16.msra.mxu0 %v10357
        %10378 = vmatprep.subr.bf16.mxu0 %v10360
        %10379 = vmatpush1.bf16.msra.mxu0 %v10359
        %10380 = vmatprep.subr.bf16.mxu0 %v10362
        %10381 = vmatpush1.bf16.msra.mxu0 %v10361
        %10382 = vmatprep.subr.bf16.mxu0 %v10364
        %10383 = vmatpush1.bf16.msra.mxu0 %v10363
        %10384 = vmatprep.subr.bf16.mxu0 0
        %10385 = vmatpush1.bf16.msra.mxu0 0
        %10386 = vmatprep.subr.bf16.mxu0 0
        %10387 = vmatpush1.bf16.msra.mxu0 0
        %10388 = vmatprep.subr.bf16.mxu0 0
        %10389 = vmatpush1.bf16.msra.mxu0 0
        %10390 = vmatprep.subr.bf16.mxu0 0
        %10391 = vmatpush1.bf16.msra.mxu0 0
        %10392 = vmatprep.subr.bf16.mxu0 0
        %10393 = vmatpush1.bf16.msra.mxu0 0
        %10394 = vmatprep.subr.bf16.mxu0 0
        %10395 = vmatpush1.bf16.msra.mxu0 0
        %10396 = vmatprep.subr.bf16.mxu0 0
        %10397 = vmatpush1.bf16.msra.mxu0 0
        %10398 = vmatprep.subr.bf16.mxu0 0
        %10399 = vmatpush1.bf16.msra.mxu0 0
        %10400 = vmatprep.subr.bf16.mxu0 0
        %10401 = vmatpush1.bf16.msra.mxu0 0
        %10402 = vmatprep.subr.bf16.mxu0 0
        %10403 = vmatpush1.bf16.msra.mxu0 0
        %10404 = vmatprep.subr.bf16.mxu0 0
        %10405 = vmatpush1.bf16.msra.mxu0 0
        %10406 = vmatprep.subr.bf16.mxu0 0
        %10407 = vmatpush1.bf16.msra.mxu0 0
        %10408 = vmatprep.mubr.bf16.mxu0 0
        %10409 = vmatmul.mubr.bf16.gmra.mrb[0].mxu0 %v10374
        %v10410 = vpop.f32.mrb[0].mxu0
        %v10411 = vadd.f32 0.0, %v10410
        %v10412 = vpop.f32.mrb[0].mxu0
        %v10413 = vadd.f32 0.0, %v10412
        %v10414 = vpop.f32.mrb[0].mxu0
        %v10415 = vpop.f32.mrb[0].mxu0
        %10416 = vdwg.mxu0
        %v10417 = vadd.f32 %v10322, %v10411
        %v10418 = vadd.f32 %v10323, %v10413
        %v10419 = vld [vmem:[%s79] sm:$0x3]
        %v10421 = vlaneseq
        %v10422 = vshrl.u32 %v10421, 7
        %v10423 = vsub.s32 0, %v10422
        %v10424 = vrot.slane %v10419, %v10423
        %v10425 = vlaneseq
        %v10426 = vshrl.u32 %v10425, 7
        %v10427 = vsub.s32 1, %v10426
        %v10428 = vrot.slane %v10419, %v10427
        %v10431 = vadd.f32 %v10417, %v10424
        %v10432 = vadd.f32 %v10418, %v10428
        %v10433 = vmul.f32 %v10431, 0.01
        %v10434 = vmul.f32 %v10432, 0.01
        %v10435 = vmax.f32 %v10431, %v10433
        %v10436 = vmax.f32 %v10432, %v10434
        %v10437 = vpack.c.bf16 %v10435, %v10435
        %v10438 = vpack.c.bf16 %v10436, %v10436
        %v10439 = vld [vmem:[%s81] sm:$0xf]
        %v10440 = vld [vmem:[%s81 + $0x4] sm:$0xf]
        %v10441 = vld [vmem:[%s81 + $0x8] sm:$0xf]
        %v10442 = vld [vmem:[%s81 + $0xc] sm:$0xf]
        %v10443 = vld [vmem:[%s81 + $0x10] sm:$0xf]
        %v10444 = vld [vmem:[%s81 + $0x14] sm:$0xf]
        %v10445 = vld [vmem:[%s81 + $0x18] sm:$0xf]
        %v10446 = vld [vmem:[%s81 + $0x1c] sm:$0xf]
        %v10447 = vld [vmem:[%s81 + $0x20] sm:$0xf]
        %v10448 = vld [vmem:[%s81 + $0x24] sm:$0xf]
        %v10449 = vld [vmem:[%s81 + $0x28] sm:$0xf]
        %v10450 = vld [vmem:[%s81 + $0x2c] sm:$0xf]
        %v10451 = vld [vmem:[%s81 + $0x30] sm:$0xf]
        %v10452 = vld [vmem:[%s81 + $0x34] sm:$0xf]
        %v10453 = vld [vmem:[%s81 + $0x38] sm:$0xf]
        %v10454 = vld [vmem:[%s81 + $0x3c] sm:$0xf]
        %v10455 = vld [vmem:[%s81 + $0x40] sm:$0xf]
        %v10456 = vld [vmem:[%s81 + $0x44] sm:$0xf]
        %v10457 = vld [vmem:[%s81 + $0x48] sm:$0xf]
        %v10458 = vld [vmem:[%s81 + $0x4c] sm:$0xf]
        %v10459 = vld [vmem:[%s81 + $0x50] sm:$0xf]
        %v10460 = vld [vmem:[%s81 + $0x54] sm:$0xf]
        %v10461 = vld [vmem:[%s81 + $0x58] sm:$0xf]
        %v10462 = vld [vmem:[%s81 + $0x5c] sm:$0xf]
        %v10463 = vld [vmem:[%s81 + $0x60] sm:$0xf]
        %v10464 = vld [vmem:[%s81 + $0x64] sm:$0xf]
        %v10465 = vld [vmem:[%s81 + $0x68] sm:$0xf]
        %v10466 = vld [vmem:[%s81 + $0x6c] sm:$0xf]
        %v10467 = vld [vmem:[%s81 + $0x70] sm:$0xf]
        %v10468 = vld [vmem:[%s81 + $0x74] sm:$0xf]
        %v10469 = vld [vmem:[%s81 + $0x78] sm:$0xf]
        %v10470 = vld [vmem:[%s81 + $0x7c] sm:$0xf]
        %v10471 = vld [vmem:[%s83] sm:$0x1]
        %v10504 = vunpack.c.l.b16 %v10439
        %v10505 = vunpack.c.l.b16 %v10440
        %v10506 = vunpack.c.l.b16 %v10441
        %v10507 = vunpack.c.l.b16 %v10442
        %v10508 = vunpack.c.l.b16 %v10443
        %v10509 = vunpack.c.l.b16 %v10444
        %v10510 = vunpack.c.l.b16 %v10445
        %v10511 = vunpack.c.l.b16 %v10446
        %v10512 = vunpack.c.l.b16 %v10447
        %v10513 = vunpack.c.l.b16 %v10448
        %v10514 = vunpack.c.l.b16 %v10449
        %v10515 = vunpack.c.l.b16 %v10450
        %v10516 = vunpack.c.l.b16 %v10451
        %v10517 = vunpack.c.l.b16 %v10452
        %v10518 = vunpack.c.l.b16 %v10453
        %v10519 = vunpack.c.l.b16 %v10454
        %v10520 = vunpack.c.l.b16 %v10455
        %v10521 = vunpack.c.l.b16 %v10456
        %v10522 = vunpack.c.l.b16 %v10457
        %v10523 = vunpack.c.l.b16 %v10458
        %v10524 = vunpack.c.l.b16 %v10459
        %v10525 = vunpack.c.l.b16 %v10460
        %v10526 = vunpack.c.l.b16 %v10461
        %v10527 = vunpack.c.l.b16 %v10462
        %v10528 = vunpack.c.l.b16 %v10463
        %v10529 = vunpack.c.l.b16 %v10464
        %v10530 = vunpack.c.l.b16 %v10465
        %v10531 = vunpack.c.l.b16 %v10466
        %v10532 = vunpack.c.l.b16 %v10467
        %v10533 = vunpack.c.l.b16 %v10468
        %v10534 = vunpack.c.l.b16 %v10469
        %v10535 = vunpack.c.l.b16 %v10470
        %v10536 = vpack.c.b16 %v10505, %v10504
        %v10537 = vpack.c.b16 %v10507, %v10506
        %v10538 = vpack.c.b16 %v10509, %v10508
        %v10539 = vpack.c.b16 %v10511, %v10510
        %v10540 = vpack.c.b16 %v10513, %v10512
        %v10541 = vpack.c.b16 %v10515, %v10514
        %v10542 = vpack.c.b16 %v10517, %v10516
        %v10543 = vpack.c.b16 %v10519, %v10518
        %v10544 = vpack.c.b16 %v10521, %v10520
        %v10545 = vpack.c.b16 %v10523, %v10522
        %v10546 = vpack.c.b16 %v10525, %v10524
        %v10547 = vpack.c.b16 %v10527, %v10526
        %v10548 = vpack.c.b16 %v10529, %v10528
        %v10549 = vpack.c.b16 %v10531, %v10530
        %v10550 = vpack.c.b16 %v10533, %v10532
        %v10551 = vpack.c.b16 %v10535, %v10534
        %10568 = vmatprep.subr.bf16.mxu0 0
        %10569 = vmatpush1.bf16.msra.mxu0 %v10536
        %10570 = vmatprep.subr.bf16.mxu0 0
        %10571 = vmatpush1.bf16.msra.mxu0 %v10537
        %10572 = vmatprep.subr.bf16.mxu0 0
        %10573 = vmatpush1.bf16.msra.mxu0 %v10538
        %10574 = vmatprep.subr.bf16.mxu0 0
        %10575 = vmatpush1.bf16.msra.mxu0 %v10539
        %10576 = vmatprep.subr.bf16.mxu0 0
        %10577 = vmatpush1.bf16.msra.mxu0 %v10540
        %10578 = vmatprep.subr.bf16.mxu0 0
        %10579 = vmatpush1.bf16.msra.mxu0 %v10541
        %10580 = vmatprep.subr.bf16.mxu0 0
        %10581 = vmatpush1.bf16.msra.mxu0 %v10542
        %10582 = vmatprep.subr.bf16.mxu0 0
        %10583 = vmatpush1.bf16.msra.mxu0 %v10543
        %10584 = vmatprep.subr.bf16.mxu0 0
        %10585 = vmatpush1.bf16.msra.mxu0 %v10544
        %10586 = vmatprep.subr.bf16.mxu0 0
        %10587 = vmatpush1.bf16.msra.mxu0 %v10545
        %10588 = vmatprep.subr.bf16.mxu0 0
        %10589 = vmatpush1.bf16.msra.mxu0 %v10546
        %10590 = vmatprep.subr.bf16.mxu0 0
        %10591 = vmatpush1.bf16.msra.mxu0 %v10547
        %10592 = vmatprep.subr.bf16.mxu0 0
        %10593 = vmatpush1.bf16.msra.mxu0 %v10548
        %10594 = vmatprep.subr.bf16.mxu0 0
        %10595 = vmatpush1.bf16.msra.mxu0 %v10549
        %10596 = vmatprep.subr.bf16.mxu0 0
        %10597 = vmatpush1.bf16.msra.mxu0 %v10550
        %10598 = vmatprep.subr.bf16.mxu0 0
        %10599 = vmatpush1.bf16.msra.mxu0 %v10551
        %10600 = vmatprep.mubr.bf16.mxu0 %v10438
        %10601 = vmatmul.mubr.bf16.gmra.mrb[0].mxu0 %v10437
        %v10602 = vpop.f32.mrb[0].mxu0
        %v10603 = vadd.f32 %v10471, %v10602
        %v10604 = vpop.f32.mrb[0].mxu0
        %v10605 = vpop.f32.mrb[0].mxu0
        %v10606 = vpop.f32.mrb[0].mxu0
        %10607 = vdwg.mxu0
        %vm10608 = vcmask 516096
        %10609 = vst.msk [vmem:[%s1286] sm:$0x1] %vm10608, %v10603
        %s10610 = sand.u32 %s1006, 1
        %s10611 = scalar_lea.sflag [#allocation4], %s10610
        %s10612 = sand.u32 %s1006, 1
        %s10613 = scalar_lea.vmem [#allocation3], %s10612
        // Predicated region
        $region189: #{posenet_forward.1} parent=187 // pred_check
          %p10614 = pneg %p1016
        $region190: #{posenet_forward.1} parent=187 // pred_check_branch
          %10616 = sbr.rel (%p10614) target = $region192
        $region191: #{posenet_forward.1} parent=187 // pred_region
          %s10618 = ssub.s32 16, 16
          %10619 = vsyncadd %s10611, %s10618
          %s10620 = smul.addr %s101, 16
          %s10621 = scalar_lea.hbm %s85, %s10620
          %s10623 = sshll.u32 %s10613, 4
          %s10624 = int_to_ptr.vmem [resolvable:$true] %s10623
          %10626 = dma.vmem_to_hbm [thread:$0]  %s10624, 16, %s10621, %s10611
        $region192: #{posenet_forward.1} parent=187 // pred_fallthru
          _
      $region188: #{posenet_forward.1} parent=5 // pred_fallthru
        _
      %p10627 = scmp.le.s32.totalorder 2, %s96
      // Predicated region
      $region193: #{posenet_forward.1} parent=5 // pred_check
        %p10628 = pneg %p10627
      $region194: #{posenet_forward.1} parent=5 // pred_check_branch
        %10630 = sbr.rel (%p10628) target = $region196
      $region195: #{posenet_forward.1} parent=5 // pred_region
        %s10631 = ssub.s32 %s96, 2
        // Predicated region
        $region197: #{posenet_forward.1} parent=195 // pred_check
          %p10632 = pneg %p1022
        $region198: #{posenet_forward.1} parent=195 // pred_check_branch
          %10634 = sbr.rel (%p10632) target = $region200
        $region199: #{posenet_forward.1} parent=195 // pred_region
          %s10635 = sand.u32 %s1007, 1
          %s10636 = scalar_lea.sflag [#allocation4], %s10635
          %s10637 = sand.u32 %s1007, 1
          %s10638 = scalar_lea.vmem [#allocation3], %s10637
          %10639 = dma.done %s10636, 16
        $region200: #{posenet_forward.1} parent=195 // pred_fallthru
          _
      $region196: #{posenet_forward.1} parent=5 // pred_fallthru
        _
    $region6: #{posenet_forward.1} parent=1 // loop_footer
      %s100 = sadd.s32 1, %s96
    $region7: #{posenet_forward.1} parent=1 // loop_footer_branch
      %95 = sbr.rel target = $region3
    $region8: #{posenet_forward.1} parent=1 // loop_exit
      _
    %10640 = vsyncpa [#allocation4], 1
    %s10641 = scalar_lea.sflag [#allocation4], 1
    %10642 = vsyncpa %s10641, 1

</llo_original>
